<compile_context>
chip_gen: v7x
topology: tpu7x:2x2x1
jax: 0.10.0
libtpu: 0.0.40
codegen_flags: <defaults>
</compile_context>

<pallas_src>
import math

import jax
import jax.numpy as jnp
from jax.experimental import pallas as pl
from jax.experimental.pallas import tpu as pltpu

# ----------------------------- config (small) --------------------------------
BATCH = 2
SEQ = 8
HIDDEN = 32
HEADS = 4
HEAD_DIM = HIDDEN // HEADS
FFN = 64
VOCAB = 64
LAYERS = 2
OUT_FEATURES = 16
EPS = 1e-7                      # DeBERTa layer_norm_eps default
SCALE = 1.0 / math.sqrt(HEAD_DIM)
N_BACKBONES = 2                 # lud + english


# ------------------------------ Pallas kernels --------------------------------
def _backbone_kernel(emb_ref, bias_ref, eg_ref, eb_ref,
                     wqkv_ref, bqkv_ref, wo_ref, bo_ref,
                     g1_ref, be1_ref, w1_ref, b1_ref,
                     w2_ref, b2_ref, g2_ref, be2_ref,
                     pw_ref, pb_ref,
                     out_ref, ctx_ref):
    """Full backbone for ONE backbone (selected by the grid axis):
    embedding LN -> LAYERS x (fused-QKV attention + FFN) -> ContextPooler."""

    def layer_norm(x, g, b):
        mu = jnp.mean(x, axis=-1, keepdims=True)
        var = jnp.mean(jnp.square(x - mu), axis=-1, keepdims=True)
        return (x - mu) * jax.lax.rsqrt(var + EPS) * g + b

    # Embedding LayerNorm (pure LN: no zero-residual DMA'd from HBM).
    x = layer_norm(emb_ref[0].astype(jnp.float32), eg_ref[0], eb_ref[0])   # (B*S, D)

    for l in range(LAYERS):                       # tiny static layer count -> unroll
        # ---- fused QKV projection: one (B*S, D) x (D, 3D) matmul --------------
        qkv = jnp.dot(x, wqkv_ref[0, l], preferred_element_type=jnp.float32)
        qkv = qkv + bqkv_ref[0, l]                # (B*S, 3D)

        # ---- multi-head attention, heads split in-kernel (no XLA transposes) --
        for b in range(BATCH):
            r0, r1 = b * SEQ, (b + 1) * SEQ
            bias_b = bias_ref[0, b]               # (S, S) additive mask, loaded once/batch
            q_b = qkv[r0:r1, 0:HIDDEN] * SCALE    # scale folded into q
            k_b = qkv[r0:r1, HIDDEN:2 * HIDDEN]
            v_b = qkv[r0:r1, 2 * HIDDEN:3 * HIDDEN]
            for h in range(HEADS):
                c0, c1 = h * HEAD_DIM, (h + 1) * HEAD_DIM
                qh = q_b[:, c0:c1]
                kh = k_b[:, c0:c1]
                vh = v_b[:, c0:c1]
                s = jax.lax.dot_general(          # q @ k^T without explicit transpose
                    qh, kh, (((1,), (1,)), ((), ())),
                    preferred_element_type=jnp.float32) + bias_b
                m = jnp.max(s, axis=-1, keepdims=True)
                p = jnp.exp(s - m)
                inv = pl.reciprocal(jnp.sum(p, axis=-1, keepdims=True), approx=True)
                ctx_ref[r0:r1, c0:c1] = jnp.dot(
                    p * inv, vh, preferred_element_type=jnp.float32)
        ctx = ctx_ref[...]                        # (B*S, D) merged heads

        # ---- attention output projection + residual LayerNorm -----------------
        attn_out = jnp.dot(ctx, wo_ref[0, l],
                           preferred_element_type=jnp.float32) + bo_ref[0, l]
        x = layer_norm(attn_out + x, g1_ref[0, l], be1_ref[0, l])

        # ---- FFN ---------------------------------------------------------------
        ff = jax.nn.gelu(
            jnp.dot(x, w1_ref[0, l], preferred_element_type=jnp.float32) + b1_ref[0, l],
            approximate=True)
        ff = jnp.dot(ff, w2_ref[0, l], preferred_element_type=jnp.float32) + b2_ref[0, l]
        x = layer_norm(ff + x, g2_ref[0, l], be2_ref[0, l])

    # ---- ContextPooler: token 0 of each sequence -> dense -> gelu --------------
    tok0 = x.reshape(BATCH, SEQ, HIDDEN)[:, 0, :]                           # (B, D)
    pooled = jax.nn.gelu(
        jnp.dot(tok0, pw_ref[0], preferred_element_type=jnp.float32) + pb_ref[0],
        approximate=True)
    out_ref[0] = pooled.astype(out_ref.dtype)


def _tail_kernel(p_ref, dw_ref, db_ref, o_ref):
    """concat(pooled_lud, pooled_eng) -> Dropout(eval) -> Linear -> Tanh.
    The concat is folded into the matmul by splitting the weight rows."""
    y = (jnp.dot(p_ref[0], dw_ref[0:HIDDEN, :], preferred_element_type=jnp.float32)
         + jnp.dot(p_ref[1], dw_ref[HIDDEN:2 * HIDDEN, :],
                   preferred_element_type=jnp.float32)
         + db_ref[...])
    o_ref[...] = jnp.tanh(y).astype(o_ref.dtype)


# ------------------------------ kernel wrappers --------------------------------
def backbone_forward(emb, bias, p):
    """emb: (2, B*S, D) f32, bias: (2, B, S, S) f32 additive mask.
    Returns pooled features (2, B, D).  grid=(2,) = one step per backbone."""

    def im3(i):
        return (i, 0, 0)

    def im4(i):
        return (i, 0, 0, 0)

    in_specs = [
        pl.BlockSpec((1, BATCH * SEQ, HIDDEN), im3),        # emb
        pl.BlockSpec((1, BATCH, SEQ, SEQ), im4),            # attention bias
        pl.BlockSpec((1, 1, HIDDEN), im3),                  # emb_ln_g
        pl.BlockSpec((1, 1, HIDDEN), im3),                  # emb_ln_b
        pl.BlockSpec((1, LAYERS, HIDDEN, 3 * HIDDEN), im4),  # wqkv (fused)
        pl.BlockSpec((1, LAYERS, 1, 3 * HIDDEN), im4),       # bqkv
        pl.BlockSpec((1, LAYERS, HIDDEN, HIDDEN), im4),      # wo
        pl.BlockSpec((1, LAYERS, 1, HIDDEN), im4),           # bo
        pl.BlockSpec((1, LAYERS, 1, HIDDEN), im4),           # ln1_g
        pl.BlockSpec((1, LAYERS, 1, HIDDEN), im4),           # ln1_b
        pl.BlockSpec((1, LAYERS, HIDDEN, FFN), im4),         # w1
        pl.BlockSpec((1, LAYERS, 1, FFN), im4),              # b1
        pl.BlockSpec((1, LAYERS, FFN, HIDDEN), im4),         # w2
        pl.BlockSpec((1, LAYERS, 1, HIDDEN), im4),           # b2
        pl.BlockSpec((1, LAYERS, 1, HIDDEN), im4),           # ln2_g
        pl.BlockSpec((1, LAYERS, 1, HIDDEN), im4),           # ln2_b
        pl.BlockSpec((1, HIDDEN, HIDDEN), im3),              # pooler_w
        pl.BlockSpec((1, 1, HIDDEN), im3),                   # pooler_b
    ]
    return pl.pallas_call(
        _backbone_kernel,
        out_shape=jax.ShapeDtypeStruct((N_BACKBONES, BATCH, HIDDEN), jnp.float32),
        grid=(N_BACKBONES,),
        in_specs=in_specs,
        out_specs=pl.BlockSpec((1, BATCH, HIDDEN), im3),
        scratch_shapes=[pltpu.VMEM((BATCH * SEQ, HIDDEN), jnp.float32)],
        compiler_params=pltpu.CompilerParams(
            dimension_semantics=("parallel",)),       # v7x: one backbone per TensorCore
    )(emb, bias,
      p["emb_ln_g"], p["emb_ln_b"],
      p["wqkv"], p["bqkv"], p["wo"], p["bo"],
      p["ln1_g"], p["ln1_b"], p["w1"], p["b1"],
      p["w2"], p["b2"], p["ln2_g"], p["ln2_b"],
      p["pooler_w"], p["pooler_b"])


def downsample(pooled, dw, db):
    return pl.pallas_call(
        _tail_kernel,
        out_shape=jax.ShapeDtypeStruct((BATCH, OUT_FEATURES), jnp.float32),
        grid=(1,),
        in_specs=[
            pl.BlockSpec((N_BACKBONES, BATCH, HIDDEN), lambda i: (0, 0, 0)),
            pl.BlockSpec((2 * HIDDEN, OUT_FEATURES), lambda i: (0, 0)),
            pl.BlockSpec((1, OUT_FEATURES), lambda i: (0, 0)),
        ],
        out_specs=pl.BlockSpec((BATCH, OUT_FEATURES), lambda i: (0, 0)),
    )(pooled, dw, db)


# ------------------------------ model --------------------------------
def _embed(word_emb, pos_emb, ids, mask):
    # Embedding gather + position add + mask (plain JAX glue).
    B, S = ids.shape
    maskf = mask.astype(jnp.float32)
    emb = jnp.take(word_emb, ids, axis=0) + pos_emb[None, :S, :]
    emb = emb * maskf[..., None]
    bias = jnp.broadcast_to(((1.0 - maskf) * -1e9)[:, None, :], (B, S, S))
    return emb.reshape(B * S, HIDDEN), bias


def game_rules_encoder(params, lud_ids, lud_mask, eng_ids, eng_mask):
    lud_emb, lud_bias = _embed(params["lud_word_emb"], params["lud_pos_emb"],
                               lud_ids, lud_mask)
    eng_emb, eng_bias = _embed(params["eng_word_emb"], params["eng_pos_emb"],
                               eng_ids, eng_mask)
    emb = jnp.stack([lud_emb, eng_emb], axis=0)        # (2, B*S, D)
    bias = jnp.stack([lud_bias, eng_bias], axis=0)     # (2, B, S, S)

    pooled = backbone_forward(emb, bias, params)       # (2, B, D): [lud, eng] pooled
    # Downsampler: Dropout (eval=identity) -> Linear -> Tanh
    return downsample(pooled, params["down_w"], params["down_b"])


# ------------------------------ params --------------------------------
def _dense_init(key, fan_in, fan_out):
    return jax.random.normal(key, (fan_in, fan_out), jnp.float32) * 0.02


def _init_backbone(key):
    keys = jax.random.split(key, 3 + LAYERS)
    p = {
        "word_emb": jax.random.normal(keys[0], (VOCAB, HIDDEN), jnp.float32) * 0.02,
        "pos_emb": jax.random.normal(keys[1], (SEQ, HIDDEN), jnp.float32) * 0.02,
        "emb_ln_g": jnp.ones((1, HIDDEN), jnp.float32),
        "emb_ln_b": jnp.zeros((1, HIDDEN), jnp.float32),
        "pooler_w": _dense_init(keys[2], HIDDEN, HIDDEN),
        "pooler_b": jnp.zeros((1, HIDDEN), jnp.float32),
    }
    wqkv, bqkv, wo, bo, w1, b1, w2, b2 = [], [], [], [], [], [], [], []
    ln1_g, ln1_b, ln2_g, ln2_b = [], [], [], []
    for l in range(LAYERS):
        lk = jax.random.split(keys[3 + l], 6)
        wq = _dense_init(lk[0], HIDDEN, HIDDEN)
        wk = _dense_init(lk[1], HIDDEN, HIDDEN)
        wv = _dense_init(lk[2], HIDDEN, HIDDEN)
        wqkv.append(jnp.concatenate([wq, wk, wv], axis=1))      # fused (D, 3D)
        bqkv.append(jnp.zeros((1, 3 * HIDDEN), jnp.float32))
        wo.append(_dense_init(lk[3], HIDDEN, HIDDEN))
        bo.append(jnp.zeros((1, HIDDEN), jnp.float32))
        w1.append(_dense_init(lk[4], HIDDEN, FFN))
        b1.append(jnp.zeros((1, FFN), jnp.float32))
        w2.append(_dense_init(lk[5], FFN, HIDDEN))
        b2.append(jnp.zeros((1, HIDDEN), jnp.float32))
        ln1_g.append(jnp.ones((1, HIDDEN), jnp.float32))
        ln1_b.append(jnp.zeros((1, HIDDEN), jnp.float32))
        ln2_g.append(jnp.ones((1, HIDDEN), jnp.float32))
        ln2_b.append(jnp.zeros((1, HIDDEN), jnp.float32))
    p.update({
        "wqkv": jnp.stack(wqkv), "bqkv": jnp.stack(bqkv),
        "wo": jnp.stack(wo), "bo": jnp.stack(bo),
        "ln1_g": jnp.stack(ln1_g), "ln1_b": jnp.stack(ln1_b),
        "w1": jnp.stack(w1), "b1": jnp.stack(b1),
        "w2": jnp.stack(w2), "b2": jnp.stack(b2),
        "ln2_g": jnp.stack(ln2_g), "ln2_b": jnp.stack(ln2_b),
    })
    return p


def init_params(key):
    k_lud, k_eng, k_down = jax.random.split(key, 3)
    lud = _init_backbone(k_lud)
    eng = _init_backbone(k_eng)

    params = {
        "lud_word_emb": lud["word_emb"], "lud_pos_emb": lud["pos_emb"],
        "eng_word_emb": eng["word_emb"], "eng_pos_emb": eng["pos_emb"],
        "down_w": _dense_init(k_down, 2 * HIDDEN, OUT_FEATURES),
        "down_b": jnp.zeros((1, OUT_FEATURES), jnp.float32),
    }
    # Stack the two backbones' weights along a leading axis (picked by grid idx).
    for name in ("emb_ln_g", "emb_ln_b", "wqkv", "bqkv", "wo", "bo",
                 "ln1_g", "ln1_b", "w1", "b1", "w2", "b2",
                 "ln2_g", "ln2_b", "pooler_w", "pooler_b"):
        params[name] = jnp.stack([lud[name], eng[name]], axis=0)
    return params


# ------------------------------ main --------------------------------
if __name__ == "__main__":
    key = jax.random.PRNGKey(0)
    k_param, k_lud_ids, k_eng_ids = jax.random.split(key, 3)

    params = init_params(k_param)

    lud_ids = jax.random.randint(k_lud_ids, (BATCH, SEQ), 0, VOCAB, dtype=jnp.int32)
    eng_ids = jax.random.randint(k_eng_ids, (BATCH, SEQ), 0, VOCAB, dtype=jnp.int32)
    lud_mask = jnp.ones((BATCH, SEQ), dtype=jnp.int32)
    # exercise attention masking: last two english tokens are padding
    eng_mask = jnp.concatenate(
        [jnp.ones((BATCH, SEQ - 2), jnp.int32), jnp.zeros((BATCH, 2), jnp.int32)], axis=1)

    fwd = jax.jit(game_rules_encoder)
    out = fwd(params, lud_ids, lud_mask, eng_ids, eng_mask)
    out = jax.block_until_ready(out)

    assert out.shape == (BATCH, OUT_FEATURES), out.shape
    assert bool(jnp.all(jnp.isfinite(out)))
    assert bool(jnp.all(jnp.abs(out) <= 1.0))  # tanh output range
    print("KERNEL_OK")
</pallas_src>

<mosaic_0001>
module attributes {stable_mosaic.version = 11 : i64} {
  func.func @_tail_kernel(%arg0: i32, %arg1: memref<2x2x32xf32, #tpu.memory_space<vmem>>, %arg2: memref<64x16xf32, #tpu.memory_space<vmem>>, %arg3: memref<1x16xf32, #tpu.memory_space<vmem>>, %arg4: memref<2x16xf32, #tpu.memory_space<vmem>>) attributes {dimension_semantics = [#tpu.dimension_semantics<arbitrary>], iteration_bounds = array<i64: 1>, scalar_prefetch = 0 : i64, scratch_operands = 0 : i64, tpu.core_type = #tpu.core_type<tc>, window_params = [{pipeline_mode = #tpu.pipeline_mode<synchronous>, transform_indices = @transform_0, window_bounds = array<i64: 2, 2, 32>}, {pipeline_mode = #tpu.pipeline_mode<synchronous>, transform_indices = @transform_1, window_bounds = array<i64: 64, 16>}, {pipeline_mode = #tpu.pipeline_mode<synchronous>, transform_indices = @transform_2, window_bounds = array<i64: 1, 16>}, {pipeline_mode = #tpu.pipeline_mode<synchronous>, transform_indices = @transform_3, window_bounds = array<i64: 2, 16>}]} {
    %c0 = arith.constant 0 : index
    %c0_0 = arith.constant 0 : index
    %c0_1 = arith.constant 0 : index
    %0 = vector.load %arg1[%c0, %c0_0, %c0_1] : memref<2x2x32xf32, #tpu.memory_space<vmem>>, vector<1x2x32xf32>
    %1 = vector.shape_cast %0 : vector<1x2x32xf32> to vector<2x32xf32>
    %c0_2 = arith.constant 0 : index
    %c0_3 = arith.constant 0 : index
    %2 = vector.load %arg2[%c0_2, %c0_3] : memref<64x16xf32, #tpu.memory_space<vmem>>, vector<32x16xf32>
    %cst = arith.constant dense<0.000000e+00> : vector<2x16xf32>
    %3 = tpu.matmul %1, %2, %cst {dimension_numbers = #tpu.dot_dimension_numbers<[1], [0], [0], [1], [0, 0, 1, 1], [], []>} : vector<2x32xf32>, vector<32x16xf32>, vector<2x16xf32> -> vector<2x16xf32>
    %c1 = arith.constant 1 : index
    %c0_4 = arith.constant 0 : index
    %c0_5 = arith.constant 0 : index
    %4 = vector.load %arg1[%c1, %c0_4, %c0_5] : memref<2x2x32xf32, #tpu.memory_space<vmem>>, vector<1x2x32xf32>
    %5 = vector.shape_cast %4 : vector<1x2x32xf32> to vector<2x32xf32>
    %c32 = arith.constant 32 : index
    %c0_6 = arith.constant 0 : index
    %6 = vector.load %arg2[%c32, %c0_6] : memref<64x16xf32, #tpu.memory_space<vmem>>, vector<32x16xf32>
    %cst_7 = arith.constant dense<0.000000e+00> : vector<2x16xf32>
    %7 = tpu.matmul %5, %6, %cst_7 {dimension_numbers = #tpu.dot_dimension_numbers<[1], [0], [0], [1], [0, 0, 1, 1], [], []>} : vector<2x32xf32>, vector<32x16xf32>, vector<2x16xf32> -> vector<2x16xf32>
    %8 = arith.addf %3, %7 : vector<2x16xf32>
    %c0_8 = arith.constant 0 : index
    %c0_9 = arith.constant 0 : index
    %9 = vector.load %arg3[%c0_8, %c0_9] : memref<1x16xf32, #tpu.memory_space<vmem>>, vector<1x16xf32>
    %10 = vector.broadcast %9 : vector<1x16xf32> to vector<2x16xf32>
    %11 = arith.addf %8, %10 : vector<2x16xf32>
    %12 = math.tanh %11 : vector<2x16xf32>
    %c0_10 = arith.constant 0 : index
    %c0_11 = arith.constant 0 : index
    %13 = vector.load %arg4[%c0_10, %c0_11] : memref<2x16xf32, #tpu.memory_space<vmem>>, vector<2x16xf32>
    tpu.vector_store %arg4[%c0_10, %c0_11], %12 {strides = array<i32>} : memref<2x16xf32, #tpu.memory_space<vmem>>, vector<2x16xf32>,
    return
  }
  func.func @transform_0(%arg0: i32) -> (i32, i32, i32) {
    %c0_i32 = arith.constant 0 : i32
    %c0_i32_0 = arith.constant 0 : i32
    %c0_i32_1 = arith.constant 0 : i32
    %c0_i32_2 = arith.constant 0 : i32
    return %c0_i32, %c0_i32_0, %c0_i32_1 : i32, i32, i32
  }
  func.func @transform_1(%arg0: i32) -> (i32, i32) {
    %c0_i32 = arith.constant 0 : i32
    %c0_i32_0 = arith.constant 0 : i32
    %c0_i32_1 = arith.constant 0 : i32
    return %c0_i32, %c0_i32_0 : i32, i32
  }
  func.func @transform_2(%arg0: i32) -> (i32, i32) {
    %c0_i32 = arith.constant 0 : i32
    %c0_i32_0 = arith.constant 0 : i32
    %c0_i32_1 = arith.constant 0 : i32
    return %c0_i32, %c0_i32_0 : i32, i32
  }
  func.func @transform_3(%arg0: i32) -> (i32, i32) {
    %c0_i32 = arith.constant 0 : i32
    %c0_i32_0 = arith.constant 0 : i32
    %c0_i32_1 = arith.constant 0 : i32
    return %c0_i32, %c0_i32_0 : i32, i32
  }
}

module attributes {stable_mosaic.version = 11 : i64} {
  func.func @_backbone_kernel(%arg0: i32, %arg1: memref<1x16x32xf32, #tpu.memory_space<vmem>>, %arg2: memref<1x2x8x8xf32, #tpu.memory_space<vmem>>, %arg3: memref<1x1x32xf32, #tpu.memory_space<vmem>>, %arg4: memref<1x1x32xf32, #tpu.memory_space<vmem>>, %arg5: memref<1x2x32x96xf32, #tpu.memory_space<vmem>>, %arg6: memref<1x2x1x96xf32, #tpu.memory_space<vmem>>, %arg7: memref<1x2x32x32xf32, #tpu.memory_space<vmem>>, %arg8: memref<1x2x1x32xf32, #tpu.memory_space<vmem>>, %arg9: memref<1x2x1x32xf32, #tpu.memory_space<vmem>>, %arg10: memref<1x2x1x32xf32, #tpu.memory_space<vmem>>, %arg11: memref<1x2x32x64xf32, #tpu.memory_space<vmem>>, %arg12: memref<1x2x1x64xf32, #tpu.memory_space<vmem>>, %arg13: memref<1x2x64x32xf32, #tpu.memory_space<vmem>>, %arg14: memref<1x2x1x32xf32, #tpu.memory_space<vmem>>, %arg15: memref<1x2x1x32xf32, #tpu.memory_space<vmem>>, %arg16: memref<1x2x1x32xf32, #tpu.memory_space<vmem>>, %arg17: memref<1x32x32xf32, #tpu.memory_space<vmem>>, %arg18: memref<1x1x32xf32, #tpu.memory_space<vmem>>, %arg19: memref<1x2x32xf32, #tpu.memory_space<vmem>>, %arg20: memref<16x32xf32, #tpu.memory_space<vmem>>) attributes {dimension_semantics = [#tpu.dimension_semantics<parallel>], iteration_bounds = array<i64: 2>, scalar_prefetch = 0 : i64, scratch_operands = 1 : i64, tpu.core_type = #tpu.core_type<tc>, window_params = [{transform_indices = @transform_0, window_bounds = array<i64: 1, 16, 32>}, {transform_indices = @transform_1, window_bounds = array<i64: 1, 2, 8, 8>}, {transform_indices = @transform_2, window_bounds = array<i64: 1, 1, 32>}, {transform_indices = @transform_3, window_bounds = array<i64: 1, 1, 32>}, {transform_indices = @transform_4, window_bounds = array<i64: 1, 2, 32, 96>}, {transform_indices = @transform_5, window_bounds = array<i64: 1, 2, 1, 96>}, {transform_indices = @transform_6, window_bounds = array<i64: 1, 2, 32, 32>}, {transform_indices = @transform_7, window_bounds = array<i64: 1, 2, 1, 32>}, {transform_indices = @transform_8, window_bounds = array<i64: 1, 2, 1, 32>}, {transform_indices = @transform_9, window_bounds = array<i64: 1, 2, 1, 32>}, {transform_indices = @transform_10, window_bounds = array<i64: 1, 2, 32, 64>}, {transform_indices = @transform_11, window_bounds = array<i64: 1, 2, 1, 64>}, {transform_indices = @transform_12, window_bounds = array<i64: 1, 2, 64, 32>}, {transform_indices = @transform_13, window_bounds = array<i64: 1, 2, 1, 32>}, {transform_indices = @transform_14, window_bounds = array<i64: 1, 2, 1, 32>}, {transform_indices = @transform_15, window_bounds = array<i64: 1, 2, 1, 32>}, {transform_indices = @transform_16, window_bounds = array<i64: 1, 32, 32>}, {transform_indices = @transform_17, window_bounds = array<i64: 1, 1, 32>}, {transform_indices = @transform_18, window_bounds = array<i64: 1, 2, 32>}]} {
    %c0 = arith.constant 0 : index
    %c0_0 = arith.constant 0 : index
    %c0_1 = arith.constant 0 : index
    %0 = vector.load %arg1[%c0, %c0_0, %c0_1] : memref<1x16x32xf32, #tpu.memory_space<vmem>>, vector<1x16x32xf32>
    %1 = vector.shape_cast %0 : vector<1x16x32xf32> to vector<16x32xf32>
    %c0_2 = arith.constant 0 : index
    %c0_3 = arith.constant 0 : index
    %c0_4 = arith.constant 0 : index
    %2 = vector.load %arg3[%c0_2, %c0_3, %c0_4] : memref<1x1x32xf32, #tpu.memory_space<vmem>>, vector<1x1x32xf32>
    %3 = vector.shape_cast %2 : vector<1x1x32xf32> to vector<1x32xf32>
    %c0_5 = arith.constant 0 : index
    %c0_6 = arith.constant 0 : index
    %c0_7 = arith.constant 0 : index
    %4 = vector.load %arg4[%c0_5, %c0_6, %c0_7] : memref<1x1x32xf32, #tpu.memory_space<vmem>>, vector<1x1x32xf32>
    %5 = vector.shape_cast %4 : vector<1x1x32xf32> to vector<1x32xf32>
    %cst = arith.constant dense<0.000000e+00> : vector<16xf32>
    %6 = vector.multi_reduction <add>, %1, %cst [1] : vector<16x32xf32> to vector<16xf32>
    %7 = vector.shape_cast %6 : vector<16xf32> to vector<16x1xf32>
    %cst_8 = arith.constant 3.200000e+01 : f32
    %8 = vector.broadcast %cst_8 : f32 to vector<16x1xf32>
    %9 = arith.divf %7, %8 : vector<16x1xf32>
    %10 = vector.broadcast %9 : vector<16x1xf32> to vector<16x32xf32>
    %11 = arith.subf %1, %10 : vector<16x32xf32>
    %12 = arith.mulf %11, %11 : vector<16x32xf32>
    %cst_9 = arith.constant dense<0.000000e+00> : vector<16xf32>
    %13 = vector.multi_reduction <add>, %12, %cst_9 [1] : vector<16x32xf32> to vector<16xf32>
    %14 = vector.shape_cast %13 : vector<16xf32> to vector<16x1xf32>
    %cst_10 = arith.constant 3.200000e+01 : f32
    %15 = vector.broadcast %cst_10 : f32 to vector<16x1xf32>
    %16 = arith.divf %14, %15 : vector<16x1xf32>
    %17 = vector.broadcast %9 : vector<16x1xf32> to vector<16x32xf32>
    %18 = arith.subf %1, %17 : vector<16x32xf32>
    %cst_11 = arith.constant 1.000000e-07 : f32
    %19 = vector.broadcast %cst_11 : f32 to vector<16x1xf32>
    %20 = arith.addf %16, %19 : vector<16x1xf32>
    %21 = math.rsqrt %20 : vector<16x1xf32>
    %22 = vector.broadcast %21 : vector<16x1xf32> to vector<16x32xf32>
    %23 = arith.mulf %18, %22 : vector<16x32xf32>
    %24 = vector.broadcast %3 : vector<1x32xf32> to vector<16x32xf32>
    %25 = arith.mulf %23, %24 : vector<16x32xf32>
    %26 = vector.broadcast %5 : vector<1x32xf32> to vector<16x32xf32>
    %27 = arith.addf %25, %26 : vector<16x32xf32>
    %c0_12 = arith.constant 0 : index
    %c0_13 = arith.constant 0 : index
    %c0_14 = arith.constant 0 : index
    %c0_15 = arith.constant 0 : index
    %28 = vector.load %arg5[%c0_12, %c0_13, %c0_14, %c0_15] : memref<1x2x32x96xf32, #tpu.memory_space<vmem>>, vector<1x1x32x96xf32>
    %29 = vector.shape_cast %28 : vector<1x1x32x96xf32> to vector<32x96xf32>
    %cst_16 = arith.constant dense<0.000000e+00> : vector<16x96xf32>
    %30 = tpu.matmul %27, %29, %cst_16 {dimension_numbers = #tpu.dot_dimension_numbers<[1], [0], [0], [1], [0, 0, 1, 1], [], []>} : vector<16x32xf32>, vector<32x96xf32>, vector<16x96xf32> -> vector<16x96xf32>
    %c0_17 = arith.constant 0 : index
    %c0_18 = arith.constant 0 : index
    %c0_19 = arith.constant 0 : index
    %c0_20 = arith.constant 0 : index
    %31 = vector.load %arg6[%c0_17, %c0_18, %c0_19, %c0_20] : memref<1x2x1x96xf32, #tpu.memory_space<vmem>>, vector<1x1x1x96xf32>
    %32 = vector.shape_cast %31 : vector<1x1x1x96xf32> to vector<1x96xf32>
    %33 = vector.broadcast %32 : vector<1x96xf32> to vector<16x96xf32>
    %34 = arith.addf %30, %33 : vector<16x96xf32>
    %c0_21 = arith.constant 0 : index
    %c0_22 = arith.constant 0 : index
    %c0_23 = arith.constant 0 : index
    %c0_24 = arith.constant 0 : index
    %35 = vector.load %arg2[%c0_21, %c0_22, %c0_23, %c0_24] : memref<1x2x8x8xf32, #tpu.memory_space<vmem>>, vector<1x1x8x8xf32>
    %36 = vector.shape_cast %35 : vector<1x1x8x8xf32> to vector<8x8xf32>
    %37 = vector.extract_strided_slice %34 {offsets = [0, 0], sizes = [8, 32], strides = [1, 1]} : vector<16x96xf32> to vector<8x32xf32>
    %cst_25 = arith.constant 0.353553385 : f32
    %38 = vector.broadcast %cst_25 : f32 to vector<8x32xf32>
    %39 = arith.mulf %37, %38 : vector<8x32xf32>
    %40 = vector.extract_strided_slice %34 {offsets = [0, 32], sizes = [8, 32], strides = [1, 1]} : vector<16x96xf32> to vector<8x32xf32>
    %41 = vector.extract_strided_slice %34 {offsets = [0, 64], sizes = [8, 32], strides = [1, 1]} : vector<16x96xf32> to vector<8x32xf32>
    %42 = vector.extract_strided_slice %39 {offsets = [0, 0], sizes = [8, 8], strides = [1, 1]} : vector<8x32xf32> to vector<8x8xf32>
    %43 = vector.extract_strided_slice %40 {offsets = [0, 0], sizes = [8, 8], strides = [1, 1]} : vector<8x32xf32> to vector<8x8xf32>
    %44 = vector.extract_strided_slice %41 {offsets = [0, 0], sizes = [8, 8], strides = [1, 1]} : vector<8x32xf32> to vector<8x8xf32>
    %cst_26 = arith.constant dense<0.000000e+00> : vector<8x8xf32>
    %45 = tpu.matmul %42, %43, %cst_26 {dimension_numbers = #tpu.dot_dimension_numbers<[1], [1], [0], [0], [0, 0, 1, 0], [], []>} : vector<8x8xf32>, vector<8x8xf32>, vector<8x8xf32> -> vector<8x8xf32>
    %46 = arith.addf %45, %36 : vector<8x8xf32>
    %cst_27 = arith.constant dense<0xFF800000> : vector<8xf32>
    %47 = vector.multi_reduction <maximumf>, %46, %cst_27 [1] : vector<8x8xf32> to vector<8xf32>
    %48 = vector.shape_cast %47 : vector<8xf32> to vector<8x1xf32>
    %49 = vector.broadcast %48 : vector<8x1xf32> to vector<8x8xf32>
    %50 = arith.subf %46, %49 : vector<8x8xf32>
    %51 = math.exp %50 : vector<8x8xf32>
    %cst_28 = arith.constant dense<0.000000e+00> : vector<8xf32>
    %52 = vector.multi_reduction <add>, %51, %cst_28 [1] : vector<8x8xf32> to vector<8xf32>
    %53 = vector.shape_cast %52 : vector<8xf32> to vector<8x1xf32>
    %54 = tpu.reciprocal %53 {approx = true} : vector<8x1xf32> -> vector<8x1xf32>
    %55 = vector.broadcast %54 : vector<8x1xf32> to vector<8x8xf32>
    %56 = arith.mulf %51, %55 : vector<8x8xf32>
    %cst_29 = arith.constant dense<0.000000e+00> : vector<8x8xf32>
    %57 = tpu.matmul %56, %44, %cst_29 {dimension_numbers = #tpu.dot_dimension_numbers<[1], [0], [0], [1], [0, 0, 1, 1], [], []>} : vector<8x8xf32>, vector<8x8xf32>, vector<8x8xf32> -> vector<8x8xf32>
    %c0_30 = arith.constant 0 : index
    %c0_31 = arith.constant 0 : index
    %58 = vector.load %arg20[%c0_30, %c0_31] : memref<16x32xf32, #tpu.memory_space<vmem>>, vector<8x8xf32>
    tpu.vector_store %arg20[%c0_30, %c0_31], %57 {strides = array<i32>} : memref<16x32xf32, #tpu.memory_space<vmem>>, vector<8x8xf32>,
    %59 = vector.extract_strided_slice %39 {offsets = [0, 8], sizes = [8, 8], strides = [1, 1]} : vector<8x32xf32> to vector<8x8xf32>
    %60 = vector.extract_strided_slice %40 {offsets = [0, 8], sizes = [8, 8], strides = [1, 1]} : vector<8x32xf32> to vector<8x8xf32>
    %61 = vector.extract_strided_slice %41 {offsets = [0, 8], sizes = [8, 8], strides = [1, 1]} : vector<8x32xf32> to vector<8x8xf32>
    %cst_32 = arith.constant dense<0.000000e+00> : vector<8x8xf32>
    %62 = tpu.matmul %59, %60, %cst_32 {dimension_numbers = #tpu.dot_dimension_numbers<[1], [1], [0], [0], [0, 0, 1, 0], [], []>} : vector<8x8xf32>, vector<8x8xf32>, vector<8x8xf32> -> vector<8x8xf32>
    %63 = arith.addf %62, %36 : vector<8x8xf32>
    %cst_33 = arith.constant dense<0xFF800000> : vector<8xf32>
    %64 = vector.multi_reduction <maximumf>, %63, %cst_33 [1] : vector<8x8xf32> to vector<8xf32>
    %65 = vector.shape_cast %64 : vector<8xf32> to vector<8x1xf32>
    %66 = vector.broadcast %65 : vector<8x1xf32> to vector<8x8xf32>
    %67 = arith.subf %63, %66 : vector<8x8xf32>
    %68 = math.exp %67 : vector<8x8xf32>
    %cst_34 = arith.constant dense<0.000000e+00> : vector<8xf32>
    %69 = vector.multi_reduction <add>, %68, %cst_34 [1] : vector<8x8xf32> to vector<8xf32>
    %70 = vector.shape_cast %69 : vector<8xf32> to vector<8x1xf32>
    %71 = tpu.reciprocal %70 {approx = true} : vector<8x1xf32> -> vector<8x1xf32>
    %72 = vector.broadcast %71 : vector<8x1xf32> to vector<8x8xf32>
    %73 = arith.mulf %68, %72 : vector<8x8xf32>
    %cst_35 = arith.constant dense<0.000000e+00> : vector<8x8xf32>
    %74 = tpu.matmul %73, %61, %cst_35 {dimension_numbers = #tpu.dot_dimension_numbers<[1], [0], [0], [1], [0, 0, 1, 1], [], []>} : vector<8x8xf32>, vector<8x8xf32>, vector<8x8xf32> -> vector<8x8xf32>
    %c0_36 = arith.constant 0 : index
    %c8 = arith.constant 8 : index
    %75 = vector.load %arg20[%c0_36, %c8] : memref<16x32xf32, #tpu.memory_space<vmem>>, vector<8x8xf32>
    tpu.vector_store %arg20[%c0_36, %c8], %74 {strides = array<i32>} : memref<16x32xf32, #tpu.memory_space<vmem>>, vector<8x8xf32>,
    %76 = vector.extract_strided_slice %39 {offsets = [0, 16], sizes = [8, 8], strides = [1, 1]} : vector<8x32xf32> to vector<8x8xf32>
    %77 = vector.extract_strided_slice %40 {offsets = [0, 16], sizes = [8, 8], strides = [1, 1]} : vector<8x32xf32> to vector<8x8xf32>
    %78 = vector.extract_strided_slice %41 {offsets = [0, 16], sizes = [8, 8], strides = [1, 1]} : vector<8x32xf32> to vector<8x8xf32>
    %cst_37 = arith.constant dense<0.000000e+00> : vector<8x8xf32>
    %79 = tpu.matmul %76, %77, %cst_37 {dimension_numbers = #tpu.dot_dimension_numbers<[1], [1], [0], [0], [0, 0, 1, 0], [], []>} : vector<8x8xf32>, vector<8x8xf32>, vector<8x8xf32> -> vector<8x8xf32>
    %80 = arith.addf %79, %36 : vector<8x8xf32>
    %cst_38 = arith.constant dense<0xFF800000> : vector<8xf32>
    %81 = vector.multi_reduction <maximumf>, %80, %cst_38 [1] : vector<8x8xf32> to vector<8xf32>
    %82 = vector.shape_cast %81 : vector<8xf32> to vector<8x1xf32>
    %83 = vector.broadcast %82 : vector<8x1xf32> to vector<8x8xf32>
    %84 = arith.subf %80, %83 : vector<8x8xf32>
    %85 = math.exp %84 : vector<8x8xf32>
    %cst_39 = arith.constant dense<0.000000e+00> : vector<8xf32>
    %86 = vector.multi_reduction <add>, %85, %cst_39 [1] : vector<8x8xf32> to vector<8xf32>
    %87 = vector.shape_cast %86 : vector<8xf32> to vector<8x1xf32>
    %88 = tpu.reciprocal %87 {approx = true} : vector<8x1xf32> -> vector<8x1xf32>
    %89 = vector.broadcast %88 : vector<8x1xf32> to vector<8x8xf32>
    %90 = arith.mulf %85, %89 : vector<8x8xf32>
    %cst_40 = arith.constant dense<0.000000e+00> : vector<8x8xf32>
    %91 = tpu.matmul %90, %78, %cst_40 {dimension_numbers = #tpu.dot_dimension_numbers<[1], [0], [0], [1], [0, 0, 1, 1], [], []>} : vector<8x8xf32>, vector<8x8xf32>, vector<8x8xf32> -> vector<8x8xf32>
    %c0_41 = arith.constant 0 : index
    %c16 = arith.constant 16 : index
    %92 = vector.load %arg20[%c0_41, %c16] : memref<16x32xf32, #tpu.memory_space<vmem>>, vector<8x8xf32>
    tpu.vector_store %arg20[%c0_41, %c16], %91 {strides = array<i32>} : memref<16x32xf32, #tpu.memory_space<vmem>>, vector<8x8xf32>,
    %93 = vector.extract_strided_slice %39 {offsets = [0, 24], sizes = [8, 8], strides = [1, 1]} : vector<8x32xf32> to vector<8x8xf32>
    %94 = vector.extract_strided_slice %40 {offsets = [0, 24], sizes = [8, 8], strides = [1, 1]} : vector<8x32xf32> to vector<8x8xf32>
    %95 = vector.extract_strided_slice %41 {offsets = [0, 24], sizes = [8, 8], strides = [1, 1]} : vector<8x32xf32> to vector<8x8xf32>
    %cst_42 = arith.constant dense<0.000000e+00> : vector<8x8xf32>
    %96 = tpu.matmul %93, %94, %cst_42 {dimension_numbers = #tpu.dot_dimension_numbers<[1], [1], [0], [0], [0, 0, 1, 0], [], []>} : vector<8x8xf32>, vector<8x8xf32>, vector<8x8xf32> -> vector<8x8xf32>
    %97 = arith.addf %96, %36 : vector<8x8xf32>
    %cst_43 = arith.constant dense<0xFF800000> : vector<8xf32>
    %98 = vector.multi_reduction <maximumf>, %97, %cst_43 [1] : vector<8x8xf32> to vector<8xf32>
    %99 = vector.shape_cast %98 : vector<8xf32> to vector<8x1xf32>
    %100 = vector.broadcast %99 : vector<8x1xf32> to vector<8x8xf32>
    %101 = arith.subf %97, %100 : vector<8x8xf32>
    %102 = math.exp %101 : vector<8x8xf32>
    %cst_44 = arith.constant dense<0.000000e+00> : vector<8xf32>
    %103 = vector.multi_reduction <add>, %102, %cst_44 [1] : vector<8x8xf32> to vector<8xf32>
    %104 = vector.shape_cast %103 : vector<8xf32> to vector<8x1xf32>
    %105 = tpu.reciprocal %104 {approx = true} : vector<8x1xf32> -> vector<8x1xf32>
    %106 = vector.broadcast %105 : vector<8x1xf32> to vector<8x8xf32>
    %107 = arith.mulf %102, %106 : vector<8x8xf32>
    %cst_45 = arith.constant dense<0.000000e+00> : vector<8x8xf32>
    %108 = tpu.matmul %107, %95, %cst_45 {dimension_numbers = #tpu.dot_dimension_numbers<[1], [0], [0], [1], [0, 0, 1, 1], [], []>} : vector<8x8xf32>, vector<8x8xf32>, vector<8x8xf32> -> vector<8x8xf32>
    %c0_46 = arith.constant 0 : index
    %c24 = arith.constant 24 : index
    %109 = vector.load %arg20[%c0_46, %c24] : memref<16x32xf32, #tpu.memory_space<vmem>>, vector<8x8xf32>
    tpu.vector_store %arg20[%c0_46, %c24], %108 {strides = array<i32>} : memref<16x32xf32, #tpu.memory_space<vmem>>, vector<8x8xf32>,
    %c0_47 = arith.constant 0 : index
    %c1 = arith.constant 1 : index
    %c0_48 = arith.constant 0 : index
    %c0_49 = arith.constant 0 : index
    %110 = vector.load %arg2[%c0_47, %c1, %c0_48, %c0_49] : memref<1x2x8x8xf32, #tpu.memory_space<vmem>>, vector<1x1x8x8xf32>
    %111 = vector.shape_cast %110 : vector<1x1x8x8xf32> to vector<8x8xf32>
    %112 = vector.extract_strided_slice %34 {offsets = [8, 0], sizes = [8, 32], strides = [1, 1]} : vector<16x96xf32> to vector<8x32xf32>
    %cst_50 = arith.constant 0.353553385 : f32
    %113 = vector.broadcast %cst_50 : f32 to vector<8x32xf32>
    %114 = arith.mulf %112, %113 : vector<8x32xf32>
    %115 = vector.extract_strided_slice %34 {offsets = [8, 32], sizes = [8, 32], strides = [1, 1]} : vector<16x96xf32> to vector<8x32xf32>
    %116 = vector.extract_strided_slice %34 {offsets = [8, 64], sizes = [8, 32], strides = [1, 1]} : vector<16x96xf32> to vector<8x32xf32>
    %117 = vector.extract_strided_slice %114 {offsets = [0, 0], sizes = [8, 8], strides = [1, 1]} : vector<8x32xf32> to vector<8x8xf32>
    %118 = vector.extract_strided_slice %115 {offsets = [0, 0], sizes = [8, 8], strides = [1, 1]} : vector<8x32xf32> to vector<8x8xf32>
    %119 = vector.extract_strided_slice %116 {offsets = [0, 0], sizes = [8, 8], strides = [1, 1]} : vector<8x32xf32> to vector<8x8xf32>
    %cst_51 = arith.constant dense<0.000000e+00> : vector<8x8xf32>
    %120 = tpu.matmul %117, %118, %cst_51 {dimension_numbers = #tpu.dot_dimension_numbers<[1], [1], [0], [0], [0, 0, 1, 0], [], []>} : vector<8x8xf32>, vector<8x8xf32>, vector<8x8xf32> -> vector<8x8xf32>
    %121 = arith.addf %120, %111 : vector<8x8xf32>
    %cst_52 = arith.constant dense<0xFF800000> : vector<8xf32>
    %122 = vector.multi_reduction <maximumf>, %121, %cst_52 [1] : vector<8x8xf32> to vector<8xf32>
    %123 = vector.shape_cast %122 : vector<8xf32> to vector<8x1xf32>
    %124 = vector.broadcast %123 : vector<8x1xf32> to vector<8x8xf32>
    %125 = arith.subf %121, %124 : vector<8x8xf32>
    %126 = math.exp %125 : vector<8x8xf32>
    %cst_53 = arith.constant dense<0.000000e+00> : vector<8xf32>
    %127 = vector.multi_reduction <add>, %126, %cst_53 [1] : vector<8x8xf32> to vector<8xf32>
    %128 = vector.shape_cast %127 : vector<8xf32> to vector<8x1xf32>
    %129 = tpu.reciprocal %128 {approx = true} : vector<8x1xf32> -> vector<8x1xf32>
    %130 = vector.broadcast %129 : vector<8x1xf32> to vector<8x8xf32>
    %131 = arith.mulf %126, %130 : vector<8x8xf32>
    %cst_54 = arith.constant dense<0.000000e+00> : vector<8x8xf32>
    %132 = tpu.matmul %131, %119, %cst_54 {dimension_numbers = #tpu.dot_dimension_numbers<[1], [0], [0], [1], [0, 0, 1, 1], [], []>} : vector<8x8xf32>, vector<8x8xf32>, vector<8x8xf32> -> vector<8x8xf32>
    %c8_55 = arith.constant 8 : index
    %c0_56 = arith.constant 0 : index
    %133 = vector.load %arg20[%c8_55, %c0_56] : memref<16x32xf32, #tpu.memory_space<vmem>>, vector<8x8xf32>
    tpu.vector_store %arg20[%c8_55, %c0_56], %132 {strides = array<i32>} : memref<16x32xf32, #tpu.memory_space<vmem>>, vector<8x8xf32>,
    %134 = vector.extract_strided_slice %114 {offsets = [0, 8], sizes = [8, 8], strides = [1, 1]} : vector<8x32xf32> to vector<8x8xf32>
    %135 = vector.extract_strided_slice %115 {offsets = [0, 8], sizes = [8, 8], strides = [1, 1]} : vector<8x32xf32> to vector<8x8xf32>
    %136 = vector.extract_strided_slice %116 {offsets = [0, 8], sizes = [8, 8], strides = [1, 1]} : vector<8x32xf32> to vector<8x8xf32>
    %cst_57 = arith.constant dense<0.000000e+00> : vector<8x8xf32>
    %137 = tpu.matmul %134, %135, %cst_57 {dimension_numbers = #tpu.dot_dimension_numbers<[1], [1], [0], [0], [0, 0, 1, 0], [], []>} : vector<8x8xf32>, vector<8x8xf32>, vector<8x8xf32> -> vector<8x8xf32>
    %138 = arith.addf %137, %111 : vector<8x8xf32>
    %cst_58 = arith.constant dense<0xFF800000> : vector<8xf32>
    %139 = vector.multi_reduction <maximumf>, %138, %cst_58 [1] : vector<8x8xf32> to vector<8xf32>
    %140 = vector.shape_cast %139 : vector<8xf32> to vector<8x1xf32>
    %141 = vector.broadcast %140 : vector<8x1xf32> to vector<8x8xf32>
    %142 = arith.subf %138, %141 : vector<8x8xf32>
    %143 = math.exp %142 : vector<8x8xf32>
    %cst_59 = arith.constant dense<0.000000e+00> : vector<8xf32>
    %144 = vector.multi_reduction <add>, %143, %cst_59 [1] : vector<8x8xf32> to vector<8xf32>
    %145 = vector.shape_cast %144 : vector<8xf32> to vector<8x1xf32>
    %146 = tpu.reciprocal %145 {approx = true} : vector<8x1xf32> -> vector<8x1xf32>
    %147 = vector.broadcast %146 : vector<8x1xf32> to vector<8x8xf32>
    %148 = arith.mulf %143, %147 : vector<8x8xf32>
    %cst_60 = arith.constant dense<0.000000e+00> : vector<8x8xf32>
    %149 = tpu.matmul %148, %136, %cst_60 {dimension_numbers = #tpu.dot_dimension_numbers<[1], [0], [0], [1], [0, 0, 1, 1], [], []>} : vector<8x8xf32>, vector<8x8xf32>, vector<8x8xf32> -> vector<8x8xf32>
    %c8_61 = arith.constant 8 : index
    %c8_62 = arith.constant 8 : index
    %150 = vector.load %arg20[%c8_61, %c8_62] : memref<16x32xf32, #tpu.memory_space<vmem>>, vector<8x8xf32>
    tpu.vector_store %arg20[%c8_61, %c8_62], %149 {strides = array<i32>} : memref<16x32xf32, #tpu.memory_space<vmem>>, vector<8x8xf32>,
    %151 = vector.extract_strided_slice %114 {offsets = [0, 16], sizes = [8, 8], strides = [1, 1]} : vector<8x32xf32> to vector<8x8xf32>
    %152 = vector.extract_strided_slice %115 {offsets = [0, 16], sizes = [8, 8], strides = [1, 1]} : vector<8x32xf32> to vector<8x8xf32>
    %153 = vector.extract_strided_slice %116 {offsets = [0, 16], sizes = [8, 8], strides = [1, 1]} : vector<8x32xf32> to vector<8x8xf32>
    %cst_63 = arith.constant dense<0.000000e+00> : vector<8x8xf32>
    %154 = tpu.matmul %151, %152, %cst_63 {dimension_numbers = #tpu.dot_dimension_numbers<[1], [1], [0], [0], [0, 0, 1, 0], [], []>} : vector<8x8xf32>, vector<8x8xf32>, vector<8x8xf32> -> vector<8x8xf32>
    %155 = arith.addf %154, %111 : vector<8x8xf32>
    %cst_64 = arith.constant dense<0xFF800000> : vector<8xf32>
    %156 = vector.multi_reduction <maximumf>, %155, %cst_64 [1] : vector<8x8xf32> to vector<8xf32>
    %157 = vector.shape_cast %156 : vector<8xf32> to vector<8x1xf32>
    %158 = vector.broadcast %157 : vector<8x1xf32> to vector<8x8xf32>
    %159 = arith.subf %155, %158 : vector<8x8xf32>
    %160 = math.exp %159 : vector<8x8xf32>
    %cst_65 = arith.constant dense<0.000000e+00> : vector<8xf32>
    %161 = vector.multi_reduction <add>, %160, %cst_65 [1] : vector<8x8xf32> to vector<8xf32>
    %162 = vector.shape_cast %161 : vector<8xf32> to vector<8x1xf32>
    %163 = tpu.reciprocal %162 {approx = true} : vector<8x1xf32> -> vector<8x1xf32>
    %164 = vector.broadcast %163 : vector<8x1xf32> to vector<8x8xf32>
    %165 = arith.mulf %160, %164 : vector<8x8xf32>
    %cst_66 = arith.constant dense<0.000000e+00> : vector<8x8xf32>
    %166 = tpu.matmul %165, %153, %cst_66 {dimension_numbers = #tpu.dot_dimension_numbers<[1], [0], [0], [1], [0, 0, 1, 1], [], []>} : vector<8x8xf32>, vector<8x8xf32>, vector<8x8xf32> -> vector<8x8xf32>
    %c8_67 = arith.constant 8 : index
    %c16_68 = arith.constant 16 : index
    %167 = vector.load %arg20[%c8_67, %c16_68] : memref<16x32xf32, #tpu.memory_space<vmem>>, vector<8x8xf32>
    tpu.vector_store %arg20[%c8_67, %c16_68], %166 {strides = array<i32>} : memref<16x32xf32, #tpu.memory_space<vmem>>, vector<8x8xf32>,
    %168 = vector.extract_strided_slice %114 {offsets = [0, 24], sizes = [8, 8], strides = [1, 1]} : vector<8x32xf32> to vector<8x8xf32>
    %169 = vector.extract_strided_slice %115 {offsets = [0, 24], sizes = [8, 8], strides = [1, 1]} : vector<8x32xf32> to vector<8x8xf32>
    %170 = vector.extract_strided_slice %116 {offsets = [0, 24], sizes = [8, 8], strides = [1, 1]} : vector<8x32xf32> to vector<8x8xf32>
    %cst_69 = arith.constant dense<0.000000e+00> : vector<8x8xf32>
    %171 = tpu.matmul %168, %169, %cst_69 {dimension_numbers = #tpu.dot_dimension_numbers<[1], [1], [0], [0], [0, 0, 1, 0], [], []>} : vector<8x8xf32>, vector<8x8xf32>, vector<8x8xf32> -> vector<8x8xf32>
    %172 = arith.addf %171, %111 : vector<8x8xf32>
    %cst_70 = arith.constant dense<0xFF800000> : vector<8xf32>
    %173 = vector.multi_reduction <maximumf>, %172, %cst_70 [1] : vector<8x8xf32> to vector<8xf32>
    %174 = vector.shape_cast %173 : vector<8xf32> to vector<8x1xf32>
    %175 = vector.broadcast %174 : vector<8x1xf32> to vector<8x8xf32>
    %176 = arith.subf %172, %175 : vector<8x8xf32>
    %177 = math.exp %176 : vector<8x8xf32>
    %cst_71 = arith.constant dense<0.000000e+00> : vector<8xf32>
    %178 = vector.multi_reduction <add>, %177, %cst_71 [1] : vector<8x8xf32> to vector<8xf32>
    %179 = vector.shape_cast %178 : vector<8xf32> to vector<8x1xf32>
    %180 = tpu.reciprocal %179 {approx = true} : vector<8x1xf32> -> vector<8x1xf32>
    %181 = vector.broadcast %180 : vector<8x1xf32> to vector<8x8xf32>
    %182 = arith.mulf %177, %181 : vector<8x8xf32>
    %cst_72 = arith.constant dense<0.000000e+00> : vector<8x8xf32>
    %183 = tpu.matmul %182, %170, %cst_72 {dimension_numbers = #tpu.dot_dimension_numbers<[1], [0], [0], [1], [0, 0, 1, 1], [], []>} : vector<8x8xf32>, vector<8x8xf32>, vector<8x8xf32> -> vector<8x8xf32>
    %c8_73 = arith.constant 8 : index
    %c24_74 = arith.constant 24 : index
    %184 = vector.load %arg20[%c8_73, %c24_74] : memref<16x32xf32, #tpu.memory_space<vmem>>, vector<8x8xf32>
    tpu.vector_store %arg20[%c8_73, %c24_74], %183 {strides = array<i32>} : memref<16x32xf32, #tpu.memory_space<vmem>>, vector<8x8xf32>,
    %c0_75 = arith.constant 0 : index
    %c0_76 = arith.constant 0 : index
    %185 = vector.load %arg20[%c0_75, %c0_76] : memref<16x32xf32, #tpu.memory_space<vmem>>, vector<16x32xf32>
    %c0_77 = arith.constant 0 : index
    %c0_78 = arith.constant 0 : index
    %c0_79 = arith.constant 0 : index
    %c0_80 = arith.constant 0 : index
    %186 = vector.load %arg7[%c0_77, %c0_78, %c0_79, %c0_80] : memref<1x2x32x32xf32, #tpu.memory_space<vmem>>, vector<1x1x32x32xf32>
    %187 = vector.shape_cast %186 : vector<1x1x32x32xf32> to vector<32x32xf32>
    %cst_81 = arith.constant dense<0.000000e+00> : vector<16x32xf32>
    %188 = tpu.matmul %185, %187, %cst_81 {dimension_numbers = #tpu.dot_dimension_numbers<[1], [0], [0], [1], [0, 0, 1, 1], [], []>} : vector<16x32xf32>, vector<32x32xf32>, vector<16x32xf32> -> vector<16x32xf32>
    %c0_82 = arith.constant 0 : index
    %c0_83 = arith.constant 0 : index
    %c0_84 = arith.constant 0 : index
    %c0_85 = arith.constant 0 : index
    %189 = vector.load %arg8[%c0_82, %c0_83, %c0_84, %c0_85] : memref<1x2x1x32xf32, #tpu.memory_space<vmem>>, vector<1x1x1x32xf32>
    %190 = vector.shape_cast %189 : vector<1x1x1x32xf32> to vector<1x32xf32>
    %191 = vector.broadcast %190 : vector<1x32xf32> to vector<16x32xf32>
    %192 = arith.addf %188, %191 : vector<16x32xf32>
    %193 = arith.addf %192, %27 : vector<16x32xf32>
    %c0_86 = arith.constant 0 : index
    %c0_87 = arith.constant 0 : index
    %c0_88 = arith.constant 0 : index
    %c0_89 = arith.constant 0 : index
    %194 = vector.load %arg9[%c0_86, %c0_87, %c0_88, %c0_89] : memref<1x2x1x32xf32, #tpu.memory_space<vmem>>, vector<1x1x1x32xf32>
    %195 = vector.shape_cast %194 : vector<1x1x1x32xf32> to vector<1x32xf32>
    %c0_90 = arith.constant 0 : index
    %c0_91 = arith.constant 0 : index
    %c0_92 = arith.constant 0 : index
    %c0_93 = arith.constant 0 : index
    %196 = vector.load %arg10[%c0_90, %c0_91, %c0_92, %c0_93] : memref<1x2x1x32xf32, #tpu.memory_space<vmem>>, vector<1x1x1x32xf32>
    %197 = vector.shape_cast %196 : vector<1x1x1x32xf32> to vector<1x32xf32>
    %cst_94 = arith.constant dense<0.000000e+00> : vector<16xf32>
    %198 = vector.multi_reduction <add>, %193, %cst_94 [1] : vector<16x32xf32> to vector<16xf32>
    %199 = vector.shape_cast %198 : vector<16xf32> to vector<16x1xf32>
    %cst_95 = arith.constant 3.200000e+01 : f32
    %200 = vector.broadcast %cst_95 : f32 to vector<16x1xf32>
    %201 = arith.divf %199, %200 : vector<16x1xf32>
    %202 = vector.broadcast %201 : vector<16x1xf32> to vector<16x32xf32>
    %203 = arith.subf %193, %202 : vector<16x32xf32>
    %204 = arith.mulf %203, %203 : vector<16x32xf32>
    %cst_96 = arith.constant dense<0.000000e+00> : vector<16xf32>
    %205 = vector.multi_reduction <add>, %204, %cst_96 [1] : vector<16x32xf32> to vector<16xf32>
    %206 = vector.shape_cast %205 : vector<16xf32> to vector<16x1xf32>
    %cst_97 = arith.constant 3.200000e+01 : f32
    %207 = vector.broadcast %cst_97 : f32 to vector<16x1xf32>
    %208 = arith.divf %206, %207 : vector<16x1xf32>
    %209 = vector.broadcast %201 : vector<16x1xf32> to vector<16x32xf32>
    %210 = arith.subf %193, %209 : vector<16x32xf32>
    %cst_98 = arith.constant 1.000000e-07 : f32
    %211 = vector.broadcast %cst_98 : f32 to vector<16x1xf32>
    %212 = arith.addf %208, %211 : vector<16x1xf32>
    %213 = math.rsqrt %212 : vector<16x1xf32>
    %214 = vector.broadcast %213 : vector<16x1xf32> to vector<16x32xf32>
    %215 = arith.mulf %210, %214 : vector<16x32xf32>
    %216 = vector.broadcast %195 : vector<1x32xf32> to vector<16x32xf32>
    %217 = arith.mulf %215, %216 : vector<16x32xf32>
    %218 = vector.broadcast %197 : vector<1x32xf32> to vector<16x32xf32>
    %219 = arith.addf %217, %218 : vector<16x32xf32>
    %c0_99 = arith.constant 0 : index
    %c0_100 = arith.constant 0 : index
    %c0_101 = arith.constant 0 : index
    %c0_102 = arith.constant 0 : index
    %220 = vector.load %arg11[%c0_99, %c0_100, %c0_101, %c0_102] : memref<1x2x32x64xf32, #tpu.memory_space<vmem>>, vector<1x1x32x64xf32>
    %221 = vector.shape_cast %220 : vector<1x1x32x64xf32> to vector<32x64xf32>
    %cst_103 = arith.constant dense<0.000000e+00> : vector<16x64xf32>
    %222 = tpu.matmul %219, %221, %cst_103 {dimension_numbers = #tpu.dot_dimension_numbers<[1], [0], [0], [1], [0, 0, 1, 1], [], []>} : vector<16x32xf32>, vector<32x64xf32>, vector<16x64xf32> -> vector<16x64xf32>
    %c0_104 = arith.constant 0 : index
    %c0_105 = arith.constant 0 : index
    %c0_106 = arith.constant 0 : index
    %c0_107 = arith.constant 0 : index
    %223 = vector.load %arg12[%c0_104, %c0_105, %c0_106, %c0_107] : memref<1x2x1x64xf32, #tpu.memory_space<vmem>>, vector<1x1x1x64xf32>
    %224 = vector.shape_cast %223 : vector<1x1x1x64xf32> to vector<1x64xf32>
    %225 = vector.broadcast %224 : vector<1x64xf32> to vector<16x64xf32>
    %226 = arith.addf %222, %225 : vector<16x64xf32>
    %227 = arith.mulf %226, %226 : vector<16x64xf32>
    %228 = arith.mulf %226, %227 : vector<16x64xf32>
    %cst_108 = arith.constant 4.471500e-02 : f32
    %229 = vector.broadcast %cst_108 : f32 to vector<16x64xf32>
    %230 = arith.mulf %229, %228 : vector<16x64xf32>
    %231 = arith.addf %226, %230 : vector<16x64xf32>
    %cst_109 = arith.constant 0.797884583 : f32
    %232 = vector.broadcast %cst_109 : f32 to vector<16x64xf32>
    %233 = arith.mulf %232, %231 : vector<16x64xf32>
    %234 = math.tanh %233 : vector<16x64xf32>
    %cst_110 = arith.constant 1.000000e+00 : f32
    %235 = vector.broadcast %cst_110 : f32 to vector<16x64xf32>
    %236 = arith.addf %235, %234 : vector<16x64xf32>
    %cst_111 = arith.constant 5.000000e-01 : f32
    %237 = vector.broadcast %cst_111 : f32 to vector<16x64xf32>
    %238 = arith.mulf %237, %236 : vector<16x64xf32>
    %239 = arith.mulf %226, %238 : vector<16x64xf32>
    %c0_112 = arith.constant 0 : index
    %c0_113 = arith.constant 0 : index
    %c0_114 = arith.constant 0 : index
    %c0_115 = arith.constant 0 : index
    %240 = vector.load %arg13[%c0_112, %c0_113, %c0_114, %c0_115] : memref<1x2x64x32xf32, #tpu.memory_space<vmem>>, vector<1x1x64x32xf32>
    %241 = vector.shape_cast %240 : vector<1x1x64x32xf32> to vector<64x32xf32>
    %cst_116 = arith.constant dense<0.000000e+00> : vector<16x32xf32>
    %242 = tpu.matmul %239, %241, %cst_116 {dimension_numbers = #tpu.dot_dimension_numbers<[1], [0], [0], [1], [0, 0, 1, 1], [], []>} : vector<16x64xf32>, vector<64x32xf32>, vector<16x32xf32> -> vector<16x32xf32>
    %c0_117 = arith.constant 0 : index
    %c0_118 = arith.constant 0 : index
    %c0_119 = arith.constant 0 : index
    %c0_120 = arith.constant 0 : index
    %243 = vector.load %arg14[%c0_117, %c0_118, %c0_119, %c0_120] : memref<1x2x1x32xf32, #tpu.memory_space<vmem>>, vector<1x1x1x32xf32>
    %244 = vector.shape_cast %243 : vector<1x1x1x32xf32> to vector<1x32xf32>
    %245 = vector.broadcast %244 : vector<1x32xf32> to vector<16x32xf32>
    %246 = arith.addf %242, %245 : vector<16x32xf32>
    %247 = arith.addf %246, %219 : vector<16x32xf32>
    %c0_121 = arith.constant 0 : index
    %c0_122 = arith.constant 0 : index
    %c0_123 = arith.constant 0 : index
    %c0_124 = arith.constant 0 : index
    %248 = vector.load %arg15[%c0_121, %c0_122, %c0_123, %c0_124] : memref<1x2x1x32xf32, #tpu.memory_space<vmem>>, vector<1x1x1x32xf32>
    %249 = vector.shape_cast %248 : vector<1x1x1x32xf32> to vector<1x32xf32>
    %c0_125 = arith.constant 0 : index
    %c0_126 = arith.constant 0 : index
    %c0_127 = arith.constant 0 : index
    %c0_128 = arith.constant 0 : index
    %250 = vector.load %arg16[%c0_125, %c0_126, %c0_127, %c0_128] : memref<1x2x1x32xf32, #tpu.memory_space<vmem>>, vector<1x1x1x32xf32>
    %251 = vector.shape_cast %250 : vector<1x1x1x32xf32> to vector<1x32xf32>
    %cst_129 = arith.constant dense<0.000000e+00> : vector<16xf32>
    %252 = vector.multi_reduction <add>, %247, %cst_129 [1] : vector<16x32xf32> to vector<16xf32>
    %253 = vector.shape_cast %252 : vector<16xf32> to vector<16x1xf32>
    %cst_130 = arith.constant 3.200000e+01 : f32
    %254 = vector.broadcast %cst_130 : f32 to vector<16x1xf32>
    %255 = arith.divf %253, %254 : vector<16x1xf32>
    %256 = vector.broadcast %255 : vector<16x1xf32> to vector<16x32xf32>
    %257 = arith.subf %247, %256 : vector<16x32xf32>
    %258 = arith.mulf %257, %257 : vector<16x32xf32>
    %cst_131 = arith.constant dense<0.000000e+00> : vector<16xf32>
    %259 = vector.multi_reduction <add>, %258, %cst_131 [1] : vector<16x32xf32> to vector<16xf32>
    %260 = vector.shape_cast %259 : vector<16xf32> to vector<16x1xf32>
    %cst_132 = arith.constant 3.200000e+01 : f32
    %261 = vector.broadcast %cst_132 : f32 to vector<16x1xf32>
    %262 = arith.divf %260, %261 : vector<16x1xf32>
    %263 = vector.broadcast %255 : vector<16x1xf32> to vector<16x32xf32>
    %264 = arith.subf %247, %263 : vector<16x32xf32>
    %cst_133 = arith.constant 1.000000e-07 : f32
    %265 = vector.broadcast %cst_133 : f32 to vector<16x1xf32>
    %266 = arith.addf %262, %265 : vector<16x1xf32>
    %267 = math.rsqrt %266 : vector<16x1xf32>
    %268 = vector.broadcast %267 : vector<16x1xf32> to vector<16x32xf32>
    %269 = arith.mulf %264, %268 : vector<16x32xf32>
    %270 = vector.broadcast %249 : vector<1x32xf32> to vector<16x32xf32>
    %271 = arith.mulf %269, %270 : vector<16x32xf32>
    %272 = vector.broadcast %251 : vector<1x32xf32> to vector<16x32xf32>
    %273 = arith.addf %271, %272 : vector<16x32xf32>
    %c0_134 = arith.constant 0 : index
    %c1_135 = arith.constant 1 : index
    %c0_136 = arith.constant 0 : index
    %c0_137 = arith.constant 0 : index
    %274 = vector.load %arg5[%c0_134, %c1_135, %c0_136, %c0_137] : memref<1x2x32x96xf32, #tpu.memory_space<vmem>>, vector<1x1x32x96xf32>
    %275 = vector.shape_cast %274 : vector<1x1x32x96xf32> to vector<32x96xf32>
    %cst_138 = arith.constant dense<0.000000e+00> : vector<16x96xf32>
    %276 = tpu.matmul %273, %275, %cst_138 {dimension_numbers = #tpu.dot_dimension_numbers<[1], [0], [0], [1], [0, 0, 1, 1], [], []>} : vector<16x32xf32>, vector<32x96xf32>, vector<16x96xf32> -> vector<16x96xf32>
    %c0_139 = arith.constant 0 : index
    %c1_140 = arith.constant 1 : index
    %c0_141 = arith.constant 0 : index
    %c0_142 = arith.constant 0 : index
    %277 = vector.load %arg6[%c0_139, %c1_140, %c0_141, %c0_142] : memref<1x2x1x96xf32, #tpu.memory_space<vmem>>, vector<1x1x1x96xf32>
    %278 = vector.shape_cast %277 : vector<1x1x1x96xf32> to vector<1x96xf32>
    %279 = vector.broadcast %278 : vector<1x96xf32> to vector<16x96xf32>
    %280 = arith.addf %276, %279 : vector<16x96xf32>
    %c0_143 = arith.constant 0 : index
    %c0_144 = arith.constant 0 : index
    %c0_145 = arith.constant 0 : index
    %c0_146 = arith.constant 0 : index
    %281 = vector.load %arg2[%c0_143, %c0_144, %c0_145, %c0_146] : memref<1x2x8x8xf32, #tpu.memory_space<vmem>>, vector<1x1x8x8xf32>
    %282 = vector.shape_cast %281 : vector<1x1x8x8xf32> to vector<8x8xf32>
    %283 = vector.extract_strided_slice %280 {offsets = [0, 0], sizes = [8, 32], strides = [1, 1]} : vector<16x96xf32> to vector<8x32xf32>
    %cst_147 = arith.constant 0.353553385 : f32
    %284 = vector.broadcast %cst_147 : f32 to vector<8x32xf32>
    %285 = arith.mulf %283, %284 : vector<8x32xf32>
    %286 = vector.extract_strided_slice %280 {offsets = [0, 32], sizes = [8, 32], strides = [1, 1]} : vector<16x96xf32> to vector<8x32xf32>
    %287 = vector.extract_strided_slice %280 {offsets = [0, 64], sizes = [8, 32], strides = [1, 1]} : vector<16x96xf32> to vector<8x32xf32>
    %288 = vector.extract_strided_slice %285 {offsets = [0, 0], sizes = [8, 8], strides = [1, 1]} : vector<8x32xf32> to vector<8x8xf32>
    %289 = vector.extract_strided_slice %286 {offsets = [0, 0], sizes = [8, 8], strides = [1, 1]} : vector<8x32xf32> to vector<8x8xf32>
    %290 = vector.extract_strided_slice %287 {offsets = [0, 0], sizes = [8, 8], strides = [1, 1]} : vector<8x32xf32> to vector<8x8xf32>
    %cst_148 = arith.constant dense<0.000000e+00> : vector<8x8xf32>
    %291 = tpu.matmul %288, %289, %cst_148 {dimension_numbers = #tpu.dot_dimension_numbers<[1], [1], [0], [0], [0, 0, 1, 0], [], []>} : vector<8x8xf32>, vector<8x8xf32>, vector<8x8xf32> -> vector<8x8xf32>
    %292 = arith.addf %291, %282 : vector<8x8xf32>
    %cst_149 = arith.constant dense<0xFF800000> : vector<8xf32>
    %293 = vector.multi_reduction <maximumf>, %292, %cst_149 [1] : vector<8x8xf32> to vector<8xf32>
    %294 = vector.shape_cast %293 : vector<8xf32> to vector<8x1xf32>
    %295 = vector.broadcast %294 : vector<8x1xf32> to vector<8x8xf32>
    %296 = arith.subf %292, %295 : vector<8x8xf32>
    %297 = math.exp %296 : vector<8x8xf32>
    %cst_150 = arith.constant dense<0.000000e+00> : vector<8xf32>
    %298 = vector.multi_reduction <add>, %297, %cst_150 [1] : vector<8x8xf32> to vector<8xf32>
    %299 = vector.shape_cast %298 : vector<8xf32> to vector<8x1xf32>
    %300 = tpu.reciprocal %299 {approx = true} : vector<8x1xf32> -> vector<8x1xf32>
    %301 = vector.broadcast %300 : vector<8x1xf32> to vector<8x8xf32>
    %302 = arith.mulf %297, %301 : vector<8x8xf32>
    %cst_151 = arith.constant dense<0.000000e+00> : vector<8x8xf32>
    %303 = tpu.matmul %302, %290, %cst_151 {dimension_numbers = #tpu.dot_dimension_numbers<[1], [0], [0], [1], [0, 0, 1, 1], [], []>} : vector<8x8xf32>, vector<8x8xf32>, vector<8x8xf32> -> vector<8x8xf32>
    %c0_152 = arith.constant 0 : index
    %c0_153 = arith.constant 0 : index
    %304 = vector.load %arg20[%c0_152, %c0_153] : memref<16x32xf32, #tpu.memory_space<vmem>>, vector<8x8xf32>
    tpu.vector_store %arg20[%c0_152, %c0_153], %303 {strides = array<i32>} : memref<16x32xf32, #tpu.memory_space<vmem>>, vector<8x8xf32>,
    %305 = vector.extract_strided_slice %285 {offsets = [0, 8], sizes = [8, 8], strides = [1, 1]} : vector<8x32xf32> to vector<8x8xf32>
    %306 = vector.extract_strided_slice %286 {offsets = [0, 8], sizes = [8, 8], strides = [1, 1]} : vector<8x32xf32> to vector<8x8xf32>
    %307 = vector.extract_strided_slice %287 {offsets = [0, 8], sizes = [8, 8], strides = [1, 1]} : vector<8x32xf32> to vector<8x8xf32>
    %cst_154 = arith.constant dense<0.000000e+00> : vector<8x8xf32>
    %308 = tpu.matmul %305, %306, %cst_154 {dimension_numbers = #tpu.dot_dimension_numbers<[1], [1], [0], [0], [0, 0, 1, 0], [], []>} : vector<8x8xf32>, vector<8x8xf32>, vector<8x8xf32> -> vector<8x8xf32>
    %309 = arith.addf %308, %282 : vector<8x8xf32>
    %cst_155 = arith.constant dense<0xFF800000> : vector<8xf32>
    %310 = vector.multi_reduction <maximumf>, %309, %cst_155 [1] : vector<8x8xf32> to vector<8xf32>
    %311 = vector.shape_cast %310 : vector<8xf32> to vector<8x1xf32>
    %312 = vector.broadcast %311 : vector<8x1xf32> to vector<8x8xf32>
    %313 = arith.subf %309, %312 : vector<8x8xf32>
    %314 = math.exp %313 : vector<8x8xf32>
    %cst_156 = arith.constant dense<0.000000e+00> : vector<8xf32>
    %315 = vector.multi_reduction <add>, %314, %cst_156 [1] : vector<8x8xf32> to vector<8xf32>
    %316 = vector.shape_cast %315 : vector<8xf32> to vector<8x1xf32>
    %317 = tpu.reciprocal %316 {approx = true} : vector<8x1xf32> -> vector<8x1xf32>
    %318 = vector.broadcast %317 : vector<8x1xf32> to vector<8x8xf32>
    %319 = arith.mulf %314, %318 : vector<8x8xf32>
    %cst_157 = arith.constant dense<0.000000e+00> : vector<8x8xf32>
    %320 = tpu.matmul %319, %307, %cst_157 {dimension_numbers = #tpu.dot_dimension_numbers<[1], [0], [0], [1], [0, 0, 1, 1], [], []>} : vector<8x8xf32>, vector<8x8xf32>, vector<8x8xf32> -> vector<8x8xf32>
    %c0_158 = arith.constant 0 : index
    %c8_159 = arith.constant 8 : index
    %321 = vector.load %arg20[%c0_158, %c8_159] : memref<16x32xf32, #tpu.memory_space<vmem>>, vector<8x8xf32>
    tpu.vector_store %arg20[%c0_158, %c8_159], %320 {strides = array<i32>} : memref<16x32xf32, #tpu.memory_space<vmem>>, vector<8x8xf32>,
    %322 = vector.extract_strided_slice %285 {offsets = [0, 16], sizes = [8, 8], strides = [1, 1]} : vector<8x32xf32> to vector<8x8xf32>
    %323 = vector.extract_strided_slice %286 {offsets = [0, 16], sizes = [8, 8], strides = [1, 1]} : vector<8x32xf32> to vector<8x8xf32>
    %324 = vector.extract_strided_slice %287 {offsets = [0, 16], sizes = [8, 8], strides = [1, 1]} : vector<8x32xf32> to vector<8x8xf32>
    %cst_160 = arith.constant dense<0.000000e+00> : vector<8x8xf32>
    %325 = tpu.matmul %322, %323, %cst_160 {dimension_numbers = #tpu.dot_dimension_numbers<[1], [1], [0], [0], [0, 0, 1, 0], [], []>} : vector<8x8xf32>, vector<8x8xf32>, vector<8x8xf32> -> vector<8x8xf32>
    %326 = arith.addf %325, %282 : vector<8x8xf32>
    %cst_161 = arith.constant dense<0xFF800000> : vector<8xf32>
    %327 = vector.multi_reduction <maximumf>, %326, %cst_161 [1] : vector<8x8xf32> to vector<8xf32>
    %328 = vector.shape_cast %327 : vector<8xf32> to vector<8x1xf32>
    %329 = vector.broadcast %328 : vector<8x1xf32> to vector<8x8xf32>
    %330 = arith.subf %326, %329 : vector<8x8xf32>
    %331 = math.exp %330 : vector<8x8xf32>
    %cst_162 = arith.constant dense<0.000000e+00> : vector<8xf32>
    %332 = vector.multi_reduction <add>, %331, %cst_162 [1] : vector<8x8xf32> to vector<8xf32>
    %333 = vector.shape_cast %332 : vector<8xf32> to vector<8x1xf32>
    %334 = tpu.reciprocal %333 {approx = true} : vector<8x1xf32> -> vector<8x1xf32>
    %335 = vector.broadcast %334 : vector<8x1xf32> to vector<8x8xf32>
    %336 = arith.mulf %331, %335 : vector<8x8xf32>
    %cst_163 = arith.constant dense<0.000000e+00> : vector<8x8xf32>
    %337 = tpu.matmul %336, %324, %cst_163 {dimension_numbers = #tpu.dot_dimension_numbers<[1], [0], [0], [1], [0, 0, 1, 1], [], []>} : vector<8x8xf32>, vector<8x8xf32>, vector<8x8xf32> -> vector<8x8xf32>
    %c0_164 = arith.constant 0 : index
    %c16_165 = arith.constant 16 : index
    %338 = vector.load %arg20[%c0_164, %c16_165] : memref<16x32xf32, #tpu.memory_space<vmem>>, vector<8x8xf32>
    tpu.vector_store %arg20[%c0_164, %c16_165], %337 {strides = array<i32>} : memref<16x32xf32, #tpu.memory_space<vmem>>, vector<8x8xf32>,
    %339 = vector.extract_strided_slice %285 {offsets = [0, 24], sizes = [8, 8], strides = [1, 1]} : vector<8x32xf32> to vector<8x8xf32>
    %340 = vector.extract_strided_slice %286 {offsets = [0, 24], sizes = [8, 8], strides = [1, 1]} : vector<8x32xf32> to vector<8x8xf32>
    %341 = vector.extract_strided_slice %287 {offsets = [0, 24], sizes = [8, 8], strides = [1, 1]} : vector<8x32xf32> to vector<8x8xf32>
    %cst_166 = arith.constant dense<0.000000e+00> : vector<8x8xf32>
    %342 = tpu.matmul %339, %340, %cst_166 {dimension_numbers = #tpu.dot_dimension_numbers<[1], [1], [0], [0], [0, 0, 1, 0], [], []>} : vector<8x8xf32>, vector<8x8xf32>, vector<8x8xf32> -> vector<8x8xf32>
    %343 = arith.addf %342, %282 : vector<8x8xf32>
    %cst_167 = arith.constant dense<0xFF800000> : vector<8xf32>
    %344 = vector.multi_reduction <maximumf>, %343, %cst_167 [1] : vector<8x8xf32> to vector<8xf32>
    %345 = vector.shape_cast %344 : vector<8xf32> to vector<8x1xf32>
    %346 = vector.broadcast %345 : vector<8x1xf32> to vector<8x8xf32>
    %347 = arith.subf %343, %346 : vector<8x8xf32>
    %348 = math.exp %347 : vector<8x8xf32>
    %cst_168 = arith.constant dense<0.000000e+00> : vector<8xf32>
    %349 = vector.multi_reduction <add>, %348, %cst_168 [1] : vector<8x8xf32> to vector<8xf32>
    %350 = vector.shape_cast %349 : vector<8xf32> to vector<8x1xf32>
    %351 = tpu.reciprocal %350 {approx = true} : vector<8x1xf32> -> vector<8x1xf32>
    %352 = vector.broadcast %351 : vector<8x1xf32> to vector<8x8xf32>
    %353 = arith.mulf %348, %352 : vector<8x8xf32>
    %cst_169 = arith.constant dense<0.000000e+00> : vector<8x8xf32>
    %354 = tpu.matmul %353, %341, %cst_169 {dimension_numbers = #tpu.dot_dimension_numbers<[1], [0], [0], [1], [0, 0, 1, 1], [], []>} : vector<8x8xf32>, vector<8x8xf32>, vector<8x8xf32> -> vector<8x8xf32>
    %c0_170 = arith.constant 0 : index
    %c24_171 = arith.constant 24 : index
    %355 = vector.load %arg20[%c0_170, %c24_171] : memref<16x32xf32, #tpu.memory_space<vmem>>, vector<8x8xf32>
    tpu.vector_store %arg20[%c0_170, %c24_171], %354 {strides = array<i32>} : memref<16x32xf32, #tpu.memory_space<vmem>>, vector<8x8xf32>,
    %c0_172 = arith.constant 0 : index
    %c1_173 = arith.constant 1 : index
    %c0_174 = arith.constant 0 : index
    %c0_175 = arith.constant 0 : index
    %356 = vector.load %arg2[%c0_172, %c1_173, %c0_174, %c0_175] : memref<1x2x8x8xf32, #tpu.memory_space<vmem>>, vector<1x1x8x8xf32>
    %357 = vector.shape_cast %356 : vector<1x1x8x8xf32> to vector<8x8xf32>
    %358 = vector.extract_strided_slice %280 {offsets = [8, 0], sizes = [8, 32], strides = [1, 1]} : vector<16x96xf32> to vector<8x32xf32>
    %cst_176 = arith.constant 0.353553385 : f32
    %359 = vector.broadcast %cst_176 : f32 to vector<8x32xf32>
    %360 = arith.mulf %358, %359 : vector<8x32xf32>
    %361 = vector.extract_strided_slice %280 {offsets = [8, 32], sizes = [8, 32], strides = [1, 1]} : vector<16x96xf32> to vector<8x32xf32>
    %362 = vector.extract_strided_slice %280 {offsets = [8, 64], sizes = [8, 32], strides = [1, 1]} : vector<16x96xf32> to vector<8x32xf32>
    %363 = vector.extract_strided_slice %360 {offsets = [0, 0], sizes = [8, 8], strides = [1, 1]} : vector<8x32xf32> to vector<8x8xf32>
    %364 = vector.extract_strided_slice %361 {offsets = [0, 0], sizes = [8, 8], strides = [1, 1]} : vector<8x32xf32> to vector<8x8xf32>
    %365 = vector.extract_strided_slice %362 {offsets = [0, 0], sizes = [8, 8], strides = [1, 1]} : vector<8x32xf32> to vector<8x8xf32>
    %cst_177 = arith.constant dense<0.000000e+00> : vector<8x8xf32>
    %366 = tpu.matmul %363, %364, %cst_177 {dimension_numbers = #tpu.dot_dimension_numbers<[1], [1], [0], [0], [0, 0, 1, 0], [], []>} : vector<8x8xf32>, vector<8x8xf32>, vector<8x8xf32> -> vector<8x8xf32>
    %367 = arith.addf %366, %357 : vector<8x8xf32>
    %cst_178 = arith.constant dense<0xFF800000> : vector<8xf32>
    %368 = vector.multi_reduction <maximumf>, %367, %cst_178 [1] : vector<8x8xf32> to vector<8xf32>
    %369 = vector.shape_cast %368 : vector<8xf32> to vector<8x1xf32>
    %370 = vector.broadcast %369 : vector<8x1xf32> to vector<8x8xf32>
    %371 = arith.subf %367, %370 : vector<8x8xf32>
    %372 = math.exp %371 : vector<8x8xf32>
    %cst_179 = arith.constant dense<0.000000e+00> : vector<8xf32>
    %373 = vector.multi_reduction <add>, %372, %cst_179 [1] : vector<8x8xf32> to vector<8xf32>
    %374 = vector.shape_cast %373 : vector<8xf32> to vector<8x1xf32>
    %375 = tpu.reciprocal %374 {approx = true} : vector<8x1xf32> -> vector<8x1xf32>
    %376 = vector.broadcast %375 : vector<8x1xf32> to vector<8x8xf32>
    %377 = arith.mulf %372, %376 : vector<8x8xf32>
    %cst_180 = arith.constant dense<0.000000e+00> : vector<8x8xf32>
    %378 = tpu.matmul %377, %365, %cst_180 {dimension_numbers = #tpu.dot_dimension_numbers<[1], [0], [0], [1], [0, 0, 1, 1], [], []>} : vector<8x8xf32>, vector<8x8xf32>, vector<8x8xf32> -> vector<8x8xf32>
    %c8_181 = arith.constant 8 : index
    %c0_182 = arith.constant 0 : index
    %379 = vector.load %arg20[%c8_181, %c0_182] : memref<16x32xf32, #tpu.memory_space<vmem>>, vector<8x8xf32>
    tpu.vector_store %arg20[%c8_181, %c0_182], %378 {strides = array<i32>} : memref<16x32xf32, #tpu.memory_space<vmem>>, vector<8x8xf32>,
    %380 = vector.extract_strided_slice %360 {offsets = [0, 8], sizes = [8, 8], strides = [1, 1]} : vector<8x32xf32> to vector<8x8xf32>
    %381 = vector.extract_strided_slice %361 {offsets = [0, 8], sizes = [8, 8], strides = [1, 1]} : vector<8x32xf32> to vector<8x8xf32>
    %382 = vector.extract_strided_slice %362 {offsets = [0, 8], sizes = [8, 8], strides = [1, 1]} : vector<8x32xf32> to vector<8x8xf32>
    %cst_183 = arith.constant dense<0.000000e+00> : vector<8x8xf32>
    %383 = tpu.matmul %380, %381, %cst_183 {dimension_numbers = #tpu.dot_dimension_numbers<[1], [1], [0], [0], [0, 0, 1, 0], [], []>} : vector<8x8xf32>, vector<8x8xf32>, vector<8x8xf32> -> vector<8x8xf32>
    %384 = arith.addf %383, %357 : vector<8x8xf32>
    %cst_184 = arith.constant dense<0xFF800000> : vector<8xf32>
    %385 = vector.multi_reduction <maximumf>, %384, %cst_184 [1] : vector<8x8xf32> to vector<8xf32>
    %386 = vector.shape_cast %385 : vector<8xf32> to vector<8x1xf32>
    %387 = vector.broadcast %386 : vector<8x1xf32> to vector<8x8xf32>
    %388 = arith.subf %384, %387 : vector<8x8xf32>
    %389 = math.exp %388 : vector<8x8xf32>
    %cst_185 = arith.constant dense<0.000000e+00> : vector<8xf32>
    %390 = vector.multi_reduction <add>, %389, %cst_185 [1] : vector<8x8xf32> to vector<8xf32>
    %391 = vector.shape_cast %390 : vector<8xf32> to vector<8x1xf32>
    %392 = tpu.reciprocal %391 {approx = true} : vector<8x1xf32> -> vector<8x1xf32>
    %393 = vector.broadcast %392 : vector<8x1xf32> to vector<8x8xf32>
    %394 = arith.mulf %389, %393 : vector<8x8xf32>
    %cst_186 = arith.constant dense<0.000000e+00> : vector<8x8xf32>
    %395 = tpu.matmul %394, %382, %cst_186 {dimension_numbers = #tpu.dot_dimension_numbers<[1], [0], [0], [1], [0, 0, 1, 1], [], []>} : vector<8x8xf32>, vector<8x8xf32>, vector<8x8xf32> -> vector<8x8xf32>
    %c8_187 = arith.constant 8 : index
    %c8_188 = arith.constant 8 : index
    %396 = vector.load %arg20[%c8_187, %c8_188] : memref<16x32xf32, #tpu.memory_space<vmem>>, vector<8x8xf32>
    tpu.vector_store %arg20[%c8_187, %c8_188], %395 {strides = array<i32>} : memref<16x32xf32, #tpu.memory_space<vmem>>, vector<8x8xf32>,
    %397 = vector.extract_strided_slice %360 {offsets = [0, 16], sizes = [8, 8], strides = [1, 1]} : vector<8x32xf32> to vector<8x8xf32>
    %398 = vector.extract_strided_slice %361 {offsets = [0, 16], sizes = [8, 8], strides = [1, 1]} : vector<8x32xf32> to vector<8x8xf32>
    %399 = vector.extract_strided_slice %362 {offsets = [0, 16], sizes = [8, 8], strides = [1, 1]} : vector<8x32xf32> to vector<8x8xf32>
    %cst_189 = arith.constant dense<0.000000e+00> : vector<8x8xf32>
    %400 = tpu.matmul %397, %398, %cst_189 {dimension_numbers = #tpu.dot_dimension_numbers<[1], [1], [0], [0], [0, 0, 1, 0], [], []>} : vector<8x8xf32>, vector<8x8xf32>, vector<8x8xf32> -> vector<8x8xf32>
    %401 = arith.addf %400, %357 : vector<8x8xf32>
    %cst_190 = arith.constant dense<0xFF800000> : vector<8xf32>
    %402 = vector.multi_reduction <maximumf>, %401, %cst_190 [1] : vector<8x8xf32> to vector<8xf32>
    %403 = vector.shape_cast %402 : vector<8xf32> to vector<8x1xf32>
    %404 = vector.broadcast %403 : vector<8x1xf32> to vector<8x8xf32>
    %405 = arith.subf %401, %404 : vector<8x8xf32>
    %406 = math.exp %405 : vector<8x8xf32>
    %cst_191 = arith.constant dense<0.000000e+00> : vector<8xf32>
    %407 = vector.multi_reduction <add>, %406, %cst_191 [1] : vector<8x8xf32> to vector<8xf32>
    %408 = vector.shape_cast %407 : vector<8xf32> to vector<8x1xf32>
    %409 = tpu.reciprocal %408 {approx = true} : vector<8x1xf32> -> vector<8x1xf32>
    %410 = vector.broadcast %409 : vector<8x1xf32> to vector<8x8xf32>
    %411 = arith.mulf %406, %410 : vector<8x8xf32>
    %cst_192 = arith.constant dense<0.000000e+00> : vector<8x8xf32>
    %412 = tpu.matmul %411, %399, %cst_192 {dimension_numbers = #tpu.dot_dimension_numbers<[1], [0], [0], [1], [0, 0, 1, 1], [], []>} : vector<8x8xf32>, vector<8x8xf32>, vector<8x8xf32> -> vector<8x8xf32>
    %c8_193 = arith.constant 8 : index
    %c16_194 = arith.constant 16 : index
    %413 = vector.load %arg20[%c8_193, %c16_194] : memref<16x32xf32, #tpu.memory_space<vmem>>, vector<8x8xf32>
    tpu.vector_store %arg20[%c8_193, %c16_194], %412 {strides = array<i32>} : memref<16x32xf32, #tpu.memory_space<vmem>>, vector<8x8xf32>,
    %414 = vector.extract_strided_slice %360 {offsets = [0, 24], sizes = [8, 8], strides = [1, 1]} : vector<8x32xf32> to vector<8x8xf32>
    %415 = vector.extract_strided_slice %361 {offsets = [0, 24], sizes = [8, 8], strides = [1, 1]} : vector<8x32xf32> to vector<8x8xf32>
    %416 = vector.extract_strided_slice %362 {offsets = [0, 24], sizes = [8, 8], strides = [1, 1]} : vector<8x32xf32> to vector<8x8xf32>
    %cst_195 = arith.constant dense<0.000000e+00> : vector<8x8xf32>
    %417 = tpu.matmul %414, %415, %cst_195 {dimension_numbers = #tpu.dot_dimension_numbers<[1], [1], [0], [0], [0, 0, 1, 0], [], []>} : vector<8x8xf32>, vector<8x8xf32>, vector<8x8xf32> -> vector<8x8xf32>
    %418 = arith.addf %417, %357 : vector<8x8xf32>
    %cst_196 = arith.constant dense<0xFF800000> : vector<8xf32>
    %419 = vector.multi_reduction <maximumf>, %418, %cst_196 [1] : vector<8x8xf32> to vector<8xf32>
    %420 = vector.shape_cast %419 : vector<8xf32> to vector<8x1xf32>
    %421 = vector.broadcast %420 : vector<8x1xf32> to vector<8x8xf32>
    %422 = arith.subf %418, %421 : vector<8x8xf32>
    %423 = math.exp %422 : vector<8x8xf32>
    %cst_197 = arith.constant dense<0.000000e+00> : vector<8xf32>
    %424 = vector.multi_reduction <add>, %423, %cst_197 [1] : vector<8x8xf32> to vector<8xf32>
    %425 = vector.shape_cast %424 : vector<8xf32> to vector<8x1xf32>
    %426 = tpu.reciprocal %425 {approx = true} : vector<8x1xf32> -> vector<8x1xf32>
    %427 = vector.broadcast %426 : vector<8x1xf32> to vector<8x8xf32>
    %428 = arith.mulf %423, %427 : vector<8x8xf32>
    %cst_198 = arith.constant dense<0.000000e+00> : vector<8x8xf32>
    %429 = tpu.matmul %428, %416, %cst_198 {dimension_numbers = #tpu.dot_dimension_numbers<[1], [0], [0], [1], [0, 0, 1, 1], [], []>} : vector<8x8xf32>, vector<8x8xf32>, vector<8x8xf32> -> vector<8x8xf32>
    %c8_199 = arith.constant 8 : index
    %c24_200 = arith.constant 24 : index
    %430 = vector.load %arg20[%c8_199, %c24_200] : memref<16x32xf32, #tpu.memory_space<vmem>>, vector<8x8xf32>
    tpu.vector_store %arg20[%c8_199, %c24_200], %429 {strides = array<i32>} : memref<16x32xf32, #tpu.memory_space<vmem>>, vector<8x8xf32>,
    %c0_201 = arith.constant 0 : index
    %c0_202 = arith.constant 0 : index
    %431 = vector.load %arg20[%c0_201, %c0_202] : memref<16x32xf32, #tpu.memory_space<vmem>>, vector<16x32xf32>
    %c0_203 = arith.constant 0 : index
    %c1_204 = arith.constant 1 : index
    %c0_205 = arith.constant 0 : index
    %c0_206 = arith.constant 0 : index
    %432 = vector.load %arg7[%c0_203, %c1_204, %c0_205, %c0_206] : memref<1x2x32x32xf32, #tpu.memory_space<vmem>>, vector<1x1x32x32xf32>
    %433 = vector.shape_cast %432 : vector<1x1x32x32xf32> to vector<32x32xf32>
    %cst_207 = arith.constant dense<0.000000e+00> : vector<16x32xf32>
    %434 = tpu.matmul %431, %433, %cst_207 {dimension_numbers = #tpu.dot_dimension_numbers<[1], [0], [0], [1], [0, 0, 1, 1], [], []>} : vector<16x32xf32>, vector<32x32xf32>, vector<16x32xf32> -> vector<16x32xf32>
    %c0_208 = arith.constant 0 : index
    %c1_209 = arith.constant 1 : index
    %c0_210 = arith.constant 0 : index
    %c0_211 = arith.constant 0 : index
    %435 = vector.load %arg8[%c0_208, %c1_209, %c0_210, %c0_211] : memref<1x2x1x32xf32, #tpu.memory_space<vmem>>, vector<1x1x1x32xf32>
    %436 = vector.shape_cast %435 : vector<1x1x1x32xf32> to vector<1x32xf32>
    %437 = vector.broadcast %436 : vector<1x32xf32> to vector<16x32xf32>
    %438 = arith.addf %434, %437 : vector<16x32xf32>
    %439 = arith.addf %438, %273 : vector<16x32xf32>
    %c0_212 = arith.constant 0 : index
    %c1_213 = arith.constant 1 : index
    %c0_214 = arith.constant 0 : index
    %c0_215 = arith.constant 0 : index
    %440 = vector.load %arg9[%c0_212, %c1_213, %c0_214, %c0_215] : memref<1x2x1x32xf32, #tpu.memory_space<vmem>>, vector<1x1x1x32xf32>
    %441 = vector.shape_cast %440 : vector<1x1x1x32xf32> to vector<1x32xf32>
    %c0_216 = arith.constant 0 : index
    %c1_217 = arith.constant 1 : index
    %c0_218 = arith.constant 0 : index
    %c0_219 = arith.constant 0 : index
    %442 = vector.load %arg10[%c0_216, %c1_217, %c0_218, %c0_219] : memref<1x2x1x32xf32, #tpu.memory_space<vmem>>, vector<1x1x1x32xf32>
    %443 = vector.shape_cast %442 : vector<1x1x1x32xf32> to vector<1x32xf32>
    %cst_220 = arith.constant dense<0.000000e+00> : vector<16xf32>
    %444 = vector.multi_reduction <add>, %439, %cst_220 [1] : vector<16x32xf32> to vector<16xf32>
    %445 = vector.shape_cast %444 : vector<16xf32> to vector<16x1xf32>
    %cst_221 = arith.constant 3.200000e+01 : f32
    %446 = vector.broadcast %cst_221 : f32 to vector<16x1xf32>
    %447 = arith.divf %445, %446 : vector<16x1xf32>
    %448 = vector.broadcast %447 : vector<16x1xf32> to vector<16x32xf32>
    %449 = arith.subf %439, %448 : vector<16x32xf32>
    %450 = arith.mulf %449, %449 : vector<16x32xf32>
    %cst_222 = arith.constant dense<0.000000e+00> : vector<16xf32>
    %451 = vector.multi_reduction <add>, %450, %cst_222 [1] : vector<16x32xf32> to vector<16xf32>
    %452 = vector.shape_cast %451 : vector<16xf32> to vector<16x1xf32>
    %cst_223 = arith.constant 3.200000e+01 : f32
    %453 = vector.broadcast %cst_223 : f32 to vector<16x1xf32>
    %454 = arith.divf %452, %453 : vector<16x1xf32>
    %455 = vector.broadcast %447 : vector<16x1xf32> to vector<16x32xf32>
    %456 = arith.subf %439, %455 : vector<16x32xf32>
    %cst_224 = arith.constant 1.000000e-07 : f32
    %457 = vector.broadcast %cst_224 : f32 to vector<16x1xf32>
    %458 = arith.addf %454, %457 : vector<16x1xf32>
    %459 = math.rsqrt %458 : vector<16x1xf32>
    %460 = vector.broadcast %459 : vector<16x1xf32> to vector<16x32xf32>
    %461 = arith.mulf %456, %460 : vector<16x32xf32>
    %462 = vector.broadcast %441 : vector<1x32xf32> to vector<16x32xf32>
    %463 = arith.mulf %461, %462 : vector<16x32xf32>
    %464 = vector.broadcast %443 : vector<1x32xf32> to vector<16x32xf32>
    %465 = arith.addf %463, %464 : vector<16x32xf32>
    %c0_225 = arith.constant 0 : index
    %c1_226 = arith.constant 1 : index
    %c0_227 = arith.constant 0 : index
    %c0_228 = arith.constant 0 : index
    %466 = vector.load %arg11[%c0_225, %c1_226, %c0_227, %c0_228] : memref<1x2x32x64xf32, #tpu.memory_space<vmem>>, vector<1x1x32x64xf32>
    %467 = vector.shape_cast %466 : vector<1x1x32x64xf32> to vector<32x64xf32>
    %cst_229 = arith.constant dense<0.000000e+00> : vector<16x64xf32>
    %468 = tpu.matmul %465, %467, %cst_229 {dimension_numbers = #tpu.dot_dimension_numbers<[1], [0], [0], [1], [0, 0, 1, 1], [], []>} : vector<16x32xf32>, vector<32x64xf32>, vector<16x64xf32> -> vector<16x64xf32>
    %c0_230 = arith.constant 0 : index
    %c1_231 = arith.constant 1 : index
    %c0_232 = arith.constant 0 : index
    %c0_233 = arith.constant 0 : index
    %469 = vector.load %arg12[%c0_230, %c1_231, %c0_232, %c0_233] : memref<1x2x1x64xf32, #tpu.memory_space<vmem>>, vector<1x1x1x64xf32>
    %470 = vector.shape_cast %469 : vector<1x1x1x64xf32> to vector<1x64xf32>
    %471 = vector.broadcast %470 : vector<1x64xf32> to vector<16x64xf32>
    %472 = arith.addf %468, %471 : vector<16x64xf32>
    %473 = arith.mulf %472, %472 : vector<16x64xf32>
    %474 = arith.mulf %472, %473 : vector<16x64xf32>
    %cst_234 = arith.constant 4.471500e-02 : f32
    %475 = vector.broadcast %cst_234 : f32 to vector<16x64xf32>
    %476 = arith.mulf %475, %474 : vector<16x64xf32>
    %477 = arith.addf %472, %476 : vector<16x64xf32>
    %cst_235 = arith.constant 0.797884583 : f32
    %478 = vector.broadcast %cst_235 : f32 to vector<16x64xf32>
    %479 = arith.mulf %478, %477 : vector<16x64xf32>
    %480 = math.tanh %479 : vector<16x64xf32>
    %cst_236 = arith.constant 1.000000e+00 : f32
    %481 = vector.broadcast %cst_236 : f32 to vector<16x64xf32>
    %482 = arith.addf %481, %480 : vector<16x64xf32>
    %cst_237 = arith.constant 5.000000e-01 : f32
    %483 = vector.broadcast %cst_237 : f32 to vector<16x64xf32>
    %484 = arith.mulf %483, %482 : vector<16x64xf32>
    %485 = arith.mulf %472, %484 : vector<16x64xf32>
    %c0_238 = arith.constant 0 : index
    %c1_239 = arith.constant 1 : index
    %c0_240 = arith.constant 0 : index
    %c0_241 = arith.constant 0 : index
    %486 = vector.load %arg13[%c0_238, %c1_239, %c0_240, %c0_241] : memref<1x2x64x32xf32, #tpu.memory_space<vmem>>, vector<1x1x64x32xf32>
    %487 = vector.shape_cast %486 : vector<1x1x64x32xf32> to vector<64x32xf32>
    %cst_242 = arith.constant dense<0.000000e+00> : vector<16x32xf32>
    %488 = tpu.matmul %485, %487, %cst_242 {dimension_numbers = #tpu.dot_dimension_numbers<[1], [0], [0], [1], [0, 0, 1, 1], [], []>} : vector<16x64xf32>, vector<64x32xf32>, vector<16x32xf32> -> vector<16x32xf32>
    %c0_243 = arith.constant 0 : index
    %c1_244 = arith.constant 1 : index
    %c0_245 = arith.constant 0 : index
    %c0_246 = arith.constant 0 : index
    %489 = vector.load %arg14[%c0_243, %c1_244, %c0_245, %c0_246] : memref<1x2x1x32xf32, #tpu.memory_space<vmem>>, vector<1x1x1x32xf32>
    %490 = vector.shape_cast %489 : vector<1x1x1x32xf32> to vector<1x32xf32>
    %491 = vector.broadcast %490 : vector<1x32xf32> to vector<16x32xf32>
    %492 = arith.addf %488, %491 : vector<16x32xf32>
    %493 = arith.addf %492, %465 : vector<16x32xf32>
    %c0_247 = arith.constant 0 : index
    %c1_248 = arith.constant 1 : index
    %c0_249 = arith.constant 0 : index
    %c0_250 = arith.constant 0 : index
    %494 = vector.load %arg15[%c0_247, %c1_248, %c0_249, %c0_250] : memref<1x2x1x32xf32, #tpu.memory_space<vmem>>, vector<1x1x1x32xf32>
    %495 = vector.shape_cast %494 : vector<1x1x1x32xf32> to vector<1x32xf32>
    %c0_251 = arith.constant 0 : index
    %c1_252 = arith.constant 1 : index
    %c0_253 = arith.constant 0 : index
    %c0_254 = arith.constant 0 : index
    %496 = vector.load %arg16[%c0_251, %c1_252, %c0_253, %c0_254] : memref<1x2x1x32xf32, #tpu.memory_space<vmem>>, vector<1x1x1x32xf32>
    %497 = vector.shape_cast %496 : vector<1x1x1x32xf32> to vector<1x32xf32>
    %cst_255 = arith.constant dense<0.000000e+00> : vector<16xf32>
    %498 = vector.multi_reduction <add>, %493, %cst_255 [1] : vector<16x32xf32> to vector<16xf32>
    %499 = vector.shape_cast %498 : vector<16xf32> to vector<16x1xf32>
    %cst_256 = arith.constant 3.200000e+01 : f32
    %500 = vector.broadcast %cst_256 : f32 to vector<16x1xf32>
    %501 = arith.divf %499, %500 : vector<16x1xf32>
    %502 = vector.broadcast %501 : vector<16x1xf32> to vector<16x32xf32>
    %503 = arith.subf %493, %502 : vector<16x32xf32>
    %504 = arith.mulf %503, %503 : vector<16x32xf32>
    %cst_257 = arith.constant dense<0.000000e+00> : vector<16xf32>
    %505 = vector.multi_reduction <add>, %504, %cst_257 [1] : vector<16x32xf32> to vector<16xf32>
    %506 = vector.shape_cast %505 : vector<16xf32> to vector<16x1xf32>
    %cst_258 = arith.constant 3.200000e+01 : f32
    %507 = vector.broadcast %cst_258 : f32 to vector<16x1xf32>
    %508 = arith.divf %506, %507 : vector<16x1xf32>
    %509 = vector.broadcast %501 : vector<16x1xf32> to vector<16x32xf32>
    %510 = arith.subf %493, %509 : vector<16x32xf32>
    %cst_259 = arith.constant 1.000000e-07 : f32
    %511 = vector.broadcast %cst_259 : f32 to vector<16x1xf32>
    %512 = arith.addf %508, %511 : vector<16x1xf32>
    %513 = math.rsqrt %512 : vector<16x1xf32>
    %514 = vector.broadcast %513 : vector<16x1xf32> to vector<16x32xf32>
    %515 = arith.mulf %510, %514 : vector<16x32xf32>
    %516 = vector.broadcast %495 : vector<1x32xf32> to vector<16x32xf32>
    %517 = arith.mulf %515, %516 : vector<16x32xf32>
    %518 = vector.broadcast %497 : vector<1x32xf32> to vector<16x32xf32>
    %519 = arith.addf %517, %518 : vector<16x32xf32>
    %520 = vector.shape_cast %519 : vector<16x32xf32> to vector<2x8x32xf32>
    %521 = vector.extract_strided_slice %520 {offsets = [0, 0, 0], sizes = [2, 1, 32], strides = [1, 1, 1]} : vector<2x8x32xf32> to vector<2x1x32xf32>
    %522 = vector.shape_cast %521 : vector<2x1x32xf32> to vector<2x32xf32>
    %c0_260 = arith.constant 0 : index
    %c0_261 = arith.constant 0 : index
    %c0_262 = arith.constant 0 : index
    %523 = vector.load %arg17[%c0_260, %c0_261, %c0_262] : memref<1x32x32xf32, #tpu.memory_space<vmem>>, vector<1x32x32xf32>
    %524 = vector.shape_cast %523 : vector<1x32x32xf32> to vector<32x32xf32>
    %cst_263 = arith.constant dense<0.000000e+00> : vector<2x32xf32>
    %525 = tpu.matmul %522, %524, %cst_263 {dimension_numbers = #tpu.dot_dimension_numbers<[1], [0], [0], [1], [0, 0, 1, 1], [], []>} : vector<2x32xf32>, vector<32x32xf32>, vector<2x32xf32> -> vector<2x32xf32>
    %c0_264 = arith.constant 0 : index
    %c0_265 = arith.constant 0 : index
    %c0_266 = arith.constant 0 : index
    %526 = vector.load %arg18[%c0_264, %c0_265, %c0_266] : memref<1x1x32xf32, #tpu.memory_space<vmem>>, vector<1x1x32xf32>
    %527 = vector.shape_cast %526 : vector<1x1x32xf32> to vector<1x32xf32>
    %528 = vector.broadcast %527 : vector<1x32xf32> to vector<2x32xf32>
    %529 = arith.addf %525, %528 : vector<2x32xf32>
    %530 = arith.mulf %529, %529 : vector<2x32xf32>
    %531 = arith.mulf %529, %530 : vector<2x32xf32>
    %cst_267 = arith.constant 4.471500e-02 : f32
    %532 = vector.broadcast %cst_267 : f32 to vector<2x32xf32>
    %533 = arith.mulf %532, %531 : vector<2x32xf32>
    %534 = arith.addf %529, %533 : vector<2x32xf32>
    %cst_268 = arith.constant 0.797884583 : f32
    %535 = vector.broadcast %cst_268 : f32 to vector<2x32xf32>
    %536 = arith.mulf %535, %534 : vector<2x32xf32>
    %537 = math.tanh %536 : vector<2x32xf32>
    %cst_269 = arith.constant 1.000000e+00 : f32
    %538 = vector.broadcast %cst_269 : f32 to vector<2x32xf32>
    %539 = arith.addf %538, %537 : vector<2x32xf32>
    %cst_270 = arith.constant 5.000000e-01 : f32
    %540 = vector.broadcast %cst_270 : f32 to vector<2x32xf32>
    %541 = arith.mulf %540, %539 : vector<2x32xf32>
    %542 = arith.mulf %529, %541 : vector<2x32xf32>
    %c0_271 = arith.constant 0 : index
    %c0_272 = arith.constant 0 : index
    %c0_273 = arith.constant 0 : index
    %543 = vector.load %arg19[%c0_271, %c0_272, %c0_273] : memref<1x2x32xf32, #tpu.memory_space<vmem>>, vector<1x2x32xf32>
    %544 = vector.shape_cast %543 : vector<1x2x32xf32> to vector<2x32xf32>
    %545 = vector.shape_cast %542 : vector<2x32xf32> to vector<1x2x32xf32>
    tpu.vector_store %arg19[%c0_271, %c0_272, %c0_273], %545 {strides = array<i32>} : memref<1x2x32xf32, #tpu.memory_space<vmem>>, vector<1x2x32xf32>,
    return
  }
  func.func @transform_0(%arg0: i32) -> (i32, i32, i32) {
    %c0_i32 = arith.constant 0 : i32
    %c0_i32_0 = arith.constant 0 : i32
    %c0_i32_1 = arith.constant 0 : i32
    return %arg0, %c0_i32, %c0_i32_0 : i32, i32, i32
  }
  func.func @transform_1(%arg0: i32) -> (i32, i32, i32, i32) {
    %c0_i32 = arith.constant 0 : i32
    %c0_i32_0 = arith.constant 0 : i32
    %c0_i32_1 = arith.constant 0 : i32
    %c0_i32_2 = arith.constant 0 : i32
    return %arg0, %c0_i32, %c0_i32_0, %c0_i32_1 : i32, i32, i32, i32
  }
  func.func @transform_2(%arg0: i32) -> (i32, i32, i32) {
    %c0_i32 = arith.constant 0 : i32
    %c0_i32_0 = arith.constant 0 : i32
    %c0_i32_1 = arith.constant 0 : i32
    return %arg0, %c0_i32, %c0_i32_0 : i32, i32, i32
  }
  func.func @transform_3(%arg0: i32) -> (i32, i32, i32) {
    %c0_i32 = arith.constant 0 : i32
    %c0_i32_0 = arith.constant 0 : i32
    %c0_i32_1 = arith.constant 0 : i32
    return %arg0, %c0_i32, %c0_i32_0 : i32, i32, i32
  }
  func.func @transform_4(%arg0: i32) -> (i32, i32, i32, i32) {
    %c0_i32 = arith.constant 0 : i32
    %c0_i32_0 = arith.constant 0 : i32
    %c0_i32_1 = arith.constant 0 : i32
    %c0_i32_2 = arith.constant 0 : i32
    return %arg0, %c0_i32, %c0_i32_0, %c0_i32_1 : i32, i32, i32, i32
  }
  func.func @transform_5(%arg0: i32) -> (i32, i32, i32, i32) {
    %c0_i32 = arith.constant 0 : i32
    %c0_i32_0 = arith.constant 0 : i32
    %c0_i32_1 = arith.constant 0 : i32
    %c0_i32_2 = arith.constant 0 : i32
    return %arg0, %c0_i32, %c0_i32_0, %c0_i32_1 : i32, i32, i32, i32
  }
  func.func @transform_6(%arg0: i32) -> (i32, i32, i32, i32) {
    %c0_i32 = arith.constant 0 : i32
    %c0_i32_0 = arith.constant 0 : i32
    %c0_i32_1 = arith.constant 0 : i32
    %c0_i32_2 = arith.constant 0 : i32
    return %arg0, %c0_i32, %c0_i32_0, %c0_i32_1 : i32, i32, i32, i32
  }
  func.func @transform_7(%arg0: i32) -> (i32, i32, i32, i32) {
    %c0_i32 = arith.constant 0 : i32
    %c0_i32_0 = arith.constant 0 : i32
    %c0_i32_1 = arith.constant 0 : i32
    %c0_i32_2 = arith.constant 0 : i32
    return %arg0, %c0_i32, %c0_i32_0, %c0_i32_1 : i32, i32, i32, i32
  }
  func.func @transform_8(%arg0: i32) -> (i32, i32, i32, i32) {
    %c0_i32 = arith.constant 0 : i32
    %c0_i32_0 = arith.constant 0 : i32
    %c0_i32_1 = arith.constant 0 : i32
    %c0_i32_2 = arith.constant 0 : i32
    return %arg0, %c0_i32, %c0_i32_0, %c0_i32_1 : i32, i32, i32, i32
  }
  func.func @transform_9(%arg0: i32) -> (i32, i32, i32, i32) {
    %c0_i32 = arith.constant 0 : i32
    %c0_i32_0 = arith.constant 0 : i32
    %c0_i32_1 = arith.constant 0 : i32
    %c0_i32_2 = arith.constant 0 : i32
    return %arg0, %c0_i32, %c0_i32_0, %c0_i32_1 : i32, i32, i32, i32
  }
  func.func @transform_10(%arg0: i32) -> (i32, i32, i32, i32) {
    %c0_i32 = arith.constant 0 : i32
    %c0_i32_0 = arith.constant 0 : i32
    %c0_i32_1 = arith.constant 0 : i32
    %c0_i32_2 = arith.constant 0 : i32
    return %arg0, %c0_i32, %c0_i32_0, %c0_i32_1 : i32, i32, i32, i32
  }
  func.func @transform_11(%arg0: i32) -> (i32, i32, i32, i32) {
    %c0_i32 = arith.constant 0 : i32
    %c0_i32_0 = arith.constant 0 : i32
    %c0_i32_1 = arith.constant 0 : i32
    %c0_i32_2 = arith.constant 0 : i32
    return %arg0, %c0_i32, %c0_i32_0, %c0_i32_1 : i32, i32, i32, i32
  }
  func.func @transform_12(%arg0: i32) -> (i32, i32, i32, i32) {
    %c0_i32 = arith.constant 0 : i32
    %c0_i32_0 = arith.constant 0 : i32
    %c0_i32_1 = arith.constant 0 : i32
    %c0_i32_2 = arith.constant 0 : i32
    return %arg0, %c0_i32, %c0_i32_0, %c0_i32_1 : i32, i32, i32, i32
  }
  func.func @transform_13(%arg0: i32) -> (i32, i32, i32, i32) {
    %c0_i32 = arith.constant 0 : i32
    %c0_i32_0 = arith.constant 0 : i32
    %c0_i32_1 = arith.constant 0 : i32
    %c0_i32_2 = arith.constant 0 : i32
    return %arg0, %c0_i32, %c0_i32_0, %c0_i32_1 : i32, i32, i32, i32
  }
  func.func @transform_14(%arg0: i32) -> (i32, i32, i32, i32) {
    %c0_i32 = arith.constant 0 : i32
    %c0_i32_0 = arith.constant 0 : i32
    %c0_i32_1 = arith.constant 0 : i32
    %c0_i32_2 = arith.constant 0 : i32
    return %arg0, %c0_i32, %c0_i32_0, %c0_i32_1 : i32, i32, i32, i32
  }
  func.func @transform_15(%arg0: i32) -> (i32, i32, i32, i32) {
    %c0_i32 = arith.constant 0 : i32
    %c0_i32_0 = arith.constant 0 : i32
    %c0_i32_1 = arith.constant 0 : i32
    %c0_i32_2 = arith.constant 0 : i32
    return %arg0, %c0_i32, %c0_i32_0, %c0_i32_1 : i32, i32, i32, i32
  }
  func.func @transform_16(%arg0: i32) -> (i32, i32, i32) {
    %c0_i32 = arith.constant 0 : i32
    %c0_i32_0 = arith.constant 0 : i32
    %c0_i32_1 = arith.constant 0 : i32
    return %arg0, %c0_i32, %c0_i32_0 : i32, i32, i32
  }
  func.func @transform_17(%arg0: i32) -> (i32, i32, i32) {
    %c0_i32 = arith.constant 0 : i32
    %c0_i32_0 = arith.constant 0 : i32
    %c0_i32_1 = arith.constant 0 : i32
    return %arg0, %c0_i32, %c0_i32_0 : i32, i32, i32
  }
  func.func @transform_18(%arg0: i32) -> (i32, i32, i32) {
    %c0_i32 = arith.constant 0 : i32
    %c0_i32_0 = arith.constant 0 : i32
    %c0_i32_1 = arith.constant 0 : i32
    return %arg0, %c0_i32, %c0_i32_0 : i32, i32, i32
  }
}

</mosaic_0001>

<llo_original>
// kernel: game_rules_encoder.3
$region0: #{game_rules_encoder.3}
  #allocation0 [shape = 'u32[]', space=smem, size = 0x4, offset = 0x4, fixed_abs, tag = 'smem constant byte address 0x4 - core index']
  #allocation1 [shape = 'u32[144,128]{1,0:T(1,128)}', space=vmem, size = 0x12000, scoped, tag = 'internal scratch']
  %s0 = inlined_call_operand.vmem [shape: f32[2,2,32], index: 0, kind: input, shape index: {}]
  %s1 = inlined_call_operand.vmem [shape: f32[64,16], index: 1, kind: input, shape index: {}]
  %s2 = inlined_call_operand.vmem [shape: f32[1,16], index: 2, kind: input, shape index: {}]
  %s3 = inlined_call_operand.hbm [shape: f32[2,16], index: 3, kind: output, shape index: {}]
  %s4 = sld [smem:[#allocation0]]
  $region22: #{game_rules_encoder.3} parent=0
    _
  %s6 = ssub.s32 1, %s4
  %s7 = scalar_select 0, %s6, %s4
  $region1: #{game_rules_encoder.3} parent=0
    #allocation2 [shape = 'u8[1024]{0}', space=vmem, size = 0x400, scoped, tag = 'output window, operand 0, single buffered']
    #allocation3 [shape = 's32[1]{0}', space=sflag, size = 0x4, scoped, tag = 'scoped memory for game_rules_encoder.3']
    %8 = vsyncpa [#allocation3], 0
    // Predicated region
    $region2: #{game_rules_encoder.3} parent=1 // pred_check
      _
    $region3: #{game_rules_encoder.3} parent=1 // pred_check_branch
      %10 = sbr.rel (0) target = $region5
    $region4: #{game_rules_encoder.3} parent=1 // pred_region
      _
    $region5: #{game_rules_encoder.3} parent=1 // pred_fallthru
      _
    // Predicated region
    $region6: #{game_rules_encoder.3} parent=1 // pred_check
      _
    $region7: #{game_rules_encoder.3} parent=1 // pred_check_branch
      %12 = sbr.rel (0) target = $region9
    $region8: #{game_rules_encoder.3} parent=1 // pred_region
      _
    $region9: #{game_rules_encoder.3} parent=1 // pred_fallthru
      _
    // Predicated region
    $region10: #{game_rules_encoder.3} parent=1 // pred_check
      _
    $region11: #{game_rules_encoder.3} parent=1 // pred_check_branch
      %14 = sbr.rel (0) target = $region13
    $region12: #{game_rules_encoder.3} parent=1 // pred_region
      _
    $region13: #{game_rules_encoder.3} parent=1 // pred_fallthru
      _
    %v15 = vld [vmem:[%s0] sm:$0x3]
    %v16 = vld [vmem:[%s1] sm:$0xff]
    %v17 = vld [vmem:[%s1 + $0x8] sm:$0xff]
    %v18 = vld [vmem:[%s1 + $0x10] sm:$0xff]
    %v19 = vld [vmem:[%s1 + $0x18] sm:$0xff]
    %s20 = scalar_lea.vmem %s0, 2
    %v21 = vld [vmem:[%s20] sm:$0x3]
    %v22 = vld [vmem:[%s1 + $0x20] sm:$0xff]
    %v23 = vld [vmem:[%s1 + $0x28] sm:$0xff]
    %v24 = vld [vmem:[%s1 + $0x30] sm:$0xff]
    %v25 = vld [vmem:[%s1 + $0x38] sm:$0xff]
    %vm26 = vcmask 261120
    %v28 = vsel %vm26, %v21, 0
    %30 = vmatprep.subr.mxu0 0.0
    %31 = vmatpush1.msra.mxu0 %v22
    %32 = vmatprep.subr.mxu0 0.0
    %33 = vmatpush1.msra.mxu0 %v23
    %34 = vmatprep.subr.mxu0 0.0
    %35 = vmatpush1.msra.mxu0 %v24
    %36 = vmatprep.subr.mxu0 0.0
    %37 = vmatpush1.msra.mxu0 %v25
    %38 = vmatprep.subr.mxu0 0.0
    %39 = vmatpush1.msra.mxu0 0.0
    %40 = vmatprep.subr.mxu0 0.0
    %41 = vmatpush1.msra.mxu0 0.0
    %42 = vmatprep.subr.mxu0 0.0
    %43 = vmatpush1.msra.mxu0 0.0
    %44 = vmatprep.subr.mxu0 0.0
    %45 = vmatpush1.msra.mxu0 0.0
    %46 = vmatprep.subr.mxu0 0.0
    %47 = vmatpush1.msra.mxu0 0.0
    %48 = vmatprep.subr.mxu0 0.0
    %49 = vmatpush1.msra.mxu0 0.0
    %50 = vmatprep.subr.mxu0 0.0
    %51 = vmatpush1.msra.mxu0 0.0
    %52 = vmatprep.subr.mxu0 0.0
    %53 = vmatpush1.msra.mxu0 0.0
    %54 = vmatprep.subr.mxu0 0.0
    %55 = vmatpush1.msra.mxu0 0.0
    %56 = vmatprep.subr.mxu0 0.0
    %57 = vmatpush1.msra.mxu0 0.0
    %58 = vmatprep.subr.mxu0 0.0
    %59 = vmatpush1.msra.mxu0 0.0
    %60 = vmatprep.subr.mxu0 0.0
    %61 = vmatpush1.msra.mxu0 0.0
    %62 = vmatprep.subr.mxu0 0.0
    %63 = vmatpush1.msra.mxu0 0.0
    %64 = vmatprep.subr.mxu0 0.0
    %65 = vmatpush1.msra.mxu0 0.0
    %66 = vmatprep.subr.mxu0 0.0
    %67 = vmatpush1.msra.mxu0 0.0
    %68 = vmatprep.subr.mxu0 0.0
    %69 = vmatpush1.msra.mxu0 0.0
    %70 = vmatprep.subr.mxu0 0.0
    %71 = vmatpush1.msra.mxu0 0.0
    %72 = vmatprep.subr.mxu0 0.0
    %73 = vmatpush1.msra.mxu0 0.0
    %74 = vmatprep.subr.mxu0 0.0
    %75 = vmatpush1.msra.mxu0 0.0
    %76 = vmatprep.subr.mxu0 0.0
    %77 = vmatpush1.msra.mxu0 0.0
    %78 = vmatprep.subr.mxu0 0.0
    %79 = vmatpush1.msra.mxu0 0.0
    %80 = vmatprep.subr.mxu0 0.0
    %81 = vmatpush1.msra.mxu0 0.0
    %82 = vmatprep.subr.mxu0 0.0
    %83 = vmatpush1.msra.mxu0 0.0
    %84 = vmatprep.subr.mxu0 0.0
    %85 = vmatpush1.msra.mxu0 0.0
    %86 = vmatprep.subr.mxu0 0.0
    %87 = vmatpush1.msra.mxu0 0.0
    %88 = vmatprep.subr.mxu0 0.0
    %89 = vmatpush1.msra.mxu0 0.0
    %90 = vmatprep.subr.mxu0 0.0
    %91 = vmatpush1.msra.mxu0 0.0
    %92 = vmatprep.subr.mxu0 0.0
    %93 = vmatpush1.msra.mxu0 0.0
    %94 = vmatprep.mubr.f32.mxu0 0.0
    %95 = vmatmul.mubr.f32.gmra.mrb[0].mxu0 %v28
    %v96 = vpop.f32.mrb[0].mxu0
    %v97 = vadd.f32 0.0, %v96
    %v98 = vpop.f32.mrb[0].mxu0
    %99 = vdwg.mxu0
    %v101 = vsel %vm26, %v15, 0
    %103 = vmatprep.subr.mxu0 0.0
    %104 = vmatpush1.msra.mxu0 %v16
    %105 = vmatprep.subr.mxu0 0.0
    %106 = vmatpush1.msra.mxu0 %v17
    %107 = vmatprep.subr.mxu0 0.0
    %108 = vmatpush1.msra.mxu0 %v18
    %109 = vmatprep.subr.mxu0 0.0
    %110 = vmatpush1.msra.mxu0 %v19
    %111 = vmatprep.subr.mxu0 0.0
    %112 = vmatpush1.msra.mxu0 0.0
    %113 = vmatprep.subr.mxu0 0.0
    %114 = vmatpush1.msra.mxu0 0.0
    %115 = vmatprep.subr.mxu0 0.0
    %116 = vmatpush1.msra.mxu0 0.0
    %117 = vmatprep.subr.mxu0 0.0
    %118 = vmatpush1.msra.mxu0 0.0
    %119 = vmatprep.subr.mxu0 0.0
    %120 = vmatpush1.msra.mxu0 0.0
    %121 = vmatprep.subr.mxu0 0.0
    %122 = vmatpush1.msra.mxu0 0.0
    %123 = vmatprep.subr.mxu0 0.0
    %124 = vmatpush1.msra.mxu0 0.0
    %125 = vmatprep.subr.mxu0 0.0
    %126 = vmatpush1.msra.mxu0 0.0
    %127 = vmatprep.subr.mxu0 0.0
    %128 = vmatpush1.msra.mxu0 0.0
    %129 = vmatprep.subr.mxu0 0.0
    %130 = vmatpush1.msra.mxu0 0.0
    %131 = vmatprep.subr.mxu0 0.0
    %132 = vmatpush1.msra.mxu0 0.0
    %133 = vmatprep.subr.mxu0 0.0
    %134 = vmatpush1.msra.mxu0 0.0
    %135 = vmatprep.subr.mxu0 0.0
    %136 = vmatpush1.msra.mxu0 0.0
    %137 = vmatprep.subr.mxu0 0.0
    %138 = vmatpush1.msra.mxu0 0.0
    %139 = vmatprep.subr.mxu0 0.0
    %140 = vmatpush1.msra.mxu0 0.0
    %141 = vmatprep.subr.mxu0 0.0
    %142 = vmatpush1.msra.mxu0 0.0
    %143 = vmatprep.subr.mxu0 0.0
    %144 = vmatpush1.msra.mxu0 0.0
    %145 = vmatprep.subr.mxu0 0.0
    %146 = vmatpush1.msra.mxu0 0.0
    %147 = vmatprep.subr.mxu0 0.0
    %148 = vmatpush1.msra.mxu0 0.0
    %149 = vmatprep.subr.mxu0 0.0
    %150 = vmatpush1.msra.mxu0 0.0
    %151 = vmatprep.subr.mxu0 0.0
    %152 = vmatpush1.msra.mxu0 0.0
    %153 = vmatprep.subr.mxu0 0.0
    %154 = vmatpush1.msra.mxu0 0.0
    %155 = vmatprep.subr.mxu0 0.0
    %156 = vmatpush1.msra.mxu0 0.0
    %157 = vmatprep.subr.mxu0 0.0
    %158 = vmatpush1.msra.mxu0 0.0
    %159 = vmatprep.subr.mxu0 0.0
    %160 = vmatpush1.msra.mxu0 0.0
    %161 = vmatprep.subr.mxu0 0.0
    %162 = vmatpush1.msra.mxu0 0.0
    %163 = vmatprep.subr.mxu0 0.0
    %164 = vmatpush1.msra.mxu0 0.0
    %165 = vmatprep.subr.mxu0 0.0
    %166 = vmatpush1.msra.mxu0 0.0
    %167 = vmatprep.mubr.f32.mxu0 0.0
    %168 = vmatmul.mubr.f32.gmra.mrb[0].mxu0 %v101
    %v169 = vpop.f32.mrb[0].mxu0
    %v170 = vadd.f32 %v97, %v169
    %v171 = vpop.f32.mrb[0].mxu0
    %172 = vdwg.mxu0
    %v173 = vld [vmem:[%s2] sm:$0x1]
    %v175 = vlaneseq
    %v176 = vshrl.u32 %v175, 7
    %v177 = vsub.s32 0, %v176
    %v178 = vrot.slane %v173, %v177
    %v180 = vadd.f32 %v170, %v178
    %v181 = vtanh.pop %v180
    %vm182 = vcmask 123904
    %183 = vst.msk [vmem:[#allocation2] sm:$0x3] %vm182, %v181
    // Predicated region
    $region14: #{game_rules_encoder.3} parent=1 // pred_check
      _
    $region15: #{game_rules_encoder.3} parent=1 // pred_check_branch
      %185 = sbr.rel (0) target = $region17
    $region16: #{game_rules_encoder.3} parent=1 // pred_region
      %s187 = ssub.s32 32, 32
      %188 = vsyncadd [#allocation3], %s187
      %s190 = sshll.u32 [#allocation2], 4
      %s191 = int_to_ptr.vmem [resolvable:$true] %s190
      %193 = dma.vmem_to_hbm [thread:$0]  %s191, 32, %s3, [#allocation3]
    $region17: #{game_rules_encoder.3} parent=1 // pred_fallthru
      _
    // Predicated region
    $region18: #{game_rules_encoder.3} parent=1 // pred_check
      _
    $region19: #{game_rules_encoder.3} parent=1 // pred_check_branch
      %195 = sbr.rel (0) target = $region21
    $region20: #{game_rules_encoder.3} parent=1 // pred_region
      %196 = dma.done [#allocation3], 32
    $region21: #{game_rules_encoder.3} parent=1 // pred_fallthru
      _
    %197 = vsyncpa [#allocation3], 1

// kernel: game_rules_encoder.2
$region0: #{game_rules_encoder.2}
  #allocation0 [shape = 'u32[]', space=smem, size = 0x4, offset = 0x4, fixed_abs, tag = 'smem constant byte address 0x4 - core index']
  #allocation1 [shape = 'u32[144,128]{1,0:T(1,128)}', space=vmem, size = 0x12000, scoped, tag = 'internal scratch']
  #allocation2 [shape = 'f32[16,32]{1,0:T(8,128)}', space=vmem, size = 0x2000, scoped, tag = 'scratch operand']
  %s0 = inlined_call_operand.vmem [shape: f32[2,16,32], index: 0, kind: input, shape index: {}]
  %s1 = inlined_call_operand.vmem [shape: f32[2,2,8,8], index: 1, kind: input, shape index: {}]
  %s2 = inlined_call_operand.vmem [shape: f32[2,1,32], index: 2, kind: input, shape index: {}]
  %s3 = inlined_call_operand.vmem [shape: f32[2,1,32], index: 3, kind: input, shape index: {}]
  %s4 = inlined_call_operand.vmem [shape: f32[2,2,32,96], index: 4, kind: input, shape index: {}]
  %s5 = inlined_call_operand.vmem [shape: f32[2,2,1,96], index: 5, kind: input, shape index: {}]
  %s6 = inlined_call_operand.vmem [shape: f32[2,2,32,32], index: 6, kind: input, shape index: {}]
  %s7 = inlined_call_operand.vmem [shape: f32[2,2,1,32], index: 7, kind: input, shape index: {}]
  %s8 = inlined_call_operand.vmem [shape: f32[2,2,1,32], index: 8, kind: input, shape index: {}]
  %s9 = inlined_call_operand.vmem [shape: f32[2,2,1,32], index: 9, kind: input, shape index: {}]
  %s10 = inlined_call_operand.vmem [shape: f32[2,2,32,64], index: 10, kind: input, shape index: {}]
  %s11 = inlined_call_operand.vmem [shape: f32[2,2,1,64], index: 11, kind: input, shape index: {}]
  %s12 = inlined_call_operand.vmem [shape: f32[2,2,64,32], index: 12, kind: input, shape index: {}]
  %s13 = inlined_call_operand.vmem [shape: f32[2,2,1,32], index: 13, kind: input, shape index: {}]
  %s14 = inlined_call_operand.vmem [shape: f32[2,2,1,32], index: 14, kind: input, shape index: {}]
  %s15 = inlined_call_operand.vmem [shape: f32[2,2,1,32], index: 15, kind: input, shape index: {}]
  %s16 = inlined_call_operand.vmem [shape: f32[2,32,32], index: 16, kind: input, shape index: {}]
  %s17 = inlined_call_operand.vmem [shape: f32[2,1,32], index: 17, kind: input, shape index: {}]
  %s18 = inlined_call_operand.vmem [shape: f32[2,2,32], index: 18, kind: output, shape index: {}]
  %s19 = sld [smem:[#allocation0]]
  $region105: #{game_rules_encoder.2} parent=0
    _
  %s21 = ssub.s32 1, %s19
  %s22 = scalar_select 0, %s21, %s19
  loop: start=0, step=1, limit=4
  $region2: #{game_rules_encoder.2} parent=0 // loop_pre_header
    _
  $region3: #{game_rules_encoder.2} parent=0 // loop_header
    %s24 = sphi 0, %s28
    %p25 = scmp.ge.s32.totalorder %s24, 4
    %s34 = sphi 0, %s36
    %s37 = sphi 0, %s34
    %s38 = sphi 0, %s37
    %s54 = sphi 0, %s38
    %s60 = sphi 0, %s62
    %s63 = sphi 0, %s60
    %s64 = sphi 0, %s63
    %s80 = sphi 0, %s64
    %s86 = sphi 0, %s88
    %s89 = sphi 0, %s86
    %s90 = sphi 0, %s89
    %s106 = sphi 0, %s90
    %s112 = sphi 0, %s114
    %s115 = sphi 0, %s112
    %s116 = sphi 0, %s115
    %s132 = sphi 0, %s116
    %s138 = sphi 0, %s140
    %s141 = sphi 0, %s138
    %s142 = sphi 0, %s141
    %s158 = sphi 0, %s142
    %s164 = sphi 0, %s166
    %s167 = sphi 0, %s164
    %s168 = sphi 0, %s167
    %s184 = sphi 0, %s168
    %s190 = sphi 0, %s192
    %s193 = sphi 0, %s190
    %s194 = sphi 0, %s193
    %s210 = sphi 0, %s194
    %s216 = sphi 0, %s218
    %s219 = sphi 0, %s216
    %s220 = sphi 0, %s219
    %s236 = sphi 0, %s220
    %s242 = sphi 0, %s244
    %s245 = sphi 0, %s242
    %s246 = sphi 0, %s245
    %s262 = sphi 0, %s246
    %s268 = sphi 0, %s270
    %s271 = sphi 0, %s268
    %s272 = sphi 0, %s271
    %s288 = sphi 0, %s272
    %s294 = sphi 0, %s296
    %s297 = sphi 0, %s294
    %s298 = sphi 0, %s297
    %s314 = sphi 0, %s298
    %s320 = sphi 0, %s322
    %s323 = sphi 0, %s320
    %s324 = sphi 0, %s323
    %s340 = sphi 0, %s324
    %s346 = sphi 0, %s348
    %s349 = sphi 0, %s346
    %s350 = sphi 0, %s349
    %s366 = sphi 0, %s350
    %s372 = sphi 0, %s374
    %s375 = sphi 0, %s372
    %s376 = sphi 0, %s375
    %s392 = sphi 0, %s376
    %s398 = sphi 0, %s400
    %s401 = sphi 0, %s398
    %s402 = sphi 0, %s401
    %s418 = sphi 0, %s402
    %s424 = sphi 0, %s426
    %s427 = sphi 0, %s424
    %s428 = sphi 0, %s427
    %s444 = sphi 0, %s428
    %s450 = sphi 0, %s452
    %s453 = sphi 0, %s450
    %s454 = sphi 0, %s453
    %s470 = sphi 0, %s454
    %s476 = sphi 0, %s478
    %s479 = sphi 0, %s476
    %s480 = sphi 0, %s479
    %s496 = sphi 0, %s480
    %s502 = sphi 0, %s504
    %s505 = sphi 0, %s502
    %s506 = sphi 0, %s505
    %s522 = sphi 0, %s506
  $region4: #{game_rules_encoder.2} parent=0 // loop_header_branch
    %27 = sbr.rel (%p25) target = $region8
  $region5: #{game_rules_encoder.2} parent=0 // loop_body
    %s29 = ssub.s32 %s24, 1
    %s30 = ssub.s32 %s24, 2
    %s31 = sadd.s32 %s24, 1
    %s32 = ssub.s32 %s24, %s31
    %p33 = scmp.eq.s32.totalorder %s32, 0
    %s35 = sadd.s32 %s34, 1
    %s36 = scalar_select %p33, %s34, %s35
    %p39 = pneg %p33
    %p40 = scmp.eq.s32.totalorder %s24, 1
    %p41 = por %p39, %p40
    %p42 = scmp.ne.s32.totalorder %s34, %s37
    %p43 = scmp.eq.s32.totalorder %s24, 0
    %p44 = por %p42, %p43
    %p45 = scmp.ne.s32.totalorder %s34, %s37
    %p46 = scmp.eq.s32.totalorder %s29, 1
    %p47 = por %p45, %p46
    %p48 = scmp.ne.s32.totalorder %s37, %s38
    %p49 = scmp.eq.s32.totalorder %s29, 0
    %p50 = por %p48, %p49
    %p51 = scmp.ne.s32.totalorder %s37, %s38
    %p52 = scmp.eq.s32.totalorder %s30, 1
    %p53 = por %p51, %p52
    %p55 = scmp.ne.s32.totalorder %s38, %s54
    %p56 = scmp.eq.s32.totalorder %s30, 0
    %p57 = por %p55, %p56
    %s58 = ssub.s32 %s24, %s31
    %p59 = scmp.eq.s32.totalorder %s58, 0
    %s61 = sadd.s32 %s60, 1
    %s62 = scalar_select %p59, %s60, %s61
    %p65 = pneg %p59
    %p66 = scmp.eq.s32.totalorder %s24, 1
    %p67 = por %p65, %p66
    %p68 = scmp.ne.s32.totalorder %s60, %s63
    %p69 = scmp.eq.s32.totalorder %s24, 0
    %p70 = por %p68, %p69
    %p71 = scmp.ne.s32.totalorder %s60, %s63
    %p72 = scmp.eq.s32.totalorder %s29, 1
    %p73 = por %p71, %p72
    %p74 = scmp.ne.s32.totalorder %s63, %s64
    %p75 = scmp.eq.s32.totalorder %s29, 0
    %p76 = por %p74, %p75
    %p77 = scmp.ne.s32.totalorder %s63, %s64
    %p78 = scmp.eq.s32.totalorder %s30, 1
    %p79 = por %p77, %p78
    %p81 = scmp.ne.s32.totalorder %s64, %s80
    %p82 = scmp.eq.s32.totalorder %s30, 0
    %p83 = por %p81, %p82
    %s84 = ssub.s32 %s24, %s31
    %p85 = scmp.eq.s32.totalorder %s84, 0
    %s87 = sadd.s32 %s86, 1
    %s88 = scalar_select %p85, %s86, %s87
    %p91 = pneg %p85
    %p92 = scmp.eq.s32.totalorder %s24, 1
    %p93 = por %p91, %p92
    %p94 = scmp.ne.s32.totalorder %s86, %s89
    %p95 = scmp.eq.s32.totalorder %s24, 0
    %p96 = por %p94, %p95
    %p97 = scmp.ne.s32.totalorder %s86, %s89
    %p98 = scmp.eq.s32.totalorder %s29, 1
    %p99 = por %p97, %p98
    %p100 = scmp.ne.s32.totalorder %s89, %s90
    %p101 = scmp.eq.s32.totalorder %s29, 0
    %p102 = por %p100, %p101
    %p103 = scmp.ne.s32.totalorder %s89, %s90
    %p104 = scmp.eq.s32.totalorder %s30, 1
    %p105 = por %p103, %p104
    %p107 = scmp.ne.s32.totalorder %s90, %s106
    %p108 = scmp.eq.s32.totalorder %s30, 0
    %p109 = por %p107, %p108
    %s110 = ssub.s32 %s24, %s31
    %p111 = scmp.eq.s32.totalorder %s110, 0
    %s113 = sadd.s32 %s112, 1
    %s114 = scalar_select %p111, %s112, %s113
    %p117 = pneg %p111
    %p118 = scmp.eq.s32.totalorder %s24, 1
    %p119 = por %p117, %p118
    %p120 = scmp.ne.s32.totalorder %s112, %s115
    %p121 = scmp.eq.s32.totalorder %s24, 0
    %p122 = por %p120, %p121
    %p123 = scmp.ne.s32.totalorder %s112, %s115
    %p124 = scmp.eq.s32.totalorder %s29, 1
    %p125 = por %p123, %p124
    %p126 = scmp.ne.s32.totalorder %s115, %s116
    %p127 = scmp.eq.s32.totalorder %s29, 0
    %p128 = por %p126, %p127
    %p129 = scmp.ne.s32.totalorder %s115, %s116
    %p130 = scmp.eq.s32.totalorder %s30, 1
    %p131 = por %p129, %p130
    %p133 = scmp.ne.s32.totalorder %s116, %s132
    %p134 = scmp.eq.s32.totalorder %s30, 0
    %p135 = por %p133, %p134
    %s136 = ssub.s32 %s24, %s31
    %p137 = scmp.eq.s32.totalorder %s136, 0
    %s139 = sadd.s32 %s138, 1
    %s140 = scalar_select %p137, %s138, %s139
    %p143 = pneg %p137
    %p144 = scmp.eq.s32.totalorder %s24, 1
    %p145 = por %p143, %p144
    %p146 = scmp.ne.s32.totalorder %s138, %s141
    %p147 = scmp.eq.s32.totalorder %s24, 0
    %p148 = por %p146, %p147
    %p149 = scmp.ne.s32.totalorder %s138, %s141
    %p150 = scmp.eq.s32.totalorder %s29, 1
    %p151 = por %p149, %p150
    %p152 = scmp.ne.s32.totalorder %s141, %s142
    %p153 = scmp.eq.s32.totalorder %s29, 0
    %p154 = por %p152, %p153
    %p155 = scmp.ne.s32.totalorder %s141, %s142
    %p156 = scmp.eq.s32.totalorder %s30, 1
    %p157 = por %p155, %p156
    %p159 = scmp.ne.s32.totalorder %s142, %s158
    %p160 = scmp.eq.s32.totalorder %s30, 0
    %p161 = por %p159, %p160
    %s162 = ssub.s32 %s24, %s31
    %p163 = scmp.eq.s32.totalorder %s162, 0
    %s165 = sadd.s32 %s164, 1
    %s166 = scalar_select %p163, %s164, %s165
    %p169 = pneg %p163
    %p170 = scmp.eq.s32.totalorder %s24, 1
    %p171 = por %p169, %p170
    %p172 = scmp.ne.s32.totalorder %s164, %s167
    %p173 = scmp.eq.s32.totalorder %s24, 0
    %p174 = por %p172, %p173
    %p175 = scmp.ne.s32.totalorder %s164, %s167
    %p176 = scmp.eq.s32.totalorder %s29, 1
    %p177 = por %p175, %p176
    %p178 = scmp.ne.s32.totalorder %s167, %s168
    %p179 = scmp.eq.s32.totalorder %s29, 0
    %p180 = por %p178, %p179
    %p181 = scmp.ne.s32.totalorder %s167, %s168
    %p182 = scmp.eq.s32.totalorder %s30, 1
    %p183 = por %p181, %p182
    %p185 = scmp.ne.s32.totalorder %s168, %s184
    %p186 = scmp.eq.s32.totalorder %s30, 0
    %p187 = por %p185, %p186
    %s188 = ssub.s32 %s24, %s31
    %p189 = scmp.eq.s32.totalorder %s188, 0
    %s191 = sadd.s32 %s190, 1
    %s192 = scalar_select %p189, %s190, %s191
    %p195 = pneg %p189
    %p196 = scmp.eq.s32.totalorder %s24, 1
    %p197 = por %p195, %p196
    %p198 = scmp.ne.s32.totalorder %s190, %s193
    %p199 = scmp.eq.s32.totalorder %s24, 0
    %p200 = por %p198, %p199
    %p201 = scmp.ne.s32.totalorder %s190, %s193
    %p202 = scmp.eq.s32.totalorder %s29, 1
    %p203 = por %p201, %p202
    %p204 = scmp.ne.s32.totalorder %s193, %s194
    %p205 = scmp.eq.s32.totalorder %s29, 0
    %p206 = por %p204, %p205
    %p207 = scmp.ne.s32.totalorder %s193, %s194
    %p208 = scmp.eq.s32.totalorder %s30, 1
    %p209 = por %p207, %p208
    %p211 = scmp.ne.s32.totalorder %s194, %s210
    %p212 = scmp.eq.s32.totalorder %s30, 0
    %p213 = por %p211, %p212
    %s214 = ssub.s32 %s24, %s31
    %p215 = scmp.eq.s32.totalorder %s214, 0
    %s217 = sadd.s32 %s216, 1
    %s218 = scalar_select %p215, %s216, %s217
    %p221 = pneg %p215
    %p222 = scmp.eq.s32.totalorder %s24, 1
    %p223 = por %p221, %p222
    %p224 = scmp.ne.s32.totalorder %s216, %s219
    %p225 = scmp.eq.s32.totalorder %s24, 0
    %p226 = por %p224, %p225
    %p227 = scmp.ne.s32.totalorder %s216, %s219
    %p228 = scmp.eq.s32.totalorder %s29, 1
    %p229 = por %p227, %p228
    %p230 = scmp.ne.s32.totalorder %s219, %s220
    %p231 = scmp.eq.s32.totalorder %s29, 0
    %p232 = por %p230, %p231
    %p233 = scmp.ne.s32.totalorder %s219, %s220
    %p234 = scmp.eq.s32.totalorder %s30, 1
    %p235 = por %p233, %p234
    %p237 = scmp.ne.s32.totalorder %s220, %s236
    %p238 = scmp.eq.s32.totalorder %s30, 0
    %p239 = por %p237, %p238
    %s240 = ssub.s32 %s24, %s31
    %p241 = scmp.eq.s32.totalorder %s240, 0
    %s243 = sadd.s32 %s242, 1
    %s244 = scalar_select %p241, %s242, %s243
    %p247 = pneg %p241
    %p248 = scmp.eq.s32.totalorder %s24, 1
    %p249 = por %p247, %p248
    %p250 = scmp.ne.s32.totalorder %s242, %s245
    %p251 = scmp.eq.s32.totalorder %s24, 0
    %p252 = por %p250, %p251
    %p253 = scmp.ne.s32.totalorder %s242, %s245
    %p254 = scmp.eq.s32.totalorder %s29, 1
    %p255 = por %p253, %p254
    %p256 = scmp.ne.s32.totalorder %s245, %s246
    %p257 = scmp.eq.s32.totalorder %s29, 0
    %p258 = por %p256, %p257
    %p259 = scmp.ne.s32.totalorder %s245, %s246
    %p260 = scmp.eq.s32.totalorder %s30, 1
    %p261 = por %p259, %p260
    %p263 = scmp.ne.s32.totalorder %s246, %s262
    %p264 = scmp.eq.s32.totalorder %s30, 0
    %p265 = por %p263, %p264
    %s266 = ssub.s32 %s24, %s31
    %p267 = scmp.eq.s32.totalorder %s266, 0
    %s269 = sadd.s32 %s268, 1
    %s270 = scalar_select %p267, %s268, %s269
    %p273 = pneg %p267
    %p274 = scmp.eq.s32.totalorder %s24, 1
    %p275 = por %p273, %p274
    %p276 = scmp.ne.s32.totalorder %s268, %s271
    %p277 = scmp.eq.s32.totalorder %s24, 0
    %p278 = por %p276, %p277
    %p279 = scmp.ne.s32.totalorder %s268, %s271
    %p280 = scmp.eq.s32.totalorder %s29, 1
    %p281 = por %p279, %p280
    %p282 = scmp.ne.s32.totalorder %s271, %s272
    %p283 = scmp.eq.s32.totalorder %s29, 0
    %p284 = por %p282, %p283
    %p285 = scmp.ne.s32.totalorder %s271, %s272
    %p286 = scmp.eq.s32.totalorder %s30, 1
    %p287 = por %p285, %p286
    %p289 = scmp.ne.s32.totalorder %s272, %s288
    %p290 = scmp.eq.s32.totalorder %s30, 0
    %p291 = por %p289, %p290
    %s292 = ssub.s32 %s24, %s31
    %p293 = scmp.eq.s32.totalorder %s292, 0
    %s295 = sadd.s32 %s294, 1
    %s296 = scalar_select %p293, %s294, %s295
    %p299 = pneg %p293
    %p300 = scmp.eq.s32.totalorder %s24, 1
    %p301 = por %p299, %p300
    %p302 = scmp.ne.s32.totalorder %s294, %s297
    %p303 = scmp.eq.s32.totalorder %s24, 0
    %p304 = por %p302, %p303
    %p305 = scmp.ne.s32.totalorder %s294, %s297
    %p306 = scmp.eq.s32.totalorder %s29, 1
    %p307 = por %p305, %p306
    %p308 = scmp.ne.s32.totalorder %s297, %s298
    %p309 = scmp.eq.s32.totalorder %s29, 0
    %p310 = por %p308, %p309
    %p311 = scmp.ne.s32.totalorder %s297, %s298
    %p312 = scmp.eq.s32.totalorder %s30, 1
    %p313 = por %p311, %p312
    %p315 = scmp.ne.s32.totalorder %s298, %s314
    %p316 = scmp.eq.s32.totalorder %s30, 0
    %p317 = por %p315, %p316
    %s318 = ssub.s32 %s24, %s31
    %p319 = scmp.eq.s32.totalorder %s318, 0
    %s321 = sadd.s32 %s320, 1
    %s322 = scalar_select %p319, %s320, %s321
    %p325 = pneg %p319
    %p326 = scmp.eq.s32.totalorder %s24, 1
    %p327 = por %p325, %p326
    %p328 = scmp.ne.s32.totalorder %s320, %s323
    %p329 = scmp.eq.s32.totalorder %s24, 0
    %p330 = por %p328, %p329
    %p331 = scmp.ne.s32.totalorder %s320, %s323
    %p332 = scmp.eq.s32.totalorder %s29, 1
    %p333 = por %p331, %p332
    %p334 = scmp.ne.s32.totalorder %s323, %s324
    %p335 = scmp.eq.s32.totalorder %s29, 0
    %p336 = por %p334, %p335
    %p337 = scmp.ne.s32.totalorder %s323, %s324
    %p338 = scmp.eq.s32.totalorder %s30, 1
    %p339 = por %p337, %p338
    %p341 = scmp.ne.s32.totalorder %s324, %s340
    %p342 = scmp.eq.s32.totalorder %s30, 0
    %p343 = por %p341, %p342
    %s344 = ssub.s32 %s24, %s31
    %p345 = scmp.eq.s32.totalorder %s344, 0
    %s347 = sadd.s32 %s346, 1
    %s348 = scalar_select %p345, %s346, %s347
    %p351 = pneg %p345
    %p352 = scmp.eq.s32.totalorder %s24, 1
    %p353 = por %p351, %p352
    %p354 = scmp.ne.s32.totalorder %s346, %s349
    %p355 = scmp.eq.s32.totalorder %s24, 0
    %p356 = por %p354, %p355
    %p357 = scmp.ne.s32.totalorder %s346, %s349
    %p358 = scmp.eq.s32.totalorder %s29, 1
    %p359 = por %p357, %p358
    %p360 = scmp.ne.s32.totalorder %s349, %s350
    %p361 = scmp.eq.s32.totalorder %s29, 0
    %p362 = por %p360, %p361
    %p363 = scmp.ne.s32.totalorder %s349, %s350
    %p364 = scmp.eq.s32.totalorder %s30, 1
    %p365 = por %p363, %p364
    %p367 = scmp.ne.s32.totalorder %s350, %s366
    %p368 = scmp.eq.s32.totalorder %s30, 0
    %p369 = por %p367, %p368
    %s370 = ssub.s32 %s24, %s31
    %p371 = scmp.eq.s32.totalorder %s370, 0
    %s373 = sadd.s32 %s372, 1
    %s374 = scalar_select %p371, %s372, %s373
    %p377 = pneg %p371
    %p378 = scmp.eq.s32.totalorder %s24, 1
    %p379 = por %p377, %p378
    %p380 = scmp.ne.s32.totalorder %s372, %s375
    %p381 = scmp.eq.s32.totalorder %s24, 0
    %p382 = por %p380, %p381
    %p383 = scmp.ne.s32.totalorder %s372, %s375
    %p384 = scmp.eq.s32.totalorder %s29, 1
    %p385 = por %p383, %p384
    %p386 = scmp.ne.s32.totalorder %s375, %s376
    %p387 = scmp.eq.s32.totalorder %s29, 0
    %p388 = por %p386, %p387
    %p389 = scmp.ne.s32.totalorder %s375, %s376
    %p390 = scmp.eq.s32.totalorder %s30, 1
    %p391 = por %p389, %p390
    %p393 = scmp.ne.s32.totalorder %s376, %s392
    %p394 = scmp.eq.s32.totalorder %s30, 0
    %p395 = por %p393, %p394
    %s396 = ssub.s32 %s24, %s31
    %p397 = scmp.eq.s32.totalorder %s396, 0
    %s399 = sadd.s32 %s398, 1
    %s400 = scalar_select %p397, %s398, %s399
    %p403 = pneg %p397
    %p404 = scmp.eq.s32.totalorder %s24, 1
    %p405 = por %p403, %p404
    %p406 = scmp.ne.s32.totalorder %s398, %s401
    %p407 = scmp.eq.s32.totalorder %s24, 0
    %p408 = por %p406, %p407
    %p409 = scmp.ne.s32.totalorder %s398, %s401
    %p410 = scmp.eq.s32.totalorder %s29, 1
    %p411 = por %p409, %p410
    %p412 = scmp.ne.s32.totalorder %s401, %s402
    %p413 = scmp.eq.s32.totalorder %s29, 0
    %p414 = por %p412, %p413
    %p415 = scmp.ne.s32.totalorder %s401, %s402
    %p416 = scmp.eq.s32.totalorder %s30, 1
    %p417 = por %p415, %p416
    %p419 = scmp.ne.s32.totalorder %s402, %s418
    %p420 = scmp.eq.s32.totalorder %s30, 0
    %p421 = por %p419, %p420
    %s422 = ssub.s32 %s24, %s31
    %p423 = scmp.eq.s32.totalorder %s422, 0
    %s425 = sadd.s32 %s424, 1
    %s426 = scalar_select %p423, %s424, %s425
    %p429 = pneg %p423
    %p430 = scmp.eq.s32.totalorder %s24, 1
    %p431 = por %p429, %p430
    %p432 = scmp.ne.s32.totalorder %s424, %s427
    %p433 = scmp.eq.s32.totalorder %s24, 0
    %p434 = por %p432, %p433
    %p435 = scmp.ne.s32.totalorder %s424, %s427
    %p436 = scmp.eq.s32.totalorder %s29, 1
    %p437 = por %p435, %p436
    %p438 = scmp.ne.s32.totalorder %s427, %s428
    %p439 = scmp.eq.s32.totalorder %s29, 0
    %p440 = por %p438, %p439
    %p441 = scmp.ne.s32.totalorder %s427, %s428
    %p442 = scmp.eq.s32.totalorder %s30, 1
    %p443 = por %p441, %p442
    %p445 = scmp.ne.s32.totalorder %s428, %s444
    %p446 = scmp.eq.s32.totalorder %s30, 0
    %p447 = por %p445, %p446
    %s448 = ssub.s32 %s24, %s31
    %p449 = scmp.eq.s32.totalorder %s448, 0
    %s451 = sadd.s32 %s450, 1
    %s452 = scalar_select %p449, %s450, %s451
    %p455 = pneg %p449
    %p456 = scmp.eq.s32.totalorder %s24, 1
    %p457 = por %p455, %p456
    %p458 = scmp.ne.s32.totalorder %s450, %s453
    %p459 = scmp.eq.s32.totalorder %s24, 0
    %p460 = por %p458, %p459
    %p461 = scmp.ne.s32.totalorder %s450, %s453
    %p462 = scmp.eq.s32.totalorder %s29, 1
    %p463 = por %p461, %p462
    %p464 = scmp.ne.s32.totalorder %s453, %s454
    %p465 = scmp.eq.s32.totalorder %s29, 0
    %p466 = por %p464, %p465
    %p467 = scmp.ne.s32.totalorder %s453, %s454
    %p468 = scmp.eq.s32.totalorder %s30, 1
    %p469 = por %p467, %p468
    %p471 = scmp.ne.s32.totalorder %s454, %s470
    %p472 = scmp.eq.s32.totalorder %s30, 0
    %p473 = por %p471, %p472
    %s474 = ssub.s32 %s24, %s31
    %p475 = scmp.eq.s32.totalorder %s474, 0
    %s477 = sadd.s32 %s476, 1
    %s478 = scalar_select %p475, %s476, %s477
    %p481 = pneg %p475
    %p482 = scmp.eq.s32.totalorder %s24, 1
    %p483 = por %p481, %p482
    %p484 = scmp.ne.s32.totalorder %s476, %s479
    %p485 = scmp.eq.s32.totalorder %s24, 0
    %p486 = por %p484, %p485
    %p487 = scmp.ne.s32.totalorder %s476, %s479
    %p488 = scmp.eq.s32.totalorder %s29, 1
    %p489 = por %p487, %p488
    %p490 = scmp.ne.s32.totalorder %s479, %s480
    %p491 = scmp.eq.s32.totalorder %s29, 0
    %p492 = por %p490, %p491
    %p493 = scmp.ne.s32.totalorder %s479, %s480
    %p494 = scmp.eq.s32.totalorder %s30, 1
    %p495 = por %p493, %p494
    %p497 = scmp.ne.s32.totalorder %s480, %s496
    %p498 = scmp.eq.s32.totalorder %s30, 0
    %p499 = por %p497, %p498
    %s500 = ssub.s32 %s24, %s31
    %p501 = scmp.eq.s32.totalorder %s500, 0
    %s503 = sadd.s32 %s502, 1
    %s504 = scalar_select %p501, %s502, %s503
    %p507 = pneg %p501
    %p508 = scmp.eq.s32.totalorder %s24, 1
    %p509 = por %p507, %p508
    %p510 = scmp.ne.s32.totalorder %s502, %s505
    %p511 = scmp.eq.s32.totalorder %s24, 0
    %p512 = por %p510, %p511
    %p513 = scmp.ne.s32.totalorder %s502, %s505
    %p514 = scmp.eq.s32.totalorder %s29, 1
    %p515 = por %p513, %p514
    %p516 = scmp.ne.s32.totalorder %s505, %s506
    %p517 = scmp.eq.s32.totalorder %s29, 0
    %p518 = por %p516, %p517
    %p519 = scmp.ne.s32.totalorder %s505, %s506
    %p520 = scmp.eq.s32.totalorder %s30, 1
    %p521 = por %p519, %p520
    %p523 = scmp.ne.s32.totalorder %s506, %s522
    %p524 = scmp.eq.s32.totalorder %s30, 0
    %p525 = por %p523, %p524
    %p526 = scmp.le.s32.totalorder 1, %s24
    %p527 = scmp.lt.s32.totalorder %s24, 3
    %p528 = pnand %p526, %p527
    %p529 = pneg %p528
    // Predicated region
    $region9: #{game_rules_encoder.2} parent=5 // pred_check
      _
    $region10: #{game_rules_encoder.2} parent=5 // pred_check_branch
      %531 = sbr.rel (%p528) target = $region12
    $region11: #{game_rules_encoder.2} parent=5 // pred_region
      %s532 = ssub.s32 %s24, 1
    $region12: #{game_rules_encoder.2} parent=5 // pred_fallthru
      _
    %p533 = scmp.lt.s32.totalorder %s24, 2
    // Predicated region
    $region13: #{game_rules_encoder.2} parent=5 // pred_check
      %p534 = pneg %p533
    $region14: #{game_rules_encoder.2} parent=5 // pred_check_branch
      %536 = sbr.rel (%p534) target = $region16
    $region15: #{game_rules_encoder.2} parent=5 // pred_region
      // Predicated region
      $region17: #{game_rules_encoder.2} parent=15 // pred_check
        %p537 = pneg %p44
      $region18: #{game_rules_encoder.2} parent=15 // pred_check_branch
        %539 = sbr.rel (%p537) target = $region20
      $region19: #{game_rules_encoder.2} parent=15 // pred_region
        %p540 = scmp.lt.s32.totalorder %s24, 1
        %s541 = scalar_select %p540, %s24, 1
        %s542 = smul.addr %s541, 2
        %s543 = smul.addr %s542, 8
        %s544 = scalar_lea.vmem %s0, %s543
      $region20: #{game_rules_encoder.2} parent=15 // pred_fallthru
        _
      // Predicated region
      $region21: #{game_rules_encoder.2} parent=15 // pred_check
        %p545 = pneg %p70
      $region22: #{game_rules_encoder.2} parent=15 // pred_check_branch
        %547 = sbr.rel (%p545) target = $region24
      $region23: #{game_rules_encoder.2} parent=15 // pred_region
        %p548 = scmp.lt.s32.totalorder %s24, 1
        %s549 = scalar_select %p548, %s24, 1
        %s550 = smul.addr %s549, 2
        %s551 = smul.addr %s550, 8
        %s552 = scalar_lea.vmem %s1, %s551
      $region24: #{game_rules_encoder.2} parent=15 // pred_fallthru
        _
      // Predicated region
      $region25: #{game_rules_encoder.2} parent=15 // pred_check
        %p553 = pneg %p96
      $region26: #{game_rules_encoder.2} parent=15 // pred_check_branch
        %555 = sbr.rel (%p553) target = $region28
      $region27: #{game_rules_encoder.2} parent=15 // pred_region
        %p556 = scmp.lt.s32.totalorder %s24, 1
        %s557 = scalar_select %p556, %s24, 1
        %s558 = scalar_lea.vmem %s2, %s557
      $region28: #{game_rules_encoder.2} parent=15 // pred_fallthru
        _
      // Predicated region
      $region29: #{game_rules_encoder.2} parent=15 // pred_check
        %p559 = pneg %p122
      $region30: #{game_rules_encoder.2} parent=15 // pred_check_branch
        %561 = sbr.rel (%p559) target = $region32
      $region31: #{game_rules_encoder.2} parent=15 // pred_region
        %p562 = scmp.lt.s32.totalorder %s24, 1
        %s563 = scalar_select %p562, %s24, 1
        %s564 = scalar_lea.vmem %s3, %s563
      $region32: #{game_rules_encoder.2} parent=15 // pred_fallthru
        _
      // Predicated region
      $region33: #{game_rules_encoder.2} parent=15 // pred_check
        %p565 = pneg %p148
      $region34: #{game_rules_encoder.2} parent=15 // pred_check_branch
        %567 = sbr.rel (%p565) target = $region36
      $region35: #{game_rules_encoder.2} parent=15 // pred_region
        %p568 = scmp.lt.s32.totalorder %s24, 1
        %s569 = scalar_select %p568, %s24, 1
        %s570 = smul.addr %s569, 8
        %s571 = smul.addr %s570, 8
        %s572 = scalar_lea.vmem %s4, %s571
      $region36: #{game_rules_encoder.2} parent=15 // pred_fallthru
        _
      // Predicated region
      $region37: #{game_rules_encoder.2} parent=15 // pred_check
        %p573 = pneg %p174
      $region38: #{game_rules_encoder.2} parent=15 // pred_check_branch
        %575 = sbr.rel (%p573) target = $region40
      $region39: #{game_rules_encoder.2} parent=15 // pred_region
        %p576 = scmp.lt.s32.totalorder %s24, 1
        %s577 = scalar_select %p576, %s24, 1
        %s578 = smul.addr %s577, 2
        %s579 = scalar_lea.vmem %s5, %s578
      $region40: #{game_rules_encoder.2} parent=15 // pred_fallthru
        _
      // Predicated region
      $region41: #{game_rules_encoder.2} parent=15 // pred_check
        %p580 = pneg %p200
      $region42: #{game_rules_encoder.2} parent=15 // pred_check_branch
        %582 = sbr.rel (%p580) target = $region44
      $region43: #{game_rules_encoder.2} parent=15 // pred_region
        %p583 = scmp.lt.s32.totalorder %s24, 1
        %s584 = scalar_select %p583, %s24, 1
        %s585 = smul.addr %s584, 8
        %s586 = smul.addr %s585, 8
        %s587 = scalar_lea.vmem %s6, %s586
      $region44: #{game_rules_encoder.2} parent=15 // pred_fallthru
        _
      // Predicated region
      $region45: #{game_rules_encoder.2} parent=15 // pred_check
        %p588 = pneg %p226
      $region46: #{game_rules_encoder.2} parent=15 // pred_check_branch
        %590 = sbr.rel (%p588) target = $region48
      $region47: #{game_rules_encoder.2} parent=15 // pred_region
        %p591 = scmp.lt.s32.totalorder %s24, 1
        %s592 = scalar_select %p591, %s24, 1
        %s593 = smul.addr %s592, 2
        %s594 = scalar_lea.vmem %s7, %s593
      $region48: #{game_rules_encoder.2} parent=15 // pred_fallthru
        _
      // Predicated region
      $region49: #{game_rules_encoder.2} parent=15 // pred_check
        %p595 = pneg %p252
      $region50: #{game_rules_encoder.2} parent=15 // pred_check_branch
        %597 = sbr.rel (%p595) target = $region52
      $region51: #{game_rules_encoder.2} parent=15 // pred_region
        %p598 = scmp.lt.s32.totalorder %s24, 1
        %s599 = scalar_select %p598, %s24, 1
        %s600 = smul.addr %s599, 2
        %s601 = scalar_lea.vmem %s8, %s600
      $region52: #{game_rules_encoder.2} parent=15 // pred_fallthru
        _
      // Predicated region
      $region53: #{game_rules_encoder.2} parent=15 // pred_check
        %p602 = pneg %p278
      $region54: #{game_rules_encoder.2} parent=15 // pred_check_branch
        %604 = sbr.rel (%p602) target = $region56
      $region55: #{game_rules_encoder.2} parent=15 // pred_region
        %p605 = scmp.lt.s32.totalorder %s24, 1
        %s606 = scalar_select %p605, %s24, 1
        %s607 = smul.addr %s606, 2
        %s608 = scalar_lea.vmem %s9, %s607
      $region56: #{game_rules_encoder.2} parent=15 // pred_fallthru
        _
      // Predicated region
      $region57: #{game_rules_encoder.2} parent=15 // pred_check
        %p609 = pneg %p304
      $region58: #{game_rules_encoder.2} parent=15 // pred_check_branch
        %611 = sbr.rel (%p609) target = $region60
      $region59: #{game_rules_encoder.2} parent=15 // pred_region
        %p612 = scmp.lt.s32.totalorder %s24, 1
        %s613 = scalar_select %p612, %s24, 1
        %s614 = smul.addr %s613, 8
        %s615 = smul.addr %s614, 8
        %s616 = scalar_lea.vmem %s10, %s615
      $region60: #{game_rules_encoder.2} parent=15 // pred_fallthru
        _
      // Predicated region
      $region61: #{game_rules_encoder.2} parent=15 // pred_check
        %p617 = pneg %p330
      $region62: #{game_rules_encoder.2} parent=15 // pred_check_branch
        %619 = sbr.rel (%p617) target = $region64
      $region63: #{game_rules_encoder.2} parent=15 // pred_region
        %p620 = scmp.lt.s32.totalorder %s24, 1
        %s621 = scalar_select %p620, %s24, 1
        %s622 = smul.addr %s621, 2
        %s623 = scalar_lea.vmem %s11, %s622
      $region64: #{game_rules_encoder.2} parent=15 // pred_fallthru
        _
      // Predicated region
      $region65: #{game_rules_encoder.2} parent=15 // pred_check
        %p624 = pneg %p356
      $region66: #{game_rules_encoder.2} parent=15 // pred_check_branch
        %626 = sbr.rel (%p624) target = $region68
      $region67: #{game_rules_encoder.2} parent=15 // pred_region
        %p627 = scmp.lt.s32.totalorder %s24, 1
        %s628 = scalar_select %p627, %s24, 1
        %s629 = smul.addr %s628, 16
        %s630 = smul.addr %s629, 8
        %s631 = scalar_lea.vmem %s12, %s630
      $region68: #{game_rules_encoder.2} parent=15 // pred_fallthru
        _
      // Predicated region
      $region69: #{game_rules_encoder.2} parent=15 // pred_check
        %p632 = pneg %p382
      $region70: #{game_rules_encoder.2} parent=15 // pred_check_branch
        %634 = sbr.rel (%p632) target = $region72
      $region71: #{game_rules_encoder.2} parent=15 // pred_region
        %p635 = scmp.lt.s32.totalorder %s24, 1
        %s636 = scalar_select %p635, %s24, 1
        %s637 = smul.addr %s636, 2
        %s638 = scalar_lea.vmem %s13, %s637
      $region72: #{game_rules_encoder.2} parent=15 // pred_fallthru
        _
      // Predicated region
      $region73: #{game_rules_encoder.2} parent=15 // pred_check
        %p639 = pneg %p408
      $region74: #{game_rules_encoder.2} parent=15 // pred_check_branch
        %641 = sbr.rel (%p639) target = $region76
      $region75: #{game_rules_encoder.2} parent=15 // pred_region
        %p642 = scmp.lt.s32.totalorder %s24, 1
        %s643 = scalar_select %p642, %s24, 1
        %s644 = smul.addr %s643, 2
        %s645 = scalar_lea.vmem %s14, %s644
      $region76: #{game_rules_encoder.2} parent=15 // pred_fallthru
        _
      // Predicated region
      $region77: #{game_rules_encoder.2} parent=15 // pred_check
        %p646 = pneg %p434
      $region78: #{game_rules_encoder.2} parent=15 // pred_check_branch
        %648 = sbr.rel (%p646) target = $region80
      $region79: #{game_rules_encoder.2} parent=15 // pred_region
        %p649 = scmp.lt.s32.totalorder %s24, 1
        %s650 = scalar_select %p649, %s24, 1
        %s651 = smul.addr %s650, 2
        %s652 = scalar_lea.vmem %s15, %s651
      $region80: #{game_rules_encoder.2} parent=15 // pred_fallthru
        _
      // Predicated region
      $region81: #{game_rules_encoder.2} parent=15 // pred_check
        %p653 = pneg %p460
      $region82: #{game_rules_encoder.2} parent=15 // pred_check_branch
        %655 = sbr.rel (%p653) target = $region84
      $region83: #{game_rules_encoder.2} parent=15 // pred_region
        %p656 = scmp.lt.s32.totalorder %s24, 1
        %s657 = scalar_select %p656, %s24, 1
        %s658 = smul.addr %s657, 4
        %s659 = smul.addr %s658, 8
        %s660 = scalar_lea.vmem %s16, %s659
      $region84: #{game_rules_encoder.2} parent=15 // pred_fallthru
        _
      // Predicated region
      $region85: #{game_rules_encoder.2} parent=15 // pred_check
        %p661 = pneg %p486
      $region86: #{game_rules_encoder.2} parent=15 // pred_check_branch
        %663 = sbr.rel (%p661) target = $region88
      $region87: #{game_rules_encoder.2} parent=15 // pred_region
        %p664 = scmp.lt.s32.totalorder %s24, 1
        %s665 = scalar_select %p664, %s24, 1
        %s666 = scalar_lea.vmem %s17, %s665
      $region88: #{game_rules_encoder.2} parent=15 // pred_fallthru
        _
    $region16: #{game_rules_encoder.2} parent=5 // pred_fallthru
      _
    %p667 = scmp.le.s32.totalorder 1, %s24
    %p668 = scmp.lt.s32.totalorder %s24, 3
    %p669 = pnand %p667, %p668
    %p670 = pneg %p669
    // Predicated region
    $region89: #{game_rules_encoder.2} parent=5 // pred_check
      _
    $region90: #{game_rules_encoder.2} parent=5 // pred_check_branch
      %672 = sbr.rel (%p669) target = $region92
    $region91: #{game_rules_encoder.2} parent=5 // pred_region
      %s673 = ssub.s32 %s24, 1
      %p674 = scmp.lt.s32.totalorder %s29, 1
      %s675 = scalar_select %p674, %s29, 1
      %s676 = smul.addr %s675, 2
      %s677 = smul.addr %s676, 8
      %s678 = scalar_lea.vmem %s0, %s677
      %p679 = pneg %p50
      %p680 = pneg %p47
      %p681 = scmp.lt.s32.totalorder %s29, 1
      %s682 = scalar_select %p681, %s29, 1
      %s683 = smul.addr %s682, 2
      %s684 = smul.addr %s683, 8
      %s685 = scalar_lea.vmem %s1, %s684
      %p686 = pneg %p76
      %p687 = pneg %p73
      %p688 = scmp.lt.s32.totalorder %s29, 1
      %s689 = scalar_select %p688, %s29, 1
      %s690 = scalar_lea.vmem %s2, %s689
      %p691 = pneg %p102
      %p692 = pneg %p99
      %p693 = scmp.lt.s32.totalorder %s29, 1
      %s694 = scalar_select %p693, %s29, 1
      %s695 = scalar_lea.vmem %s3, %s694
      %p696 = pneg %p128
      %p697 = pneg %p125
      %p698 = scmp.lt.s32.totalorder %s29, 1
      %s699 = scalar_select %p698, %s29, 1
      %s700 = smul.addr %s699, 8
      %s701 = smul.addr %s700, 8
      %s702 = scalar_lea.vmem %s4, %s701
      %p703 = pneg %p154
      %p704 = pneg %p151
      %p705 = scmp.lt.s32.totalorder %s29, 1
      %s706 = scalar_select %p705, %s29, 1
      %s707 = smul.addr %s706, 2
      %s708 = scalar_lea.vmem %s5, %s707
      %p709 = pneg %p180
      %p710 = pneg %p177
      %p711 = scmp.lt.s32.totalorder %s29, 1
      %s712 = scalar_select %p711, %s29, 1
      %s713 = smul.addr %s712, 8
      %s714 = smul.addr %s713, 8
      %s715 = scalar_lea.vmem %s6, %s714
      %p716 = pneg %p206
      %p717 = pneg %p203
      %p718 = scmp.lt.s32.totalorder %s29, 1
      %s719 = scalar_select %p718, %s29, 1
      %s720 = smul.addr %s719, 2
      %s721 = scalar_lea.vmem %s7, %s720
      %p722 = pneg %p232
      %p723 = pneg %p229
      %p724 = scmp.lt.s32.totalorder %s29, 1
      %s725 = scalar_select %p724, %s29, 1
      %s726 = smul.addr %s725, 2
      %s727 = scalar_lea.vmem %s8, %s726
      %p728 = pneg %p258
      %p729 = pneg %p255
      %p730 = scmp.lt.s32.totalorder %s29, 1
      %s731 = scalar_select %p730, %s29, 1
      %s732 = smul.addr %s731, 2
      %s733 = scalar_lea.vmem %s9, %s732
      %p734 = pneg %p284
      %p735 = pneg %p281
      %p736 = scmp.lt.s32.totalorder %s29, 1
      %s737 = scalar_select %p736, %s29, 1
      %s738 = smul.addr %s737, 8
      %s739 = smul.addr %s738, 8
      %s740 = scalar_lea.vmem %s10, %s739
      %p741 = pneg %p310
      %p742 = pneg %p307
      %p743 = scmp.lt.s32.totalorder %s29, 1
      %s744 = scalar_select %p743, %s29, 1
      %s745 = smul.addr %s744, 2
      %s746 = scalar_lea.vmem %s11, %s745
      %p747 = pneg %p336
      %p748 = pneg %p333
      %p749 = scmp.lt.s32.totalorder %s29, 1
      %s750 = scalar_select %p749, %s29, 1
      %s751 = smul.addr %s750, 16
      %s752 = smul.addr %s751, 8
      %s753 = scalar_lea.vmem %s12, %s752
      %p754 = pneg %p362
      %p755 = pneg %p359
      %p756 = scmp.lt.s32.totalorder %s29, 1
      %s757 = scalar_select %p756, %s29, 1
      %s758 = smul.addr %s757, 2
      %s759 = scalar_lea.vmem %s13, %s758
      %p760 = pneg %p388
      %p761 = pneg %p385
      %p762 = scmp.lt.s32.totalorder %s29, 1
      %s763 = scalar_select %p762, %s29, 1
      %s764 = smul.addr %s763, 2
      %s765 = scalar_lea.vmem %s14, %s764
      %p766 = pneg %p414
      %p767 = pneg %p411
      %p768 = scmp.lt.s32.totalorder %s29, 1
      %s769 = scalar_select %p768, %s29, 1
      %s770 = smul.addr %s769, 2
      %s771 = scalar_lea.vmem %s15, %s770
      %p772 = pneg %p440
      %p773 = pneg %p437
      %p774 = scmp.lt.s32.totalorder %s29, 1
      %s775 = scalar_select %p774, %s29, 1
      %s776 = smul.addr %s775, 4
      %s777 = smul.addr %s776, 8
      %s778 = scalar_lea.vmem %s16, %s777
      %p779 = pneg %p466
      %p780 = pneg %p463
      %p781 = scmp.lt.s32.totalorder %s29, 1
      %s782 = scalar_select %p781, %s29, 1
      %s783 = scalar_lea.vmem %s17, %s782
      %p784 = pneg %p492
      %p785 = pneg %p489
      %p786 = pneg %p518
      %p787 = pneg %p515
      %p788 = scmp.lt.s32.totalorder %s29, 1
      %s789 = scalar_select %p788, %s29, 1
      %s790 = smul.addr %s789, 2
      %s791 = scalar_lea.vmem %s18, %s790
      %p792 = scmp.lt.s32.totalorder %s29, 1
      %s793 = scalar_select %p792, %s29, 1
      %s794 = smul.addr %s793, 2
      %s795 = smul.addr %s794, 8
      %s796 = scalar_lea.vmem %s0, %s795
      %p797 = scmp.lt.s32.totalorder %s29, 1
      %s798 = scalar_select %p797, %s29, 1
      %s799 = smul.addr %s798, 2
      %s800 = smul.addr %s799, 8
      %s801 = scalar_lea.vmem %s1, %s800
      %p802 = scmp.lt.s32.totalorder %s29, 1
      %s803 = scalar_select %p802, %s29, 1
      %s804 = scalar_lea.vmem %s2, %s803
      %p805 = scmp.lt.s32.totalorder %s29, 1
      %s806 = scalar_select %p805, %s29, 1
      %s807 = scalar_lea.vmem %s3, %s806
      %p808 = scmp.lt.s32.totalorder %s29, 1
      %s809 = scalar_select %p808, %s29, 1
      %s810 = smul.addr %s809, 8
      %s811 = smul.addr %s810, 8
      %s812 = scalar_lea.vmem %s4, %s811
      %p813 = scmp.lt.s32.totalorder %s29, 1
      %s814 = scalar_select %p813, %s29, 1
      %s815 = smul.addr %s814, 2
      %s816 = scalar_lea.vmem %s5, %s815
      %p817 = scmp.lt.s32.totalorder %s29, 1
      %s818 = scalar_select %p817, %s29, 1
      %s819 = smul.addr %s818, 8
      %s820 = smul.addr %s819, 8
      %s821 = scalar_lea.vmem %s6, %s820
      %p822 = scmp.lt.s32.totalorder %s29, 1
      %s823 = scalar_select %p822, %s29, 1
      %s824 = smul.addr %s823, 2
      %s825 = scalar_lea.vmem %s7, %s824
      %p826 = scmp.lt.s32.totalorder %s29, 1
      %s827 = scalar_select %p826, %s29, 1
      %s828 = smul.addr %s827, 2
      %s829 = scalar_lea.vmem %s8, %s828
      %p830 = scmp.lt.s32.totalorder %s29, 1
      %s831 = scalar_select %p830, %s29, 1
      %s832 = smul.addr %s831, 2
      %s833 = scalar_lea.vmem %s9, %s832
      %p834 = scmp.lt.s32.totalorder %s29, 1
      %s835 = scalar_select %p834, %s29, 1
      %s836 = smul.addr %s835, 8
      %s837 = smul.addr %s836, 8
      %s838 = scalar_lea.vmem %s10, %s837
      %p839 = scmp.lt.s32.totalorder %s29, 1
      %s840 = scalar_select %p839, %s29, 1
      %s841 = smul.addr %s840, 2
      %s842 = scalar_lea.vmem %s11, %s841
      %p843 = scmp.lt.s32.totalorder %s29, 1
      %s844 = scalar_select %p843, %s29, 1
      %s845 = smul.addr %s844, 16
      %s846 = smul.addr %s845, 8
      %s847 = scalar_lea.vmem %s12, %s846
      %p848 = scmp.lt.s32.totalorder %s29, 1
      %s849 = scalar_select %p848, %s29, 1
      %s850 = smul.addr %s849, 2
      %s851 = scalar_lea.vmem %s13, %s850
      %p852 = scmp.lt.s32.totalorder %s29, 1
      %s853 = scalar_select %p852, %s29, 1
      %s854 = smul.addr %s853, 2
      %s855 = scalar_lea.vmem %s14, %s854
      %p856 = scmp.lt.s32.totalorder %s29, 1
      %s857 = scalar_select %p856, %s29, 1
      %s858 = smul.addr %s857, 2
      %s859 = scalar_lea.vmem %s15, %s858
      %p860 = scmp.lt.s32.totalorder %s29, 1
      %s861 = scalar_select %p860, %s29, 1
      %s862 = smul.addr %s861, 4
      %s863 = smul.addr %s862, 8
      %s864 = scalar_lea.vmem %s16, %s863
      %p865 = scmp.lt.s32.totalorder %s29, 1
      %s866 = scalar_select %p865, %s29, 1
      %s867 = scalar_lea.vmem %s17, %s866
      %p868 = scmp.lt.s32.totalorder %s29, 1
      %s869 = scalar_select %p868, %s29, 1
      %s870 = smul.addr %s869, 2
      %s871 = scalar_lea.vmem %s18, %s870
      %v872 = vld [vmem:[%s796] sm:$0xff]
      %v873 = vld [vmem:[%s796 + $0x8] sm:$0xff]
      %v874 = vld [vmem:[%s804] sm:$0x1]
      %v875 = vld [vmem:[%s807] sm:$0x1]
      %vm876 = vcmask 261120
      %v877 = vsel %vm876, %v872, 0.0
      %878 = vadd.xlane.f32.xlu0 %v877
      %v879 = vpop.xlane.xlu0 %878
      %v880 = vsel %vm876, %v873, 0.0
      %881 = vadd.xlane.f32.xlu0 %v880
      %v882 = vpop.xlane.xlu0 %881
      %v883 = vrcp.pop 32.0
      %v884 = vmul.f32 %v879, %v883
      %v885 = vmul.f32 %v882, %v883
      %v886 = vsub.f32 %v872, %v884
      %v887 = vsub.f32 %v873, %v885
      %v888 = vmul.f32 %v886, %v886
      %v889 = vmul.f32 %v887, %v887
      %v890 = vsel %vm876, %v888, 0.0
      %891 = vadd.xlane.f32.xlu0 %v890
      %v892 = vpop.xlane.xlu0 %891
      %v893 = vsel %vm876, %v889, 0.0
      %894 = vadd.xlane.f32.xlu0 %v893
      %v895 = vpop.xlane.xlu0 %894
      %v896 = vmul.f32 %v892, %v883
      %v897 = vmul.f32 %v895, %v883
      %v898 = vadd.f32 %v896, 1e-07
      %v899 = vadd.f32 %v897, 1e-07
      %v900 = vrsqrt.pop %v898
      %v901 = vrsqrt.pop %v899
      %v902 = vmul.f32 %v886, %v900
      %v903 = vmul.f32 %v887, %v901
      %v905 = vlaneseq
      %v906 = vshrl.u32 %v905, 7
      %v907 = vsub.s32 0, %v906
      %v908 = vrot.slane %v874, %v907
      %v910 = vmul.f32 %v902, %v908
      %v911 = vmul.f32 %v903, %v908
      %v913 = vlaneseq
      %v914 = vshrl.u32 %v913, 7
      %v915 = vsub.s32 0, %v914
      %v916 = vrot.slane %v875, %v915
      %v918 = vadd.f32 %v910, %v916
      %v919 = vadd.f32 %v911, %v916
      %v920 = vld [vmem:[%s812] sm:$0xff]
      %v921 = vld [vmem:[%s812 + $0x8] sm:$0xff]
      %v922 = vld [vmem:[%s812 + $0x10] sm:$0xff]
      %v923 = vld [vmem:[%s812 + $0x18] sm:$0xff]
      %v924 = vld [vmem:[%s816] sm:$0x1]
      %v926 = vlaneseq
      %v927 = vshrl.u32 %v926, 7
      %v928 = vsub.s32 0, %v927
      %v929 = vrot.slane %v924, %v928
      %v932 = vsel %vm876, %v918, 0
      %v935 = vsel %vm876, %v919, 0
      %937 = vmatprep.subr.mxu0 0.0
      %938 = vmatpush1.msra.mxu0 %v920
      %939 = vmatprep.subr.mxu0 0.0
      %940 = vmatpush1.msra.mxu0 %v921
      %941 = vmatprep.subr.mxu0 0.0
      %942 = vmatpush1.msra.mxu0 %v922
      %943 = vmatprep.subr.mxu0 0.0
      %944 = vmatpush1.msra.mxu0 %v923
      %945 = vmatprep.subr.mxu0 0.0
      %946 = vmatpush1.msra.mxu0 0.0
      %947 = vmatprep.subr.mxu0 0.0
      %948 = vmatpush1.msra.mxu0 0.0
      %949 = vmatprep.subr.mxu0 0.0
      %950 = vmatpush1.msra.mxu0 0.0
      %951 = vmatprep.subr.mxu0 0.0
      %952 = vmatpush1.msra.mxu0 0.0
      %953 = vmatprep.subr.mxu0 0.0
      %954 = vmatpush1.msra.mxu0 0.0
      %955 = vmatprep.subr.mxu0 0.0
      %956 = vmatpush1.msra.mxu0 0.0
      %957 = vmatprep.subr.mxu0 0.0
      %958 = vmatpush1.msra.mxu0 0.0
      %959 = vmatprep.subr.mxu0 0.0
      %960 = vmatpush1.msra.mxu0 0.0
      %961 = vmatprep.subr.mxu0 0.0
      %962 = vmatpush1.msra.mxu0 0.0
      %963 = vmatprep.subr.mxu0 0.0
      %964 = vmatpush1.msra.mxu0 0.0
      %965 = vmatprep.subr.mxu0 0.0
      %966 = vmatpush1.msra.mxu0 0.0
      %967 = vmatprep.subr.mxu0 0.0
      %968 = vmatpush1.msra.mxu0 0.0
      %969 = vmatprep.subr.mxu0 0.0
      %970 = vmatpush1.msra.mxu0 0.0
      %971 = vmatprep.subr.mxu0 0.0
      %972 = vmatpush1.msra.mxu0 0.0
      %973 = vmatprep.subr.mxu0 0.0
      %974 = vmatpush1.msra.mxu0 0.0
      %975 = vmatprep.subr.mxu0 0.0
      %976 = vmatpush1.msra.mxu0 0.0
      %977 = vmatprep.subr.mxu0 0.0
      %978 = vmatpush1.msra.mxu0 0.0
      %979 = vmatprep.subr.mxu0 0.0
      %980 = vmatpush1.msra.mxu0 0.0
      %981 = vmatprep.subr.mxu0 0.0
      %982 = vmatpush1.msra.mxu0 0.0
      %983 = vmatprep.subr.mxu0 0.0
      %984 = vmatpush1.msra.mxu0 0.0
      %985 = vmatprep.subr.mxu0 0.0
      %986 = vmatpush1.msra.mxu0 0.0
      %987 = vmatprep.subr.mxu0 0.0
      %988 = vmatpush1.msra.mxu0 0.0
      %989 = vmatprep.subr.mxu0 0.0
      %990 = vmatpush1.msra.mxu0 0.0
      %991 = vmatprep.subr.mxu0 0.0
      %992 = vmatpush1.msra.mxu0 0.0
      %993 = vmatprep.subr.mxu0 0.0
      %994 = vmatpush1.msra.mxu0 0.0
      %995 = vmatprep.subr.mxu0 0.0
      %996 = vmatpush1.msra.mxu0 0.0
      %997 = vmatprep.subr.mxu0 0.0
      %998 = vmatpush1.msra.mxu0 0.0
      %999 = vmatprep.subr.mxu0 0.0
      %1000 = vmatpush1.msra.mxu0 0.0
      %1001 = vmatprep.mubr.f32.mxu0 0.0
      %1002 = vmatmul.mubr.f32.gmra.mrb[0].mxu0 %v932
      %v1003 = vpop.f32.mrb[0].mxu0
      %v1004 = vadd.f32 %v929, %v1003
      %v1005 = vpop.f32.mrb[0].mxu0
      %1006 = vmatprep.mubr.f32.mxu0 0.0
      %1007 = vmatmul.mubr.f32.gmra.mrb[0].mxu0 %v935
      %v1008 = vpop.f32.mrb[0].mxu0
      %v1009 = vadd.f32 %v929, %v1008
      %v1010 = vpop.f32.mrb[0].mxu0
      %1011 = vdwg.mxu0
      %v1012 = vld [vmem:[%s801] sm:$0xff]
      %v1013 = vmul.f32 %v1004, 0.35355338
      %1015 = vrot.lane.b32.xlu0 %v1004, 96
      %v1016 = vpop.permute.xlu0 %1015
      %vm1017 = vcmask 64512
      %v1019 = vsel %vm1017, %v1013, 0
      %v1021 = vsel %vm1017, %v1016, 0
      %1023 = vmatprep.subr.mxu0 0.0
      %1024 = vmatpush1.xpose.msra.mxu0 %v1021
      %1025 = vmatprep.subr.mxu0 0.0
      %1026 = vmatpush1.xpose.msra.mxu0 0.0
      %1027 = vmatprep.subr.mxu0 0.0
      %1028 = vmatpush1.xpose.msra.mxu0 0.0
      %1029 = vmatprep.subr.mxu0 0.0
      %1030 = vmatpush1.xpose.msra.mxu0 0.0
      %1031 = vmatprep.subr.mxu0 0.0
      %1032 = vmatpush1.xpose.msra.mxu0 0.0
      %1033 = vmatprep.subr.mxu0 0.0
      %1034 = vmatpush1.xpose.msra.mxu0 0.0
      %1035 = vmatprep.subr.mxu0 0.0
      %1036 = vmatpush1.xpose.msra.mxu0 0.0
      %1037 = vmatprep.subr.mxu0 0.0
      %1038 = vmatpush1.xpose.msra.mxu0 0.0
      %1039 = vmatprep.subr.mxu0 0.0
      %1040 = vmatpush1.xpose.msra.mxu0 0.0
      %1041 = vmatprep.subr.mxu0 0.0
      %1042 = vmatpush1.xpose.msra.mxu0 0.0
      %1043 = vmatprep.subr.mxu0 0.0
      %1044 = vmatpush1.xpose.msra.mxu0 0.0
      %1045 = vmatprep.subr.mxu0 0.0
      %1046 = vmatpush1.xpose.msra.mxu0 0.0
      %1047 = vmatprep.subr.mxu0 0.0
      %1048 = vmatpush1.xpose.msra.mxu0 0.0
      %1049 = vmatprep.subr.mxu0 0.0
      %1050 = vmatpush1.xpose.msra.mxu0 0.0
      %1051 = vmatprep.subr.mxu0 0.0
      %1052 = vmatpush1.xpose.msra.mxu0 0.0
      %1053 = vmatprep.subr.mxu0 0.0
      %1054 = vmatpush1.xpose.msra.mxu0 0.0
      %1055 = vmatprep.subr.mxu0 0.0
      %1056 = vmatpush1.xpose.msra.mxu0 0.0
      %1057 = vmatprep.subr.mxu0 0.0
      %1058 = vmatpush1.xpose.msra.mxu0 0.0
      %1059 = vmatprep.subr.mxu0 0.0
      %1060 = vmatpush1.xpose.msra.mxu0 0.0
      %1061 = vmatprep.subr.mxu0 0.0
      %1062 = vmatpush1.xpose.msra.mxu0 0.0
      %1063 = vmatprep.subr.mxu0 0.0
      %1064 = vmatpush1.xpose.msra.mxu0 0.0
      %1065 = vmatprep.subr.mxu0 0.0
      %1066 = vmatpush1.xpose.msra.mxu0 0.0
      %1067 = vmatprep.subr.mxu0 0.0
      %1068 = vmatpush1.xpose.msra.mxu0 0.0
      %1069 = vmatprep.subr.mxu0 0.0
      %1070 = vmatpush1.xpose.msra.mxu0 0.0
      %1071 = vmatprep.subr.mxu0 0.0
      %1072 = vmatpush1.xpose.msra.mxu0 0.0
      %1073 = vmatprep.subr.mxu0 0.0
      %1074 = vmatpush1.xpose.msra.mxu0 0.0
      %1075 = vmatprep.subr.mxu0 0.0
      %1076 = vmatpush1.xpose.msra.mxu0 0.0
      %1077 = vmatprep.subr.mxu0 0.0
      %1078 = vmatpush1.xpose.msra.mxu0 0.0
      %1079 = vmatprep.subr.mxu0 0.0
      %1080 = vmatpush1.xpose.msra.mxu0 0.0
      %1081 = vmatprep.subr.mxu0 0.0
      %1082 = vmatpush1.xpose.msra.mxu0 0.0
      %1083 = vmatprep.subr.mxu0 0.0
      %1084 = vmatpush1.xpose.msra.mxu0 0.0
      %1085 = vmatprep.subr.mxu0 0.0
      %1086 = vmatpush1.xpose.msra.mxu0 0.0
      %1087 = vmatprep.mubr.f32.mxu0 0.0
      %1088 = vmatmul.mubr.f32.gmra.mrb[0].mxu0 %v1019
      %v1089 = vpop.f32.mrb[0].mxu0
      %v1090 = vadd.f32 %v1012, %v1089
      %v1091 = vpop.f32.mrb[0].mxu0
      %1092 = vdwg.mxu0
      %v1093 = vsel %vm1017, %v1090, -inf
      %1094 = vmax.xlane.f32.xlu0 %v1093
      %v1095 = vpop.xlane.xlu0 %1094
      %v1096 = vsub.f32 %v1090, %v1095
      %v1097 = vmul.f32 %v1096, 1.442695
      %v1098 = vpow.pop %v1097
      %v1099 = vsel %vm1017, %v1098, 0.0
      %1100 = vadd.xlane.f32.xlu0 %v1099
      %v1101 = vpop.xlane.xlu0 %1100
      %v1102 = vrcp.pop %v1101
      %v1103 = vmul.f32 %v1098, %v1102
      %1104 = vrot.lane.b32.xlu0 %v1004, 64
      %v1105 = vpop.permute.xlu0 %1104
      %v1108 = vsel %vm1017, %v1103, 0
      %1110 = vmatprep.subr.mxu0 0.0
      %1111 = vmatpush1.msra.mxu0 %v1105
      %1112 = vmatprep.subr.mxu0 0.0
      %1113 = vmatpush1.msra.mxu0 0.0
      %1114 = vmatprep.subr.mxu0 0.0
      %1115 = vmatpush1.msra.mxu0 0.0
      %1116 = vmatprep.subr.mxu0 0.0
      %1117 = vmatpush1.msra.mxu0 0.0
      %1118 = vmatprep.subr.mxu0 0.0
      %1119 = vmatpush1.msra.mxu0 0.0
      %1120 = vmatprep.subr.mxu0 0.0
      %1121 = vmatpush1.msra.mxu0 0.0
      %1122 = vmatprep.subr.mxu0 0.0
      %1123 = vmatpush1.msra.mxu0 0.0
      %1124 = vmatprep.subr.mxu0 0.0
      %1125 = vmatpush1.msra.mxu0 0.0
      %1126 = vmatprep.subr.mxu0 0.0
      %1127 = vmatpush1.msra.mxu0 0.0
      %1128 = vmatprep.subr.mxu0 0.0
      %1129 = vmatpush1.msra.mxu0 0.0
      %1130 = vmatprep.subr.mxu0 0.0
      %1131 = vmatpush1.msra.mxu0 0.0
      %1132 = vmatprep.subr.mxu0 0.0
      %1133 = vmatpush1.msra.mxu0 0.0
      %1134 = vmatprep.subr.mxu0 0.0
      %1135 = vmatpush1.msra.mxu0 0.0
      %1136 = vmatprep.subr.mxu0 0.0
      %1137 = vmatpush1.msra.mxu0 0.0
      %1138 = vmatprep.subr.mxu0 0.0
      %1139 = vmatpush1.msra.mxu0 0.0
      %1140 = vmatprep.subr.mxu0 0.0
      %1141 = vmatpush1.msra.mxu0 0.0
      %1142 = vmatprep.subr.mxu0 0.0
      %1143 = vmatpush1.msra.mxu0 0.0
      %1144 = vmatprep.subr.mxu0 0.0
      %1145 = vmatpush1.msra.mxu0 0.0
      %1146 = vmatprep.subr.mxu0 0.0
      %1147 = vmatpush1.msra.mxu0 0.0
      %1148 = vmatprep.subr.mxu0 0.0
      %1149 = vmatpush1.msra.mxu0 0.0
      %1150 = vmatprep.subr.mxu0 0.0
      %1151 = vmatpush1.msra.mxu0 0.0
      %1152 = vmatprep.subr.mxu0 0.0
      %1153 = vmatpush1.msra.mxu0 0.0
      %1154 = vmatprep.subr.mxu0 0.0
      %1155 = vmatpush1.msra.mxu0 0.0
      %1156 = vmatprep.subr.mxu0 0.0
      %1157 = vmatpush1.msra.mxu0 0.0
      %1158 = vmatprep.subr.mxu0 0.0
      %1159 = vmatpush1.msra.mxu0 0.0
      %1160 = vmatprep.subr.mxu0 0.0
      %1161 = vmatpush1.msra.mxu0 0.0
      %1162 = vmatprep.subr.mxu0 0.0
      %1163 = vmatpush1.msra.mxu0 0.0
      %1164 = vmatprep.subr.mxu0 0.0
      %1165 = vmatpush1.msra.mxu0 0.0
      %1166 = vmatprep.subr.mxu0 0.0
      %1167 = vmatpush1.msra.mxu0 0.0
      %1168 = vmatprep.subr.mxu0 0.0
      %1169 = vmatpush1.msra.mxu0 0.0
      %1170 = vmatprep.subr.mxu0 0.0
      %1171 = vmatpush1.msra.mxu0 0.0
      %1172 = vmatprep.subr.mxu0 0.0
      %1173 = vmatpush1.msra.mxu0 0.0
      %1174 = vmatprep.mubr.f32.mxu0 0.0
      %1175 = vmatmul.mubr.f32.gmra.mrb[0].mxu0 %v1108
      %v1176 = vpop.f32.mrb[0].mxu0
      %v1177 = vadd.f32 0.0, %v1176
      %v1178 = vpop.f32.mrb[0].mxu0
      %1179 = vdwg.mxu0
      %1180 = vst.msk [vmem:[#allocation2] sm:$0xff] %vm1017, %v1177
      %1181 = vrot.lane.b32.xlu0 %v1013, 120
      %v1182 = vpop.permute.xlu0 %1181
      %1183 = vrot.lane.b32.xlu0 %v1004, 88
      %v1184 = vpop.permute.xlu0 %1183
      %v1185 = vsel %vm1017, %v1182, 0
      %v1187 = vsel %vm1017, %v1184, 0
      %1189 = vmatprep.subr.mxu0 0.0
      %1190 = vmatpush1.xpose.msra.mxu0 %v1187
      %1191 = vmatprep.subr.mxu0 0.0
      %1192 = vmatpush1.xpose.msra.mxu0 0.0
      %1193 = vmatprep.subr.mxu0 0.0
      %1194 = vmatpush1.xpose.msra.mxu0 0.0
      %1195 = vmatprep.subr.mxu0 0.0
      %1196 = vmatpush1.xpose.msra.mxu0 0.0
      %1197 = vmatprep.subr.mxu0 0.0
      %1198 = vmatpush1.xpose.msra.mxu0 0.0
      %1199 = vmatprep.subr.mxu0 0.0
      %1200 = vmatpush1.xpose.msra.mxu0 0.0
      %1201 = vmatprep.subr.mxu0 0.0
      %1202 = vmatpush1.xpose.msra.mxu0 0.0
      %1203 = vmatprep.subr.mxu0 0.0
      %1204 = vmatpush1.xpose.msra.mxu0 0.0
      %1205 = vmatprep.subr.mxu0 0.0
      %1206 = vmatpush1.xpose.msra.mxu0 0.0
      %1207 = vmatprep.subr.mxu0 0.0
      %1208 = vmatpush1.xpose.msra.mxu0 0.0
      %1209 = vmatprep.subr.mxu0 0.0
      %1210 = vmatpush1.xpose.msra.mxu0 0.0
      %1211 = vmatprep.subr.mxu0 0.0
      %1212 = vmatpush1.xpose.msra.mxu0 0.0
      %1213 = vmatprep.subr.mxu0 0.0
      %1214 = vmatpush1.xpose.msra.mxu0 0.0
      %1215 = vmatprep.subr.mxu0 0.0
      %1216 = vmatpush1.xpose.msra.mxu0 0.0
      %1217 = vmatprep.subr.mxu0 0.0
      %1218 = vmatpush1.xpose.msra.mxu0 0.0
      %1219 = vmatprep.subr.mxu0 0.0
      %1220 = vmatpush1.xpose.msra.mxu0 0.0
      %1221 = vmatprep.subr.mxu0 0.0
      %1222 = vmatpush1.xpose.msra.mxu0 0.0
      %1223 = vmatprep.subr.mxu0 0.0
      %1224 = vmatpush1.xpose.msra.mxu0 0.0
      %1225 = vmatprep.subr.mxu0 0.0
      %1226 = vmatpush1.xpose.msra.mxu0 0.0
      %1227 = vmatprep.subr.mxu0 0.0
      %1228 = vmatpush1.xpose.msra.mxu0 0.0
      %1229 = vmatprep.subr.mxu0 0.0
      %1230 = vmatpush1.xpose.msra.mxu0 0.0
      %1231 = vmatprep.subr.mxu0 0.0
      %1232 = vmatpush1.xpose.msra.mxu0 0.0
      %1233 = vmatprep.subr.mxu0 0.0
      %1234 = vmatpush1.xpose.msra.mxu0 0.0
      %1235 = vmatprep.subr.mxu0 0.0
      %1236 = vmatpush1.xpose.msra.mxu0 0.0
      %1237 = vmatprep.subr.mxu0 0.0
      %1238 = vmatpush1.xpose.msra.mxu0 0.0
      %1239 = vmatprep.subr.mxu0 0.0
      %1240 = vmatpush1.xpose.msra.mxu0 0.0
      %1241 = vmatprep.subr.mxu0 0.0
      %1242 = vmatpush1.xpose.msra.mxu0 0.0
      %1243 = vmatprep.subr.mxu0 0.0
      %1244 = vmatpush1.xpose.msra.mxu0 0.0
      %1245 = vmatprep.subr.mxu0 0.0
      %1246 = vmatpush1.xpose.msra.mxu0 0.0
      %1247 = vmatprep.subr.mxu0 0.0
      %1248 = vmatpush1.xpose.msra.mxu0 0.0
      %1249 = vmatprep.subr.mxu0 0.0
      %1250 = vmatpush1.xpose.msra.mxu0 0.0
      %1251 = vmatprep.subr.mxu0 0.0
      %1252 = vmatpush1.xpose.msra.mxu0 0.0
      %1253 = vmatprep.mubr.f32.mxu0 0.0
      %1254 = vmatmul.mubr.f32.gmra.mrb[0].mxu0 %v1185
      %v1255 = vpop.f32.mrb[0].mxu0
      %v1256 = vadd.f32 %v1012, %v1255
      %v1257 = vpop.f32.mrb[0].mxu0
      %1258 = vdwg.mxu0
      %v1259 = vsel %vm1017, %v1256, -inf
      %1260 = vmax.xlane.f32.xlu0 %v1259
      %v1261 = vpop.xlane.xlu0 %1260
      %v1262 = vsub.f32 %v1256, %v1261
      %v1263 = vmul.f32 %v1262, 1.442695
      %v1264 = vpow.pop %v1263
      %v1265 = vsel %vm1017, %v1264, 0.0
      %1266 = vadd.xlane.f32.xlu0 %v1265
      %v1267 = vpop.xlane.xlu0 %1266
      %v1268 = vrcp.pop %v1267
      %v1269 = vmul.f32 %v1264, %v1268
      %1270 = vrot.lane.b32.xlu0 %v1004, 56
      %v1271 = vpop.permute.xlu0 %1270
      %v1274 = vsel %vm1017, %v1269, 0
      %1276 = vmatprep.subr.mxu0 0.0
      %1277 = vmatpush1.msra.mxu0 %v1271
      %1278 = vmatprep.subr.mxu0 0.0
      %1279 = vmatpush1.msra.mxu0 0.0
      %1280 = vmatprep.subr.mxu0 0.0
      %1281 = vmatpush1.msra.mxu0 0.0
      %1282 = vmatprep.subr.mxu0 0.0
      %1283 = vmatpush1.msra.mxu0 0.0
      %1284 = vmatprep.subr.mxu0 0.0
      %1285 = vmatpush1.msra.mxu0 0.0
      %1286 = vmatprep.subr.mxu0 0.0
      %1287 = vmatpush1.msra.mxu0 0.0
      %1288 = vmatprep.subr.mxu0 0.0
      %1289 = vmatpush1.msra.mxu0 0.0
      %1290 = vmatprep.subr.mxu0 0.0
      %1291 = vmatpush1.msra.mxu0 0.0
      %1292 = vmatprep.subr.mxu0 0.0
      %1293 = vmatpush1.msra.mxu0 0.0
      %1294 = vmatprep.subr.mxu0 0.0
      %1295 = vmatpush1.msra.mxu0 0.0
      %1296 = vmatprep.subr.mxu0 0.0
      %1297 = vmatpush1.msra.mxu0 0.0
      %1298 = vmatprep.subr.mxu0 0.0
      %1299 = vmatpush1.msra.mxu0 0.0
      %1300 = vmatprep.subr.mxu0 0.0
      %1301 = vmatpush1.msra.mxu0 0.0
      %1302 = vmatprep.subr.mxu0 0.0
      %1303 = vmatpush1.msra.mxu0 0.0
      %1304 = vmatprep.subr.mxu0 0.0
      %1305 = vmatpush1.msra.mxu0 0.0
      %1306 = vmatprep.subr.mxu0 0.0
      %1307 = vmatpush1.msra.mxu0 0.0
      %1308 = vmatprep.subr.mxu0 0.0
      %1309 = vmatpush1.msra.mxu0 0.0
      %1310 = vmatprep.subr.mxu0 0.0
      %1311 = vmatpush1.msra.mxu0 0.0
      %1312 = vmatprep.subr.mxu0 0.0
      %1313 = vmatpush1.msra.mxu0 0.0
      %1314 = vmatprep.subr.mxu0 0.0
      %1315 = vmatpush1.msra.mxu0 0.0
      %1316 = vmatprep.subr.mxu0 0.0
      %1317 = vmatpush1.msra.mxu0 0.0
      %1318 = vmatprep.subr.mxu0 0.0
      %1319 = vmatpush1.msra.mxu0 0.0
      %1320 = vmatprep.subr.mxu0 0.0
      %1321 = vmatpush1.msra.mxu0 0.0
      %1322 = vmatprep.subr.mxu0 0.0
      %1323 = vmatpush1.msra.mxu0 0.0
      %1324 = vmatprep.subr.mxu0 0.0
      %1325 = vmatpush1.msra.mxu0 0.0
      %1326 = vmatprep.subr.mxu0 0.0
      %1327 = vmatpush1.msra.mxu0 0.0
      %1328 = vmatprep.subr.mxu0 0.0
      %1329 = vmatpush1.msra.mxu0 0.0
      %1330 = vmatprep.subr.mxu0 0.0
      %1331 = vmatpush1.msra.mxu0 0.0
      %1332 = vmatprep.subr.mxu0 0.0
      %1333 = vmatpush1.msra.mxu0 0.0
      %1334 = vmatprep.subr.mxu0 0.0
      %1335 = vmatpush1.msra.mxu0 0.0
      %1336 = vmatprep.subr.mxu0 0.0
      %1337 = vmatpush1.msra.mxu0 0.0
      %1338 = vmatprep.subr.mxu0 0.0
      %1339 = vmatpush1.msra.mxu0 0.0
      %1340 = vmatprep.mubr.f32.mxu0 0.0
      %1341 = vmatmul.mubr.f32.gmra.mrb[0].mxu0 %v1274
      %v1342 = vpop.f32.mrb[0].mxu0
      %v1343 = vadd.f32 0.0, %v1342
      %v1344 = vpop.f32.mrb[0].mxu0
      %1345 = vdwg.mxu0
      %1347 = vrot.lane.b32.xlu0 %v1343, 8
      %v1348 = vpop.permute.xlu0 %1347
      %vm1350 = vcmask 130112
      %1351 = vst.msk [vmem:[#allocation2] sm:$0xff] %vm1350, %v1348
      %1352 = vrot.lane.b32.xlu0 %v1013, 112
      %v1353 = vpop.permute.xlu0 %1352
      %1354 = vrot.lane.b32.xlu0 %v1004, 80
      %v1355 = vpop.permute.xlu0 %1354
      %v1356 = vsel %vm1017, %v1353, 0
      %v1358 = vsel %vm1017, %v1355, 0
      %1360 = vmatprep.subr.mxu0 0.0
      %1361 = vmatpush1.xpose.msra.mxu0 %v1358
      %1362 = vmatprep.subr.mxu0 0.0
      %1363 = vmatpush1.xpose.msra.mxu0 0.0
      %1364 = vmatprep.subr.mxu0 0.0
      %1365 = vmatpush1.xpose.msra.mxu0 0.0
      %1366 = vmatprep.subr.mxu0 0.0
      %1367 = vmatpush1.xpose.msra.mxu0 0.0
      %1368 = vmatprep.subr.mxu0 0.0
      %1369 = vmatpush1.xpose.msra.mxu0 0.0
      %1370 = vmatprep.subr.mxu0 0.0
      %1371 = vmatpush1.xpose.msra.mxu0 0.0
      %1372 = vmatprep.subr.mxu0 0.0
      %1373 = vmatpush1.xpose.msra.mxu0 0.0
      %1374 = vmatprep.subr.mxu0 0.0
      %1375 = vmatpush1.xpose.msra.mxu0 0.0
      %1376 = vmatprep.subr.mxu0 0.0
      %1377 = vmatpush1.xpose.msra.mxu0 0.0
      %1378 = vmatprep.subr.mxu0 0.0
      %1379 = vmatpush1.xpose.msra.mxu0 0.0
      %1380 = vmatprep.subr.mxu0 0.0
      %1381 = vmatpush1.xpose.msra.mxu0 0.0
      %1382 = vmatprep.subr.mxu0 0.0
      %1383 = vmatpush1.xpose.msra.mxu0 0.0
      %1384 = vmatprep.subr.mxu0 0.0
      %1385 = vmatpush1.xpose.msra.mxu0 0.0
      %1386 = vmatprep.subr.mxu0 0.0
      %1387 = vmatpush1.xpose.msra.mxu0 0.0
      %1388 = vmatprep.subr.mxu0 0.0
      %1389 = vmatpush1.xpose.msra.mxu0 0.0
      %1390 = vmatprep.subr.mxu0 0.0
      %1391 = vmatpush1.xpose.msra.mxu0 0.0
      %1392 = vmatprep.subr.mxu0 0.0
      %1393 = vmatpush1.xpose.msra.mxu0 0.0
      %1394 = vmatprep.subr.mxu0 0.0
      %1395 = vmatpush1.xpose.msra.mxu0 0.0
      %1396 = vmatprep.subr.mxu0 0.0
      %1397 = vmatpush1.xpose.msra.mxu0 0.0
      %1398 = vmatprep.subr.mxu0 0.0
      %1399 = vmatpush1.xpose.msra.mxu0 0.0
      %1400 = vmatprep.subr.mxu0 0.0
      %1401 = vmatpush1.xpose.msra.mxu0 0.0
      %1402 = vmatprep.subr.mxu0 0.0
      %1403 = vmatpush1.xpose.msra.mxu0 0.0
      %1404 = vmatprep.subr.mxu0 0.0
      %1405 = vmatpush1.xpose.msra.mxu0 0.0
      %1406 = vmatprep.subr.mxu0 0.0
      %1407 = vmatpush1.xpose.msra.mxu0 0.0
      %1408 = vmatprep.subr.mxu0 0.0
      %1409 = vmatpush1.xpose.msra.mxu0 0.0
      %1410 = vmatprep.subr.mxu0 0.0
      %1411 = vmatpush1.xpose.msra.mxu0 0.0
      %1412 = vmatprep.subr.mxu0 0.0
      %1413 = vmatpush1.xpose.msra.mxu0 0.0
      %1414 = vmatprep.subr.mxu0 0.0
      %1415 = vmatpush1.xpose.msra.mxu0 0.0
      %1416 = vmatprep.subr.mxu0 0.0
      %1417 = vmatpush1.xpose.msra.mxu0 0.0
      %1418 = vmatprep.subr.mxu0 0.0
      %1419 = vmatpush1.xpose.msra.mxu0 0.0
      %1420 = vmatprep.subr.mxu0 0.0
      %1421 = vmatpush1.xpose.msra.mxu0 0.0
      %1422 = vmatprep.subr.mxu0 0.0
      %1423 = vmatpush1.xpose.msra.mxu0 0.0
      %1424 = vmatprep.mubr.f32.mxu0 0.0
      %1425 = vmatmul.mubr.f32.gmra.mrb[0].mxu0 %v1356
      %v1426 = vpop.f32.mrb[0].mxu0
      %v1427 = vadd.f32 %v1012, %v1426
      %v1428 = vpop.f32.mrb[0].mxu0
      %1429 = vdwg.mxu0
      %v1430 = vsel %vm1017, %v1427, -inf
      %1431 = vmax.xlane.f32.xlu0 %v1430
      %v1432 = vpop.xlane.xlu0 %1431
      %v1433 = vsub.f32 %v1427, %v1432
      %v1434 = vmul.f32 %v1433, 1.442695
      %v1435 = vpow.pop %v1434
      %v1436 = vsel %vm1017, %v1435, 0.0
      %1437 = vadd.xlane.f32.xlu0 %v1436
      %v1438 = vpop.xlane.xlu0 %1437
      %v1439 = vrcp.pop %v1438
      %v1440 = vmul.f32 %v1435, %v1439
      %1441 = vrot.lane.b32.xlu0 %v1004, 48
      %v1442 = vpop.permute.xlu0 %1441
      %v1445 = vsel %vm1017, %v1440, 0
      %1447 = vmatprep.subr.mxu0 0.0
      %1448 = vmatpush1.msra.mxu0 %v1442
      %1449 = vmatprep.subr.mxu0 0.0
      %1450 = vmatpush1.msra.mxu0 0.0
      %1451 = vmatprep.subr.mxu0 0.0
      %1452 = vmatpush1.msra.mxu0 0.0
      %1453 = vmatprep.subr.mxu0 0.0
      %1454 = vmatpush1.msra.mxu0 0.0
      %1455 = vmatprep.subr.mxu0 0.0
      %1456 = vmatpush1.msra.mxu0 0.0
      %1457 = vmatprep.subr.mxu0 0.0
      %1458 = vmatpush1.msra.mxu0 0.0
      %1459 = vmatprep.subr.mxu0 0.0
      %1460 = vmatpush1.msra.mxu0 0.0
      %1461 = vmatprep.subr.mxu0 0.0
      %1462 = vmatpush1.msra.mxu0 0.0
      %1463 = vmatprep.subr.mxu0 0.0
      %1464 = vmatpush1.msra.mxu0 0.0
      %1465 = vmatprep.subr.mxu0 0.0
      %1466 = vmatpush1.msra.mxu0 0.0
      %1467 = vmatprep.subr.mxu0 0.0
      %1468 = vmatpush1.msra.mxu0 0.0
      %1469 = vmatprep.subr.mxu0 0.0
      %1470 = vmatpush1.msra.mxu0 0.0
      %1471 = vmatprep.subr.mxu0 0.0
      %1472 = vmatpush1.msra.mxu0 0.0
      %1473 = vmatprep.subr.mxu0 0.0
      %1474 = vmatpush1.msra.mxu0 0.0
      %1475 = vmatprep.subr.mxu0 0.0
      %1476 = vmatpush1.msra.mxu0 0.0
      %1477 = vmatprep.subr.mxu0 0.0
      %1478 = vmatpush1.msra.mxu0 0.0
      %1479 = vmatprep.subr.mxu0 0.0
      %1480 = vmatpush1.msra.mxu0 0.0
      %1481 = vmatprep.subr.mxu0 0.0
      %1482 = vmatpush1.msra.mxu0 0.0
      %1483 = vmatprep.subr.mxu0 0.0
      %1484 = vmatpush1.msra.mxu0 0.0
      %1485 = vmatprep.subr.mxu0 0.0
      %1486 = vmatpush1.msra.mxu0 0.0
      %1487 = vmatprep.subr.mxu0 0.0
      %1488 = vmatpush1.msra.mxu0 0.0
      %1489 = vmatprep.subr.mxu0 0.0
      %1490 = vmatpush1.msra.mxu0 0.0
      %1491 = vmatprep.subr.mxu0 0.0
      %1492 = vmatpush1.msra.mxu0 0.0
      %1493 = vmatprep.subr.mxu0 0.0
      %1494 = vmatpush1.msra.mxu0 0.0
      %1495 = vmatprep.subr.mxu0 0.0
      %1496 = vmatpush1.msra.mxu0 0.0
      %1497 = vmatprep.subr.mxu0 0.0
      %1498 = vmatpush1.msra.mxu0 0.0
      %1499 = vmatprep.subr.mxu0 0.0
      %1500 = vmatpush1.msra.mxu0 0.0
      %1501 = vmatprep.subr.mxu0 0.0
      %1502 = vmatpush1.msra.mxu0 0.0
      %1503 = vmatprep.subr.mxu0 0.0
      %1504 = vmatpush1.msra.mxu0 0.0
      %1505 = vmatprep.subr.mxu0 0.0
      %1506 = vmatpush1.msra.mxu0 0.0
      %1507 = vmatprep.subr.mxu0 0.0
      %1508 = vmatpush1.msra.mxu0 0.0
      %1509 = vmatprep.subr.mxu0 0.0
      %1510 = vmatpush1.msra.mxu0 0.0
      %1511 = vmatprep.mubr.f32.mxu0 0.0
      %1512 = vmatmul.mubr.f32.gmra.mrb[0].mxu0 %v1445
      %v1513 = vpop.f32.mrb[0].mxu0
      %v1514 = vadd.f32 0.0, %v1513
      %v1515 = vpop.f32.mrb[0].mxu0
      %1516 = vdwg.mxu0
      %1518 = vrot.lane.b32.xlu0 %v1514, 16
      %v1519 = vpop.permute.xlu0 %1518
      %vm1521 = vcmask 195712
      %1522 = vst.msk [vmem:[#allocation2] sm:$0xff] %vm1521, %v1519
      %1523 = vrot.lane.b32.xlu0 %v1013, 104
      %v1524 = vpop.permute.xlu0 %1523
      %1525 = vrot.lane.b32.xlu0 %v1004, 72
      %v1526 = vpop.permute.xlu0 %1525
      %v1527 = vsel %vm1017, %v1524, 0
      %v1529 = vsel %vm1017, %v1526, 0
      %1531 = vmatprep.subr.mxu0 0.0
      %1532 = vmatpush1.xpose.msra.mxu0 %v1529
      %1533 = vmatprep.subr.mxu0 0.0
      %1534 = vmatpush1.xpose.msra.mxu0 0.0
      %1535 = vmatprep.subr.mxu0 0.0
      %1536 = vmatpush1.xpose.msra.mxu0 0.0
      %1537 = vmatprep.subr.mxu0 0.0
      %1538 = vmatpush1.xpose.msra.mxu0 0.0
      %1539 = vmatprep.subr.mxu0 0.0
      %1540 = vmatpush1.xpose.msra.mxu0 0.0
      %1541 = vmatprep.subr.mxu0 0.0
      %1542 = vmatpush1.xpose.msra.mxu0 0.0
      %1543 = vmatprep.subr.mxu0 0.0
      %1544 = vmatpush1.xpose.msra.mxu0 0.0
      %1545 = vmatprep.subr.mxu0 0.0
      %1546 = vmatpush1.xpose.msra.mxu0 0.0
      %1547 = vmatprep.subr.mxu0 0.0
      %1548 = vmatpush1.xpose.msra.mxu0 0.0
      %1549 = vmatprep.subr.mxu0 0.0
      %1550 = vmatpush1.xpose.msra.mxu0 0.0
      %1551 = vmatprep.subr.mxu0 0.0
      %1552 = vmatpush1.xpose.msra.mxu0 0.0
      %1553 = vmatprep.subr.mxu0 0.0
      %1554 = vmatpush1.xpose.msra.mxu0 0.0
      %1555 = vmatprep.subr.mxu0 0.0
      %1556 = vmatpush1.xpose.msra.mxu0 0.0
      %1557 = vmatprep.subr.mxu0 0.0
      %1558 = vmatpush1.xpose.msra.mxu0 0.0
      %1559 = vmatprep.subr.mxu0 0.0
      %1560 = vmatpush1.xpose.msra.mxu0 0.0
      %1561 = vmatprep.subr.mxu0 0.0
      %1562 = vmatpush1.xpose.msra.mxu0 0.0
      %1563 = vmatprep.subr.mxu0 0.0
      %1564 = vmatpush1.xpose.msra.mxu0 0.0
      %1565 = vmatprep.subr.mxu0 0.0
      %1566 = vmatpush1.xpose.msra.mxu0 0.0
      %1567 = vmatprep.subr.mxu0 0.0
      %1568 = vmatpush1.xpose.msra.mxu0 0.0
      %1569 = vmatprep.subr.mxu0 0.0
      %1570 = vmatpush1.xpose.msra.mxu0 0.0
      %1571 = vmatprep.subr.mxu0 0.0
      %1572 = vmatpush1.xpose.msra.mxu0 0.0
      %1573 = vmatprep.subr.mxu0 0.0
      %1574 = vmatpush1.xpose.msra.mxu0 0.0
      %1575 = vmatprep.subr.mxu0 0.0
      %1576 = vmatpush1.xpose.msra.mxu0 0.0
      %1577 = vmatprep.subr.mxu0 0.0
      %1578 = vmatpush1.xpose.msra.mxu0 0.0
      %1579 = vmatprep.subr.mxu0 0.0
      %1580 = vmatpush1.xpose.msra.mxu0 0.0
      %1581 = vmatprep.subr.mxu0 0.0
      %1582 = vmatpush1.xpose.msra.mxu0 0.0
      %1583 = vmatprep.subr.mxu0 0.0
      %1584 = vmatpush1.xpose.msra.mxu0 0.0
      %1585 = vmatprep.subr.mxu0 0.0
      %1586 = vmatpush1.xpose.msra.mxu0 0.0
      %1587 = vmatprep.subr.mxu0 0.0
      %1588 = vmatpush1.xpose.msra.mxu0 0.0
      %1589 = vmatprep.subr.mxu0 0.0
      %1590 = vmatpush1.xpose.msra.mxu0 0.0
      %1591 = vmatprep.subr.mxu0 0.0
      %1592 = vmatpush1.xpose.msra.mxu0 0.0
      %1593 = vmatprep.subr.mxu0 0.0
      %1594 = vmatpush1.xpose.msra.mxu0 0.0
      %1595 = vmatprep.mubr.f32.mxu0 0.0
      %1596 = vmatmul.mubr.f32.gmra.mrb[0].mxu0 %v1527
      %v1597 = vpop.f32.mrb[0].mxu0
      %v1598 = vadd.f32 %v1012, %v1597
      %v1599 = vpop.f32.mrb[0].mxu0
      %1600 = vdwg.mxu0
      %v1601 = vsel %vm1017, %v1598, -inf
      %1602 = vmax.xlane.f32.xlu0 %v1601
      %v1603 = vpop.xlane.xlu0 %1602
      %v1604 = vsub.f32 %v1598, %v1603
      %v1605 = vmul.f32 %v1604, 1.442695
      %v1606 = vpow.pop %v1605
      %v1607 = vsel %vm1017, %v1606, 0.0
      %1608 = vadd.xlane.f32.xlu0 %v1607
      %v1609 = vpop.xlane.xlu0 %1608
      %v1610 = vrcp.pop %v1609
      %v1611 = vmul.f32 %v1606, %v1610
      %1612 = vrot.lane.b32.xlu0 %v1004, 40
      %v1613 = vpop.permute.xlu0 %1612
      %v1616 = vsel %vm1017, %v1611, 0
      %1618 = vmatprep.subr.mxu0 0.0
      %1619 = vmatpush1.msra.mxu0 %v1613
      %1620 = vmatprep.subr.mxu0 0.0
      %1621 = vmatpush1.msra.mxu0 0.0
      %1622 = vmatprep.subr.mxu0 0.0
      %1623 = vmatpush1.msra.mxu0 0.0
      %1624 = vmatprep.subr.mxu0 0.0
      %1625 = vmatpush1.msra.mxu0 0.0
      %1626 = vmatprep.subr.mxu0 0.0
      %1627 = vmatpush1.msra.mxu0 0.0
      %1628 = vmatprep.subr.mxu0 0.0
      %1629 = vmatpush1.msra.mxu0 0.0
      %1630 = vmatprep.subr.mxu0 0.0
      %1631 = vmatpush1.msra.mxu0 0.0
      %1632 = vmatprep.subr.mxu0 0.0
      %1633 = vmatpush1.msra.mxu0 0.0
      %1634 = vmatprep.subr.mxu0 0.0
      %1635 = vmatpush1.msra.mxu0 0.0
      %1636 = vmatprep.subr.mxu0 0.0
      %1637 = vmatpush1.msra.mxu0 0.0
      %1638 = vmatprep.subr.mxu0 0.0
      %1639 = vmatpush1.msra.mxu0 0.0
      %1640 = vmatprep.subr.mxu0 0.0
      %1641 = vmatpush1.msra.mxu0 0.0
      %1642 = vmatprep.subr.mxu0 0.0
      %1643 = vmatpush1.msra.mxu0 0.0
      %1644 = vmatprep.subr.mxu0 0.0
      %1645 = vmatpush1.msra.mxu0 0.0
      %1646 = vmatprep.subr.mxu0 0.0
      %1647 = vmatpush1.msra.mxu0 0.0
      %1648 = vmatprep.subr.mxu0 0.0
      %1649 = vmatpush1.msra.mxu0 0.0
      %1650 = vmatprep.subr.mxu0 0.0
      %1651 = vmatpush1.msra.mxu0 0.0
      %1652 = vmatprep.subr.mxu0 0.0
      %1653 = vmatpush1.msra.mxu0 0.0
      %1654 = vmatprep.subr.mxu0 0.0
      %1655 = vmatpush1.msra.mxu0 0.0
      %1656 = vmatprep.subr.mxu0 0.0
      %1657 = vmatpush1.msra.mxu0 0.0
      %1658 = vmatprep.subr.mxu0 0.0
      %1659 = vmatpush1.msra.mxu0 0.0
      %1660 = vmatprep.subr.mxu0 0.0
      %1661 = vmatpush1.msra.mxu0 0.0
      %1662 = vmatprep.subr.mxu0 0.0
      %1663 = vmatpush1.msra.mxu0 0.0
      %1664 = vmatprep.subr.mxu0 0.0
      %1665 = vmatpush1.msra.mxu0 0.0
      %1666 = vmatprep.subr.mxu0 0.0
      %1667 = vmatpush1.msra.mxu0 0.0
      %1668 = vmatprep.subr.mxu0 0.0
      %1669 = vmatpush1.msra.mxu0 0.0
      %1670 = vmatprep.subr.mxu0 0.0
      %1671 = vmatpush1.msra.mxu0 0.0
      %1672 = vmatprep.subr.mxu0 0.0
      %1673 = vmatpush1.msra.mxu0 0.0
      %1674 = vmatprep.subr.mxu0 0.0
      %1675 = vmatpush1.msra.mxu0 0.0
      %1676 = vmatprep.subr.mxu0 0.0
      %1677 = vmatpush1.msra.mxu0 0.0
      %1678 = vmatprep.subr.mxu0 0.0
      %1679 = vmatpush1.msra.mxu0 0.0
      %1680 = vmatprep.subr.mxu0 0.0
      %1681 = vmatpush1.msra.mxu0 0.0
      %1682 = vmatprep.mubr.f32.mxu0 0.0
      %1683 = vmatmul.mubr.f32.gmra.mrb[0].mxu0 %v1616
      %v1684 = vpop.f32.mrb[0].mxu0
      %v1685 = vadd.f32 0.0, %v1684
      %v1686 = vpop.f32.mrb[0].mxu0
      %1687 = vdwg.mxu0
      %1689 = vrot.lane.b32.xlu0 %v1685, 24
      %v1690 = vpop.permute.xlu0 %1689
      %vm1692 = vcmask 261312
      %1693 = vst.msk [vmem:[#allocation2] sm:$0xff] %vm1692, %v1690
      %s1694 = scalar_lea.vmem %s801, 8
      %v1695 = vld [vmem:[%s1694] sm:$0xff]
      %v1696 = vmul.f32 %v1009, 0.35355338
      %1698 = vrot.lane.b32.xlu0 %v1009, 96
      %v1699 = vpop.permute.xlu0 %1698
      %v1701 = vsel %vm1017, %v1696, 0
      %v1703 = vsel %vm1017, %v1699, 0
      %1705 = vmatprep.subr.mxu0 0.0
      %1706 = vmatpush1.xpose.msra.mxu0 %v1703
      %1707 = vmatprep.subr.mxu0 0.0
      %1708 = vmatpush1.xpose.msra.mxu0 0.0
      %1709 = vmatprep.subr.mxu0 0.0
      %1710 = vmatpush1.xpose.msra.mxu0 0.0
      %1711 = vmatprep.subr.mxu0 0.0
      %1712 = vmatpush1.xpose.msra.mxu0 0.0
      %1713 = vmatprep.subr.mxu0 0.0
      %1714 = vmatpush1.xpose.msra.mxu0 0.0
      %1715 = vmatprep.subr.mxu0 0.0
      %1716 = vmatpush1.xpose.msra.mxu0 0.0
      %1717 = vmatprep.subr.mxu0 0.0
      %1718 = vmatpush1.xpose.msra.mxu0 0.0
      %1719 = vmatprep.subr.mxu0 0.0
      %1720 = vmatpush1.xpose.msra.mxu0 0.0
      %1721 = vmatprep.subr.mxu0 0.0
      %1722 = vmatpush1.xpose.msra.mxu0 0.0
      %1723 = vmatprep.subr.mxu0 0.0
      %1724 = vmatpush1.xpose.msra.mxu0 0.0
      %1725 = vmatprep.subr.mxu0 0.0
      %1726 = vmatpush1.xpose.msra.mxu0 0.0
      %1727 = vmatprep.subr.mxu0 0.0
      %1728 = vmatpush1.xpose.msra.mxu0 0.0
      %1729 = vmatprep.subr.mxu0 0.0
      %1730 = vmatpush1.xpose.msra.mxu0 0.0
      %1731 = vmatprep.subr.mxu0 0.0
      %1732 = vmatpush1.xpose.msra.mxu0 0.0
      %1733 = vmatprep.subr.mxu0 0.0
      %1734 = vmatpush1.xpose.msra.mxu0 0.0
      %1735 = vmatprep.subr.mxu0 0.0
      %1736 = vmatpush1.xpose.msra.mxu0 0.0
      %1737 = vmatprep.subr.mxu0 0.0
      %1738 = vmatpush1.xpose.msra.mxu0 0.0
      %1739 = vmatprep.subr.mxu0 0.0
      %1740 = vmatpush1.xpose.msra.mxu0 0.0
      %1741 = vmatprep.subr.mxu0 0.0
      %1742 = vmatpush1.xpose.msra.mxu0 0.0
      %1743 = vmatprep.subr.mxu0 0.0
      %1744 = vmatpush1.xpose.msra.mxu0 0.0
      %1745 = vmatprep.subr.mxu0 0.0
      %1746 = vmatpush1.xpose.msra.mxu0 0.0
      %1747 = vmatprep.subr.mxu0 0.0
      %1748 = vmatpush1.xpose.msra.mxu0 0.0
      %1749 = vmatprep.subr.mxu0 0.0
      %1750 = vmatpush1.xpose.msra.mxu0 0.0
      %1751 = vmatprep.subr.mxu0 0.0
      %1752 = vmatpush1.xpose.msra.mxu0 0.0
      %1753 = vmatprep.subr.mxu0 0.0
      %1754 = vmatpush1.xpose.msra.mxu0 0.0
      %1755 = vmatprep.subr.mxu0 0.0
      %1756 = vmatpush1.xpose.msra.mxu0 0.0
      %1757 = vmatprep.subr.mxu0 0.0
      %1758 = vmatpush1.xpose.msra.mxu0 0.0
      %1759 = vmatprep.subr.mxu0 0.0
      %1760 = vmatpush1.xpose.msra.mxu0 0.0
      %1761 = vmatprep.subr.mxu0 0.0
      %1762 = vmatpush1.xpose.msra.mxu0 0.0
      %1763 = vmatprep.subr.mxu0 0.0
      %1764 = vmatpush1.xpose.msra.mxu0 0.0
      %1765 = vmatprep.subr.mxu0 0.0
      %1766 = vmatpush1.xpose.msra.mxu0 0.0
      %1767 = vmatprep.subr.mxu0 0.0
      %1768 = vmatpush1.xpose.msra.mxu0 0.0
      %1769 = vmatprep.mubr.f32.mxu0 0.0
      %1770 = vmatmul.mubr.f32.gmra.mrb[0].mxu0 %v1701
      %v1771 = vpop.f32.mrb[0].mxu0
      %v1772 = vadd.f32 %v1695, %v1771
      %v1773 = vpop.f32.mrb[0].mxu0
      %1774 = vdwg.mxu0
      %v1775 = vsel %vm1017, %v1772, -inf
      %1776 = vmax.xlane.f32.xlu0 %v1775
      %v1777 = vpop.xlane.xlu0 %1776
      %v1778 = vsub.f32 %v1772, %v1777
      %v1779 = vmul.f32 %v1778, 1.442695
      %v1780 = vpow.pop %v1779
      %v1781 = vsel %vm1017, %v1780, 0.0
      %1782 = vadd.xlane.f32.xlu0 %v1781
      %v1783 = vpop.xlane.xlu0 %1782
      %v1784 = vrcp.pop %v1783
      %v1785 = vmul.f32 %v1780, %v1784
      %1786 = vrot.lane.b32.xlu0 %v1009, 64
      %v1787 = vpop.permute.xlu0 %1786
      %v1790 = vsel %vm1017, %v1785, 0
      %1792 = vmatprep.subr.mxu0 0.0
      %1793 = vmatpush1.msra.mxu0 %v1787
      %1794 = vmatprep.subr.mxu0 0.0
      %1795 = vmatpush1.msra.mxu0 0.0
      %1796 = vmatprep.subr.mxu0 0.0
      %1797 = vmatpush1.msra.mxu0 0.0
      %1798 = vmatprep.subr.mxu0 0.0
      %1799 = vmatpush1.msra.mxu0 0.0
      %1800 = vmatprep.subr.mxu0 0.0
      %1801 = vmatpush1.msra.mxu0 0.0
      %1802 = vmatprep.subr.mxu0 0.0
      %1803 = vmatpush1.msra.mxu0 0.0
      %1804 = vmatprep.subr.mxu0 0.0
      %1805 = vmatpush1.msra.mxu0 0.0
      %1806 = vmatprep.subr.mxu0 0.0
      %1807 = vmatpush1.msra.mxu0 0.0
      %1808 = vmatprep.subr.mxu0 0.0
      %1809 = vmatpush1.msra.mxu0 0.0
      %1810 = vmatprep.subr.mxu0 0.0
      %1811 = vmatpush1.msra.mxu0 0.0
      %1812 = vmatprep.subr.mxu0 0.0
      %1813 = vmatpush1.msra.mxu0 0.0
      %1814 = vmatprep.subr.mxu0 0.0
      %1815 = vmatpush1.msra.mxu0 0.0
      %1816 = vmatprep.subr.mxu0 0.0
      %1817 = vmatpush1.msra.mxu0 0.0
      %1818 = vmatprep.subr.mxu0 0.0
      %1819 = vmatpush1.msra.mxu0 0.0
      %1820 = vmatprep.subr.mxu0 0.0
      %1821 = vmatpush1.msra.mxu0 0.0
      %1822 = vmatprep.subr.mxu0 0.0
      %1823 = vmatpush1.msra.mxu0 0.0
      %1824 = vmatprep.subr.mxu0 0.0
      %1825 = vmatpush1.msra.mxu0 0.0
      %1826 = vmatprep.subr.mxu0 0.0
      %1827 = vmatpush1.msra.mxu0 0.0
      %1828 = vmatprep.subr.mxu0 0.0
      %1829 = vmatpush1.msra.mxu0 0.0
      %1830 = vmatprep.subr.mxu0 0.0
      %1831 = vmatpush1.msra.mxu0 0.0
      %1832 = vmatprep.subr.mxu0 0.0
      %1833 = vmatpush1.msra.mxu0 0.0
      %1834 = vmatprep.subr.mxu0 0.0
      %1835 = vmatpush1.msra.mxu0 0.0
      %1836 = vmatprep.subr.mxu0 0.0
      %1837 = vmatpush1.msra.mxu0 0.0
      %1838 = vmatprep.subr.mxu0 0.0
      %1839 = vmatpush1.msra.mxu0 0.0
      %1840 = vmatprep.subr.mxu0 0.0
      %1841 = vmatpush1.msra.mxu0 0.0
      %1842 = vmatprep.subr.mxu0 0.0
      %1843 = vmatpush1.msra.mxu0 0.0
      %1844 = vmatprep.subr.mxu0 0.0
      %1845 = vmatpush1.msra.mxu0 0.0
      %1846 = vmatprep.subr.mxu0 0.0
      %1847 = vmatpush1.msra.mxu0 0.0
      %1848 = vmatprep.subr.mxu0 0.0
      %1849 = vmatpush1.msra.mxu0 0.0
      %1850 = vmatprep.subr.mxu0 0.0
      %1851 = vmatpush1.msra.mxu0 0.0
      %1852 = vmatprep.subr.mxu0 0.0
      %1853 = vmatpush1.msra.mxu0 0.0
      %1854 = vmatprep.subr.mxu0 0.0
      %1855 = vmatpush1.msra.mxu0 0.0
      %1856 = vmatprep.mubr.f32.mxu0 0.0
      %1857 = vmatmul.mubr.f32.gmra.mrb[0].mxu0 %v1790
      %v1858 = vpop.f32.mrb[0].mxu0
      %v1859 = vadd.f32 0.0, %v1858
      %v1860 = vpop.f32.mrb[0].mxu0
      %1861 = vdwg.mxu0
      %1862 = vst.msk [vmem:[#allocation2 + $0x8] sm:$0xff] %vm1017, %v1859
      %1863 = vrot.lane.b32.xlu0 %v1696, 120
      %v1864 = vpop.permute.xlu0 %1863
      %1865 = vrot.lane.b32.xlu0 %v1009, 88
      %v1866 = vpop.permute.xlu0 %1865
      %v1867 = vsel %vm1017, %v1864, 0
      %v1869 = vsel %vm1017, %v1866, 0
      %1871 = vmatprep.subr.mxu0 0.0
      %1872 = vmatpush1.xpose.msra.mxu0 %v1869
      %1873 = vmatprep.subr.mxu0 0.0
      %1874 = vmatpush1.xpose.msra.mxu0 0.0
      %1875 = vmatprep.subr.mxu0 0.0
      %1876 = vmatpush1.xpose.msra.mxu0 0.0
      %1877 = vmatprep.subr.mxu0 0.0
      %1878 = vmatpush1.xpose.msra.mxu0 0.0
      %1879 = vmatprep.subr.mxu0 0.0
      %1880 = vmatpush1.xpose.msra.mxu0 0.0
      %1881 = vmatprep.subr.mxu0 0.0
      %1882 = vmatpush1.xpose.msra.mxu0 0.0
      %1883 = vmatprep.subr.mxu0 0.0
      %1884 = vmatpush1.xpose.msra.mxu0 0.0
      %1885 = vmatprep.subr.mxu0 0.0
      %1886 = vmatpush1.xpose.msra.mxu0 0.0
      %1887 = vmatprep.subr.mxu0 0.0
      %1888 = vmatpush1.xpose.msra.mxu0 0.0
      %1889 = vmatprep.subr.mxu0 0.0
      %1890 = vmatpush1.xpose.msra.mxu0 0.0
      %1891 = vmatprep.subr.mxu0 0.0
      %1892 = vmatpush1.xpose.msra.mxu0 0.0
      %1893 = vmatprep.subr.mxu0 0.0
      %1894 = vmatpush1.xpose.msra.mxu0 0.0
      %1895 = vmatprep.subr.mxu0 0.0
      %1896 = vmatpush1.xpose.msra.mxu0 0.0
      %1897 = vmatprep.subr.mxu0 0.0
      %1898 = vmatpush1.xpose.msra.mxu0 0.0
      %1899 = vmatprep.subr.mxu0 0.0
      %1900 = vmatpush1.xpose.msra.mxu0 0.0
      %1901 = vmatprep.subr.mxu0 0.0
      %1902 = vmatpush1.xpose.msra.mxu0 0.0
      %1903 = vmatprep.subr.mxu0 0.0
      %1904 = vmatpush1.xpose.msra.mxu0 0.0
      %1905 = vmatprep.subr.mxu0 0.0
      %1906 = vmatpush1.xpose.msra.mxu0 0.0
      %1907 = vmatprep.subr.mxu0 0.0
      %1908 = vmatpush1.xpose.msra.mxu0 0.0
      %1909 = vmatprep.subr.mxu0 0.0
      %1910 = vmatpush1.xpose.msra.mxu0 0.0
      %1911 = vmatprep.subr.mxu0 0.0
      %1912 = vmatpush1.xpose.msra.mxu0 0.0
      %1913 = vmatprep.subr.mxu0 0.0
      %1914 = vmatpush1.xpose.msra.mxu0 0.0
      %1915 = vmatprep.subr.mxu0 0.0
      %1916 = vmatpush1.xpose.msra.mxu0 0.0
      %1917 = vmatprep.subr.mxu0 0.0
      %1918 = vmatpush1.xpose.msra.mxu0 0.0
      %1919 = vmatprep.subr.mxu0 0.0
      %1920 = vmatpush1.xpose.msra.mxu0 0.0
      %1921 = vmatprep.subr.mxu0 0.0
      %1922 = vmatpush1.xpose.msra.mxu0 0.0
      %1923 = vmatprep.subr.mxu0 0.0
      %1924 = vmatpush1.xpose.msra.mxu0 0.0
      %1925 = vmatprep.subr.mxu0 0.0
      %1926 = vmatpush1.xpose.msra.mxu0 0.0
      %1927 = vmatprep.subr.mxu0 0.0
      %1928 = vmatpush1.xpose.msra.mxu0 0.0
      %1929 = vmatprep.subr.mxu0 0.0
      %1930 = vmatpush1.xpose.msra.mxu0 0.0
      %1931 = vmatprep.subr.mxu0 0.0
      %1932 = vmatpush1.xpose.msra.mxu0 0.0
      %1933 = vmatprep.subr.mxu0 0.0
      %1934 = vmatpush1.xpose.msra.mxu0 0.0
      %1935 = vmatprep.mubr.f32.mxu0 0.0
      %1936 = vmatmul.mubr.f32.gmra.mrb[0].mxu0 %v1867
      %v1937 = vpop.f32.mrb[0].mxu0
      %v1938 = vadd.f32 %v1695, %v1937
      %v1939 = vpop.f32.mrb[0].mxu0
      %1940 = vdwg.mxu0
      %v1941 = vsel %vm1017, %v1938, -inf
      %1942 = vmax.xlane.f32.xlu0 %v1941
      %v1943 = vpop.xlane.xlu0 %1942
      %v1944 = vsub.f32 %v1938, %v1943
      %v1945 = vmul.f32 %v1944, 1.442695
      %v1946 = vpow.pop %v1945
      %v1947 = vsel %vm1017, %v1946, 0.0
      %1948 = vadd.xlane.f32.xlu0 %v1947
      %v1949 = vpop.xlane.xlu0 %1948
      %v1950 = vrcp.pop %v1949
      %v1951 = vmul.f32 %v1946, %v1950
      %1952 = vrot.lane.b32.xlu0 %v1009, 56
      %v1953 = vpop.permute.xlu0 %1952
      %v1956 = vsel %vm1017, %v1951, 0
      %1958 = vmatprep.subr.mxu0 0.0
      %1959 = vmatpush1.msra.mxu0 %v1953
      %1960 = vmatprep.subr.mxu0 0.0
      %1961 = vmatpush1.msra.mxu0 0.0
      %1962 = vmatprep.subr.mxu0 0.0
      %1963 = vmatpush1.msra.mxu0 0.0
      %1964 = vmatprep.subr.mxu0 0.0
      %1965 = vmatpush1.msra.mxu0 0.0
      %1966 = vmatprep.subr.mxu0 0.0
      %1967 = vmatpush1.msra.mxu0 0.0
      %1968 = vmatprep.subr.mxu0 0.0
      %1969 = vmatpush1.msra.mxu0 0.0
      %1970 = vmatprep.subr.mxu0 0.0
      %1971 = vmatpush1.msra.mxu0 0.0
      %1972 = vmatprep.subr.mxu0 0.0
      %1973 = vmatpush1.msra.mxu0 0.0
      %1974 = vmatprep.subr.mxu0 0.0
      %1975 = vmatpush1.msra.mxu0 0.0
      %1976 = vmatprep.subr.mxu0 0.0
      %1977 = vmatpush1.msra.mxu0 0.0
      %1978 = vmatprep.subr.mxu0 0.0
      %1979 = vmatpush1.msra.mxu0 0.0
      %1980 = vmatprep.subr.mxu0 0.0
      %1981 = vmatpush1.msra.mxu0 0.0
      %1982 = vmatprep.subr.mxu0 0.0
      %1983 = vmatpush1.msra.mxu0 0.0
      %1984 = vmatprep.subr.mxu0 0.0
      %1985 = vmatpush1.msra.mxu0 0.0
      %1986 = vmatprep.subr.mxu0 0.0
      %1987 = vmatpush1.msra.mxu0 0.0
      %1988 = vmatprep.subr.mxu0 0.0
      %1989 = vmatpush1.msra.mxu0 0.0
      %1990 = vmatprep.subr.mxu0 0.0
      %1991 = vmatpush1.msra.mxu0 0.0
      %1992 = vmatprep.subr.mxu0 0.0
      %1993 = vmatpush1.msra.mxu0 0.0
      %1994 = vmatprep.subr.mxu0 0.0
      %1995 = vmatpush1.msra.mxu0 0.0
      %1996 = vmatprep.subr.mxu0 0.0
      %1997 = vmatpush1.msra.mxu0 0.0
      %1998 = vmatprep.subr.mxu0 0.0
      %1999 = vmatpush1.msra.mxu0 0.0
      %2000 = vmatprep.subr.mxu0 0.0
      %2001 = vmatpush1.msra.mxu0 0.0
      %2002 = vmatprep.subr.mxu0 0.0
      %2003 = vmatpush1.msra.mxu0 0.0
      %2004 = vmatprep.subr.mxu0 0.0
      %2005 = vmatpush1.msra.mxu0 0.0
      %2006 = vmatprep.subr.mxu0 0.0
      %2007 = vmatpush1.msra.mxu0 0.0
      %2008 = vmatprep.subr.mxu0 0.0
      %2009 = vmatpush1.msra.mxu0 0.0
      %2010 = vmatprep.subr.mxu0 0.0
      %2011 = vmatpush1.msra.mxu0 0.0
      %2012 = vmatprep.subr.mxu0 0.0
      %2013 = vmatpush1.msra.mxu0 0.0
      %2014 = vmatprep.subr.mxu0 0.0
      %2015 = vmatpush1.msra.mxu0 0.0
      %2016 = vmatprep.subr.mxu0 0.0
      %2017 = vmatpush1.msra.mxu0 0.0
      %2018 = vmatprep.subr.mxu0 0.0
      %2019 = vmatpush1.msra.mxu0 0.0
      %2020 = vmatprep.subr.mxu0 0.0
      %2021 = vmatpush1.msra.mxu0 0.0
      %2022 = vmatprep.mubr.f32.mxu0 0.0
      %2023 = vmatmul.mubr.f32.gmra.mrb[0].mxu0 %v1956
      %v2024 = vpop.f32.mrb[0].mxu0
      %v2025 = vadd.f32 0.0, %v2024
      %v2026 = vpop.f32.mrb[0].mxu0
      %2027 = vdwg.mxu0
      %2029 = vrot.lane.b32.xlu0 %v2025, 8
      %v2030 = vpop.permute.xlu0 %2029
      %2032 = vst.msk [vmem:[#allocation2 + $0x8] sm:$0xff] %vm1350, %v2030
      %2033 = vrot.lane.b32.xlu0 %v1696, 112
      %v2034 = vpop.permute.xlu0 %2033
      %2035 = vrot.lane.b32.xlu0 %v1009, 80
      %v2036 = vpop.permute.xlu0 %2035
      %v2037 = vsel %vm1017, %v2034, 0
      %v2039 = vsel %vm1017, %v2036, 0
      %2041 = vmatprep.subr.mxu0 0.0
      %2042 = vmatpush1.xpose.msra.mxu0 %v2039
      %2043 = vmatprep.subr.mxu0 0.0
      %2044 = vmatpush1.xpose.msra.mxu0 0.0
      %2045 = vmatprep.subr.mxu0 0.0
      %2046 = vmatpush1.xpose.msra.mxu0 0.0
      %2047 = vmatprep.subr.mxu0 0.0
      %2048 = vmatpush1.xpose.msra.mxu0 0.0
      %2049 = vmatprep.subr.mxu0 0.0
      %2050 = vmatpush1.xpose.msra.mxu0 0.0
      %2051 = vmatprep.subr.mxu0 0.0
      %2052 = vmatpush1.xpose.msra.mxu0 0.0
      %2053 = vmatprep.subr.mxu0 0.0
      %2054 = vmatpush1.xpose.msra.mxu0 0.0
      %2055 = vmatprep.subr.mxu0 0.0
      %2056 = vmatpush1.xpose.msra.mxu0 0.0
      %2057 = vmatprep.subr.mxu0 0.0
      %2058 = vmatpush1.xpose.msra.mxu0 0.0
      %2059 = vmatprep.subr.mxu0 0.0
      %2060 = vmatpush1.xpose.msra.mxu0 0.0
      %2061 = vmatprep.subr.mxu0 0.0
      %2062 = vmatpush1.xpose.msra.mxu0 0.0
      %2063 = vmatprep.subr.mxu0 0.0
      %2064 = vmatpush1.xpose.msra.mxu0 0.0
      %2065 = vmatprep.subr.mxu0 0.0
      %2066 = vmatpush1.xpose.msra.mxu0 0.0
      %2067 = vmatprep.subr.mxu0 0.0
      %2068 = vmatpush1.xpose.msra.mxu0 0.0
      %2069 = vmatprep.subr.mxu0 0.0
      %2070 = vmatpush1.xpose.msra.mxu0 0.0
      %2071 = vmatprep.subr.mxu0 0.0
      %2072 = vmatpush1.xpose.msra.mxu0 0.0
      %2073 = vmatprep.subr.mxu0 0.0
      %2074 = vmatpush1.xpose.msra.mxu0 0.0
      %2075 = vmatprep.subr.mxu0 0.0
      %2076 = vmatpush1.xpose.msra.mxu0 0.0
      %2077 = vmatprep.subr.mxu0 0.0
      %2078 = vmatpush1.xpose.msra.mxu0 0.0
      %2079 = vmatprep.subr.mxu0 0.0
      %2080 = vmatpush1.xpose.msra.mxu0 0.0
      %2081 = vmatprep.subr.mxu0 0.0
      %2082 = vmatpush1.xpose.msra.mxu0 0.0
      %2083 = vmatprep.subr.mxu0 0.0
      %2084 = vmatpush1.xpose.msra.mxu0 0.0
      %2085 = vmatprep.subr.mxu0 0.0
      %2086 = vmatpush1.xpose.msra.mxu0 0.0
      %2087 = vmatprep.subr.mxu0 0.0
      %2088 = vmatpush1.xpose.msra.mxu0 0.0
      %2089 = vmatprep.subr.mxu0 0.0
      %2090 = vmatpush1.xpose.msra.mxu0 0.0
      %2091 = vmatprep.subr.mxu0 0.0
      %2092 = vmatpush1.xpose.msra.mxu0 0.0
      %2093 = vmatprep.subr.mxu0 0.0
      %2094 = vmatpush1.xpose.msra.mxu0 0.0
      %2095 = vmatprep.subr.mxu0 0.0
      %2096 = vmatpush1.xpose.msra.mxu0 0.0
      %2097 = vmatprep.subr.mxu0 0.0
      %2098 = vmatpush1.xpose.msra.mxu0 0.0
      %2099 = vmatprep.subr.mxu0 0.0
      %2100 = vmatpush1.xpose.msra.mxu0 0.0
      %2101 = vmatprep.subr.mxu0 0.0
      %2102 = vmatpush1.xpose.msra.mxu0 0.0
      %2103 = vmatprep.subr.mxu0 0.0
      %2104 = vmatpush1.xpose.msra.mxu0 0.0
      %2105 = vmatprep.mubr.f32.mxu0 0.0
      %2106 = vmatmul.mubr.f32.gmra.mrb[0].mxu0 %v2037
      %v2107 = vpop.f32.mrb[0].mxu0
      %v2108 = vadd.f32 %v1695, %v2107
      %v2109 = vpop.f32.mrb[0].mxu0
      %2110 = vdwg.mxu0
      %v2111 = vsel %vm1017, %v2108, -inf
      %2112 = vmax.xlane.f32.xlu0 %v2111
      %v2113 = vpop.xlane.xlu0 %2112
      %v2114 = vsub.f32 %v2108, %v2113
      %v2115 = vmul.f32 %v2114, 1.442695
      %v2116 = vpow.pop %v2115
      %v2117 = vsel %vm1017, %v2116, 0.0
      %2118 = vadd.xlane.f32.xlu0 %v2117
      %v2119 = vpop.xlane.xlu0 %2118
      %v2120 = vrcp.pop %v2119
      %v2121 = vmul.f32 %v2116, %v2120
      %2122 = vrot.lane.b32.xlu0 %v1009, 48
      %v2123 = vpop.permute.xlu0 %2122
      %v2126 = vsel %vm1017, %v2121, 0
      %2128 = vmatprep.subr.mxu0 0.0
      %2129 = vmatpush1.msra.mxu0 %v2123
      %2130 = vmatprep.subr.mxu0 0.0
      %2131 = vmatpush1.msra.mxu0 0.0
      %2132 = vmatprep.subr.mxu0 0.0
      %2133 = vmatpush1.msra.mxu0 0.0
      %2134 = vmatprep.subr.mxu0 0.0
      %2135 = vmatpush1.msra.mxu0 0.0
      %2136 = vmatprep.subr.mxu0 0.0
      %2137 = vmatpush1.msra.mxu0 0.0
      %2138 = vmatprep.subr.mxu0 0.0
      %2139 = vmatpush1.msra.mxu0 0.0
      %2140 = vmatprep.subr.mxu0 0.0
      %2141 = vmatpush1.msra.mxu0 0.0
      %2142 = vmatprep.subr.mxu0 0.0
      %2143 = vmatpush1.msra.mxu0 0.0
      %2144 = vmatprep.subr.mxu0 0.0
      %2145 = vmatpush1.msra.mxu0 0.0
      %2146 = vmatprep.subr.mxu0 0.0
      %2147 = vmatpush1.msra.mxu0 0.0
      %2148 = vmatprep.subr.mxu0 0.0
      %2149 = vmatpush1.msra.mxu0 0.0
      %2150 = vmatprep.subr.mxu0 0.0
      %2151 = vmatpush1.msra.mxu0 0.0
      %2152 = vmatprep.subr.mxu0 0.0
      %2153 = vmatpush1.msra.mxu0 0.0
      %2154 = vmatprep.subr.mxu0 0.0
      %2155 = vmatpush1.msra.mxu0 0.0
      %2156 = vmatprep.subr.mxu0 0.0
      %2157 = vmatpush1.msra.mxu0 0.0
      %2158 = vmatprep.subr.mxu0 0.0
      %2159 = vmatpush1.msra.mxu0 0.0
      %2160 = vmatprep.subr.mxu0 0.0
      %2161 = vmatpush1.msra.mxu0 0.0
      %2162 = vmatprep.subr.mxu0 0.0
      %2163 = vmatpush1.msra.mxu0 0.0
      %2164 = vmatprep.subr.mxu0 0.0
      %2165 = vmatpush1.msra.mxu0 0.0
      %2166 = vmatprep.subr.mxu0 0.0
      %2167 = vmatpush1.msra.mxu0 0.0
      %2168 = vmatprep.subr.mxu0 0.0
      %2169 = vmatpush1.msra.mxu0 0.0
      %2170 = vmatprep.subr.mxu0 0.0
      %2171 = vmatpush1.msra.mxu0 0.0
      %2172 = vmatprep.subr.mxu0 0.0
      %2173 = vmatpush1.msra.mxu0 0.0
      %2174 = vmatprep.subr.mxu0 0.0
      %2175 = vmatpush1.msra.mxu0 0.0
      %2176 = vmatprep.subr.mxu0 0.0
      %2177 = vmatpush1.msra.mxu0 0.0
      %2178 = vmatprep.subr.mxu0 0.0
      %2179 = vmatpush1.msra.mxu0 0.0
      %2180 = vmatprep.subr.mxu0 0.0
      %2181 = vmatpush1.msra.mxu0 0.0
      %2182 = vmatprep.subr.mxu0 0.0
      %2183 = vmatpush1.msra.mxu0 0.0
      %2184 = vmatprep.subr.mxu0 0.0
      %2185 = vmatpush1.msra.mxu0 0.0
      %2186 = vmatprep.subr.mxu0 0.0
      %2187 = vmatpush1.msra.mxu0 0.0
      %2188 = vmatprep.subr.mxu0 0.0
      %2189 = vmatpush1.msra.mxu0 0.0
      %2190 = vmatprep.subr.mxu0 0.0
      %2191 = vmatpush1.msra.mxu0 0.0
      %2192 = vmatprep.mubr.f32.mxu0 0.0
      %2193 = vmatmul.mubr.f32.gmra.mrb[0].mxu0 %v2126
      %v2194 = vpop.f32.mrb[0].mxu0
      %v2195 = vadd.f32 0.0, %v2194
      %v2196 = vpop.f32.mrb[0].mxu0
      %2197 = vdwg.mxu0
      %2199 = vrot.lane.b32.xlu0 %v2195, 16
      %v2200 = vpop.permute.xlu0 %2199
      %2202 = vst.msk [vmem:[#allocation2 + $0x8] sm:$0xff] %vm1521, %v2200
      %2203 = vrot.lane.b32.xlu0 %v1696, 104
      %v2204 = vpop.permute.xlu0 %2203
      %2205 = vrot.lane.b32.xlu0 %v1009, 72
      %v2206 = vpop.permute.xlu0 %2205
      %v2207 = vsel %vm1017, %v2204, 0
      %v2209 = vsel %vm1017, %v2206, 0
      %2211 = vmatprep.subr.mxu0 0.0
      %2212 = vmatpush1.xpose.msra.mxu0 %v2209
      %2213 = vmatprep.subr.mxu0 0.0
      %2214 = vmatpush1.xpose.msra.mxu0 0.0
      %2215 = vmatprep.subr.mxu0 0.0
      %2216 = vmatpush1.xpose.msra.mxu0 0.0
      %2217 = vmatprep.subr.mxu0 0.0
      %2218 = vmatpush1.xpose.msra.mxu0 0.0
      %2219 = vmatprep.subr.mxu0 0.0
      %2220 = vmatpush1.xpose.msra.mxu0 0.0
      %2221 = vmatprep.subr.mxu0 0.0
      %2222 = vmatpush1.xpose.msra.mxu0 0.0
      %2223 = vmatprep.subr.mxu0 0.0
      %2224 = vmatpush1.xpose.msra.mxu0 0.0
      %2225 = vmatprep.subr.mxu0 0.0
      %2226 = vmatpush1.xpose.msra.mxu0 0.0
      %2227 = vmatprep.subr.mxu0 0.0
      %2228 = vmatpush1.xpose.msra.mxu0 0.0
      %2229 = vmatprep.subr.mxu0 0.0
      %2230 = vmatpush1.xpose.msra.mxu0 0.0
      %2231 = vmatprep.subr.mxu0 0.0
      %2232 = vmatpush1.xpose.msra.mxu0 0.0
      %2233 = vmatprep.subr.mxu0 0.0
      %2234 = vmatpush1.xpose.msra.mxu0 0.0
      %2235 = vmatprep.subr.mxu0 0.0
      %2236 = vmatpush1.xpose.msra.mxu0 0.0
      %2237 = vmatprep.subr.mxu0 0.0
      %2238 = vmatpush1.xpose.msra.mxu0 0.0
      %2239 = vmatprep.subr.mxu0 0.0
      %2240 = vmatpush1.xpose.msra.mxu0 0.0
      %2241 = vmatprep.subr.mxu0 0.0
      %2242 = vmatpush1.xpose.msra.mxu0 0.0
      %2243 = vmatprep.subr.mxu0 0.0
      %2244 = vmatpush1.xpose.msra.mxu0 0.0
      %2245 = vmatprep.subr.mxu0 0.0
      %2246 = vmatpush1.xpose.msra.mxu0 0.0
      %2247 = vmatprep.subr.mxu0 0.0
      %2248 = vmatpush1.xpose.msra.mxu0 0.0
      %2249 = vmatprep.subr.mxu0 0.0
      %2250 = vmatpush1.xpose.msra.mxu0 0.0
      %2251 = vmatprep.subr.mxu0 0.0
      %2252 = vmatpush1.xpose.msra.mxu0 0.0
      %2253 = vmatprep.subr.mxu0 0.0
      %2254 = vmatpush1.xpose.msra.mxu0 0.0
      %2255 = vmatprep.subr.mxu0 0.0
      %2256 = vmatpush1.xpose.msra.mxu0 0.0
      %2257 = vmatprep.subr.mxu0 0.0
      %2258 = vmatpush1.xpose.msra.mxu0 0.0
      %2259 = vmatprep.subr.mxu0 0.0
      %2260 = vmatpush1.xpose.msra.mxu0 0.0
      %2261 = vmatprep.subr.mxu0 0.0
      %2262 = vmatpush1.xpose.msra.mxu0 0.0
      %2263 = vmatprep.subr.mxu0 0.0
      %2264 = vmatpush1.xpose.msra.mxu0 0.0
      %2265 = vmatprep.subr.mxu0 0.0
      %2266 = vmatpush1.xpose.msra.mxu0 0.0
      %2267 = vmatprep.subr.mxu0 0.0
      %2268 = vmatpush1.xpose.msra.mxu0 0.0
      %2269 = vmatprep.subr.mxu0 0.0
      %2270 = vmatpush1.xpose.msra.mxu0 0.0
      %2271 = vmatprep.subr.mxu0 0.0
      %2272 = vmatpush1.xpose.msra.mxu0 0.0
      %2273 = vmatprep.subr.mxu0 0.0
      %2274 = vmatpush1.xpose.msra.mxu0 0.0
      %2275 = vmatprep.mubr.f32.mxu0 0.0
      %2276 = vmatmul.mubr.f32.gmra.mrb[0].mxu0 %v2207
      %v2277 = vpop.f32.mrb[0].mxu0
      %v2278 = vadd.f32 %v1695, %v2277
      %v2279 = vpop.f32.mrb[0].mxu0
      %2280 = vdwg.mxu0
      %v2281 = vsel %vm1017, %v2278, -inf
      %2282 = vmax.xlane.f32.xlu0 %v2281
      %v2283 = vpop.xlane.xlu0 %2282
      %v2284 = vsub.f32 %v2278, %v2283
      %v2285 = vmul.f32 %v2284, 1.442695
      %v2286 = vpow.pop %v2285
      %v2287 = vsel %vm1017, %v2286, 0.0
      %2288 = vadd.xlane.f32.xlu0 %v2287
      %v2289 = vpop.xlane.xlu0 %2288
      %v2290 = vrcp.pop %v2289
      %v2291 = vmul.f32 %v2286, %v2290
      %2292 = vrot.lane.b32.xlu0 %v1009, 40
      %v2293 = vpop.permute.xlu0 %2292
      %v2296 = vsel %vm1017, %v2291, 0
      %2298 = vmatprep.subr.mxu0 0.0
      %2299 = vmatpush1.msra.mxu0 %v2293
      %2300 = vmatprep.subr.mxu0 0.0
      %2301 = vmatpush1.msra.mxu0 0.0
      %2302 = vmatprep.subr.mxu0 0.0
      %2303 = vmatpush1.msra.mxu0 0.0
      %2304 = vmatprep.subr.mxu0 0.0
      %2305 = vmatpush1.msra.mxu0 0.0
      %2306 = vmatprep.subr.mxu0 0.0
      %2307 = vmatpush1.msra.mxu0 0.0
      %2308 = vmatprep.subr.mxu0 0.0
      %2309 = vmatpush1.msra.mxu0 0.0
      %2310 = vmatprep.subr.mxu0 0.0
      %2311 = vmatpush1.msra.mxu0 0.0
      %2312 = vmatprep.subr.mxu0 0.0
      %2313 = vmatpush1.msra.mxu0 0.0
      %2314 = vmatprep.subr.mxu0 0.0
      %2315 = vmatpush1.msra.mxu0 0.0
      %2316 = vmatprep.subr.mxu0 0.0
      %2317 = vmatpush1.msra.mxu0 0.0
      %2318 = vmatprep.subr.mxu0 0.0
      %2319 = vmatpush1.msra.mxu0 0.0
      %2320 = vmatprep.subr.mxu0 0.0
      %2321 = vmatpush1.msra.mxu0 0.0
      %2322 = vmatprep.subr.mxu0 0.0
      %2323 = vmatpush1.msra.mxu0 0.0
      %2324 = vmatprep.subr.mxu0 0.0
      %2325 = vmatpush1.msra.mxu0 0.0
      %2326 = vmatprep.subr.mxu0 0.0
      %2327 = vmatpush1.msra.mxu0 0.0
      %2328 = vmatprep.subr.mxu0 0.0
      %2329 = vmatpush1.msra.mxu0 0.0
      %2330 = vmatprep.subr.mxu0 0.0
      %2331 = vmatpush1.msra.mxu0 0.0
      %2332 = vmatprep.subr.mxu0 0.0
      %2333 = vmatpush1.msra.mxu0 0.0
      %2334 = vmatprep.subr.mxu0 0.0
      %2335 = vmatpush1.msra.mxu0 0.0
      %2336 = vmatprep.subr.mxu0 0.0
      %2337 = vmatpush1.msra.mxu0 0.0
      %2338 = vmatprep.subr.mxu0 0.0
      %2339 = vmatpush1.msra.mxu0 0.0
      %2340 = vmatprep.subr.mxu0 0.0
      %2341 = vmatpush1.msra.mxu0 0.0
      %2342 = vmatprep.subr.mxu0 0.0
      %2343 = vmatpush1.msra.mxu0 0.0
      %2344 = vmatprep.subr.mxu0 0.0
      %2345 = vmatpush1.msra.mxu0 0.0
      %2346 = vmatprep.subr.mxu0 0.0
      %2347 = vmatpush1.msra.mxu0 0.0
      %2348 = vmatprep.subr.mxu0 0.0
      %2349 = vmatpush1.msra.mxu0 0.0
      %2350 = vmatprep.subr.mxu0 0.0
      %2351 = vmatpush1.msra.mxu0 0.0
      %2352 = vmatprep.subr.mxu0 0.0
      %2353 = vmatpush1.msra.mxu0 0.0
      %2354 = vmatprep.subr.mxu0 0.0
      %2355 = vmatpush1.msra.mxu0 0.0
      %2356 = vmatprep.subr.mxu0 0.0
      %2357 = vmatpush1.msra.mxu0 0.0
      %2358 = vmatprep.subr.mxu0 0.0
      %2359 = vmatpush1.msra.mxu0 0.0
      %2360 = vmatprep.subr.mxu0 0.0
      %2361 = vmatpush1.msra.mxu0 0.0
      %2362 = vmatprep.mubr.f32.mxu0 0.0
      %2363 = vmatmul.mubr.f32.gmra.mrb[0].mxu0 %v2296
      %v2364 = vpop.f32.mrb[0].mxu0
      %v2365 = vadd.f32 0.0, %v2364
      %v2366 = vpop.f32.mrb[0].mxu0
      %2367 = vdwg.mxu0
      %2369 = vrot.lane.b32.xlu0 %v2365, 24
      %v2370 = vpop.permute.xlu0 %2369
      %2372 = vst.msk [vmem:[#allocation2 + $0x8] sm:$0xff] %vm1692, %v2370
      %v2373 = vld [vmem:[#allocation2] sm:$0xff]
      %v2374 = vld [vmem:[#allocation2 + $0x8] sm:$0xff]
      %v2375 = vld [vmem:[%s821] sm:$0xff]
      %v2376 = vld [vmem:[%s821 + $0x8] sm:$0xff]
      %v2377 = vld [vmem:[%s821 + $0x10] sm:$0xff]
      %v2378 = vld [vmem:[%s821 + $0x18] sm:$0xff]
      %v2379 = vld [vmem:[%s825] sm:$0x1]
      %v2381 = vlaneseq
      %v2382 = vshrl.u32 %v2381, 7
      %v2383 = vsub.s32 0, %v2382
      %v2384 = vrot.slane %v2379, %v2383
      %v2387 = vsel %vm876, %v2373, 0
      %v2390 = vsel %vm876, %v2374, 0
      %2392 = vmatprep.subr.mxu0 0.0
      %2393 = vmatpush1.msra.mxu0 %v2375
      %2394 = vmatprep.subr.mxu0 0.0
      %2395 = vmatpush1.msra.mxu0 %v2376
      %2396 = vmatprep.subr.mxu0 0.0
      %2397 = vmatpush1.msra.mxu0 %v2377
      %2398 = vmatprep.subr.mxu0 0.0
      %2399 = vmatpush1.msra.mxu0 %v2378
      %2400 = vmatprep.subr.mxu0 0.0
      %2401 = vmatpush1.msra.mxu0 0.0
      %2402 = vmatprep.subr.mxu0 0.0
      %2403 = vmatpush1.msra.mxu0 0.0
      %2404 = vmatprep.subr.mxu0 0.0
      %2405 = vmatpush1.msra.mxu0 0.0
      %2406 = vmatprep.subr.mxu0 0.0
      %2407 = vmatpush1.msra.mxu0 0.0
      %2408 = vmatprep.subr.mxu0 0.0
      %2409 = vmatpush1.msra.mxu0 0.0
      %2410 = vmatprep.subr.mxu0 0.0
      %2411 = vmatpush1.msra.mxu0 0.0
      %2412 = vmatprep.subr.mxu0 0.0
      %2413 = vmatpush1.msra.mxu0 0.0
      %2414 = vmatprep.subr.mxu0 0.0
      %2415 = vmatpush1.msra.mxu0 0.0
      %2416 = vmatprep.subr.mxu0 0.0
      %2417 = vmatpush1.msra.mxu0 0.0
      %2418 = vmatprep.subr.mxu0 0.0
      %2419 = vmatpush1.msra.mxu0 0.0
      %2420 = vmatprep.subr.mxu0 0.0
      %2421 = vmatpush1.msra.mxu0 0.0
      %2422 = vmatprep.subr.mxu0 0.0
      %2423 = vmatpush1.msra.mxu0 0.0
      %2424 = vmatprep.subr.mxu0 0.0
      %2425 = vmatpush1.msra.mxu0 0.0
      %2426 = vmatprep.subr.mxu0 0.0
      %2427 = vmatpush1.msra.mxu0 0.0
      %2428 = vmatprep.subr.mxu0 0.0
      %2429 = vmatpush1.msra.mxu0 0.0
      %2430 = vmatprep.subr.mxu0 0.0
      %2431 = vmatpush1.msra.mxu0 0.0
      %2432 = vmatprep.subr.mxu0 0.0
      %2433 = vmatpush1.msra.mxu0 0.0
      %2434 = vmatprep.subr.mxu0 0.0
      %2435 = vmatpush1.msra.mxu0 0.0
      %2436 = vmatprep.subr.mxu0 0.0
      %2437 = vmatpush1.msra.mxu0 0.0
      %2438 = vmatprep.subr.mxu0 0.0
      %2439 = vmatpush1.msra.mxu0 0.0
      %2440 = vmatprep.subr.mxu0 0.0
      %2441 = vmatpush1.msra.mxu0 0.0
      %2442 = vmatprep.subr.mxu0 0.0
      %2443 = vmatpush1.msra.mxu0 0.0
      %2444 = vmatprep.subr.mxu0 0.0
      %2445 = vmatpush1.msra.mxu0 0.0
      %2446 = vmatprep.subr.mxu0 0.0
      %2447 = vmatpush1.msra.mxu0 0.0
      %2448 = vmatprep.subr.mxu0 0.0
      %2449 = vmatpush1.msra.mxu0 0.0
      %2450 = vmatprep.subr.mxu0 0.0
      %2451 = vmatpush1.msra.mxu0 0.0
      %2452 = vmatprep.subr.mxu0 0.0
      %2453 = vmatpush1.msra.mxu0 0.0
      %2454 = vmatprep.subr.mxu0 0.0
      %2455 = vmatpush1.msra.mxu0 0.0
      %2456 = vmatprep.mubr.f32.mxu0 0.0
      %2457 = vmatmul.mubr.f32.gmra.mrb[0].mxu0 %v2387
      %v2458 = vpop.f32.mrb[0].mxu0
      %v2459 = vadd.f32 %v2384, %v2458
      %v2460 = vpop.f32.mrb[0].mxu0
      %2461 = vmatprep.mubr.f32.mxu0 0.0
      %2462 = vmatmul.mubr.f32.gmra.mrb[0].mxu0 %v2390
      %v2463 = vpop.f32.mrb[0].mxu0
      %v2464 = vadd.f32 %v2384, %v2463
      %v2465 = vpop.f32.mrb[0].mxu0
      %2466 = vdwg.mxu0
      %v2467 = vadd.f32 %v2459, %v918
      %v2468 = vadd.f32 %v2464, %v919
      %v2469 = vld [vmem:[%s829] sm:$0x1]
      %v2470 = vld [vmem:[%s833] sm:$0x1]
      %v2471 = vsel %vm876, %v2467, 0.0
      %2472 = vadd.xlane.f32.xlu0 %v2471
      %v2473 = vpop.xlane.xlu0 %2472
      %v2474 = vsel %vm876, %v2468, 0.0
      %2475 = vadd.xlane.f32.xlu0 %v2474
      %v2476 = vpop.xlane.xlu0 %2475
      %v2477 = vmul.f32 %v2473, %v883
      %v2478 = vmul.f32 %v2476, %v883
      %v2479 = vsub.f32 %v2467, %v2477
      %v2480 = vsub.f32 %v2468, %v2478
      %v2481 = vmul.f32 %v2479, %v2479
      %v2482 = vmul.f32 %v2480, %v2480
      %v2483 = vsel %vm876, %v2481, 0.0
      %2484 = vadd.xlane.f32.xlu0 %v2483
      %v2485 = vpop.xlane.xlu0 %2484
      %v2486 = vsel %vm876, %v2482, 0.0
      %2487 = vadd.xlane.f32.xlu0 %v2486
      %v2488 = vpop.xlane.xlu0 %2487
      %v2489 = vmul.f32 %v2485, %v883
      %v2490 = vmul.f32 %v2488, %v883
      %v2491 = vadd.f32 %v2489, 1e-07
      %v2492 = vadd.f32 %v2490, 1e-07
      %v2493 = vrsqrt.pop %v2491
      %v2494 = vrsqrt.pop %v2492
      %v2495 = vmul.f32 %v2479, %v2493
      %v2496 = vmul.f32 %v2480, %v2494
      %v2498 = vlaneseq
      %v2499 = vshrl.u32 %v2498, 7
      %v2500 = vsub.s32 0, %v2499
      %v2501 = vrot.slane %v2469, %v2500
      %v2503 = vmul.f32 %v2495, %v2501
      %v2504 = vmul.f32 %v2496, %v2501
      %v2506 = vlaneseq
      %v2507 = vshrl.u32 %v2506, 7
      %v2508 = vsub.s32 0, %v2507
      %v2509 = vrot.slane %v2470, %v2508
      %v2511 = vadd.f32 %v2503, %v2509
      %v2512 = vadd.f32 %v2504, %v2509
      %v2513 = vld [vmem:[%s838] sm:$0xff]
      %v2514 = vld [vmem:[%s838 + $0x8] sm:$0xff]
      %v2515 = vld [vmem:[%s838 + $0x10] sm:$0xff]
      %v2516 = vld [vmem:[%s838 + $0x18] sm:$0xff]
      %v2517 = vld [vmem:[%s842] sm:$0x1]
      %v2519 = vlaneseq
      %v2520 = vshrl.u32 %v2519, 7
      %v2521 = vsub.s32 0, %v2520
      %v2522 = vrot.slane %v2517, %v2521
      %v2525 = vsel %vm876, %v2511, 0
      %v2528 = vsel %vm876, %v2512, 0
      %2530 = vmatprep.subr.mxu0 0.0
      %2531 = vmatpush1.msra.mxu0 %v2513
      %2532 = vmatprep.subr.mxu0 0.0
      %2533 = vmatpush1.msra.mxu0 %v2514
      %2534 = vmatprep.subr.mxu0 0.0
      %2535 = vmatpush1.msra.mxu0 %v2515
      %2536 = vmatprep.subr.mxu0 0.0
      %2537 = vmatpush1.msra.mxu0 %v2516
      %2538 = vmatprep.subr.mxu0 0.0
      %2539 = vmatpush1.msra.mxu0 0.0
      %2540 = vmatprep.subr.mxu0 0.0
      %2541 = vmatpush1.msra.mxu0 0.0
      %2542 = vmatprep.subr.mxu0 0.0
      %2543 = vmatpush1.msra.mxu0 0.0
      %2544 = vmatprep.subr.mxu0 0.0
      %2545 = vmatpush1.msra.mxu0 0.0
      %2546 = vmatprep.subr.mxu0 0.0
      %2547 = vmatpush1.msra.mxu0 0.0
      %2548 = vmatprep.subr.mxu0 0.0
      %2549 = vmatpush1.msra.mxu0 0.0
      %2550 = vmatprep.subr.mxu0 0.0
      %2551 = vmatpush1.msra.mxu0 0.0
      %2552 = vmatprep.subr.mxu0 0.0
      %2553 = vmatpush1.msra.mxu0 0.0
      %2554 = vmatprep.subr.mxu0 0.0
      %2555 = vmatpush1.msra.mxu0 0.0
      %2556 = vmatprep.subr.mxu0 0.0
      %2557 = vmatpush1.msra.mxu0 0.0
      %2558 = vmatprep.subr.mxu0 0.0
      %2559 = vmatpush1.msra.mxu0 0.0
      %2560 = vmatprep.subr.mxu0 0.0
      %2561 = vmatpush1.msra.mxu0 0.0
      %2562 = vmatprep.subr.mxu0 0.0
      %2563 = vmatpush1.msra.mxu0 0.0
      %2564 = vmatprep.subr.mxu0 0.0
      %2565 = vmatpush1.msra.mxu0 0.0
      %2566 = vmatprep.subr.mxu0 0.0
      %2567 = vmatpush1.msra.mxu0 0.0
      %2568 = vmatprep.subr.mxu0 0.0
      %2569 = vmatpush1.msra.mxu0 0.0
      %2570 = vmatprep.subr.mxu0 0.0
      %2571 = vmatpush1.msra.mxu0 0.0
      %2572 = vmatprep.subr.mxu0 0.0
      %2573 = vmatpush1.msra.mxu0 0.0
      %2574 = vmatprep.subr.mxu0 0.0
      %2575 = vmatpush1.msra.mxu0 0.0
      %2576 = vmatprep.subr.mxu0 0.0
      %2577 = vmatpush1.msra.mxu0 0.0
      %2578 = vmatprep.subr.mxu0 0.0
      %2579 = vmatpush1.msra.mxu0 0.0
      %2580 = vmatprep.subr.mxu0 0.0
      %2581 = vmatpush1.msra.mxu0 0.0
      %2582 = vmatprep.subr.mxu0 0.0
      %2583 = vmatpush1.msra.mxu0 0.0
      %2584 = vmatprep.subr.mxu0 0.0
      %2585 = vmatpush1.msra.mxu0 0.0
      %2586 = vmatprep.subr.mxu0 0.0
      %2587 = vmatpush1.msra.mxu0 0.0
      %2588 = vmatprep.subr.mxu0 0.0
      %2589 = vmatpush1.msra.mxu0 0.0
      %2590 = vmatprep.subr.mxu0 0.0
      %2591 = vmatpush1.msra.mxu0 0.0
      %2592 = vmatprep.subr.mxu0 0.0
      %2593 = vmatpush1.msra.mxu0 0.0
      %2594 = vmatprep.mubr.f32.mxu0 0.0
      %2595 = vmatmul.mubr.f32.gmra.mrb[0].mxu0 %v2525
      %v2596 = vpop.f32.mrb[0].mxu0
      %v2597 = vadd.f32 %v2522, %v2596
      %v2598 = vpop.f32.mrb[0].mxu0
      %2599 = vmatprep.mubr.f32.mxu0 0.0
      %2600 = vmatmul.mubr.f32.gmra.mrb[0].mxu0 %v2528
      %v2601 = vpop.f32.mrb[0].mxu0
      %v2602 = vadd.f32 %v2522, %v2601
      %v2603 = vpop.f32.mrb[0].mxu0
      %2604 = vdwg.mxu0
      %v2605 = vmul.f32 %v2597, %v2597
      %v2606 = vmul.f32 %v2602, %v2602
      %v2607 = vmul.f32 %v2597, %v2605
      %v2608 = vmul.f32 %v2602, %v2606
      %v2609 = vmul.f32 %v2607, 0.044715
      %v2610 = vmul.f32 %v2608, 0.044715
      %v2611 = vadd.f32 %v2597, %v2609
      %v2612 = vadd.f32 %v2602, %v2610
      %v2613 = vmul.f32 %v2611, 0.7978846
      %v2614 = vmul.f32 %v2612, 0.7978846
      %v2615 = vtanh.pop %v2613
      %v2616 = vtanh.pop %v2614
      %v2617 = vadd.f32 %v2615, 1.0
      %v2618 = vadd.f32 %v2616, 1.0
      %v2619 = vmul.f32 %v2617, 0.5
      %v2620 = vmul.f32 %v2618, 0.5
      %v2621 = vmul.f32 %v2597, %v2619
      %v2622 = vmul.f32 %v2602, %v2620
      %v2623 = vld [vmem:[%s847] sm:$0xff]
      %v2624 = vld [vmem:[%s847 + $0x8] sm:$0xff]
      %v2625 = vld [vmem:[%s847 + $0x10] sm:$0xff]
      %v2626 = vld [vmem:[%s847 + $0x18] sm:$0xff]
      %v2627 = vld [vmem:[%s847 + $0x20] sm:$0xff]
      %v2628 = vld [vmem:[%s847 + $0x28] sm:$0xff]
      %v2629 = vld [vmem:[%s847 + $0x30] sm:$0xff]
      %v2630 = vld [vmem:[%s847 + $0x38] sm:$0xff]
      %v2631 = vld [vmem:[%s851] sm:$0x1]
      %v2633 = vlaneseq
      %v2634 = vshrl.u32 %v2633, 7
      %v2635 = vsub.s32 0, %v2634
      %v2636 = vrot.slane %v2631, %v2635
      %vm2638 = vcmask 523264
      %v2640 = vsel %vm2638, %v2621, 0
      %v2643 = vsel %vm2638, %v2622, 0
      %2645 = vmatprep.subr.mxu0 0.0
      %2646 = vmatpush1.msra.mxu0 %v2623
      %2647 = vmatprep.subr.mxu0 0.0
      %2648 = vmatpush1.msra.mxu0 %v2624
      %2649 = vmatprep.subr.mxu0 0.0
      %2650 = vmatpush1.msra.mxu0 %v2625
      %2651 = vmatprep.subr.mxu0 0.0
      %2652 = vmatpush1.msra.mxu0 %v2626
      %2653 = vmatprep.subr.mxu0 0.0
      %2654 = vmatpush1.msra.mxu0 %v2627
      %2655 = vmatprep.subr.mxu0 0.0
      %2656 = vmatpush1.msra.mxu0 %v2628
      %2657 = vmatprep.subr.mxu0 0.0
      %2658 = vmatpush1.msra.mxu0 %v2629
      %2659 = vmatprep.subr.mxu0 0.0
      %2660 = vmatpush1.msra.mxu0 %v2630
      %2661 = vmatprep.subr.mxu0 0.0
      %2662 = vmatpush1.msra.mxu0 0.0
      %2663 = vmatprep.subr.mxu0 0.0
      %2664 = vmatpush1.msra.mxu0 0.0
      %2665 = vmatprep.subr.mxu0 0.0
      %2666 = vmatpush1.msra.mxu0 0.0
      %2667 = vmatprep.subr.mxu0 0.0
      %2668 = vmatpush1.msra.mxu0 0.0
      %2669 = vmatprep.subr.mxu0 0.0
      %2670 = vmatpush1.msra.mxu0 0.0
      %2671 = vmatprep.subr.mxu0 0.0
      %2672 = vmatpush1.msra.mxu0 0.0
      %2673 = vmatprep.subr.mxu0 0.0
      %2674 = vmatpush1.msra.mxu0 0.0
      %2675 = vmatprep.subr.mxu0 0.0
      %2676 = vmatpush1.msra.mxu0 0.0
      %2677 = vmatprep.subr.mxu0 0.0
      %2678 = vmatpush1.msra.mxu0 0.0
      %2679 = vmatprep.subr.mxu0 0.0
      %2680 = vmatpush1.msra.mxu0 0.0
      %2681 = vmatprep.subr.mxu0 0.0
      %2682 = vmatpush1.msra.mxu0 0.0
      %2683 = vmatprep.subr.mxu0 0.0
      %2684 = vmatpush1.msra.mxu0 0.0
      %2685 = vmatprep.subr.mxu0 0.0
      %2686 = vmatpush1.msra.mxu0 0.0
      %2687 = vmatprep.subr.mxu0 0.0
      %2688 = vmatpush1.msra.mxu0 0.0
      %2689 = vmatprep.subr.mxu0 0.0
      %2690 = vmatpush1.msra.mxu0 0.0
      %2691 = vmatprep.subr.mxu0 0.0
      %2692 = vmatpush1.msra.mxu0 0.0
      %2693 = vmatprep.subr.mxu0 0.0
      %2694 = vmatpush1.msra.mxu0 0.0
      %2695 = vmatprep.subr.mxu0 0.0
      %2696 = vmatpush1.msra.mxu0 0.0
      %2697 = vmatprep.subr.mxu0 0.0
      %2698 = vmatpush1.msra.mxu0 0.0
      %2699 = vmatprep.subr.mxu0 0.0
      %2700 = vmatpush1.msra.mxu0 0.0
      %2701 = vmatprep.subr.mxu0 0.0
      %2702 = vmatpush1.msra.mxu0 0.0
      %2703 = vmatprep.subr.mxu0 0.0
      %2704 = vmatpush1.msra.mxu0 0.0
      %2705 = vmatprep.subr.mxu0 0.0
      %2706 = vmatpush1.msra.mxu0 0.0
      %2707 = vmatprep.subr.mxu0 0.0
      %2708 = vmatpush1.msra.mxu0 0.0
      %2709 = vmatprep.mubr.f32.mxu0 0.0
      %2710 = vmatmul.mubr.f32.gmra.mrb[0].mxu0 %v2640
      %v2711 = vpop.f32.mrb[0].mxu0
      %v2712 = vadd.f32 %v2636, %v2711
      %v2713 = vpop.f32.mrb[0].mxu0
      %2714 = vmatprep.mubr.f32.mxu0 0.0
      %2715 = vmatmul.mubr.f32.gmra.mrb[0].mxu0 %v2643
      %v2716 = vpop.f32.mrb[0].mxu0
      %v2717 = vadd.f32 %v2636, %v2716
      %v2718 = vpop.f32.mrb[0].mxu0
      %2719 = vdwg.mxu0
      %v2720 = vadd.f32 %v2712, %v2511
      %v2721 = vadd.f32 %v2717, %v2512
      %v2722 = vld [vmem:[%s855] sm:$0x1]
      %v2723 = vld [vmem:[%s859] sm:$0x1]
      %v2724 = vsel %vm876, %v2720, 0.0
      %2725 = vadd.xlane.f32.xlu0 %v2724
      %v2726 = vpop.xlane.xlu0 %2725
      %v2727 = vsel %vm876, %v2721, 0.0
      %2728 = vadd.xlane.f32.xlu0 %v2727
      %v2729 = vpop.xlane.xlu0 %2728
      %v2730 = vmul.f32 %v2726, %v883
      %v2731 = vmul.f32 %v2729, %v883
      %v2732 = vsub.f32 %v2720, %v2730
      %v2733 = vsub.f32 %v2721, %v2731
      %v2734 = vmul.f32 %v2732, %v2732
      %v2735 = vmul.f32 %v2733, %v2733
      %v2736 = vsel %vm876, %v2734, 0.0
      %2737 = vadd.xlane.f32.xlu0 %v2736
      %v2738 = vpop.xlane.xlu0 %2737
      %v2739 = vsel %vm876, %v2735, 0.0
      %2740 = vadd.xlane.f32.xlu0 %v2739
      %v2741 = vpop.xlane.xlu0 %2740
      %v2742 = vmul.f32 %v2738, %v883
      %v2743 = vmul.f32 %v2741, %v883
      %v2744 = vadd.f32 %v2742, 1e-07
      %v2745 = vadd.f32 %v2743, 1e-07
      %v2746 = vrsqrt.pop %v2744
      %v2747 = vrsqrt.pop %v2745
      %v2748 = vmul.f32 %v2732, %v2746
      %v2749 = vmul.f32 %v2733, %v2747
      %v2751 = vlaneseq
      %v2752 = vshrl.u32 %v2751, 7
      %v2753 = vsub.s32 0, %v2752
      %v2754 = vrot.slane %v2722, %v2753
      %v2756 = vmul.f32 %v2748, %v2754
      %v2757 = vmul.f32 %v2749, %v2754
      %v2759 = vlaneseq
      %v2760 = vshrl.u32 %v2759, 7
      %v2761 = vsub.s32 0, %v2760
      %v2762 = vrot.slane %v2723, %v2761
      %v2764 = vadd.f32 %v2756, %v2762
      %v2765 = vadd.f32 %v2757, %v2762
      %s2766 = scalar_lea.vmem %s812, 32
      %v2767 = vld [vmem:[%s2766] sm:$0xff]
      %v2768 = vld [vmem:[%s2766 + $0x8] sm:$0xff]
      %v2769 = vld [vmem:[%s2766 + $0x10] sm:$0xff]
      %v2770 = vld [vmem:[%s2766 + $0x18] sm:$0xff]
      %s2771 = scalar_lea.vmem %s816, 1
      %v2772 = vld [vmem:[%s2771] sm:$0x1]
      %v2774 = vlaneseq
      %v2775 = vshrl.u32 %v2774, 7
      %v2776 = vsub.s32 0, %v2775
      %v2777 = vrot.slane %v2772, %v2776
      %v2780 = vsel %vm876, %v2764, 0
      %v2783 = vsel %vm876, %v2765, 0
      %2785 = vmatprep.subr.mxu0 0.0
      %2786 = vmatpush1.msra.mxu0 %v2767
      %2787 = vmatprep.subr.mxu0 0.0
      %2788 = vmatpush1.msra.mxu0 %v2768
      %2789 = vmatprep.subr.mxu0 0.0
      %2790 = vmatpush1.msra.mxu0 %v2769
      %2791 = vmatprep.subr.mxu0 0.0
      %2792 = vmatpush1.msra.mxu0 %v2770
      %2793 = vmatprep.subr.mxu0 0.0
      %2794 = vmatpush1.msra.mxu0 0.0
      %2795 = vmatprep.subr.mxu0 0.0
      %2796 = vmatpush1.msra.mxu0 0.0
      %2797 = vmatprep.subr.mxu0 0.0
      %2798 = vmatpush1.msra.mxu0 0.0
      %2799 = vmatprep.subr.mxu0 0.0
      %2800 = vmatpush1.msra.mxu0 0.0
      %2801 = vmatprep.subr.mxu0 0.0
      %2802 = vmatpush1.msra.mxu0 0.0
      %2803 = vmatprep.subr.mxu0 0.0
      %2804 = vmatpush1.msra.mxu0 0.0
      %2805 = vmatprep.subr.mxu0 0.0
      %2806 = vmatpush1.msra.mxu0 0.0
      %2807 = vmatprep.subr.mxu0 0.0
      %2808 = vmatpush1.msra.mxu0 0.0
      %2809 = vmatprep.subr.mxu0 0.0
      %2810 = vmatpush1.msra.mxu0 0.0
      %2811 = vmatprep.subr.mxu0 0.0
      %2812 = vmatpush1.msra.mxu0 0.0
      %2813 = vmatprep.subr.mxu0 0.0
      %2814 = vmatpush1.msra.mxu0 0.0
      %2815 = vmatprep.subr.mxu0 0.0
      %2816 = vmatpush1.msra.mxu0 0.0
      %2817 = vmatprep.subr.mxu0 0.0
      %2818 = vmatpush1.msra.mxu0 0.0
      %2819 = vmatprep.subr.mxu0 0.0
      %2820 = vmatpush1.msra.mxu0 0.0
      %2821 = vmatprep.subr.mxu0 0.0
      %2822 = vmatpush1.msra.mxu0 0.0
      %2823 = vmatprep.subr.mxu0 0.0
      %2824 = vmatpush1.msra.mxu0 0.0
      %2825 = vmatprep.subr.mxu0 0.0
      %2826 = vmatpush1.msra.mxu0 0.0
      %2827 = vmatprep.subr.mxu0 0.0
      %2828 = vmatpush1.msra.mxu0 0.0
      %2829 = vmatprep.subr.mxu0 0.0
      %2830 = vmatpush1.msra.mxu0 0.0
      %2831 = vmatprep.subr.mxu0 0.0
      %2832 = vmatpush1.msra.mxu0 0.0
      %2833 = vmatprep.subr.mxu0 0.0
      %2834 = vmatpush1.msra.mxu0 0.0
      %2835 = vmatprep.subr.mxu0 0.0
      %2836 = vmatpush1.msra.mxu0 0.0
      %2837 = vmatprep.subr.mxu0 0.0
      %2838 = vmatpush1.msra.mxu0 0.0
      %2839 = vmatprep.subr.mxu0 0.0
      %2840 = vmatpush1.msra.mxu0 0.0
      %2841 = vmatprep.subr.mxu0 0.0
      %2842 = vmatpush1.msra.mxu0 0.0
      %2843 = vmatprep.subr.mxu0 0.0
      %2844 = vmatpush1.msra.mxu0 0.0
      %2845 = vmatprep.subr.mxu0 0.0
      %2846 = vmatpush1.msra.mxu0 0.0
      %2847 = vmatprep.subr.mxu0 0.0
      %2848 = vmatpush1.msra.mxu0 0.0
      %2849 = vmatprep.mubr.f32.mxu0 0.0
      %2850 = vmatmul.mubr.f32.gmra.mrb[0].mxu0 %v2780
      %v2851 = vpop.f32.mrb[0].mxu0
      %v2852 = vadd.f32 %v2777, %v2851
      %v2853 = vpop.f32.mrb[0].mxu0
      %2854 = vmatprep.mubr.f32.mxu0 0.0
      %2855 = vmatmul.mubr.f32.gmra.mrb[0].mxu0 %v2783
      %v2856 = vpop.f32.mrb[0].mxu0
      %v2857 = vadd.f32 %v2777, %v2856
      %v2858 = vpop.f32.mrb[0].mxu0
      %2859 = vdwg.mxu0
      %v2860 = vld [vmem:[%s801] sm:$0xff]
      %v2861 = vmul.f32 %v2852, 0.35355338
      %2863 = vrot.lane.b32.xlu0 %v2852, 96
      %v2864 = vpop.permute.xlu0 %2863
      %v2866 = vsel %vm1017, %v2861, 0
      %v2868 = vsel %vm1017, %v2864, 0
      %2870 = vmatprep.subr.mxu0 0.0
      %2871 = vmatpush1.xpose.msra.mxu0 %v2868
      %2872 = vmatprep.subr.mxu0 0.0
      %2873 = vmatpush1.xpose.msra.mxu0 0.0
      %2874 = vmatprep.subr.mxu0 0.0
      %2875 = vmatpush1.xpose.msra.mxu0 0.0
      %2876 = vmatprep.subr.mxu0 0.0
      %2877 = vmatpush1.xpose.msra.mxu0 0.0
      %2878 = vmatprep.subr.mxu0 0.0
      %2879 = vmatpush1.xpose.msra.mxu0 0.0
      %2880 = vmatprep.subr.mxu0 0.0
      %2881 = vmatpush1.xpose.msra.mxu0 0.0
      %2882 = vmatprep.subr.mxu0 0.0
      %2883 = vmatpush1.xpose.msra.mxu0 0.0
      %2884 = vmatprep.subr.mxu0 0.0
      %2885 = vmatpush1.xpose.msra.mxu0 0.0
      %2886 = vmatprep.subr.mxu0 0.0
      %2887 = vmatpush1.xpose.msra.mxu0 0.0
      %2888 = vmatprep.subr.mxu0 0.0
      %2889 = vmatpush1.xpose.msra.mxu0 0.0
      %2890 = vmatprep.subr.mxu0 0.0
      %2891 = vmatpush1.xpose.msra.mxu0 0.0
      %2892 = vmatprep.subr.mxu0 0.0
      %2893 = vmatpush1.xpose.msra.mxu0 0.0
      %2894 = vmatprep.subr.mxu0 0.0
      %2895 = vmatpush1.xpose.msra.mxu0 0.0
      %2896 = vmatprep.subr.mxu0 0.0
      %2897 = vmatpush1.xpose.msra.mxu0 0.0
      %2898 = vmatprep.subr.mxu0 0.0
      %2899 = vmatpush1.xpose.msra.mxu0 0.0
      %2900 = vmatprep.subr.mxu0 0.0
      %2901 = vmatpush1.xpose.msra.mxu0 0.0
      %2902 = vmatprep.subr.mxu0 0.0
      %2903 = vmatpush1.xpose.msra.mxu0 0.0
      %2904 = vmatprep.subr.mxu0 0.0
      %2905 = vmatpush1.xpose.msra.mxu0 0.0
      %2906 = vmatprep.subr.mxu0 0.0
      %2907 = vmatpush1.xpose.msra.mxu0 0.0
      %2908 = vmatprep.subr.mxu0 0.0
      %2909 = vmatpush1.xpose.msra.mxu0 0.0
      %2910 = vmatprep.subr.mxu0 0.0
      %2911 = vmatpush1.xpose.msra.mxu0 0.0
      %2912 = vmatprep.subr.mxu0 0.0
      %2913 = vmatpush1.xpose.msra.mxu0 0.0
      %2914 = vmatprep.subr.mxu0 0.0
      %2915 = vmatpush1.xpose.msra.mxu0 0.0
      %2916 = vmatprep.subr.mxu0 0.0
      %2917 = vmatpush1.xpose.msra.mxu0 0.0
      %2918 = vmatprep.subr.mxu0 0.0
      %2919 = vmatpush1.xpose.msra.mxu0 0.0
      %2920 = vmatprep.subr.mxu0 0.0
      %2921 = vmatpush1.xpose.msra.mxu0 0.0
      %2922 = vmatprep.subr.mxu0 0.0
      %2923 = vmatpush1.xpose.msra.mxu0 0.0
      %2924 = vmatprep.subr.mxu0 0.0
      %2925 = vmatpush1.xpose.msra.mxu0 0.0
      %2926 = vmatprep.subr.mxu0 0.0
      %2927 = vmatpush1.xpose.msra.mxu0 0.0
      %2928 = vmatprep.subr.mxu0 0.0
      %2929 = vmatpush1.xpose.msra.mxu0 0.0
      %2930 = vmatprep.subr.mxu0 0.0
      %2931 = vmatpush1.xpose.msra.mxu0 0.0
      %2932 = vmatprep.subr.mxu0 0.0
      %2933 = vmatpush1.xpose.msra.mxu0 0.0
      %2934 = vmatprep.mubr.f32.mxu0 0.0
      %2935 = vmatmul.mubr.f32.gmra.mrb[0].mxu0 %v2866
      %v2936 = vpop.f32.mrb[0].mxu0
      %v2937 = vadd.f32 %v2860, %v2936
      %v2938 = vpop.f32.mrb[0].mxu0
      %2939 = vdwg.mxu0
      %v2940 = vsel %vm1017, %v2937, -inf
      %2941 = vmax.xlane.f32.xlu0 %v2940
      %v2942 = vpop.xlane.xlu0 %2941
      %v2943 = vsub.f32 %v2937, %v2942
      %v2944 = vmul.f32 %v2943, 1.442695
      %v2945 = vpow.pop %v2944
      %v2946 = vsel %vm1017, %v2945, 0.0
      %2947 = vadd.xlane.f32.xlu0 %v2946
      %v2948 = vpop.xlane.xlu0 %2947
      %v2949 = vrcp.pop %v2948
      %v2950 = vmul.f32 %v2945, %v2949
      %2951 = vrot.lane.b32.xlu0 %v2852, 64
      %v2952 = vpop.permute.xlu0 %2951
      %v2955 = vsel %vm1017, %v2950, 0
      %2957 = vmatprep.subr.mxu0 0.0
      %2958 = vmatpush1.msra.mxu0 %v2952
      %2959 = vmatprep.subr.mxu0 0.0
      %2960 = vmatpush1.msra.mxu0 0.0
      %2961 = vmatprep.subr.mxu0 0.0
      %2962 = vmatpush1.msra.mxu0 0.0
      %2963 = vmatprep.subr.mxu0 0.0
      %2964 = vmatpush1.msra.mxu0 0.0
      %2965 = vmatprep.subr.mxu0 0.0
      %2966 = vmatpush1.msra.mxu0 0.0
      %2967 = vmatprep.subr.mxu0 0.0
      %2968 = vmatpush1.msra.mxu0 0.0
      %2969 = vmatprep.subr.mxu0 0.0
      %2970 = vmatpush1.msra.mxu0 0.0
      %2971 = vmatprep.subr.mxu0 0.0
      %2972 = vmatpush1.msra.mxu0 0.0
      %2973 = vmatprep.subr.mxu0 0.0
      %2974 = vmatpush1.msra.mxu0 0.0
      %2975 = vmatprep.subr.mxu0 0.0
      %2976 = vmatpush1.msra.mxu0 0.0
      %2977 = vmatprep.subr.mxu0 0.0
      %2978 = vmatpush1.msra.mxu0 0.0
      %2979 = vmatprep.subr.mxu0 0.0
      %2980 = vmatpush1.msra.mxu0 0.0
      %2981 = vmatprep.subr.mxu0 0.0
      %2982 = vmatpush1.msra.mxu0 0.0
      %2983 = vmatprep.subr.mxu0 0.0
      %2984 = vmatpush1.msra.mxu0 0.0
      %2985 = vmatprep.subr.mxu0 0.0
      %2986 = vmatpush1.msra.mxu0 0.0
      %2987 = vmatprep.subr.mxu0 0.0
      %2988 = vmatpush1.msra.mxu0 0.0
      %2989 = vmatprep.subr.mxu0 0.0
      %2990 = vmatpush1.msra.mxu0 0.0
      %2991 = vmatprep.subr.mxu0 0.0
      %2992 = vmatpush1.msra.mxu0 0.0
      %2993 = vmatprep.subr.mxu0 0.0
      %2994 = vmatpush1.msra.mxu0 0.0
      %2995 = vmatprep.subr.mxu0 0.0
      %2996 = vmatpush1.msra.mxu0 0.0
      %2997 = vmatprep.subr.mxu0 0.0
      %2998 = vmatpush1.msra.mxu0 0.0
      %2999 = vmatprep.subr.mxu0 0.0
      %3000 = vmatpush1.msra.mxu0 0.0
      %3001 = vmatprep.subr.mxu0 0.0
      %3002 = vmatpush1.msra.mxu0 0.0
      %3003 = vmatprep.subr.mxu0 0.0
      %3004 = vmatpush1.msra.mxu0 0.0
      %3005 = vmatprep.subr.mxu0 0.0
      %3006 = vmatpush1.msra.mxu0 0.0
      %3007 = vmatprep.subr.mxu0 0.0
      %3008 = vmatpush1.msra.mxu0 0.0
      %3009 = vmatprep.subr.mxu0 0.0
      %3010 = vmatpush1.msra.mxu0 0.0
      %3011 = vmatprep.subr.mxu0 0.0
      %3012 = vmatpush1.msra.mxu0 0.0
      %3013 = vmatprep.subr.mxu0 0.0
      %3014 = vmatpush1.msra.mxu0 0.0
      %3015 = vmatprep.subr.mxu0 0.0
      %3016 = vmatpush1.msra.mxu0 0.0
      %3017 = vmatprep.subr.mxu0 0.0
      %3018 = vmatpush1.msra.mxu0 0.0
      %3019 = vmatprep.subr.mxu0 0.0
      %3020 = vmatpush1.msra.mxu0 0.0
      %3021 = vmatprep.mubr.f32.mxu0 0.0
      %3022 = vmatmul.mubr.f32.gmra.mrb[0].mxu0 %v2955
      %v3023 = vpop.f32.mrb[0].mxu0
      %v3024 = vadd.f32 0.0, %v3023
      %v3025 = vpop.f32.mrb[0].mxu0
      %3026 = vdwg.mxu0
      %3027 = vst.msk [vmem:[#allocation2] sm:$0xff] %vm1017, %v3024
      %3028 = vrot.lane.b32.xlu0 %v2861, 120
      %v3029 = vpop.permute.xlu0 %3028
      %3030 = vrot.lane.b32.xlu0 %v2852, 88
      %v3031 = vpop.permute.xlu0 %3030
      %v3032 = vsel %vm1017, %v3029, 0
      %v3034 = vsel %vm1017, %v3031, 0
      %3036 = vmatprep.subr.mxu0 0.0
      %3037 = vmatpush1.xpose.msra.mxu0 %v3034
      %3038 = vmatprep.subr.mxu0 0.0
      %3039 = vmatpush1.xpose.msra.mxu0 0.0
      %3040 = vmatprep.subr.mxu0 0.0
      %3041 = vmatpush1.xpose.msra.mxu0 0.0
      %3042 = vmatprep.subr.mxu0 0.0
      %3043 = vmatpush1.xpose.msra.mxu0 0.0
      %3044 = vmatprep.subr.mxu0 0.0
      %3045 = vmatpush1.xpose.msra.mxu0 0.0
      %3046 = vmatprep.subr.mxu0 0.0
      %3047 = vmatpush1.xpose.msra.mxu0 0.0
      %3048 = vmatprep.subr.mxu0 0.0
      %3049 = vmatpush1.xpose.msra.mxu0 0.0
      %3050 = vmatprep.subr.mxu0 0.0
      %3051 = vmatpush1.xpose.msra.mxu0 0.0
      %3052 = vmatprep.subr.mxu0 0.0
      %3053 = vmatpush1.xpose.msra.mxu0 0.0
      %3054 = vmatprep.subr.mxu0 0.0
      %3055 = vmatpush1.xpose.msra.mxu0 0.0
      %3056 = vmatprep.subr.mxu0 0.0
      %3057 = vmatpush1.xpose.msra.mxu0 0.0
      %3058 = vmatprep.subr.mxu0 0.0
      %3059 = vmatpush1.xpose.msra.mxu0 0.0
      %3060 = vmatprep.subr.mxu0 0.0
      %3061 = vmatpush1.xpose.msra.mxu0 0.0
      %3062 = vmatprep.subr.mxu0 0.0
      %3063 = vmatpush1.xpose.msra.mxu0 0.0
      %3064 = vmatprep.subr.mxu0 0.0
      %3065 = vmatpush1.xpose.msra.mxu0 0.0
      %3066 = vmatprep.subr.mxu0 0.0
      %3067 = vmatpush1.xpose.msra.mxu0 0.0
      %3068 = vmatprep.subr.mxu0 0.0
      %3069 = vmatpush1.xpose.msra.mxu0 0.0
      %3070 = vmatprep.subr.mxu0 0.0
      %3071 = vmatpush1.xpose.msra.mxu0 0.0
      %3072 = vmatprep.subr.mxu0 0.0
      %3073 = vmatpush1.xpose.msra.mxu0 0.0
      %3074 = vmatprep.subr.mxu0 0.0
      %3075 = vmatpush1.xpose.msra.mxu0 0.0
      %3076 = vmatprep.subr.mxu0 0.0
      %3077 = vmatpush1.xpose.msra.mxu0 0.0
      %3078 = vmatprep.subr.mxu0 0.0
      %3079 = vmatpush1.xpose.msra.mxu0 0.0
      %3080 = vmatprep.subr.mxu0 0.0
      %3081 = vmatpush1.xpose.msra.mxu0 0.0
      %3082 = vmatprep.subr.mxu0 0.0
      %3083 = vmatpush1.xpose.msra.mxu0 0.0
      %3084 = vmatprep.subr.mxu0 0.0
      %3085 = vmatpush1.xpose.msra.mxu0 0.0
      %3086 = vmatprep.subr.mxu0 0.0
      %3087 = vmatpush1.xpose.msra.mxu0 0.0
      %3088 = vmatprep.subr.mxu0 0.0
      %3089 = vmatpush1.xpose.msra.mxu0 0.0
      %3090 = vmatprep.subr.mxu0 0.0
      %3091 = vmatpush1.xpose.msra.mxu0 0.0
      %3092 = vmatprep.subr.mxu0 0.0
      %3093 = vmatpush1.xpose.msra.mxu0 0.0
      %3094 = vmatprep.subr.mxu0 0.0
      %3095 = vmatpush1.xpose.msra.mxu0 0.0
      %3096 = vmatprep.subr.mxu0 0.0
      %3097 = vmatpush1.xpose.msra.mxu0 0.0
      %3098 = vmatprep.subr.mxu0 0.0
      %3099 = vmatpush1.xpose.msra.mxu0 0.0
      %3100 = vmatprep.mubr.f32.mxu0 0.0
      %3101 = vmatmul.mubr.f32.gmra.mrb[0].mxu0 %v3032
      %v3102 = vpop.f32.mrb[0].mxu0
      %v3103 = vadd.f32 %v2860, %v3102
      %v3104 = vpop.f32.mrb[0].mxu0
      %3105 = vdwg.mxu0
      %v3106 = vsel %vm1017, %v3103, -inf
      %3107 = vmax.xlane.f32.xlu0 %v3106
      %v3108 = vpop.xlane.xlu0 %3107
      %v3109 = vsub.f32 %v3103, %v3108
      %v3110 = vmul.f32 %v3109, 1.442695
      %v3111 = vpow.pop %v3110
      %v3112 = vsel %vm1017, %v3111, 0.0
      %3113 = vadd.xlane.f32.xlu0 %v3112
      %v3114 = vpop.xlane.xlu0 %3113
      %v3115 = vrcp.pop %v3114
      %v3116 = vmul.f32 %v3111, %v3115
      %3117 = vrot.lane.b32.xlu0 %v2852, 56
      %v3118 = vpop.permute.xlu0 %3117
      %v3121 = vsel %vm1017, %v3116, 0
      %3123 = vmatprep.subr.mxu0 0.0
      %3124 = vmatpush1.msra.mxu0 %v3118
      %3125 = vmatprep.subr.mxu0 0.0
      %3126 = vmatpush1.msra.mxu0 0.0
      %3127 = vmatprep.subr.mxu0 0.0
      %3128 = vmatpush1.msra.mxu0 0.0
      %3129 = vmatprep.subr.mxu0 0.0
      %3130 = vmatpush1.msra.mxu0 0.0
      %3131 = vmatprep.subr.mxu0 0.0
      %3132 = vmatpush1.msra.mxu0 0.0
      %3133 = vmatprep.subr.mxu0 0.0
      %3134 = vmatpush1.msra.mxu0 0.0
      %3135 = vmatprep.subr.mxu0 0.0
      %3136 = vmatpush1.msra.mxu0 0.0
      %3137 = vmatprep.subr.mxu0 0.0
      %3138 = vmatpush1.msra.mxu0 0.0
      %3139 = vmatprep.subr.mxu0 0.0
      %3140 = vmatpush1.msra.mxu0 0.0
      %3141 = vmatprep.subr.mxu0 0.0
      %3142 = vmatpush1.msra.mxu0 0.0
      %3143 = vmatprep.subr.mxu0 0.0
      %3144 = vmatpush1.msra.mxu0 0.0
      %3145 = vmatprep.subr.mxu0 0.0
      %3146 = vmatpush1.msra.mxu0 0.0
      %3147 = vmatprep.subr.mxu0 0.0
      %3148 = vmatpush1.msra.mxu0 0.0
      %3149 = vmatprep.subr.mxu0 0.0
      %3150 = vmatpush1.msra.mxu0 0.0
      %3151 = vmatprep.subr.mxu0 0.0
      %3152 = vmatpush1.msra.mxu0 0.0
      %3153 = vmatprep.subr.mxu0 0.0
      %3154 = vmatpush1.msra.mxu0 0.0
      %3155 = vmatprep.subr.mxu0 0.0
      %3156 = vmatpush1.msra.mxu0 0.0
      %3157 = vmatprep.subr.mxu0 0.0
      %3158 = vmatpush1.msra.mxu0 0.0
      %3159 = vmatprep.subr.mxu0 0.0
      %3160 = vmatpush1.msra.mxu0 0.0
      %3161 = vmatprep.subr.mxu0 0.0
      %3162 = vmatpush1.msra.mxu0 0.0
      %3163 = vmatprep.subr.mxu0 0.0
      %3164 = vmatpush1.msra.mxu0 0.0
      %3165 = vmatprep.subr.mxu0 0.0
      %3166 = vmatpush1.msra.mxu0 0.0
      %3167 = vmatprep.subr.mxu0 0.0
      %3168 = vmatpush1.msra.mxu0 0.0
      %3169 = vmatprep.subr.mxu0 0.0
      %3170 = vmatpush1.msra.mxu0 0.0
      %3171 = vmatprep.subr.mxu0 0.0
      %3172 = vmatpush1.msra.mxu0 0.0
      %3173 = vmatprep.subr.mxu0 0.0
      %3174 = vmatpush1.msra.mxu0 0.0
      %3175 = vmatprep.subr.mxu0 0.0
      %3176 = vmatpush1.msra.mxu0 0.0
      %3177 = vmatprep.subr.mxu0 0.0
      %3178 = vmatpush1.msra.mxu0 0.0
      %3179 = vmatprep.subr.mxu0 0.0
      %3180 = vmatpush1.msra.mxu0 0.0
      %3181 = vmatprep.subr.mxu0 0.0
      %3182 = vmatpush1.msra.mxu0 0.0
      %3183 = vmatprep.subr.mxu0 0.0
      %3184 = vmatpush1.msra.mxu0 0.0
      %3185 = vmatprep.subr.mxu0 0.0
      %3186 = vmatpush1.msra.mxu0 0.0
      %3187 = vmatprep.mubr.f32.mxu0 0.0
      %3188 = vmatmul.mubr.f32.gmra.mrb[0].mxu0 %v3121
      %v3189 = vpop.f32.mrb[0].mxu0
      %v3190 = vadd.f32 0.0, %v3189
      %v3191 = vpop.f32.mrb[0].mxu0
      %3192 = vdwg.mxu0
      %3194 = vrot.lane.b32.xlu0 %v3190, 8
      %v3195 = vpop.permute.xlu0 %3194
      %3197 = vst.msk [vmem:[#allocation2] sm:$0xff] %vm1350, %v3195
      %3198 = vrot.lane.b32.xlu0 %v2861, 112
      %v3199 = vpop.permute.xlu0 %3198
      %3200 = vrot.lane.b32.xlu0 %v2852, 80
      %v3201 = vpop.permute.xlu0 %3200
      %v3202 = vsel %vm1017, %v3199, 0
      %v3204 = vsel %vm1017, %v3201, 0
      %3206 = vmatprep.subr.mxu0 0.0
      %3207 = vmatpush1.xpose.msra.mxu0 %v3204
      %3208 = vmatprep.subr.mxu0 0.0
      %3209 = vmatpush1.xpose.msra.mxu0 0.0
      %3210 = vmatprep.subr.mxu0 0.0
      %3211 = vmatpush1.xpose.msra.mxu0 0.0
      %3212 = vmatprep.subr.mxu0 0.0
      %3213 = vmatpush1.xpose.msra.mxu0 0.0
      %3214 = vmatprep.subr.mxu0 0.0
      %3215 = vmatpush1.xpose.msra.mxu0 0.0
      %3216 = vmatprep.subr.mxu0 0.0
      %3217 = vmatpush1.xpose.msra.mxu0 0.0
      %3218 = vmatprep.subr.mxu0 0.0
      %3219 = vmatpush1.xpose.msra.mxu0 0.0
      %3220 = vmatprep.subr.mxu0 0.0
      %3221 = vmatpush1.xpose.msra.mxu0 0.0
      %3222 = vmatprep.subr.mxu0 0.0
      %3223 = vmatpush1.xpose.msra.mxu0 0.0
      %3224 = vmatprep.subr.mxu0 0.0
      %3225 = vmatpush1.xpose.msra.mxu0 0.0
      %3226 = vmatprep.subr.mxu0 0.0
      %3227 = vmatpush1.xpose.msra.mxu0 0.0
      %3228 = vmatprep.subr.mxu0 0.0
      %3229 = vmatpush1.xpose.msra.mxu0 0.0
      %3230 = vmatprep.subr.mxu0 0.0
      %3231 = vmatpush1.xpose.msra.mxu0 0.0
      %3232 = vmatprep.subr.mxu0 0.0
      %3233 = vmatpush1.xpose.msra.mxu0 0.0
      %3234 = vmatprep.subr.mxu0 0.0
      %3235 = vmatpush1.xpose.msra.mxu0 0.0
      %3236 = vmatprep.subr.mxu0 0.0
      %3237 = vmatpush1.xpose.msra.mxu0 0.0
      %3238 = vmatprep.subr.mxu0 0.0
      %3239 = vmatpush1.xpose.msra.mxu0 0.0
      %3240 = vmatprep.subr.mxu0 0.0
      %3241 = vmatpush1.xpose.msra.mxu0 0.0
      %3242 = vmatprep.subr.mxu0 0.0
      %3243 = vmatpush1.xpose.msra.mxu0 0.0
      %3244 = vmatprep.subr.mxu0 0.0
      %3245 = vmatpush1.xpose.msra.mxu0 0.0
      %3246 = vmatprep.subr.mxu0 0.0
      %3247 = vmatpush1.xpose.msra.mxu0 0.0
      %3248 = vmatprep.subr.mxu0 0.0
      %3249 = vmatpush1.xpose.msra.mxu0 0.0
      %3250 = vmatprep.subr.mxu0 0.0
      %3251 = vmatpush1.xpose.msra.mxu0 0.0
      %3252 = vmatprep.subr.mxu0 0.0
      %3253 = vmatpush1.xpose.msra.mxu0 0.0
      %3254 = vmatprep.subr.mxu0 0.0
      %3255 = vmatpush1.xpose.msra.mxu0 0.0
      %3256 = vmatprep.subr.mxu0 0.0
      %3257 = vmatpush1.xpose.msra.mxu0 0.0
      %3258 = vmatprep.subr.mxu0 0.0
      %3259 = vmatpush1.xpose.msra.mxu0 0.0
      %3260 = vmatprep.subr.mxu0 0.0
      %3261 = vmatpush1.xpose.msra.mxu0 0.0
      %3262 = vmatprep.subr.mxu0 0.0
      %3263 = vmatpush1.xpose.msra.mxu0 0.0
      %3264 = vmatprep.subr.mxu0 0.0
      %3265 = vmatpush1.xpose.msra.mxu0 0.0
      %3266 = vmatprep.subr.mxu0 0.0
      %3267 = vmatpush1.xpose.msra.mxu0 0.0
      %3268 = vmatprep.subr.mxu0 0.0
      %3269 = vmatpush1.xpose.msra.mxu0 0.0
      %3270 = vmatprep.mubr.f32.mxu0 0.0
      %3271 = vmatmul.mubr.f32.gmra.mrb[0].mxu0 %v3202
      %v3272 = vpop.f32.mrb[0].mxu0
      %v3273 = vadd.f32 %v2860, %v3272
      %v3274 = vpop.f32.mrb[0].mxu0
      %3275 = vdwg.mxu0
      %v3276 = vsel %vm1017, %v3273, -inf
      %3277 = vmax.xlane.f32.xlu0 %v3276
      %v3278 = vpop.xlane.xlu0 %3277
      %v3279 = vsub.f32 %v3273, %v3278
      %v3280 = vmul.f32 %v3279, 1.442695
      %v3281 = vpow.pop %v3280
      %v3282 = vsel %vm1017, %v3281, 0.0
      %3283 = vadd.xlane.f32.xlu0 %v3282
      %v3284 = vpop.xlane.xlu0 %3283
      %v3285 = vrcp.pop %v3284
      %v3286 = vmul.f32 %v3281, %v3285
      %3287 = vrot.lane.b32.xlu0 %v2852, 48
      %v3288 = vpop.permute.xlu0 %3287
      %v3291 = vsel %vm1017, %v3286, 0
      %3293 = vmatprep.subr.mxu0 0.0
      %3294 = vmatpush1.msra.mxu0 %v3288
      %3295 = vmatprep.subr.mxu0 0.0
      %3296 = vmatpush1.msra.mxu0 0.0
      %3297 = vmatprep.subr.mxu0 0.0
      %3298 = vmatpush1.msra.mxu0 0.0
      %3299 = vmatprep.subr.mxu0 0.0
      %3300 = vmatpush1.msra.mxu0 0.0
      %3301 = vmatprep.subr.mxu0 0.0
      %3302 = vmatpush1.msra.mxu0 0.0
      %3303 = vmatprep.subr.mxu0 0.0
      %3304 = vmatpush1.msra.mxu0 0.0
      %3305 = vmatprep.subr.mxu0 0.0
      %3306 = vmatpush1.msra.mxu0 0.0
      %3307 = vmatprep.subr.mxu0 0.0
      %3308 = vmatpush1.msra.mxu0 0.0
      %3309 = vmatprep.subr.mxu0 0.0
      %3310 = vmatpush1.msra.mxu0 0.0
      %3311 = vmatprep.subr.mxu0 0.0
      %3312 = vmatpush1.msra.mxu0 0.0
      %3313 = vmatprep.subr.mxu0 0.0
      %3314 = vmatpush1.msra.mxu0 0.0
      %3315 = vmatprep.subr.mxu0 0.0
      %3316 = vmatpush1.msra.mxu0 0.0
      %3317 = vmatprep.subr.mxu0 0.0
      %3318 = vmatpush1.msra.mxu0 0.0
      %3319 = vmatprep.subr.mxu0 0.0
      %3320 = vmatpush1.msra.mxu0 0.0
      %3321 = vmatprep.subr.mxu0 0.0
      %3322 = vmatpush1.msra.mxu0 0.0
      %3323 = vmatprep.subr.mxu0 0.0
      %3324 = vmatpush1.msra.mxu0 0.0
      %3325 = vmatprep.subr.mxu0 0.0
      %3326 = vmatpush1.msra.mxu0 0.0
      %3327 = vmatprep.subr.mxu0 0.0
      %3328 = vmatpush1.msra.mxu0 0.0
      %3329 = vmatprep.subr.mxu0 0.0
      %3330 = vmatpush1.msra.mxu0 0.0
      %3331 = vmatprep.subr.mxu0 0.0
      %3332 = vmatpush1.msra.mxu0 0.0
      %3333 = vmatprep.subr.mxu0 0.0
      %3334 = vmatpush1.msra.mxu0 0.0
      %3335 = vmatprep.subr.mxu0 0.0
      %3336 = vmatpush1.msra.mxu0 0.0
      %3337 = vmatprep.subr.mxu0 0.0
      %3338 = vmatpush1.msra.mxu0 0.0
      %3339 = vmatprep.subr.mxu0 0.0
      %3340 = vmatpush1.msra.mxu0 0.0
      %3341 = vmatprep.subr.mxu0 0.0
      %3342 = vmatpush1.msra.mxu0 0.0
      %3343 = vmatprep.subr.mxu0 0.0
      %3344 = vmatpush1.msra.mxu0 0.0
      %3345 = vmatprep.subr.mxu0 0.0
      %3346 = vmatpush1.msra.mxu0 0.0
      %3347 = vmatprep.subr.mxu0 0.0
      %3348 = vmatpush1.msra.mxu0 0.0
      %3349 = vmatprep.subr.mxu0 0.0
      %3350 = vmatpush1.msra.mxu0 0.0
      %3351 = vmatprep.subr.mxu0 0.0
      %3352 = vmatpush1.msra.mxu0 0.0
      %3353 = vmatprep.subr.mxu0 0.0
      %3354 = vmatpush1.msra.mxu0 0.0
      %3355 = vmatprep.subr.mxu0 0.0
      %3356 = vmatpush1.msra.mxu0 0.0
      %3357 = vmatprep.mubr.f32.mxu0 0.0
      %3358 = vmatmul.mubr.f32.gmra.mrb[0].mxu0 %v3291
      %v3359 = vpop.f32.mrb[0].mxu0
      %v3360 = vadd.f32 0.0, %v3359
      %v3361 = vpop.f32.mrb[0].mxu0
      %3362 = vdwg.mxu0
      %3364 = vrot.lane.b32.xlu0 %v3360, 16
      %v3365 = vpop.permute.xlu0 %3364
      %3367 = vst.msk [vmem:[#allocation2] sm:$0xff] %vm1521, %v3365
      %3368 = vrot.lane.b32.xlu0 %v2861, 104
      %v3369 = vpop.permute.xlu0 %3368
      %3370 = vrot.lane.b32.xlu0 %v2852, 72
      %v3371 = vpop.permute.xlu0 %3370
      %v3372 = vsel %vm1017, %v3369, 0
      %v3374 = vsel %vm1017, %v3371, 0
      %3376 = vmatprep.subr.mxu0 0.0
      %3377 = vmatpush1.xpose.msra.mxu0 %v3374
      %3378 = vmatprep.subr.mxu0 0.0
      %3379 = vmatpush1.xpose.msra.mxu0 0.0
      %3380 = vmatprep.subr.mxu0 0.0
      %3381 = vmatpush1.xpose.msra.mxu0 0.0
      %3382 = vmatprep.subr.mxu0 0.0
      %3383 = vmatpush1.xpose.msra.mxu0 0.0
      %3384 = vmatprep.subr.mxu0 0.0
      %3385 = vmatpush1.xpose.msra.mxu0 0.0
      %3386 = vmatprep.subr.mxu0 0.0
      %3387 = vmatpush1.xpose.msra.mxu0 0.0
      %3388 = vmatprep.subr.mxu0 0.0
      %3389 = vmatpush1.xpose.msra.mxu0 0.0
      %3390 = vmatprep.subr.mxu0 0.0
      %3391 = vmatpush1.xpose.msra.mxu0 0.0
      %3392 = vmatprep.subr.mxu0 0.0
      %3393 = vmatpush1.xpose.msra.mxu0 0.0
      %3394 = vmatprep.subr.mxu0 0.0
      %3395 = vmatpush1.xpose.msra.mxu0 0.0
      %3396 = vmatprep.subr.mxu0 0.0
      %3397 = vmatpush1.xpose.msra.mxu0 0.0
      %3398 = vmatprep.subr.mxu0 0.0
      %3399 = vmatpush1.xpose.msra.mxu0 0.0
      %3400 = vmatprep.subr.mxu0 0.0
      %3401 = vmatpush1.xpose.msra.mxu0 0.0
      %3402 = vmatprep.subr.mxu0 0.0
      %3403 = vmatpush1.xpose.msra.mxu0 0.0
      %3404 = vmatprep.subr.mxu0 0.0
      %3405 = vmatpush1.xpose.msra.mxu0 0.0
      %3406 = vmatprep.subr.mxu0 0.0
      %3407 = vmatpush1.xpose.msra.mxu0 0.0
      %3408 = vmatprep.subr.mxu0 0.0
      %3409 = vmatpush1.xpose.msra.mxu0 0.0
      %3410 = vmatprep.subr.mxu0 0.0
      %3411 = vmatpush1.xpose.msra.mxu0 0.0
      %3412 = vmatprep.subr.mxu0 0.0
      %3413 = vmatpush1.xpose.msra.mxu0 0.0
      %3414 = vmatprep.subr.mxu0 0.0
      %3415 = vmatpush1.xpose.msra.mxu0 0.0
      %3416 = vmatprep.subr.mxu0 0.0
      %3417 = vmatpush1.xpose.msra.mxu0 0.0
      %3418 = vmatprep.subr.mxu0 0.0
      %3419 = vmatpush1.xpose.msra.mxu0 0.0
      %3420 = vmatprep.subr.mxu0 0.0
      %3421 = vmatpush1.xpose.msra.mxu0 0.0
      %3422 = vmatprep.subr.mxu0 0.0
      %3423 = vmatpush1.xpose.msra.mxu0 0.0
      %3424 = vmatprep.subr.mxu0 0.0
      %3425 = vmatpush1.xpose.msra.mxu0 0.0
      %3426 = vmatprep.subr.mxu0 0.0
      %3427 = vmatpush1.xpose.msra.mxu0 0.0
      %3428 = vmatprep.subr.mxu0 0.0
      %3429 = vmatpush1.xpose.msra.mxu0 0.0
      %3430 = vmatprep.subr.mxu0 0.0
      %3431 = vmatpush1.xpose.msra.mxu0 0.0
      %3432 = vmatprep.subr.mxu0 0.0
      %3433 = vmatpush1.xpose.msra.mxu0 0.0
      %3434 = vmatprep.subr.mxu0 0.0
      %3435 = vmatpush1.xpose.msra.mxu0 0.0
      %3436 = vmatprep.subr.mxu0 0.0
      %3437 = vmatpush1.xpose.msra.mxu0 0.0
      %3438 = vmatprep.subr.mxu0 0.0
      %3439 = vmatpush1.xpose.msra.mxu0 0.0
      %3440 = vmatprep.mubr.f32.mxu0 0.0
      %3441 = vmatmul.mubr.f32.gmra.mrb[0].mxu0 %v3372
      %v3442 = vpop.f32.mrb[0].mxu0
      %v3443 = vadd.f32 %v2860, %v3442
      %v3444 = vpop.f32.mrb[0].mxu0
      %3445 = vdwg.mxu0
      %v3446 = vsel %vm1017, %v3443, -inf
      %3447 = vmax.xlane.f32.xlu0 %v3446
      %v3448 = vpop.xlane.xlu0 %3447
      %v3449 = vsub.f32 %v3443, %v3448
      %v3450 = vmul.f32 %v3449, 1.442695
      %v3451 = vpow.pop %v3450
      %v3452 = vsel %vm1017, %v3451, 0.0
      %3453 = vadd.xlane.f32.xlu0 %v3452
      %v3454 = vpop.xlane.xlu0 %3453
      %v3455 = vrcp.pop %v3454
      %v3456 = vmul.f32 %v3451, %v3455
      %3457 = vrot.lane.b32.xlu0 %v2852, 40
      %v3458 = vpop.permute.xlu0 %3457
      %v3461 = vsel %vm1017, %v3456, 0
      %3463 = vmatprep.subr.mxu0 0.0
      %3464 = vmatpush1.msra.mxu0 %v3458
      %3465 = vmatprep.subr.mxu0 0.0
      %3466 = vmatpush1.msra.mxu0 0.0
      %3467 = vmatprep.subr.mxu0 0.0
      %3468 = vmatpush1.msra.mxu0 0.0
      %3469 = vmatprep.subr.mxu0 0.0
      %3470 = vmatpush1.msra.mxu0 0.0
      %3471 = vmatprep.subr.mxu0 0.0
      %3472 = vmatpush1.msra.mxu0 0.0
      %3473 = vmatprep.subr.mxu0 0.0
      %3474 = vmatpush1.msra.mxu0 0.0
      %3475 = vmatprep.subr.mxu0 0.0
      %3476 = vmatpush1.msra.mxu0 0.0
      %3477 = vmatprep.subr.mxu0 0.0
      %3478 = vmatpush1.msra.mxu0 0.0
      %3479 = vmatprep.subr.mxu0 0.0
      %3480 = vmatpush1.msra.mxu0 0.0
      %3481 = vmatprep.subr.mxu0 0.0
      %3482 = vmatpush1.msra.mxu0 0.0
      %3483 = vmatprep.subr.mxu0 0.0
      %3484 = vmatpush1.msra.mxu0 0.0
      %3485 = vmatprep.subr.mxu0 0.0
      %3486 = vmatpush1.msra.mxu0 0.0
      %3487 = vmatprep.subr.mxu0 0.0
      %3488 = vmatpush1.msra.mxu0 0.0
      %3489 = vmatprep.subr.mxu0 0.0
      %3490 = vmatpush1.msra.mxu0 0.0
      %3491 = vmatprep.subr.mxu0 0.0
      %3492 = vmatpush1.msra.mxu0 0.0
      %3493 = vmatprep.subr.mxu0 0.0
      %3494 = vmatpush1.msra.mxu0 0.0
      %3495 = vmatprep.subr.mxu0 0.0
      %3496 = vmatpush1.msra.mxu0 0.0
      %3497 = vmatprep.subr.mxu0 0.0
      %3498 = vmatpush1.msra.mxu0 0.0
      %3499 = vmatprep.subr.mxu0 0.0
      %3500 = vmatpush1.msra.mxu0 0.0
      %3501 = vmatprep.subr.mxu0 0.0
      %3502 = vmatpush1.msra.mxu0 0.0
      %3503 = vmatprep.subr.mxu0 0.0
      %3504 = vmatpush1.msra.mxu0 0.0
      %3505 = vmatprep.subr.mxu0 0.0
      %3506 = vmatpush1.msra.mxu0 0.0
      %3507 = vmatprep.subr.mxu0 0.0
      %3508 = vmatpush1.msra.mxu0 0.0
      %3509 = vmatprep.subr.mxu0 0.0
      %3510 = vmatpush1.msra.mxu0 0.0
      %3511 = vmatprep.subr.mxu0 0.0
      %3512 = vmatpush1.msra.mxu0 0.0
      %3513 = vmatprep.subr.mxu0 0.0
      %3514 = vmatpush1.msra.mxu0 0.0
      %3515 = vmatprep.subr.mxu0 0.0
      %3516 = vmatpush1.msra.mxu0 0.0
      %3517 = vmatprep.subr.mxu0 0.0
      %3518 = vmatpush1.msra.mxu0 0.0
      %3519 = vmatprep.subr.mxu0 0.0
      %3520 = vmatpush1.msra.mxu0 0.0
      %3521 = vmatprep.subr.mxu0 0.0
      %3522 = vmatpush1.msra.mxu0 0.0
      %3523 = vmatprep.subr.mxu0 0.0
      %3524 = vmatpush1.msra.mxu0 0.0
      %3525 = vmatprep.subr.mxu0 0.0
      %3526 = vmatpush1.msra.mxu0 0.0
      %3527 = vmatprep.mubr.f32.mxu0 0.0
      %3528 = vmatmul.mubr.f32.gmra.mrb[0].mxu0 %v3461
      %v3529 = vpop.f32.mrb[0].mxu0
      %v3530 = vadd.f32 0.0, %v3529
      %v3531 = vpop.f32.mrb[0].mxu0
      %3532 = vdwg.mxu0
      %3534 = vrot.lane.b32.xlu0 %v3530, 24
      %v3535 = vpop.permute.xlu0 %3534
      %3537 = vst.msk [vmem:[#allocation2] sm:$0xff] %vm1692, %v3535
      %v3538 = vld [vmem:[%s1694] sm:$0xff]
      %v3539 = vmul.f32 %v2857, 0.35355338
      %3541 = vrot.lane.b32.xlu0 %v2857, 96
      %v3542 = vpop.permute.xlu0 %3541
      %v3544 = vsel %vm1017, %v3539, 0
      %v3546 = vsel %vm1017, %v3542, 0
      %3548 = vmatprep.subr.mxu0 0.0
      %3549 = vmatpush1.xpose.msra.mxu0 %v3546
      %3550 = vmatprep.subr.mxu0 0.0
      %3551 = vmatpush1.xpose.msra.mxu0 0.0
      %3552 = vmatprep.subr.mxu0 0.0
      %3553 = vmatpush1.xpose.msra.mxu0 0.0
      %3554 = vmatprep.subr.mxu0 0.0
      %3555 = vmatpush1.xpose.msra.mxu0 0.0
      %3556 = vmatprep.subr.mxu0 0.0
      %3557 = vmatpush1.xpose.msra.mxu0 0.0
      %3558 = vmatprep.subr.mxu0 0.0
      %3559 = vmatpush1.xpose.msra.mxu0 0.0
      %3560 = vmatprep.subr.mxu0 0.0
      %3561 = vmatpush1.xpose.msra.mxu0 0.0
      %3562 = vmatprep.subr.mxu0 0.0
      %3563 = vmatpush1.xpose.msra.mxu0 0.0
      %3564 = vmatprep.subr.mxu0 0.0
      %3565 = vmatpush1.xpose.msra.mxu0 0.0
      %3566 = vmatprep.subr.mxu0 0.0
      %3567 = vmatpush1.xpose.msra.mxu0 0.0
      %3568 = vmatprep.subr.mxu0 0.0
      %3569 = vmatpush1.xpose.msra.mxu0 0.0
      %3570 = vmatprep.subr.mxu0 0.0
      %3571 = vmatpush1.xpose.msra.mxu0 0.0
      %3572 = vmatprep.subr.mxu0 0.0
      %3573 = vmatpush1.xpose.msra.mxu0 0.0
      %3574 = vmatprep.subr.mxu0 0.0
      %3575 = vmatpush1.xpose.msra.mxu0 0.0
      %3576 = vmatprep.subr.mxu0 0.0
      %3577 = vmatpush1.xpose.msra.mxu0 0.0
      %3578 = vmatprep.subr.mxu0 0.0
      %3579 = vmatpush1.xpose.msra.mxu0 0.0
      %3580 = vmatprep.subr.mxu0 0.0
      %3581 = vmatpush1.xpose.msra.mxu0 0.0
      %3582 = vmatprep.subr.mxu0 0.0
      %3583 = vmatpush1.xpose.msra.mxu0 0.0
      %3584 = vmatprep.subr.mxu0 0.0
      %3585 = vmatpush1.xpose.msra.mxu0 0.0
      %3586 = vmatprep.subr.mxu0 0.0
      %3587 = vmatpush1.xpose.msra.mxu0 0.0
      %3588 = vmatprep.subr.mxu0 0.0
      %3589 = vmatpush1.xpose.msra.mxu0 0.0
      %3590 = vmatprep.subr.mxu0 0.0
      %3591 = vmatpush1.xpose.msra.mxu0 0.0
      %3592 = vmatprep.subr.mxu0 0.0
      %3593 = vmatpush1.xpose.msra.mxu0 0.0
      %3594 = vmatprep.subr.mxu0 0.0
      %3595 = vmatpush1.xpose.msra.mxu0 0.0
      %3596 = vmatprep.subr.mxu0 0.0
      %3597 = vmatpush1.xpose.msra.mxu0 0.0
      %3598 = vmatprep.subr.mxu0 0.0
      %3599 = vmatpush1.xpose.msra.mxu0 0.0
      %3600 = vmatprep.subr.mxu0 0.0
      %3601 = vmatpush1.xpose.msra.mxu0 0.0
      %3602 = vmatprep.subr.mxu0 0.0
      %3603 = vmatpush1.xpose.msra.mxu0 0.0
      %3604 = vmatprep.subr.mxu0 0.0
      %3605 = vmatpush1.xpose.msra.mxu0 0.0
      %3606 = vmatprep.subr.mxu0 0.0
      %3607 = vmatpush1.xpose.msra.mxu0 0.0
      %3608 = vmatprep.subr.mxu0 0.0
      %3609 = vmatpush1.xpose.msra.mxu0 0.0
      %3610 = vmatprep.subr.mxu0 0.0
      %3611 = vmatpush1.xpose.msra.mxu0 0.0
      %3612 = vmatprep.mubr.f32.mxu0 0.0
      %3613 = vmatmul.mubr.f32.gmra.mrb[0].mxu0 %v3544
      %v3614 = vpop.f32.mrb[0].mxu0
      %v3615 = vadd.f32 %v3538, %v3614
      %v3616 = vpop.f32.mrb[0].mxu0
      %3617 = vdwg.mxu0
      %v3618 = vsel %vm1017, %v3615, -inf
      %3619 = vmax.xlane.f32.xlu0 %v3618
      %v3620 = vpop.xlane.xlu0 %3619
      %v3621 = vsub.f32 %v3615, %v3620
      %v3622 = vmul.f32 %v3621, 1.442695
      %v3623 = vpow.pop %v3622
      %v3624 = vsel %vm1017, %v3623, 0.0
      %3625 = vadd.xlane.f32.xlu0 %v3624
      %v3626 = vpop.xlane.xlu0 %3625
      %v3627 = vrcp.pop %v3626
      %v3628 = vmul.f32 %v3623, %v3627
      %3629 = vrot.lane.b32.xlu0 %v2857, 64
      %v3630 = vpop.permute.xlu0 %3629
      %v3633 = vsel %vm1017, %v3628, 0
      %3635 = vmatprep.subr.mxu0 0.0
      %3636 = vmatpush1.msra.mxu0 %v3630
      %3637 = vmatprep.subr.mxu0 0.0
      %3638 = vmatpush1.msra.mxu0 0.0
      %3639 = vmatprep.subr.mxu0 0.0
      %3640 = vmatpush1.msra.mxu0 0.0
      %3641 = vmatprep.subr.mxu0 0.0
      %3642 = vmatpush1.msra.mxu0 0.0
      %3643 = vmatprep.subr.mxu0 0.0
      %3644 = vmatpush1.msra.mxu0 0.0
      %3645 = vmatprep.subr.mxu0 0.0
      %3646 = vmatpush1.msra.mxu0 0.0
      %3647 = vmatprep.subr.mxu0 0.0
      %3648 = vmatpush1.msra.mxu0 0.0
      %3649 = vmatprep.subr.mxu0 0.0
      %3650 = vmatpush1.msra.mxu0 0.0
      %3651 = vmatprep.subr.mxu0 0.0
      %3652 = vmatpush1.msra.mxu0 0.0
      %3653 = vmatprep.subr.mxu0 0.0
      %3654 = vmatpush1.msra.mxu0 0.0
      %3655 = vmatprep.subr.mxu0 0.0
      %3656 = vmatpush1.msra.mxu0 0.0
      %3657 = vmatprep.subr.mxu0 0.0
      %3658 = vmatpush1.msra.mxu0 0.0
      %3659 = vmatprep.subr.mxu0 0.0
      %3660 = vmatpush1.msra.mxu0 0.0
      %3661 = vmatprep.subr.mxu0 0.0
      %3662 = vmatpush1.msra.mxu0 0.0
      %3663 = vmatprep.subr.mxu0 0.0
      %3664 = vmatpush1.msra.mxu0 0.0
      %3665 = vmatprep.subr.mxu0 0.0
      %3666 = vmatpush1.msra.mxu0 0.0
      %3667 = vmatprep.subr.mxu0 0.0
      %3668 = vmatpush1.msra.mxu0 0.0
      %3669 = vmatprep.subr.mxu0 0.0
      %3670 = vmatpush1.msra.mxu0 0.0
      %3671 = vmatprep.subr.mxu0 0.0
      %3672 = vmatpush1.msra.mxu0 0.0
      %3673 = vmatprep.subr.mxu0 0.0
      %3674 = vmatpush1.msra.mxu0 0.0
      %3675 = vmatprep.subr.mxu0 0.0
      %3676 = vmatpush1.msra.mxu0 0.0
      %3677 = vmatprep.subr.mxu0 0.0
      %3678 = vmatpush1.msra.mxu0 0.0
      %3679 = vmatprep.subr.mxu0 0.0
      %3680 = vmatpush1.msra.mxu0 0.0
      %3681 = vmatprep.subr.mxu0 0.0
      %3682 = vmatpush1.msra.mxu0 0.0
      %3683 = vmatprep.subr.mxu0 0.0
      %3684 = vmatpush1.msra.mxu0 0.0
      %3685 = vmatprep.subr.mxu0 0.0
      %3686 = vmatpush1.msra.mxu0 0.0
      %3687 = vmatprep.subr.mxu0 0.0
      %3688 = vmatpush1.msra.mxu0 0.0
      %3689 = vmatprep.subr.mxu0 0.0
      %3690 = vmatpush1.msra.mxu0 0.0
      %3691 = vmatprep.subr.mxu0 0.0
      %3692 = vmatpush1.msra.mxu0 0.0
      %3693 = vmatprep.subr.mxu0 0.0
      %3694 = vmatpush1.msra.mxu0 0.0
      %3695 = vmatprep.subr.mxu0 0.0
      %3696 = vmatpush1.msra.mxu0 0.0
      %3697 = vmatprep.subr.mxu0 0.0
      %3698 = vmatpush1.msra.mxu0 0.0
      %3699 = vmatprep.mubr.f32.mxu0 0.0
      %3700 = vmatmul.mubr.f32.gmra.mrb[0].mxu0 %v3633
      %v3701 = vpop.f32.mrb[0].mxu0
      %v3702 = vadd.f32 0.0, %v3701
      %v3703 = vpop.f32.mrb[0].mxu0
      %3704 = vdwg.mxu0
      %3705 = vst.msk [vmem:[#allocation2 + $0x8] sm:$0xff] %vm1017, %v3702
      %3706 = vrot.lane.b32.xlu0 %v3539, 120
      %v3707 = vpop.permute.xlu0 %3706
      %3708 = vrot.lane.b32.xlu0 %v2857, 88
      %v3709 = vpop.permute.xlu0 %3708
      %v3710 = vsel %vm1017, %v3707, 0
      %v3712 = vsel %vm1017, %v3709, 0
      %3714 = vmatprep.subr.mxu0 0.0
      %3715 = vmatpush1.xpose.msra.mxu0 %v3712
      %3716 = vmatprep.subr.mxu0 0.0
      %3717 = vmatpush1.xpose.msra.mxu0 0.0
      %3718 = vmatprep.subr.mxu0 0.0
      %3719 = vmatpush1.xpose.msra.mxu0 0.0
      %3720 = vmatprep.subr.mxu0 0.0
      %3721 = vmatpush1.xpose.msra.mxu0 0.0
      %3722 = vmatprep.subr.mxu0 0.0
      %3723 = vmatpush1.xpose.msra.mxu0 0.0
      %3724 = vmatprep.subr.mxu0 0.0
      %3725 = vmatpush1.xpose.msra.mxu0 0.0
      %3726 = vmatprep.subr.mxu0 0.0
      %3727 = vmatpush1.xpose.msra.mxu0 0.0
      %3728 = vmatprep.subr.mxu0 0.0
      %3729 = vmatpush1.xpose.msra.mxu0 0.0
      %3730 = vmatprep.subr.mxu0 0.0
      %3731 = vmatpush1.xpose.msra.mxu0 0.0
      %3732 = vmatprep.subr.mxu0 0.0
      %3733 = vmatpush1.xpose.msra.mxu0 0.0
      %3734 = vmatprep.subr.mxu0 0.0
      %3735 = vmatpush1.xpose.msra.mxu0 0.0
      %3736 = vmatprep.subr.mxu0 0.0
      %3737 = vmatpush1.xpose.msra.mxu0 0.0
      %3738 = vmatprep.subr.mxu0 0.0
      %3739 = vmatpush1.xpose.msra.mxu0 0.0
      %3740 = vmatprep.subr.mxu0 0.0
      %3741 = vmatpush1.xpose.msra.mxu0 0.0
      %3742 = vmatprep.subr.mxu0 0.0
      %3743 = vmatpush1.xpose.msra.mxu0 0.0
      %3744 = vmatprep.subr.mxu0 0.0
      %3745 = vmatpush1.xpose.msra.mxu0 0.0
      %3746 = vmatprep.subr.mxu0 0.0
      %3747 = vmatpush1.xpose.msra.mxu0 0.0
      %3748 = vmatprep.subr.mxu0 0.0
      %3749 = vmatpush1.xpose.msra.mxu0 0.0
      %3750 = vmatprep.subr.mxu0 0.0
      %3751 = vmatpush1.xpose.msra.mxu0 0.0
      %3752 = vmatprep.subr.mxu0 0.0
      %3753 = vmatpush1.xpose.msra.mxu0 0.0
      %3754 = vmatprep.subr.mxu0 0.0
      %3755 = vmatpush1.xpose.msra.mxu0 0.0
      %3756 = vmatprep.subr.mxu0 0.0
      %3757 = vmatpush1.xpose.msra.mxu0 0.0
      %3758 = vmatprep.subr.mxu0 0.0
      %3759 = vmatpush1.xpose.msra.mxu0 0.0
      %3760 = vmatprep.subr.mxu0 0.0
      %3761 = vmatpush1.xpose.msra.mxu0 0.0
      %3762 = vmatprep.subr.mxu0 0.0
      %3763 = vmatpush1.xpose.msra.mxu0 0.0
      %3764 = vmatprep.subr.mxu0 0.0
      %3765 = vmatpush1.xpose.msra.mxu0 0.0
      %3766 = vmatprep.subr.mxu0 0.0
      %3767 = vmatpush1.xpose.msra.mxu0 0.0
      %3768 = vmatprep.subr.mxu0 0.0
      %3769 = vmatpush1.xpose.msra.mxu0 0.0
      %3770 = vmatprep.subr.mxu0 0.0
      %3771 = vmatpush1.xpose.msra.mxu0 0.0
      %3772 = vmatprep.subr.mxu0 0.0
      %3773 = vmatpush1.xpose.msra.mxu0 0.0
      %3774 = vmatprep.subr.mxu0 0.0
      %3775 = vmatpush1.xpose.msra.mxu0 0.0
      %3776 = vmatprep.subr.mxu0 0.0
      %3777 = vmatpush1.xpose.msra.mxu0 0.0
      %3778 = vmatprep.mubr.f32.mxu0 0.0
      %3779 = vmatmul.mubr.f32.gmra.mrb[0].mxu0 %v3710
      %v3780 = vpop.f32.mrb[0].mxu0
      %v3781 = vadd.f32 %v3538, %v3780
      %v3782 = vpop.f32.mrb[0].mxu0
      %3783 = vdwg.mxu0
      %v3784 = vsel %vm1017, %v3781, -inf
      %3785 = vmax.xlane.f32.xlu0 %v3784
      %v3786 = vpop.xlane.xlu0 %3785
      %v3787 = vsub.f32 %v3781, %v3786
      %v3788 = vmul.f32 %v3787, 1.442695
      %v3789 = vpow.pop %v3788
      %v3790 = vsel %vm1017, %v3789, 0.0
      %3791 = vadd.xlane.f32.xlu0 %v3790
      %v3792 = vpop.xlane.xlu0 %3791
      %v3793 = vrcp.pop %v3792
      %v3794 = vmul.f32 %v3789, %v3793
      %3795 = vrot.lane.b32.xlu0 %v2857, 56
      %v3796 = vpop.permute.xlu0 %3795
      %v3799 = vsel %vm1017, %v3794, 0
      %3801 = vmatprep.subr.mxu0 0.0
      %3802 = vmatpush1.msra.mxu0 %v3796
      %3803 = vmatprep.subr.mxu0 0.0
      %3804 = vmatpush1.msra.mxu0 0.0
      %3805 = vmatprep.subr.mxu0 0.0
      %3806 = vmatpush1.msra.mxu0 0.0
      %3807 = vmatprep.subr.mxu0 0.0
      %3808 = vmatpush1.msra.mxu0 0.0
      %3809 = vmatprep.subr.mxu0 0.0
      %3810 = vmatpush1.msra.mxu0 0.0
      %3811 = vmatprep.subr.mxu0 0.0
      %3812 = vmatpush1.msra.mxu0 0.0
      %3813 = vmatprep.subr.mxu0 0.0
      %3814 = vmatpush1.msra.mxu0 0.0
      %3815 = vmatprep.subr.mxu0 0.0
      %3816 = vmatpush1.msra.mxu0 0.0
      %3817 = vmatprep.subr.mxu0 0.0
      %3818 = vmatpush1.msra.mxu0 0.0
      %3819 = vmatprep.subr.mxu0 0.0
      %3820 = vmatpush1.msra.mxu0 0.0
      %3821 = vmatprep.subr.mxu0 0.0
      %3822 = vmatpush1.msra.mxu0 0.0
      %3823 = vmatprep.subr.mxu0 0.0
      %3824 = vmatpush1.msra.mxu0 0.0
      %3825 = vmatprep.subr.mxu0 0.0
      %3826 = vmatpush1.msra.mxu0 0.0
      %3827 = vmatprep.subr.mxu0 0.0
      %3828 = vmatpush1.msra.mxu0 0.0
      %3829 = vmatprep.subr.mxu0 0.0
      %3830 = vmatpush1.msra.mxu0 0.0
      %3831 = vmatprep.subr.mxu0 0.0
      %3832 = vmatpush1.msra.mxu0 0.0
      %3833 = vmatprep.subr.mxu0 0.0
      %3834 = vmatpush1.msra.mxu0 0.0
      %3835 = vmatprep.subr.mxu0 0.0
      %3836 = vmatpush1.msra.mxu0 0.0
      %3837 = vmatprep.subr.mxu0 0.0
      %3838 = vmatpush1.msra.mxu0 0.0
      %3839 = vmatprep.subr.mxu0 0.0
      %3840 = vmatpush1.msra.mxu0 0.0
      %3841 = vmatprep.subr.mxu0 0.0
      %3842 = vmatpush1.msra.mxu0 0.0
      %3843 = vmatprep.subr.mxu0 0.0
      %3844 = vmatpush1.msra.mxu0 0.0
      %3845 = vmatprep.subr.mxu0 0.0
      %3846 = vmatpush1.msra.mxu0 0.0
      %3847 = vmatprep.subr.mxu0 0.0
      %3848 = vmatpush1.msra.mxu0 0.0
      %3849 = vmatprep.subr.mxu0 0.0
      %3850 = vmatpush1.msra.mxu0 0.0
      %3851 = vmatprep.subr.mxu0 0.0
      %3852 = vmatpush1.msra.mxu0 0.0
      %3853 = vmatprep.subr.mxu0 0.0
      %3854 = vmatpush1.msra.mxu0 0.0
      %3855 = vmatprep.subr.mxu0 0.0
      %3856 = vmatpush1.msra.mxu0 0.0
      %3857 = vmatprep.subr.mxu0 0.0
      %3858 = vmatpush1.msra.mxu0 0.0
      %3859 = vmatprep.subr.mxu0 0.0
      %3860 = vmatpush1.msra.mxu0 0.0
      %3861 = vmatprep.subr.mxu0 0.0
      %3862 = vmatpush1.msra.mxu0 0.0
      %3863 = vmatprep.subr.mxu0 0.0
      %3864 = vmatpush1.msra.mxu0 0.0
      %3865 = vmatprep.mubr.f32.mxu0 0.0
      %3866 = vmatmul.mubr.f32.gmra.mrb[0].mxu0 %v3799
      %v3867 = vpop.f32.mrb[0].mxu0
      %v3868 = vadd.f32 0.0, %v3867
      %v3869 = vpop.f32.mrb[0].mxu0
      %3870 = vdwg.mxu0
      %3872 = vrot.lane.b32.xlu0 %v3868, 8
      %v3873 = vpop.permute.xlu0 %3872
      %3875 = vst.msk [vmem:[#allocation2 + $0x8] sm:$0xff] %vm1350, %v3873
      %3876 = vrot.lane.b32.xlu0 %v3539, 112
      %v3877 = vpop.permute.xlu0 %3876
      %3878 = vrot.lane.b32.xlu0 %v2857, 80
      %v3879 = vpop.permute.xlu0 %3878
      %v3880 = vsel %vm1017, %v3877, 0
      %v3882 = vsel %vm1017, %v3879, 0
      %3884 = vmatprep.subr.mxu0 0.0
      %3885 = vmatpush1.xpose.msra.mxu0 %v3882
      %3886 = vmatprep.subr.mxu0 0.0
      %3887 = vmatpush1.xpose.msra.mxu0 0.0
      %3888 = vmatprep.subr.mxu0 0.0
      %3889 = vmatpush1.xpose.msra.mxu0 0.0
      %3890 = vmatprep.subr.mxu0 0.0
      %3891 = vmatpush1.xpose.msra.mxu0 0.0
      %3892 = vmatprep.subr.mxu0 0.0
      %3893 = vmatpush1.xpose.msra.mxu0 0.0
      %3894 = vmatprep.subr.mxu0 0.0
      %3895 = vmatpush1.xpose.msra.mxu0 0.0
      %3896 = vmatprep.subr.mxu0 0.0
      %3897 = vmatpush1.xpose.msra.mxu0 0.0
      %3898 = vmatprep.subr.mxu0 0.0
      %3899 = vmatpush1.xpose.msra.mxu0 0.0
      %3900 = vmatprep.subr.mxu0 0.0
      %3901 = vmatpush1.xpose.msra.mxu0 0.0
      %3902 = vmatprep.subr.mxu0 0.0
      %3903 = vmatpush1.xpose.msra.mxu0 0.0
      %3904 = vmatprep.subr.mxu0 0.0
      %3905 = vmatpush1.xpose.msra.mxu0 0.0
      %3906 = vmatprep.subr.mxu0 0.0
      %3907 = vmatpush1.xpose.msra.mxu0 0.0
      %3908 = vmatprep.subr.mxu0 0.0
      %3909 = vmatpush1.xpose.msra.mxu0 0.0
      %3910 = vmatprep.subr.mxu0 0.0
      %3911 = vmatpush1.xpose.msra.mxu0 0.0
      %3912 = vmatprep.subr.mxu0 0.0
      %3913 = vmatpush1.xpose.msra.mxu0 0.0
      %3914 = vmatprep.subr.mxu0 0.0
      %3915 = vmatpush1.xpose.msra.mxu0 0.0
      %3916 = vmatprep.subr.mxu0 0.0
      %3917 = vmatpush1.xpose.msra.mxu0 0.0
      %3918 = vmatprep.subr.mxu0 0.0
      %3919 = vmatpush1.xpose.msra.mxu0 0.0
      %3920 = vmatprep.subr.mxu0 0.0
      %3921 = vmatpush1.xpose.msra.mxu0 0.0
      %3922 = vmatprep.subr.mxu0 0.0
      %3923 = vmatpush1.xpose.msra.mxu0 0.0
      %3924 = vmatprep.subr.mxu0 0.0
      %3925 = vmatpush1.xpose.msra.mxu0 0.0
      %3926 = vmatprep.subr.mxu0 0.0
      %3927 = vmatpush1.xpose.msra.mxu0 0.0
      %3928 = vmatprep.subr.mxu0 0.0
      %3929 = vmatpush1.xpose.msra.mxu0 0.0
      %3930 = vmatprep.subr.mxu0 0.0
      %3931 = vmatpush1.xpose.msra.mxu0 0.0
      %3932 = vmatprep.subr.mxu0 0.0
      %3933 = vmatpush1.xpose.msra.mxu0 0.0
      %3934 = vmatprep.subr.mxu0 0.0
      %3935 = vmatpush1.xpose.msra.mxu0 0.0
      %3936 = vmatprep.subr.mxu0 0.0
      %3937 = vmatpush1.xpose.msra.mxu0 0.0
      %3938 = vmatprep.subr.mxu0 0.0
      %3939 = vmatpush1.xpose.msra.mxu0 0.0
      %3940 = vmatprep.subr.mxu0 0.0
      %3941 = vmatpush1.xpose.msra.mxu0 0.0
      %3942 = vmatprep.subr.mxu0 0.0
      %3943 = vmatpush1.xpose.msra.mxu0 0.0
      %3944 = vmatprep.subr.mxu0 0.0
      %3945 = vmatpush1.xpose.msra.mxu0 0.0
      %3946 = vmatprep.subr.mxu0 0.0
      %3947 = vmatpush1.xpose.msra.mxu0 0.0
      %3948 = vmatprep.mubr.f32.mxu0 0.0
      %3949 = vmatmul.mubr.f32.gmra.mrb[0].mxu0 %v3880
      %v3950 = vpop.f32.mrb[0].mxu0
      %v3951 = vadd.f32 %v3538, %v3950
      %v3952 = vpop.f32.mrb[0].mxu0
      %3953 = vdwg.mxu0
      %v3954 = vsel %vm1017, %v3951, -inf
      %3955 = vmax.xlane.f32.xlu0 %v3954
      %v3956 = vpop.xlane.xlu0 %3955
      %v3957 = vsub.f32 %v3951, %v3956
      %v3958 = vmul.f32 %v3957, 1.442695
      %v3959 = vpow.pop %v3958
      %v3960 = vsel %vm1017, %v3959, 0.0
      %3961 = vadd.xlane.f32.xlu0 %v3960
      %v3962 = vpop.xlane.xlu0 %3961
      %v3963 = vrcp.pop %v3962
      %v3964 = vmul.f32 %v3959, %v3963
      %3965 = vrot.lane.b32.xlu0 %v2857, 48
      %v3966 = vpop.permute.xlu0 %3965
      %v3969 = vsel %vm1017, %v3964, 0
      %3971 = vmatprep.subr.mxu0 0.0
      %3972 = vmatpush1.msra.mxu0 %v3966
      %3973 = vmatprep.subr.mxu0 0.0
      %3974 = vmatpush1.msra.mxu0 0.0
      %3975 = vmatprep.subr.mxu0 0.0
      %3976 = vmatpush1.msra.mxu0 0.0
      %3977 = vmatprep.subr.mxu0 0.0
      %3978 = vmatpush1.msra.mxu0 0.0
      %3979 = vmatprep.subr.mxu0 0.0
      %3980 = vmatpush1.msra.mxu0 0.0
      %3981 = vmatprep.subr.mxu0 0.0
      %3982 = vmatpush1.msra.mxu0 0.0
      %3983 = vmatprep.subr.mxu0 0.0
      %3984 = vmatpush1.msra.mxu0 0.0
      %3985 = vmatprep.subr.mxu0 0.0
      %3986 = vmatpush1.msra.mxu0 0.0
      %3987 = vmatprep.subr.mxu0 0.0
      %3988 = vmatpush1.msra.mxu0 0.0
      %3989 = vmatprep.subr.mxu0 0.0
      %3990 = vmatpush1.msra.mxu0 0.0
      %3991 = vmatprep.subr.mxu0 0.0
      %3992 = vmatpush1.msra.mxu0 0.0
      %3993 = vmatprep.subr.mxu0 0.0
      %3994 = vmatpush1.msra.mxu0 0.0
      %3995 = vmatprep.subr.mxu0 0.0
      %3996 = vmatpush1.msra.mxu0 0.0
      %3997 = vmatprep.subr.mxu0 0.0
      %3998 = vmatpush1.msra.mxu0 0.0
      %3999 = vmatprep.subr.mxu0 0.0
      %4000 = vmatpush1.msra.mxu0 0.0
      %4001 = vmatprep.subr.mxu0 0.0
      %4002 = vmatpush1.msra.mxu0 0.0
      %4003 = vmatprep.subr.mxu0 0.0
      %4004 = vmatpush1.msra.mxu0 0.0
      %4005 = vmatprep.subr.mxu0 0.0
      %4006 = vmatpush1.msra.mxu0 0.0
      %4007 = vmatprep.subr.mxu0 0.0
      %4008 = vmatpush1.msra.mxu0 0.0
      %4009 = vmatprep.subr.mxu0 0.0
      %4010 = vmatpush1.msra.mxu0 0.0
      %4011 = vmatprep.subr.mxu0 0.0
      %4012 = vmatpush1.msra.mxu0 0.0
      %4013 = vmatprep.subr.mxu0 0.0
      %4014 = vmatpush1.msra.mxu0 0.0
      %4015 = vmatprep.subr.mxu0 0.0
      %4016 = vmatpush1.msra.mxu0 0.0
      %4017 = vmatprep.subr.mxu0 0.0
      %4018 = vmatpush1.msra.mxu0 0.0
      %4019 = vmatprep.subr.mxu0 0.0
      %4020 = vmatpush1.msra.mxu0 0.0
      %4021 = vmatprep.subr.mxu0 0.0
      %4022 = vmatpush1.msra.mxu0 0.0
      %4023 = vmatprep.subr.mxu0 0.0
      %4024 = vmatpush1.msra.mxu0 0.0
      %4025 = vmatprep.subr.mxu0 0.0
      %4026 = vmatpush1.msra.mxu0 0.0
      %4027 = vmatprep.subr.mxu0 0.0
      %4028 = vmatpush1.msra.mxu0 0.0
      %4029 = vmatprep.subr.mxu0 0.0
      %4030 = vmatpush1.msra.mxu0 0.0
      %4031 = vmatprep.subr.mxu0 0.0
      %4032 = vmatpush1.msra.mxu0 0.0
      %4033 = vmatprep.subr.mxu0 0.0
      %4034 = vmatpush1.msra.mxu0 0.0
      %4035 = vmatprep.mubr.f32.mxu0 0.0
      %4036 = vmatmul.mubr.f32.gmra.mrb[0].mxu0 %v3969
      %v4037 = vpop.f32.mrb[0].mxu0
      %v4038 = vadd.f32 0.0, %v4037
      %v4039 = vpop.f32.mrb[0].mxu0
      %4040 = vdwg.mxu0
      %4042 = vrot.lane.b32.xlu0 %v4038, 16
      %v4043 = vpop.permute.xlu0 %4042
      %4045 = vst.msk [vmem:[#allocation2 + $0x8] sm:$0xff] %vm1521, %v4043
      %4046 = vrot.lane.b32.xlu0 %v3539, 104
      %v4047 = vpop.permute.xlu0 %4046
      %4048 = vrot.lane.b32.xlu0 %v2857, 72
      %v4049 = vpop.permute.xlu0 %4048
      %v4050 = vsel %vm1017, %v4047, 0
      %v4052 = vsel %vm1017, %v4049, 0
      %4054 = vmatprep.subr.mxu0 0.0
      %4055 = vmatpush1.xpose.msra.mxu0 %v4052
      %4056 = vmatprep.subr.mxu0 0.0
      %4057 = vmatpush1.xpose.msra.mxu0 0.0
      %4058 = vmatprep.subr.mxu0 0.0
      %4059 = vmatpush1.xpose.msra.mxu0 0.0
      %4060 = vmatprep.subr.mxu0 0.0
      %4061 = vmatpush1.xpose.msra.mxu0 0.0
      %4062 = vmatprep.subr.mxu0 0.0
      %4063 = vmatpush1.xpose.msra.mxu0 0.0
      %4064 = vmatprep.subr.mxu0 0.0
      %4065 = vmatpush1.xpose.msra.mxu0 0.0
      %4066 = vmatprep.subr.mxu0 0.0
      %4067 = vmatpush1.xpose.msra.mxu0 0.0
      %4068 = vmatprep.subr.mxu0 0.0
      %4069 = vmatpush1.xpose.msra.mxu0 0.0
      %4070 = vmatprep.subr.mxu0 0.0
      %4071 = vmatpush1.xpose.msra.mxu0 0.0
      %4072 = vmatprep.subr.mxu0 0.0
      %4073 = vmatpush1.xpose.msra.mxu0 0.0
      %4074 = vmatprep.subr.mxu0 0.0
      %4075 = vmatpush1.xpose.msra.mxu0 0.0
      %4076 = vmatprep.subr.mxu0 0.0
      %4077 = vmatpush1.xpose.msra.mxu0 0.0
      %4078 = vmatprep.subr.mxu0 0.0
      %4079 = vmatpush1.xpose.msra.mxu0 0.0
      %4080 = vmatprep.subr.mxu0 0.0
      %4081 = vmatpush1.xpose.msra.mxu0 0.0
      %4082 = vmatprep.subr.mxu0 0.0
      %4083 = vmatpush1.xpose.msra.mxu0 0.0
      %4084 = vmatprep.subr.mxu0 0.0
      %4085 = vmatpush1.xpose.msra.mxu0 0.0
      %4086 = vmatprep.subr.mxu0 0.0
      %4087 = vmatpush1.xpose.msra.mxu0 0.0
      %4088 = vmatprep.subr.mxu0 0.0
      %4089 = vmatpush1.xpose.msra.mxu0 0.0
      %4090 = vmatprep.subr.mxu0 0.0
      %4091 = vmatpush1.xpose.msra.mxu0 0.0
      %4092 = vmatprep.subr.mxu0 0.0
      %4093 = vmatpush1.xpose.msra.mxu0 0.0
      %4094 = vmatprep.subr.mxu0 0.0
      %4095 = vmatpush1.xpose.msra.mxu0 0.0
      %4096 = vmatprep.subr.mxu0 0.0
      %4097 = vmatpush1.xpose.msra.mxu0 0.0
      %4098 = vmatprep.subr.mxu0 0.0
      %4099 = vmatpush1.xpose.msra.mxu0 0.0
      %4100 = vmatprep.subr.mxu0 0.0
      %4101 = vmatpush1.xpose.msra.mxu0 0.0
      %4102 = vmatprep.subr.mxu0 0.0
      %4103 = vmatpush1.xpose.msra.mxu0 0.0
      %4104 = vmatprep.subr.mxu0 0.0
      %4105 = vmatpush1.xpose.msra.mxu0 0.0
      %4106 = vmatprep.subr.mxu0 0.0
      %4107 = vmatpush1.xpose.msra.mxu0 0.0
      %4108 = vmatprep.subr.mxu0 0.0
      %4109 = vmatpush1.xpose.msra.mxu0 0.0
      %4110 = vmatprep.subr.mxu0 0.0
      %4111 = vmatpush1.xpose.msra.mxu0 0.0
      %4112 = vmatprep.subr.mxu0 0.0
      %4113 = vmatpush1.xpose.msra.mxu0 0.0
      %4114 = vmatprep.subr.mxu0 0.0
      %4115 = vmatpush1.xpose.msra.mxu0 0.0
      %4116 = vmatprep.subr.mxu0 0.0
      %4117 = vmatpush1.xpose.msra.mxu0 0.0
      %4118 = vmatprep.mubr.f32.mxu0 0.0
      %4119 = vmatmul.mubr.f32.gmra.mrb[0].mxu0 %v4050
      %v4120 = vpop.f32.mrb[0].mxu0
      %v4121 = vadd.f32 %v3538, %v4120
      %v4122 = vpop.f32.mrb[0].mxu0
      %4123 = vdwg.mxu0
      %v4124 = vsel %vm1017, %v4121, -inf
      %4125 = vmax.xlane.f32.xlu0 %v4124
      %v4126 = vpop.xlane.xlu0 %4125
      %v4127 = vsub.f32 %v4121, %v4126
      %v4128 = vmul.f32 %v4127, 1.442695
      %v4129 = vpow.pop %v4128
      %v4130 = vsel %vm1017, %v4129, 0.0
      %4131 = vadd.xlane.f32.xlu0 %v4130
      %v4132 = vpop.xlane.xlu0 %4131
      %v4133 = vrcp.pop %v4132
      %v4134 = vmul.f32 %v4129, %v4133
      %4135 = vrot.lane.b32.xlu0 %v2857, 40
      %v4136 = vpop.permute.xlu0 %4135
      %v4139 = vsel %vm1017, %v4134, 0
      %4141 = vmatprep.subr.mxu0 0.0
      %4142 = vmatpush1.msra.mxu0 %v4136
      %4143 = vmatprep.subr.mxu0 0.0
      %4144 = vmatpush1.msra.mxu0 0.0
      %4145 = vmatprep.subr.mxu0 0.0
      %4146 = vmatpush1.msra.mxu0 0.0
      %4147 = vmatprep.subr.mxu0 0.0
      %4148 = vmatpush1.msra.mxu0 0.0
      %4149 = vmatprep.subr.mxu0 0.0
      %4150 = vmatpush1.msra.mxu0 0.0
      %4151 = vmatprep.subr.mxu0 0.0
      %4152 = vmatpush1.msra.mxu0 0.0
      %4153 = vmatprep.subr.mxu0 0.0
      %4154 = vmatpush1.msra.mxu0 0.0
      %4155 = vmatprep.subr.mxu0 0.0
      %4156 = vmatpush1.msra.mxu0 0.0
      %4157 = vmatprep.subr.mxu0 0.0
      %4158 = vmatpush1.msra.mxu0 0.0
      %4159 = vmatprep.subr.mxu0 0.0
      %4160 = vmatpush1.msra.mxu0 0.0
      %4161 = vmatprep.subr.mxu0 0.0
      %4162 = vmatpush1.msra.mxu0 0.0
      %4163 = vmatprep.subr.mxu0 0.0
      %4164 = vmatpush1.msra.mxu0 0.0
      %4165 = vmatprep.subr.mxu0 0.0
      %4166 = vmatpush1.msra.mxu0 0.0
      %4167 = vmatprep.subr.mxu0 0.0
      %4168 = vmatpush1.msra.mxu0 0.0
      %4169 = vmatprep.subr.mxu0 0.0
      %4170 = vmatpush1.msra.mxu0 0.0
      %4171 = vmatprep.subr.mxu0 0.0
      %4172 = vmatpush1.msra.mxu0 0.0
      %4173 = vmatprep.subr.mxu0 0.0
      %4174 = vmatpush1.msra.mxu0 0.0
      %4175 = vmatprep.subr.mxu0 0.0
      %4176 = vmatpush1.msra.mxu0 0.0
      %4177 = vmatprep.subr.mxu0 0.0
      %4178 = vmatpush1.msra.mxu0 0.0
      %4179 = vmatprep.subr.mxu0 0.0
      %4180 = vmatpush1.msra.mxu0 0.0
      %4181 = vmatprep.subr.mxu0 0.0
      %4182 = vmatpush1.msra.mxu0 0.0
      %4183 = vmatprep.subr.mxu0 0.0
      %4184 = vmatpush1.msra.mxu0 0.0
      %4185 = vmatprep.subr.mxu0 0.0
      %4186 = vmatpush1.msra.mxu0 0.0
      %4187 = vmatprep.subr.mxu0 0.0
      %4188 = vmatpush1.msra.mxu0 0.0
      %4189 = vmatprep.subr.mxu0 0.0
      %4190 = vmatpush1.msra.mxu0 0.0
      %4191 = vmatprep.subr.mxu0 0.0
      %4192 = vmatpush1.msra.mxu0 0.0
      %4193 = vmatprep.subr.mxu0 0.0
      %4194 = vmatpush1.msra.mxu0 0.0
      %4195 = vmatprep.subr.mxu0 0.0
      %4196 = vmatpush1.msra.mxu0 0.0
      %4197 = vmatprep.subr.mxu0 0.0
      %4198 = vmatpush1.msra.mxu0 0.0
      %4199 = vmatprep.subr.mxu0 0.0
      %4200 = vmatpush1.msra.mxu0 0.0
      %4201 = vmatprep.subr.mxu0 0.0
      %4202 = vmatpush1.msra.mxu0 0.0
      %4203 = vmatprep.subr.mxu0 0.0
      %4204 = vmatpush1.msra.mxu0 0.0
      %4205 = vmatprep.mubr.f32.mxu0 0.0
      %4206 = vmatmul.mubr.f32.gmra.mrb[0].mxu0 %v4139
      %v4207 = vpop.f32.mrb[0].mxu0
      %v4208 = vadd.f32 0.0, %v4207
      %v4209 = vpop.f32.mrb[0].mxu0
      %4210 = vdwg.mxu0
      %4212 = vrot.lane.b32.xlu0 %v4208, 24
      %v4213 = vpop.permute.xlu0 %4212
      %4215 = vst.msk [vmem:[#allocation2 + $0x8] sm:$0xff] %vm1692, %v4213
      %v4216 = vld [vmem:[#allocation2] sm:$0xff]
      %v4217 = vld [vmem:[#allocation2 + $0x8] sm:$0xff]
      %s4218 = scalar_lea.vmem %s821, 32
      %v4219 = vld [vmem:[%s4218] sm:$0xff]
      %v4220 = vld [vmem:[%s4218 + $0x8] sm:$0xff]
      %v4221 = vld [vmem:[%s4218 + $0x10] sm:$0xff]
      %v4222 = vld [vmem:[%s4218 + $0x18] sm:$0xff]
      %s4223 = scalar_lea.vmem %s825, 1
      %v4224 = vld [vmem:[%s4223] sm:$0x1]
      %v4226 = vlaneseq
      %v4227 = vshrl.u32 %v4226, 7
      %v4228 = vsub.s32 0, %v4227
      %v4229 = vrot.slane %v4224, %v4228
      %v4232 = vsel %vm876, %v4216, 0
      %v4235 = vsel %vm876, %v4217, 0
      %4237 = vmatprep.subr.mxu0 0.0
      %4238 = vmatpush1.msra.mxu0 %v4219
      %4239 = vmatprep.subr.mxu0 0.0
      %4240 = vmatpush1.msra.mxu0 %v4220
      %4241 = vmatprep.subr.mxu0 0.0
      %4242 = vmatpush1.msra.mxu0 %v4221
      %4243 = vmatprep.subr.mxu0 0.0
      %4244 = vmatpush1.msra.mxu0 %v4222
      %4245 = vmatprep.subr.mxu0 0.0
      %4246 = vmatpush1.msra.mxu0 0.0
      %4247 = vmatprep.subr.mxu0 0.0
      %4248 = vmatpush1.msra.mxu0 0.0
      %4249 = vmatprep.subr.mxu0 0.0
      %4250 = vmatpush1.msra.mxu0 0.0
      %4251 = vmatprep.subr.mxu0 0.0
      %4252 = vmatpush1.msra.mxu0 0.0
      %4253 = vmatprep.subr.mxu0 0.0
      %4254 = vmatpush1.msra.mxu0 0.0
      %4255 = vmatprep.subr.mxu0 0.0
      %4256 = vmatpush1.msra.mxu0 0.0
      %4257 = vmatprep.subr.mxu0 0.0
      %4258 = vmatpush1.msra.mxu0 0.0
      %4259 = vmatprep.subr.mxu0 0.0
      %4260 = vmatpush1.msra.mxu0 0.0
      %4261 = vmatprep.subr.mxu0 0.0
      %4262 = vmatpush1.msra.mxu0 0.0
      %4263 = vmatprep.subr.mxu0 0.0
      %4264 = vmatpush1.msra.mxu0 0.0
      %4265 = vmatprep.subr.mxu0 0.0
      %4266 = vmatpush1.msra.mxu0 0.0
      %4267 = vmatprep.subr.mxu0 0.0
      %4268 = vmatpush1.msra.mxu0 0.0
      %4269 = vmatprep.subr.mxu0 0.0
      %4270 = vmatpush1.msra.mxu0 0.0
      %4271 = vmatprep.subr.mxu0 0.0
      %4272 = vmatpush1.msra.mxu0 0.0
      %4273 = vmatprep.subr.mxu0 0.0
      %4274 = vmatpush1.msra.mxu0 0.0
      %4275 = vmatprep.subr.mxu0 0.0
      %4276 = vmatpush1.msra.mxu0 0.0
      %4277 = vmatprep.subr.mxu0 0.0
      %4278 = vmatpush1.msra.mxu0 0.0
      %4279 = vmatprep.subr.mxu0 0.0
      %4280 = vmatpush1.msra.mxu0 0.0
      %4281 = vmatprep.subr.mxu0 0.0
      %4282 = vmatpush1.msra.mxu0 0.0
      %4283 = vmatprep.subr.mxu0 0.0
      %4284 = vmatpush1.msra.mxu0 0.0
      %4285 = vmatprep.subr.mxu0 0.0
      %4286 = vmatpush1.msra.mxu0 0.0
      %4287 = vmatprep.subr.mxu0 0.0
      %4288 = vmatpush1.msra.mxu0 0.0
      %4289 = vmatprep.subr.mxu0 0.0
      %4290 = vmatpush1.msra.mxu0 0.0
      %4291 = vmatprep.subr.mxu0 0.0
      %4292 = vmatpush1.msra.mxu0 0.0
      %4293 = vmatprep.subr.mxu0 0.0
      %4294 = vmatpush1.msra.mxu0 0.0
      %4295 = vmatprep.subr.mxu0 0.0
      %4296 = vmatpush1.msra.mxu0 0.0
      %4297 = vmatprep.subr.mxu0 0.0
      %4298 = vmatpush1.msra.mxu0 0.0
      %4299 = vmatprep.subr.mxu0 0.0
      %4300 = vmatpush1.msra.mxu0 0.0
      %4301 = vmatprep.mubr.f32.mxu0 0.0
      %4302 = vmatmul.mubr.f32.gmra.mrb[0].mxu0 %v4232
      %v4303 = vpop.f32.mrb[0].mxu0
      %v4304 = vadd.f32 %v4229, %v4303
      %v4305 = vpop.f32.mrb[0].mxu0
      %4306 = vmatprep.mubr.f32.mxu0 0.0
      %4307 = vmatmul.mubr.f32.gmra.mrb[0].mxu0 %v4235
      %v4308 = vpop.f32.mrb[0].mxu0
      %v4309 = vadd.f32 %v4229, %v4308
      %v4310 = vpop.f32.mrb[0].mxu0
      %4311 = vdwg.mxu0
      %v4312 = vadd.f32 %v4304, %v2764
      %v4313 = vadd.f32 %v4309, %v2765
      %s4314 = scalar_lea.vmem %s829, 1
      %v4315 = vld [vmem:[%s4314] sm:$0x1]
      %s4316 = scalar_lea.vmem %s833, 1
      %v4317 = vld [vmem:[%s4316] sm:$0x1]
      %v4318 = vsel %vm876, %v4312, 0.0
      %4319 = vadd.xlane.f32.xlu0 %v4318
      %v4320 = vpop.xlane.xlu0 %4319
      %v4321 = vsel %vm876, %v4313, 0.0
      %4322 = vadd.xlane.f32.xlu0 %v4321
      %v4323 = vpop.xlane.xlu0 %4322
      %v4324 = vmul.f32 %v4320, %v883
      %v4325 = vmul.f32 %v4323, %v883
      %v4326 = vsub.f32 %v4312, %v4324
      %v4327 = vsub.f32 %v4313, %v4325
      %v4328 = vmul.f32 %v4326, %v4326
      %v4329 = vmul.f32 %v4327, %v4327
      %v4330 = vsel %vm876, %v4328, 0.0
      %4331 = vadd.xlane.f32.xlu0 %v4330
      %v4332 = vpop.xlane.xlu0 %4331
      %v4333 = vsel %vm876, %v4329, 0.0
      %4334 = vadd.xlane.f32.xlu0 %v4333
      %v4335 = vpop.xlane.xlu0 %4334
      %v4336 = vmul.f32 %v4332, %v883
      %v4337 = vmul.f32 %v4335, %v883
      %v4338 = vadd.f32 %v4336, 1e-07
      %v4339 = vadd.f32 %v4337, 1e-07
      %v4340 = vrsqrt.pop %v4338
      %v4341 = vrsqrt.pop %v4339
      %v4342 = vmul.f32 %v4326, %v4340
      %v4343 = vmul.f32 %v4327, %v4341
      %v4345 = vlaneseq
      %v4346 = vshrl.u32 %v4345, 7
      %v4347 = vsub.s32 0, %v4346
      %v4348 = vrot.slane %v4315, %v4347
      %v4350 = vmul.f32 %v4342, %v4348
      %v4351 = vmul.f32 %v4343, %v4348
      %v4353 = vlaneseq
      %v4354 = vshrl.u32 %v4353, 7
      %v4355 = vsub.s32 0, %v4354
      %v4356 = vrot.slane %v4317, %v4355
      %v4358 = vadd.f32 %v4350, %v4356
      %v4359 = vadd.f32 %v4351, %v4356
      %s4360 = scalar_lea.vmem %s838, 32
      %v4361 = vld [vmem:[%s4360] sm:$0xff]
      %v4362 = vld [vmem:[%s4360 + $0x8] sm:$0xff]
      %v4363 = vld [vmem:[%s4360 + $0x10] sm:$0xff]
      %v4364 = vld [vmem:[%s4360 + $0x18] sm:$0xff]
      %s4365 = scalar_lea.vmem %s842, 1
      %v4366 = vld [vmem:[%s4365] sm:$0x1]
      %v4368 = vlaneseq
      %v4369 = vshrl.u32 %v4368, 7
      %v4370 = vsub.s32 0, %v4369
      %v4371 = vrot.slane %v4366, %v4370
      %v4374 = vsel %vm876, %v4358, 0
      %v4377 = vsel %vm876, %v4359, 0
      %4379 = vmatprep.subr.mxu0 0.0
      %4380 = vmatpush1.msra.mxu0 %v4361
      %4381 = vmatprep.subr.mxu0 0.0
      %4382 = vmatpush1.msra.mxu0 %v4362
      %4383 = vmatprep.subr.mxu0 0.0
      %4384 = vmatpush1.msra.mxu0 %v4363
      %4385 = vmatprep.subr.mxu0 0.0
      %4386 = vmatpush1.msra.mxu0 %v4364
      %4387 = vmatprep.subr.mxu0 0.0
      %4388 = vmatpush1.msra.mxu0 0.0
      %4389 = vmatprep.subr.mxu0 0.0
      %4390 = vmatpush1.msra.mxu0 0.0
      %4391 = vmatprep.subr.mxu0 0.0
      %4392 = vmatpush1.msra.mxu0 0.0
      %4393 = vmatprep.subr.mxu0 0.0
      %4394 = vmatpush1.msra.mxu0 0.0
      %4395 = vmatprep.subr.mxu0 0.0
      %4396 = vmatpush1.msra.mxu0 0.0
      %4397 = vmatprep.subr.mxu0 0.0
      %4398 = vmatpush1.msra.mxu0 0.0
      %4399 = vmatprep.subr.mxu0 0.0
      %4400 = vmatpush1.msra.mxu0 0.0
      %4401 = vmatprep.subr.mxu0 0.0
      %4402 = vmatpush1.msra.mxu0 0.0
      %4403 = vmatprep.subr.mxu0 0.0
      %4404 = vmatpush1.msra.mxu0 0.0
      %4405 = vmatprep.subr.mxu0 0.0
      %4406 = vmatpush1.msra.mxu0 0.0
      %4407 = vmatprep.subr.mxu0 0.0
      %4408 = vmatpush1.msra.mxu0 0.0
      %4409 = vmatprep.subr.mxu0 0.0
      %4410 = vmatpush1.msra.mxu0 0.0
      %4411 = vmatprep.subr.mxu0 0.0
      %4412 = vmatpush1.msra.mxu0 0.0
      %4413 = vmatprep.subr.mxu0 0.0
      %4414 = vmatpush1.msra.mxu0 0.0
      %4415 = vmatprep.subr.mxu0 0.0
      %4416 = vmatpush1.msra.mxu0 0.0
      %4417 = vmatprep.subr.mxu0 0.0
      %4418 = vmatpush1.msra.mxu0 0.0
      %4419 = vmatprep.subr.mxu0 0.0
      %4420 = vmatpush1.msra.mxu0 0.0
      %4421 = vmatprep.subr.mxu0 0.0
      %4422 = vmatpush1.msra.mxu0 0.0
      %4423 = vmatprep.subr.mxu0 0.0
      %4424 = vmatpush1.msra.mxu0 0.0
      %4425 = vmatprep.subr.mxu0 0.0
      %4426 = vmatpush1.msra.mxu0 0.0
      %4427 = vmatprep.subr.mxu0 0.0
      %4428 = vmatpush1.msra.mxu0 0.0
      %4429 = vmatprep.subr.mxu0 0.0
      %4430 = vmatpush1.msra.mxu0 0.0
      %4431 = vmatprep.subr.mxu0 0.0
      %4432 = vmatpush1.msra.mxu0 0.0
      %4433 = vmatprep.subr.mxu0 0.0
      %4434 = vmatpush1.msra.mxu0 0.0
      %4435 = vmatprep.subr.mxu0 0.0
      %4436 = vmatpush1.msra.mxu0 0.0
      %4437 = vmatprep.subr.mxu0 0.0
      %4438 = vmatpush1.msra.mxu0 0.0
      %4439 = vmatprep.subr.mxu0 0.0
      %4440 = vmatpush1.msra.mxu0 0.0
      %4441 = vmatprep.subr.mxu0 0.0
      %4442 = vmatpush1.msra.mxu0 0.0
      %4443 = vmatprep.mubr.f32.mxu0 0.0
      %4444 = vmatmul.mubr.f32.gmra.mrb[0].mxu0 %v4374
      %v4445 = vpop.f32.mrb[0].mxu0
      %v4446 = vadd.f32 %v4371, %v4445
      %v4447 = vpop.f32.mrb[0].mxu0
      %4448 = vmatprep.mubr.f32.mxu0 0.0
      %4449 = vmatmul.mubr.f32.gmra.mrb[0].mxu0 %v4377
      %v4450 = vpop.f32.mrb[0].mxu0
      %v4451 = vadd.f32 %v4371, %v4450
      %v4452 = vpop.f32.mrb[0].mxu0
      %4453 = vdwg.mxu0
      %v4454 = vmul.f32 %v4446, %v4446
      %v4455 = vmul.f32 %v4451, %v4451
      %v4456 = vmul.f32 %v4446, %v4454
      %v4457 = vmul.f32 %v4451, %v4455
      %v4458 = vmul.f32 %v4456, 0.044715
      %v4459 = vmul.f32 %v4457, 0.044715
      %v4460 = vadd.f32 %v4446, %v4458
      %v4461 = vadd.f32 %v4451, %v4459
      %v4462 = vmul.f32 %v4460, 0.7978846
      %v4463 = vmul.f32 %v4461, 0.7978846
      %v4464 = vtanh.pop %v4462
      %v4465 = vtanh.pop %v4463
      %v4466 = vadd.f32 %v4464, 1.0
      %v4467 = vadd.f32 %v4465, 1.0
      %v4468 = vmul.f32 %v4466, 0.5
      %v4469 = vmul.f32 %v4467, 0.5
      %v4470 = vmul.f32 %v4446, %v4468
      %v4471 = vmul.f32 %v4451, %v4469
      %s4472 = scalar_lea.vmem %s847, 64
      %v4473 = vld [vmem:[%s4472] sm:$0xff]
      %v4474 = vld [vmem:[%s4472 + $0x8] sm:$0xff]
      %v4475 = vld [vmem:[%s4472 + $0x10] sm:$0xff]
      %v4476 = vld [vmem:[%s4472 + $0x18] sm:$0xff]
      %v4477 = vld [vmem:[%s4472 + $0x20] sm:$0xff]
      %v4478 = vld [vmem:[%s4472 + $0x28] sm:$0xff]
      %v4479 = vld [vmem:[%s4472 + $0x30] sm:$0xff]
      %v4480 = vld [vmem:[%s4472 + $0x38] sm:$0xff]
      %s4481 = scalar_lea.vmem %s851, 1
      %v4482 = vld [vmem:[%s4481] sm:$0x1]
      %v4484 = vlaneseq
      %v4485 = vshrl.u32 %v4484, 7
      %v4486 = vsub.s32 0, %v4485
      %v4487 = vrot.slane %v4482, %v4486
      %v4490 = vsel %vm2638, %v4470, 0
      %v4493 = vsel %vm2638, %v4471, 0
      %4495 = vmatprep.subr.mxu0 0.0
      %4496 = vmatpush1.msra.mxu0 %v4473
      %4497 = vmatprep.subr.mxu0 0.0
      %4498 = vmatpush1.msra.mxu0 %v4474
      %4499 = vmatprep.subr.mxu0 0.0
      %4500 = vmatpush1.msra.mxu0 %v4475
      %4501 = vmatprep.subr.mxu0 0.0
      %4502 = vmatpush1.msra.mxu0 %v4476
      %4503 = vmatprep.subr.mxu0 0.0
      %4504 = vmatpush1.msra.mxu0 %v4477
      %4505 = vmatprep.subr.mxu0 0.0
      %4506 = vmatpush1.msra.mxu0 %v4478
      %4507 = vmatprep.subr.mxu0 0.0
      %4508 = vmatpush1.msra.mxu0 %v4479
      %4509 = vmatprep.subr.mxu0 0.0
      %4510 = vmatpush1.msra.mxu0 %v4480
      %4511 = vmatprep.subr.mxu0 0.0
      %4512 = vmatpush1.msra.mxu0 0.0
      %4513 = vmatprep.subr.mxu0 0.0
      %4514 = vmatpush1.msra.mxu0 0.0
      %4515 = vmatprep.subr.mxu0 0.0
      %4516 = vmatpush1.msra.mxu0 0.0
      %4517 = vmatprep.subr.mxu0 0.0
      %4518 = vmatpush1.msra.mxu0 0.0
      %4519 = vmatprep.subr.mxu0 0.0
      %4520 = vmatpush1.msra.mxu0 0.0
      %4521 = vmatprep.subr.mxu0 0.0
      %4522 = vmatpush1.msra.mxu0 0.0
      %4523 = vmatprep.subr.mxu0 0.0
      %4524 = vmatpush1.msra.mxu0 0.0
      %4525 = vmatprep.subr.mxu0 0.0
      %4526 = vmatpush1.msra.mxu0 0.0
      %4527 = vmatprep.subr.mxu0 0.0
      %4528 = vmatpush1.msra.mxu0 0.0
      %4529 = vmatprep.subr.mxu0 0.0
      %4530 = vmatpush1.msra.mxu0 0.0
      %4531 = vmatprep.subr.mxu0 0.0
      %4532 = vmatpush1.msra.mxu0 0.0
      %4533 = vmatprep.subr.mxu0 0.0
      %4534 = vmatpush1.msra.mxu0 0.0
      %4535 = vmatprep.subr.mxu0 0.0
      %4536 = vmatpush1.msra.mxu0 0.0
      %4537 = vmatprep.subr.mxu0 0.0
      %4538 = vmatpush1.msra.mxu0 0.0
      %4539 = vmatprep.subr.mxu0 0.0
      %4540 = vmatpush1.msra.mxu0 0.0
      %4541 = vmatprep.subr.mxu0 0.0
      %4542 = vmatpush1.msra.mxu0 0.0
      %4543 = vmatprep.subr.mxu0 0.0
      %4544 = vmatpush1.msra.mxu0 0.0
      %4545 = vmatprep.subr.mxu0 0.0
      %4546 = vmatpush1.msra.mxu0 0.0
      %4547 = vmatprep.subr.mxu0 0.0
      %4548 = vmatpush1.msra.mxu0 0.0
      %4549 = vmatprep.subr.mxu0 0.0
      %4550 = vmatpush1.msra.mxu0 0.0
      %4551 = vmatprep.subr.mxu0 0.0
      %4552 = vmatpush1.msra.mxu0 0.0
      %4553 = vmatprep.subr.mxu0 0.0
      %4554 = vmatpush1.msra.mxu0 0.0
      %4555 = vmatprep.subr.mxu0 0.0
      %4556 = vmatpush1.msra.mxu0 0.0
      %4557 = vmatprep.subr.mxu0 0.0
      %4558 = vmatpush1.msra.mxu0 0.0
      %4559 = vmatprep.mubr.f32.mxu0 0.0
      %4560 = vmatmul.mubr.f32.gmra.mrb[0].mxu0 %v4490
      %v4561 = vpop.f32.mrb[0].mxu0
      %v4562 = vadd.f32 %v4487, %v4561
      %v4563 = vpop.f32.mrb[0].mxu0
      %4564 = vmatprep.mubr.f32.mxu0 0.0
      %4565 = vmatmul.mubr.f32.gmra.mrb[0].mxu0 %v4493
      %v4566 = vpop.f32.mrb[0].mxu0
      %v4567 = vadd.f32 %v4487, %v4566
      %v4568 = vpop.f32.mrb[0].mxu0
      %4569 = vdwg.mxu0
      %v4570 = vadd.f32 %v4562, %v4358
      %v4571 = vadd.f32 %v4567, %v4359
      %s4572 = scalar_lea.vmem %s855, 1
      %v4573 = vld [vmem:[%s4572] sm:$0x1]
      %s4574 = scalar_lea.vmem %s859, 1
      %v4575 = vld [vmem:[%s4574] sm:$0x1]
      %v4576 = vsel %vm876, %v4570, 0.0
      %4577 = vadd.xlane.f32.xlu0 %v4576
      %v4578 = vpop.xlane.xlu0 %4577
      %v4579 = vsel %vm876, %v4571, 0.0
      %4580 = vadd.xlane.f32.xlu0 %v4579
      %v4581 = vpop.xlane.xlu0 %4580
      %v4582 = vmul.f32 %v4578, %v883
      %v4583 = vmul.f32 %v4581, %v883
      %v4584 = vsub.f32 %v4570, %v4582
      %v4585 = vsub.f32 %v4571, %v4583
      %v4586 = vmul.f32 %v4584, %v4584
      %v4587 = vmul.f32 %v4585, %v4585
      %v4588 = vsel %vm876, %v4586, 0.0
      %4589 = vadd.xlane.f32.xlu0 %v4588
      %v4590 = vpop.xlane.xlu0 %4589
      %v4591 = vsel %vm876, %v4587, 0.0
      %4592 = vadd.xlane.f32.xlu0 %v4591
      %v4593 = vpop.xlane.xlu0 %4592
      %v4594 = vmul.f32 %v4590, %v883
      %v4595 = vmul.f32 %v4593, %v883
      %v4596 = vadd.f32 %v4594, 1e-07
      %v4597 = vadd.f32 %v4595, 1e-07
      %v4598 = vrsqrt.pop %v4596
      %v4599 = vrsqrt.pop %v4597
      %v4600 = vmul.f32 %v4584, %v4598
      %v4601 = vmul.f32 %v4585, %v4599
      %v4603 = vlaneseq
      %v4604 = vshrl.u32 %v4603, 7
      %v4605 = vsub.s32 0, %v4604
      %v4606 = vrot.slane %v4573, %v4605
      %v4608 = vmul.f32 %v4600, %v4606
      %v4609 = vmul.f32 %v4601, %v4606
      %v4611 = vlaneseq
      %v4612 = vshrl.u32 %v4611, 7
      %v4613 = vsub.s32 0, %v4612
      %v4614 = vrot.slane %v4575, %v4613
      %v4616 = vadd.f32 %v4608, %v4614
      %v4617 = vadd.f32 %v4609, %v4614
      %v4618 = vld [vmem:[%s864] sm:$0xff]
      %v4619 = vld [vmem:[%s864 + $0x8] sm:$0xff]
      %v4620 = vld [vmem:[%s864 + $0x10] sm:$0xff]
      %v4621 = vld [vmem:[%s864 + $0x18] sm:$0xff]
      %v4622 = vld [vmem:[%s867] sm:$0x1]
      %v4624 = vlaneseq
      %v4625 = vshrl.u32 %v4624, 7
      %v4626 = vsub.s32 0, %v4625
      %v4627 = vrot.slane %v4622, %v4626
      %v4631 = vrot.slane %v4617, 7
      %vm4632 = vcmask 1041409
      %v4633 = vsel %vm4632, %v4631, %v4616
      %v4634 = vsel %vm876, %v4633, 0
      %4636 = vmatprep.subr.mxu0 0.0
      %4637 = vmatpush1.msra.mxu0 %v4618
      %4638 = vmatprep.subr.mxu0 0.0
      %4639 = vmatpush1.msra.mxu0 %v4619
      %4640 = vmatprep.subr.mxu0 0.0
      %4641 = vmatpush1.msra.mxu0 %v4620
      %4642 = vmatprep.subr.mxu0 0.0
      %4643 = vmatpush1.msra.mxu0 %v4621
      %4644 = vmatprep.subr.mxu0 0.0
      %4645 = vmatpush1.msra.mxu0 0.0
      %4646 = vmatprep.subr.mxu0 0.0
      %4647 = vmatpush1.msra.mxu0 0.0
      %4648 = vmatprep.subr.mxu0 0.0
      %4649 = vmatpush1.msra.mxu0 0.0
      %4650 = vmatprep.subr.mxu0 0.0
      %4651 = vmatpush1.msra.mxu0 0.0
      %4652 = vmatprep.subr.mxu0 0.0
      %4653 = vmatpush1.msra.mxu0 0.0
      %4654 = vmatprep.subr.mxu0 0.0
      %4655 = vmatpush1.msra.mxu0 0.0
      %4656 = vmatprep.subr.mxu0 0.0
      %4657 = vmatpush1.msra.mxu0 0.0
      %4658 = vmatprep.subr.mxu0 0.0
      %4659 = vmatpush1.msra.mxu0 0.0
      %4660 = vmatprep.subr.mxu0 0.0
      %4661 = vmatpush1.msra.mxu0 0.0
      %4662 = vmatprep.subr.mxu0 0.0
      %4663 = vmatpush1.msra.mxu0 0.0
      %4664 = vmatprep.subr.mxu0 0.0
      %4665 = vmatpush1.msra.mxu0 0.0
      %4666 = vmatprep.subr.mxu0 0.0
      %4667 = vmatpush1.msra.mxu0 0.0
      %4668 = vmatprep.subr.mxu0 0.0
      %4669 = vmatpush1.msra.mxu0 0.0
      %4670 = vmatprep.subr.mxu0 0.0
      %4671 = vmatpush1.msra.mxu0 0.0
      %4672 = vmatprep.subr.mxu0 0.0
      %4673 = vmatpush1.msra.mxu0 0.0
      %4674 = vmatprep.subr.mxu0 0.0
      %4675 = vmatpush1.msra.mxu0 0.0
      %4676 = vmatprep.subr.mxu0 0.0
      %4677 = vmatpush1.msra.mxu0 0.0
      %4678 = vmatprep.subr.mxu0 0.0
      %4679 = vmatpush1.msra.mxu0 0.0
      %4680 = vmatprep.subr.mxu0 0.0
      %4681 = vmatpush1.msra.mxu0 0.0
      %4682 = vmatprep.subr.mxu0 0.0
      %4683 = vmatpush1.msra.mxu0 0.0
      %4684 = vmatprep.subr.mxu0 0.0
      %4685 = vmatpush1.msra.mxu0 0.0
      %4686 = vmatprep.subr.mxu0 0.0
      %4687 = vmatpush1.msra.mxu0 0.0
      %4688 = vmatprep.subr.mxu0 0.0
      %4689 = vmatpush1.msra.mxu0 0.0
      %4690 = vmatprep.subr.mxu0 0.0
      %4691 = vmatpush1.msra.mxu0 0.0
      %4692 = vmatprep.subr.mxu0 0.0
      %4693 = vmatpush1.msra.mxu0 0.0
      %4694 = vmatprep.subr.mxu0 0.0
      %4695 = vmatpush1.msra.mxu0 0.0
      %4696 = vmatprep.subr.mxu0 0.0
      %4697 = vmatpush1.msra.mxu0 0.0
      %4698 = vmatprep.subr.mxu0 0.0
      %4699 = vmatpush1.msra.mxu0 0.0
      %4700 = vmatprep.mubr.f32.mxu0 0.0
      %4701 = vmatmul.mubr.f32.gmra.mrb[0].mxu0 %v4634
      %v4702 = vpop.f32.mrb[0].mxu0
      %v4703 = vadd.f32 %v4627, %v4702
      %v4704 = vpop.f32.mrb[0].mxu0
      %4705 = vdwg.mxu0
      %v4706 = vmul.f32 %v4703, %v4703
      %v4707 = vmul.f32 %v4703, %v4706
      %v4708 = vmul.f32 %v4707, 0.044715
      %v4709 = vadd.f32 %v4703, %v4708
      %v4710 = vmul.f32 %v4709, 0.7978846
      %v4711 = vtanh.pop %v4710
      %v4712 = vadd.f32 %v4711, 1.0
      %v4713 = vmul.f32 %v4712, 0.5
      %v4714 = vmul.f32 %v4703, %v4713
      %vm4715 = vcmask 254976
      %4716 = vst.msk [vmem:[%s871] sm:$0x3] %vm4715, %v4714
      %p4717 = scmp.lt.s32.totalorder %s29, 1
      %s4718 = scalar_select %p4717, %s29, 1
      %s4719 = smul.addr %s4718, 2
      %s4720 = scalar_lea.vmem %s18, %s4719
      // Predicated region
      $region93: #{game_rules_encoder.2} parent=91 // pred_check
        %p4721 = pneg %p515
      $region94: #{game_rules_encoder.2} parent=91 // pred_check_branch
        %4723 = sbr.rel (%p4721) target = $region96
      $region95: #{game_rules_encoder.2} parent=91 // pred_region
        _
      $region96: #{game_rules_encoder.2} parent=91 // pred_fallthru
        _
    $region92: #{game_rules_encoder.2} parent=5 // pred_fallthru
      _
    %p4724 = scmp.le.s32.totalorder 2, %s24
    // Predicated region
    $region97: #{game_rules_encoder.2} parent=5 // pred_check
      %p4725 = pneg %p4724
    $region98: #{game_rules_encoder.2} parent=5 // pred_check_branch
      %4727 = sbr.rel (%p4725) target = $region100
    $region99: #{game_rules_encoder.2} parent=5 // pred_region
      %s4728 = ssub.s32 %s24, 2
      // Predicated region
      $region101: #{game_rules_encoder.2} parent=99 // pred_check
        %p4729 = pneg %p521
      $region102: #{game_rules_encoder.2} parent=99 // pred_check_branch
        %4731 = sbr.rel (%p4729) target = $region104
      $region103: #{game_rules_encoder.2} parent=99 // pred_region
        %p4732 = scmp.lt.s32.totalorder %s30, 1
        %s4733 = scalar_select %p4732, %s30, 1
        %s4734 = smul.addr %s4733, 2
        %s4735 = scalar_lea.vmem %s18, %s4734
      $region104: #{game_rules_encoder.2} parent=99 // pred_fallthru
        _
    $region100: #{game_rules_encoder.2} parent=5 // pred_fallthru
      _
  $region6: #{game_rules_encoder.2} parent=0 // loop_footer
    %s28 = sadd.s32 1, %s24
  $region7: #{game_rules_encoder.2} parent=0 // loop_footer_branch
    %23 = sbr.rel target = $region3
  $region8: #{game_rules_encoder.2} parent=0 // loop_exit
    _

</llo_original>
